<compile_context>
chip_gen: v7x
topology: tpu7x:2x2x1
jax: 0.10.0
libtpu: 0.0.40
codegen_flags: <defaults>
</compile_context>

<pallas_src>
import functools

import jax
import jax.numpy as jnp
from jax import lax
from jax.experimental import pallas as pl
from jax.experimental.pallas import tpu as pltpu


# Tap tables for a 3x3 conv (pad=1) evaluated on a 2x bilinear-upsampled image,
# decomposed by output row/col parity.  For output parity p and tap d in
# {0,1,2}, the tap reads subpixel phase _TAP[p][d][0] at 1x offset _TAP[p][d][1].
_TAP = (((1, -1), (0, 0), (1, 0)),   # even output rows / cols
        ((0, 0), (1, 0), (0, 1)))    # odd  output rows / cols


# --------------------------------------------------------------------------
# Fused Pallas kernel: upsample x2 -> conv3x3+ReLU -> conv3x3+ReLU (in VMEM)
# --------------------------------------------------------------------------
def _decoder_kernel(x_ref, w1_ref, b1_ref, w2_ref, b2_ref,
                    umask_ref, cmask_ref, out_ref, *, H, W, pitch):
    """One image per grid step.

    x_ref    : (1, Cin, L)   edge-replicated 1x input; rows of width `pitch`
                             (= W+2) flattened on the lane axis, L=(H+2)*pitch.
    w*_ref   : (9, Cout, Cin) bf16 tap-major weight matrices.
    b*_ref   : (Cout, 1) f32 biases.
    umask_ref: (1, L)  1.0 on interior (real) pixels of a padded 1x slab.
    cmask_ref: (1, Mo) 1.0 on lanes whose column index is < W.
    out_ref  : (1, 4, Cout, Mo) the 4 subpixel output phase slabs, Mo=H*pitch.
    """
    f32 = jnp.float32
    bf16 = jnp.bfloat16
    L = (H + 2) * pitch       # padded 1x slab length
    Mo = H * pitch            # flat conv-output length (2 garbage cols per row)
    cin = x_ref.shape[1]
    cmid = w1_ref.shape[1]

    x = x_ref[0]                                           # (cin, L) f32
    umask = umask_ref[...]                                 # (1, L)
    cmask = cmask_ref[...]                                 # (1, Mo)

    # ---- bilinear x2 upsample: four subpixel phase slabs, all in VMEM -----
    # Vertical phases (even/odd output rows) via +-pitch lane shifts; the
    # edge-replicated border of x reproduces PyTorch's source-index clamp.
    zrow = jnp.zeros((cin, pitch), f32)
    xz = jnp.concatenate([zrow, x, zrow], axis=1)
    x_up = xz[:, 0:L]                                      # x[m - pitch]
    x_dn = xz[:, 2 * pitch:2 * pitch + L]                  # x[m + pitch]
    v0 = 0.25 * x_up + 0.75 * x                            # even output rows
    v1 = 0.75 * x + 0.25 * x_dn                            # odd output rows

    ztail = jnp.zeros((cin, pitch), bf16)

    def h_phases(v):
        # Horizontal phases via +-1 lane shifts; then zero the pad border so
        # the slab doubles as conv1's zero-padded input, and add a slack row.
        zc = jnp.zeros((cin, 1), f32)
        vz = jnp.concatenate([zc, v, zc], axis=1)
        vl = vz[:, 0:L]                                    # v[m - 1]
        vr = vz[:, 2:2 + L]                                # v[m + 1]
        u_even = (0.25 * vl + 0.75 * v) * umask
        u_odd = (0.75 * v + 0.25 * vr) * umask
        u_even = jnp.concatenate([u_even.astype(bf16), ztail], axis=1)
        u_odd = jnp.concatenate([u_odd.astype(bf16), ztail], axis=1)
        return u_even, u_odd                               # (cin, (H+3)*pitch)

    u_slabs = (h_phases(v0), h_phases(v1))                 # [row_phase][col_phase]

    def conv3x3(slabs, w_ref, b_ref, p, q):
        # 3x3 conv for output phase (p, q): 9 accumulating K=C_in MXU matmuls
        # (bf16 operands, f32 accumulation), each RHS a lane-shifted tap slice.
        acc = None
        for dy in range(3):
            rp, roff = _TAP[p][dy]
            for dx in range(3):
                cp, coff = _TAP[q][dx]
                base = (1 + roff) * pitch + (1 + coff)
                rhs = slabs[rp][cp][:, base:base + Mo]
                t = jnp.dot(w_ref[dy * 3 + dx], rhs,
                            preferred_element_type=jnp.float32)
                acc = t if acc is None else acc + t
        return jnp.maximum(acc + b_ref[...], 0.0)          # bias + ReLU (f32)

    # ---- conv1 + ReLU: mid-activation phase slabs stay in VMEM ------------
    zlead = jnp.zeros((cmid, pitch + 1), bf16)
    ztail_m = jnp.zeros((cmid, 2 * pitch - 1), bf16)
    m_rows = []
    for p in range(2):
        row = []
        for q in range(2):
            h = conv3x3(u_slabs, w1_ref, b1_ref, p, q)      # (cmid, Mo) f32
            h = (h * cmask).astype(bf16)                    # zero garbage cols
            # Rebuild the zero-padded slab for conv2 with a lane concat.
            row.append(jnp.concatenate([zlead, h, ztail_m], axis=1))
        m_rows.append(tuple(row))
    m_slabs = tuple(m_rows)

    # ---- conv2 + ReLU: write the 4 output phase slabs ---------------------
    for p in range(2):
        for q in range(2):
            o = conv3x3(m_slabs, w2_ref, b2_ref, p, q)      # (cout, Mo) f32
            out_ref[0, 2 * p + q] = o.astype(out_ref.dtype)


# --------------------------------------------------------------------------
# Wrapper
# --------------------------------------------------------------------------
def _round_up(v, m):
    return (v + m - 1) // m * m


def decoder_module_forward(x_nchw, params):
    """DecoderModule (upsample=True): (N,Cin,H,W) f32 -> (N,Cout,2H,2W) f32."""
    N, Cin, H, W = x_nchw.shape
    Cmid, Cout = params["w1"].shape[0], params["w2"].shape[0]
    cin_p, cmid_p, cout_p = (_round_up(c, 8) for c in (Cin, Cmid, Cout))

    pitch = W + 2                    # flat-row lane pitch (1x padded width)
    L = (H + 2) * pitch              # edge-padded 1x slab length
    Mo = H * pitch                   # flat conv-output length per phase

    # Edge-replicate by 1 pixel (reproduces the align_corners=False clamp),
    # zero-pad channels to a sublane multiple, flatten rows onto lanes (free
    # reshape).  This is the only pre-pass and it only touches the 1x input.
    xe = jnp.pad(x_nchw, ((0, 0), (0, 0), (1, 1), (1, 1)), mode="edge")
    xe = jnp.pad(xe, ((0, 0), (0, cin_p - Cin), (0, 0), (0, 0)))
    x_flat = xe.reshape(N, cin_p, L)

    # Tap-major bf16 weight matrices (9, C_out, C_in) with zero-padded channels.
    def prep_w(w, co_p, ci_p):
        co, ci = w.shape[0], w.shape[1]
        wt = jnp.transpose(w, (2, 3, 0, 1)).reshape(9, co, ci)
        wt = jnp.pad(wt, ((0, 0), (0, co_p - co), (0, ci_p - ci)))
        return wt.astype(jnp.bfloat16)

    w1m = prep_w(params["w1"], cmid_p, cin_p)
    w2m = prep_w(params["w2"], cout_p, cmid_p)
    b1 = jnp.pad(params["b1"], (0, cmid_p - Cmid)).reshape(cmid_p, 1).astype(jnp.float32)
    b2 = jnp.pad(params["b2"], (0, cout_p - Cout)).reshape(cout_p, 1).astype(jnp.float32)

    # Tiny resident masks (no per-step iota/mod on the VPU).
    k = jnp.arange(L, dtype=jnp.int32)
    r, c = k // pitch, k % pitch
    umask = (((r >= 1) & (r <= H) & (c >= 1) & (c <= W))
             .astype(jnp.float32).reshape(1, L))
    cmask = ((jnp.arange(Mo, dtype=jnp.int32) % pitch) < W
             ).astype(jnp.float32).reshape(1, Mo)

    kernel = functools.partial(_decoder_kernel, H=H, W=W, pitch=pitch)

    out = pl.pallas_call(
        kernel,
        out_shape=jax.ShapeDtypeStruct((N, 4, cout_p, Mo), jnp.float32),
        grid_spec=pltpu.PrefetchScalarGridSpec(
            num_scalar_prefetch=0,
            grid=(N,),
            # TODO(synk): at real decoder resolutions add a second "parallel"
            # grid axis over output-row bands (1-row input halo in the
            # index_map) so the pipeliner gets DMA/compute overlap and v7x's
            # second TensorCore stays busy when N is small or odd.
            in_specs=[
                pl.BlockSpec((1, cin_p, L), lambda n: (n, 0, 0)),
                pl.BlockSpec((9, cmid_p, cin_p), lambda n: (0, 0, 0)),
                pl.BlockSpec((cmid_p, 1), lambda n: (0, 0)),
                pl.BlockSpec((9, cout_p, cmid_p), lambda n: (0, 0, 0)),
                pl.BlockSpec((cout_p, 1), lambda n: (0, 0)),
                pl.BlockSpec((1, L), lambda n: (0, 0)),
                pl.BlockSpec((1, Mo), lambda n: (0, 0)),
            ],
            out_specs=pl.BlockSpec((1, 4, cout_p, Mo), lambda n: (n, 0, 0, 0)),
        ),
        compiler_params=pltpu.CompilerParams(
            dimension_semantics=("parallel",),
            vmem_limit_bytes=64 * 1024 * 1024),
    )(x_flat, w1m, b1, w2m, b2, umask, cmask)

    # Phase -> pixel interleave: a single XLA slice+transpose fusion over the
    # output (channel/column pads are dropped in the same pass).
    # TODO(synk): fuse this relayout into the downstream consumer.
    out = out.reshape(N, 2, 2, cout_p, H, pitch)[:, :, :, :Cout, :, :W]
    out = out.transpose(0, 3, 4, 1, 5, 2).reshape(N, Cout, 2 * H, 2 * W)
    return out


# --------------------------------------------------------------------------
# Pure-JAX reference (self-check) and param init
# --------------------------------------------------------------------------
def _bilinear_idx_weights(in_size):
    out = jnp.arange(2 * in_size, dtype=jnp.float32)
    src = (out + 0.5) / 2.0 - 0.5
    src = jnp.maximum(src, 0.0)                  # PyTorch clamps negative coords
    i0 = jnp.minimum(jnp.floor(src).astype(jnp.int32), in_size - 1)
    i1 = jnp.minimum(i0 + 1, in_size - 1)
    w = src - i0.astype(jnp.float32)
    return i0, i1, w


def bilinear_upsample_2x_nchw(x):
    """(N, C, H, W) -> (N, C, 2H, 2W), bilinear, align_corners=False."""
    y0, y1, wy = _bilinear_idx_weights(x.shape[2])
    x0, x1, wx = _bilinear_idx_weights(x.shape[3])
    rows = (x[:, :, y0, :] * (1.0 - wy)[None, None, :, None]
            + x[:, :, y1, :] * wy[None, None, :, None])
    return rows[:, :, :, x0] * (1.0 - wx) + rows[:, :, :, x1] * wx


def decoder_module_reference(x_nchw, params):
    up = bilinear_upsample_2x_nchw(x_nchw)
    dn = ("NCHW", "OIHW", "NCHW")
    h = lax.conv_general_dilated(up, params["w1"], (1, 1), ((1, 1), (1, 1)),
                                 dimension_numbers=dn)
    h = jnp.maximum(h + params["b1"][None, :, None, None], 0.0)
    o = lax.conv_general_dilated(h, params["w2"], (1, 1), ((1, 1), (1, 1)),
                                 dimension_numbers=dn)
    return jnp.maximum(o + params["b2"][None, :, None, None], 0.0)


def init_params(key, in_channels, mid_channels, out_channels):
    k1, k2, k3, k4 = jax.random.split(key, 4)
    s1 = 1.0 / (in_channels * 9) ** 0.5
    s2 = 1.0 / (mid_channels * 9) ** 0.5
    return {
        "w1": jax.random.normal(k1, (mid_channels, in_channels, 3, 3),
                                jnp.float32) * s1,
        "b1": jax.random.normal(k2, (mid_channels,), jnp.float32) * 0.01,
        "w2": jax.random.normal(k3, (out_channels, mid_channels, 3, 3),
                                jnp.float32) * s2,
        "b2": jax.random.normal(k4, (out_channels,), jnp.float32) * 0.01,
    }


if __name__ == "__main__":
    key = jax.random.PRNGKey(0)
    kx, kp = jax.random.split(key)

    N, Cin, H, W = 2, 4, 16, 16
    mid_channels, out_channels = 8, 4

    x = jax.random.normal(kx, (N, Cin, H, W), jnp.float32)
    params = init_params(kp, Cin, mid_channels, out_channels)

    y = jax.jit(decoder_module_forward)(x, params)
    y = jax.block_until_ready(y)

    assert y.shape == (N, out_channels, 2 * H, 2 * W), y.shape
    assert bool(jnp.all(y >= 0.0))            # ReLU output
    assert bool(jnp.all(jnp.isfinite(y)))

    y_ref = decoder_module_reference(x, params)
    max_err = float(jnp.max(jnp.abs(y - y_ref)))
    # bf16 MXU operands with f32 accumulation: small, bounded mismatch vs f32.
    assert max_err < 5e-2, max_err

    print("KERNEL_OK")
</pallas_src>

<mosaic_0001>
module attributes {stable_mosaic.version = 11 : i64} {
  func.func @_decoder_kernel(%arg0: i32, %arg1: memref<1x8x324xf32, #tpu.memory_space<vmem>>, %arg2: memref<9x8x8xbf16, #tpu.memory_space<vmem>>, %arg3: memref<8x1xf32, #tpu.memory_space<vmem>>, %arg4: memref<9x8x8xbf16, #tpu.memory_space<vmem>>, %arg5: memref<8x1xf32, #tpu.memory_space<vmem>>, %arg6: memref<1x324xf32, #tpu.memory_space<vmem>>, %arg7: memref<1x288xf32, #tpu.memory_space<vmem>>, %arg8: memref<1x4x8x288xf32, #tpu.memory_space<vmem>>) attributes {dimension_semantics = [#tpu.dimension_semantics<parallel>], iteration_bounds = array<i64: 2>, scalar_prefetch = 0 : i64, scratch_operands = 0 : i64, tpu.core_type = #tpu.core_type<tc>, window_params = [{transform_indices = @transform_0, window_bounds = array<i64: 1, 8, 324>}, {pipeline_mode = #tpu.pipeline_mode<synchronous>, transform_indices = @transform_1, window_bounds = array<i64: 9, 8, 8>}, {pipeline_mode = #tpu.pipeline_mode<synchronous>, transform_indices = @transform_2, window_bounds = array<i64: 8, 1>}, {pipeline_mode = #tpu.pipeline_mode<synchronous>, transform_indices = @transform_3, window_bounds = array<i64: 9, 8, 8>}, {pipeline_mode = #tpu.pipeline_mode<synchronous>, transform_indices = @transform_4, window_bounds = array<i64: 8, 1>}, {pipeline_mode = #tpu.pipeline_mode<synchronous>, transform_indices = @transform_5, window_bounds = array<i64: 1, 324>}, {pipeline_mode = #tpu.pipeline_mode<synchronous>, transform_indices = @transform_6, window_bounds = array<i64: 1, 288>}, {transform_indices = @transform_7, window_bounds = array<i64: 1, 4, 8, 288>}]} {
    %c0 = arith.constant 0 : index
    %c0_0 = arith.constant 0 : index
    %c0_1 = arith.constant 0 : index
    %0 = vector.load %arg1[%c0, %c0_0, %c0_1] : memref<1x8x324xf32, #tpu.memory_space<vmem>>, vector<1x8x324xf32>
    %1 = vector.shape_cast %0 : vector<1x8x324xf32> to vector<8x324xf32>
    %c0_2 = arith.constant 0 : index
    %c0_3 = arith.constant 0 : index
    %2 = vector.load %arg6[%c0_2, %c0_3] : memref<1x324xf32, #tpu.memory_space<vmem>>, vector<1x324xf32>
    %c0_4 = arith.constant 0 : index
    %c0_5 = arith.constant 0 : index
    %3 = vector.load %arg7[%c0_4, %c0_5] : memref<1x288xf32, #tpu.memory_space<vmem>>, vector<1x288xf32>
    %cst = arith.constant 0.000000e+00 : f32
    %4 = vector.broadcast %cst : f32 to vector<8x18xf32>
    %5 = tpu.concatenate %4, %1, %4 in 1 : vector<8x18xf32>, vector<8x324xf32>, vector<8x18xf32> -> vector<8x360xf32>
    %6 = vector.extract_strided_slice %5 {offsets = [0, 0], sizes = [8, 324], strides = [1, 1]} : vector<8x360xf32> to vector<8x324xf32>
    %7 = vector.extract_strided_slice %5 {offsets = [0, 36], sizes = [8, 324], strides = [1, 1]} : vector<8x360xf32> to vector<8x324xf32>
    %cst_6 = arith.constant 2.500000e-01 : f32
    %8 = vector.broadcast %cst_6 : f32 to vector<8x324xf32>
    %9 = arith.mulf %8, %6 : vector<8x324xf32>
    %cst_7 = arith.constant 7.500000e-01 : f32
    %10 = vector.broadcast %cst_7 : f32 to vector<8x324xf32>
    %11 = arith.mulf %10, %1 : vector<8x324xf32>
    %12 = arith.addf %9, %11 : vector<8x324xf32>
    %cst_8 = arith.constant 7.500000e-01 : f32
    %13 = vector.broadcast %cst_8 : f32 to vector<8x324xf32>
    %14 = arith.mulf %13, %1 : vector<8x324xf32>
    %cst_9 = arith.constant 2.500000e-01 : f32
    %15 = vector.broadcast %cst_9 : f32 to vector<8x324xf32>
    %16 = arith.mulf %15, %7 : vector<8x324xf32>
    %17 = arith.addf %14, %16 : vector<8x324xf32>
    %cst_10 = arith.constant 0.000000e+00 : bf16
    %18 = vector.broadcast %cst_10 : bf16 to vector<8x18xbf16>
    %cst_11 = arith.constant 0.000000e+00 : f32
    %19 = vector.broadcast %cst_11 : f32 to vector<8x1xf32>
    %20 = tpu.concatenate %19, %12, %19 in 1 : vector<8x1xf32>, vector<8x324xf32>, vector<8x1xf32> -> vector<8x326xf32>
    %21 = vector.extract_strided_slice %20 {offsets = [0, 0], sizes = [8, 324], strides = [1, 1]} : vector<8x326xf32> to vector<8x324xf32>
    %22 = vector.extract_strided_slice %20 {offsets = [0, 2], sizes = [8, 324], strides = [1, 1]} : vector<8x326xf32> to vector<8x324xf32>
    %cst_12 = arith.constant 2.500000e-01 : f32
    %23 = vector.broadcast %cst_12 : f32 to vector<8x324xf32>
    %24 = arith.mulf %23, %21 : vector<8x324xf32>
    %cst_13 = arith.constant 7.500000e-01 : f32
    %25 = vector.broadcast %cst_13 : f32 to vector<8x324xf32>
    %26 = arith.mulf %25, %12 : vector<8x324xf32>
    %27 = arith.addf %24, %26 : vector<8x324xf32>
    %28 = vector.broadcast %2 : vector<1x324xf32> to vector<8x324xf32>
    %29 = arith.mulf %27, %28 : vector<8x324xf32>
    %cst_14 = arith.constant 7.500000e-01 : f32
    %30 = vector.broadcast %cst_14 : f32 to vector<8x324xf32>
    %31 = arith.mulf %30, %12 : vector<8x324xf32>
    %cst_15 = arith.constant 2.500000e-01 : f32
    %32 = vector.broadcast %cst_15 : f32 to vector<8x324xf32>
    %33 = arith.mulf %32, %22 : vector<8x324xf32>
    %34 = arith.addf %31, %33 : vector<8x324xf32>
    %35 = vector.broadcast %2 : vector<1x324xf32> to vector<8x324xf32>
    %36 = arith.mulf %34, %35 : vector<8x324xf32>
    %37 = arith.truncf %29 : vector<8x324xf32> to vector<8x324xbf16>
    %38 = tpu.concatenate %37, %18 in 1 : vector<8x324xbf16>, vector<8x18xbf16> -> vector<8x342xbf16>
    %39 = arith.truncf %36 : vector<8x324xf32> to vector<8x324xbf16>
    %40 = tpu.concatenate %39, %18 in 1 : vector<8x324xbf16>, vector<8x18xbf16> -> vector<8x342xbf16>
    %cst_16 = arith.constant 0.000000e+00 : f32
    %41 = vector.broadcast %cst_16 : f32 to vector<8x1xf32>
    %42 = tpu.concatenate %41, %17, %41 in 1 : vector<8x1xf32>, vector<8x324xf32>, vector<8x1xf32> -> vector<8x326xf32>
    %43 = vector.extract_strided_slice %42 {offsets = [0, 0], sizes = [8, 324], strides = [1, 1]} : vector<8x326xf32> to vector<8x324xf32>
    %44 = vector.extract_strided_slice %42 {offsets = [0, 2], sizes = [8, 324], strides = [1, 1]} : vector<8x326xf32> to vector<8x324xf32>
    %cst_17 = arith.constant 2.500000e-01 : f32
    %45 = vector.broadcast %cst_17 : f32 to vector<8x324xf32>
    %46 = arith.mulf %45, %43 : vector<8x324xf32>
    %cst_18 = arith.constant 7.500000e-01 : f32
    %47 = vector.broadcast %cst_18 : f32 to vector<8x324xf32>
    %48 = arith.mulf %47, %17 : vector<8x324xf32>
    %49 = arith.addf %46, %48 : vector<8x324xf32>
    %50 = vector.broadcast %2 : vector<1x324xf32> to vector<8x324xf32>
    %51 = arith.mulf %49, %50 : vector<8x324xf32>
    %cst_19 = arith.constant 7.500000e-01 : f32
    %52 = vector.broadcast %cst_19 : f32 to vector<8x324xf32>
    %53 = arith.mulf %52, %17 : vector<8x324xf32>
    %cst_20 = arith.constant 2.500000e-01 : f32
    %54 = vector.broadcast %cst_20 : f32 to vector<8x324xf32>
    %55 = arith.mulf %54, %44 : vector<8x324xf32>
    %56 = arith.addf %53, %55 : vector<8x324xf32>
    %57 = vector.broadcast %2 : vector<1x324xf32> to vector<8x324xf32>
    %58 = arith.mulf %56, %57 : vector<8x324xf32>
    %59 = arith.truncf %51 : vector<8x324xf32> to vector<8x324xbf16>
    %60 = tpu.concatenate %59, %18 in 1 : vector<8x324xbf16>, vector<8x18xbf16> -> vector<8x342xbf16>
    %61 = arith.truncf %58 : vector<8x324xf32> to vector<8x324xbf16>
    %62 = tpu.concatenate %61, %18 in 1 : vector<8x324xbf16>, vector<8x18xbf16> -> vector<8x342xbf16>
    %cst_21 = arith.constant 0.000000e+00 : bf16
    %63 = vector.broadcast %cst_21 : bf16 to vector<8x19xbf16>
    %cst_22 = arith.constant 0.000000e+00 : bf16
    %64 = vector.broadcast %cst_22 : bf16 to vector<8x35xbf16>
    %65 = vector.extract_strided_slice %62 {offsets = [0, 0], sizes = [8, 288], strides = [1, 1]} : vector<8x342xbf16> to vector<8x288xbf16>
    %c0_23 = arith.constant 0 : index
    %c0_24 = arith.constant 0 : index
    %c0_25 = arith.constant 0 : index
    %66 = vector.load %arg2[%c0_23, %c0_24, %c0_25] : memref<9x8x8xbf16, #tpu.memory_space<vmem>>, vector<1x8x8xbf16>
    %67 = vector.shape_cast %66 : vector<1x8x8xbf16> to vector<8x8xbf16>
    %cst_26 = arith.constant dense<0.000000e+00> : vector<8x288xf32>
    %68 = tpu.matmul %67, %65, %cst_26 {dimension_numbers = #tpu.dot_dimension_numbers<[1], [0], [0], [1], [0, 0, 1, 1], [], []>} : vector<8x8xbf16>, vector<8x288xbf16>, vector<8x288xf32> -> vector<8x288xf32>
    %69 = vector.extract_strided_slice %60 {offsets = [0, 1], sizes = [8, 288], strides = [1, 1]} : vector<8x342xbf16> to vector<8x288xbf16>
    %c1 = arith.constant 1 : index
    %c0_27 = arith.constant 0 : index
    %c0_28 = arith.constant 0 : index
    %70 = vector.load %arg2[%c1, %c0_27, %c0_28] : memref<9x8x8xbf16, #tpu.memory_space<vmem>>, vector<1x8x8xbf16>
    %71 = vector.shape_cast %70 : vector<1x8x8xbf16> to vector<8x8xbf16>
    %cst_29 = arith.constant dense<0.000000e+00> : vector<8x288xf32>
    %72 = tpu.matmul %71, %69, %cst_29 {dimension_numbers = #tpu.dot_dimension_numbers<[1], [0], [0], [1], [0, 0, 1, 1], [], []>} : vector<8x8xbf16>, vector<8x288xbf16>, vector<8x288xf32> -> vector<8x288xf32>
    %73 = arith.addf %68, %72 : vector<8x288xf32>
    %74 = vector.extract_strided_slice %62 {offsets = [0, 1], sizes = [8, 288], strides = [1, 1]} : vector<8x342xbf16> to vector<8x288xbf16>
    %c2 = arith.constant 2 : index
    %c0_30 = arith.constant 0 : index
    %c0_31 = arith.constant 0 : index
    %75 = vector.load %arg2[%c2, %c0_30, %c0_31] : memref<9x8x8xbf16, #tpu.memory_space<vmem>>, vector<1x8x8xbf16>
    %76 = vector.shape_cast %75 : vector<1x8x8xbf16> to vector<8x8xbf16>
    %cst_32 = arith.constant dense<0.000000e+00> : vector<8x288xf32>
    %77 = tpu.matmul %76, %74, %cst_32 {dimension_numbers = #tpu.dot_dimension_numbers<[1], [0], [0], [1], [0, 0, 1, 1], [], []>} : vector<8x8xbf16>, vector<8x288xbf16>, vector<8x288xf32> -> vector<8x288xf32>
    %78 = arith.addf %73, %77 : vector<8x288xf32>
    %79 = vector.extract_strided_slice %40 {offsets = [0, 18], sizes = [8, 288], strides = [1, 1]} : vector<8x342xbf16> to vector<8x288xbf16>
    %c3 = arith.constant 3 : index
    %c0_33 = arith.constant 0 : index
    %c0_34 = arith.constant 0 : index
    %80 = vector.load %arg2[%c3, %c0_33, %c0_34] : memref<9x8x8xbf16, #tpu.memory_space<vmem>>, vector<1x8x8xbf16>
    %81 = vector.shape_cast %80 : vector<1x8x8xbf16> to vector<8x8xbf16>
    %cst_35 = arith.constant dense<0.000000e+00> : vector<8x288xf32>
    %82 = tpu.matmul %81, %79, %cst_35 {dimension_numbers = #tpu.dot_dimension_numbers<[1], [0], [0], [1], [0, 0, 1, 1], [], []>} : vector<8x8xbf16>, vector<8x288xbf16>, vector<8x288xf32> -> vector<8x288xf32>
    %83 = arith.addf %78, %82 : vector<8x288xf32>
    %84 = vector.extract_strided_slice %38 {offsets = [0, 19], sizes = [8, 288], strides = [1, 1]} : vector<8x342xbf16> to vector<8x288xbf16>
    %c4 = arith.constant 4 : index
    %c0_36 = arith.constant 0 : index
    %c0_37 = arith.constant 0 : index
    %85 = vector.load %arg2[%c4, %c0_36, %c0_37] : memref<9x8x8xbf16, #tpu.memory_space<vmem>>, vector<1x8x8xbf16>
    %86 = vector.shape_cast %85 : vector<1x8x8xbf16> to vector<8x8xbf16>
    %cst_38 = arith.constant dense<0.000000e+00> : vector<8x288xf32>
    %87 = tpu.matmul %86, %84, %cst_38 {dimension_numbers = #tpu.dot_dimension_numbers<[1], [0], [0], [1], [0, 0, 1, 1], [], []>} : vector<8x8xbf16>, vector<8x288xbf16>, vector<8x288xf32> -> vector<8x288xf32>
    %88 = arith.addf %83, %87 : vector<8x288xf32>
    %89 = vector.extract_strided_slice %40 {offsets = [0, 19], sizes = [8, 288], strides = [1, 1]} : vector<8x342xbf16> to vector<8x288xbf16>
    %c5 = arith.constant 5 : index
    %c0_39 = arith.constant 0 : index
    %c0_40 = arith.constant 0 : index
    %90 = vector.load %arg2[%c5, %c0_39, %c0_40] : memref<9x8x8xbf16, #tpu.memory_space<vmem>>, vector<1x8x8xbf16>
    %91 = vector.shape_cast %90 : vector<1x8x8xbf16> to vector<8x8xbf16>
    %cst_41 = arith.constant dense<0.000000e+00> : vector<8x288xf32>
    %92 = tpu.matmul %91, %89, %cst_41 {dimension_numbers = #tpu.dot_dimension_numbers<[1], [0], [0], [1], [0, 0, 1, 1], [], []>} : vector<8x8xbf16>, vector<8x288xbf16>, vector<8x288xf32> -> vector<8x288xf32>
    %93 = arith.addf %88, %92 : vector<8x288xf32>
    %94 = vector.extract_strided_slice %62 {offsets = [0, 18], sizes = [8, 288], strides = [1, 1]} : vector<8x342xbf16> to vector<8x288xbf16>
    %c6 = arith.constant 6 : index
    %c0_42 = arith.constant 0 : index
    %c0_43 = arith.constant 0 : index
    %95 = vector.load %arg2[%c6, %c0_42, %c0_43] : memref<9x8x8xbf16, #tpu.memory_space<vmem>>, vector<1x8x8xbf16>
    %96 = vector.shape_cast %95 : vector<1x8x8xbf16> to vector<8x8xbf16>
    %cst_44 = arith.constant dense<0.000000e+00> : vector<8x288xf32>
    %97 = tpu.matmul %96, %94, %cst_44 {dimension_numbers = #tpu.dot_dimension_numbers<[1], [0], [0], [1], [0, 0, 1, 1], [], []>} : vector<8x8xbf16>, vector<8x288xbf16>, vector<8x288xf32> -> vector<8x288xf32>
    %98 = arith.addf %93, %97 : vector<8x288xf32>
    %99 = vector.extract_strided_slice %60 {offsets = [0, 19], sizes = [8, 288], strides = [1, 1]} : vector<8x342xbf16> to vector<8x288xbf16>
    %c7 = arith.constant 7 : index
    %c0_45 = arith.constant 0 : index
    %c0_46 = arith.constant 0 : index
    %100 = vector.load %arg2[%c7, %c0_45, %c0_46] : memref<9x8x8xbf16, #tpu.memory_space<vmem>>, vector<1x8x8xbf16>
    %101 = vector.shape_cast %100 : vector<1x8x8xbf16> to vector<8x8xbf16>
    %cst_47 = arith.constant dense<0.000000e+00> : vector<8x288xf32>
    %102 = tpu.matmul %101, %99, %cst_47 {dimension_numbers = #tpu.dot_dimension_numbers<[1], [0], [0], [1], [0, 0, 1, 1], [], []>} : vector<8x8xbf16>, vector<8x288xbf16>, vector<8x288xf32> -> vector<8x288xf32>
    %103 = arith.addf %98, %102 : vector<8x288xf32>
    %104 = vector.extract_strided_slice %62 {offsets = [0, 19], sizes = [8, 288], strides = [1, 1]} : vector<8x342xbf16> to vector<8x288xbf16>
    %c8 = arith.constant 8 : index
    %c0_48 = arith.constant 0 : index
    %c0_49 = arith.constant 0 : index
    %105 = vector.load %arg2[%c8, %c0_48, %c0_49] : memref<9x8x8xbf16, #tpu.memory_space<vmem>>, vector<1x8x8xbf16>
    %106 = vector.shape_cast %105 : vector<1x8x8xbf16> to vector<8x8xbf16>
    %cst_50 = arith.constant dense<0.000000e+00> : vector<8x288xf32>
    %107 = tpu.matmul %106, %104, %cst_50 {dimension_numbers = #tpu.dot_dimension_numbers<[1], [0], [0], [1], [0, 0, 1, 1], [], []>} : vector<8x8xbf16>, vector<8x288xbf16>, vector<8x288xf32> -> vector<8x288xf32>
    %108 = arith.addf %103, %107 : vector<8x288xf32>
    %c0_51 = arith.constant 0 : index
    %c0_52 = arith.constant 0 : index
    %109 = vector.load %arg3[%c0_51, %c0_52] : memref<8x1xf32, #tpu.memory_space<vmem>>, vector<8x1xf32>
    %110 = vector.broadcast %109 : vector<8x1xf32> to vector<8x288xf32>
    %111 = arith.addf %108, %110 : vector<8x288xf32>
    %cst_53 = arith.constant 0.000000e+00 : f32
    %112 = vector.broadcast %cst_53 : f32 to vector<8x288xf32>
    %113 = arith.maximumf %111, %112 : vector<8x288xf32>
    %114 = vector.broadcast %3 : vector<1x288xf32> to vector<8x288xf32>
    %115 = arith.mulf %113, %114 : vector<8x288xf32>
    %116 = arith.truncf %115 : vector<8x288xf32> to vector<8x288xbf16>
    %117 = tpu.concatenate %63, %116, %64 in 1 : vector<8x19xbf16>, vector<8x288xbf16>, vector<8x35xbf16> -> vector<8x342xbf16>
    %118 = vector.extract_strided_slice %60 {offsets = [0, 1], sizes = [8, 288], strides = [1, 1]} : vector<8x342xbf16> to vector<8x288xbf16>
    %c0_54 = arith.constant 0 : index
    %c0_55 = arith.constant 0 : index
    %c0_56 = arith.constant 0 : index
    %119 = vector.load %arg2[%c0_54, %c0_55, %c0_56] : memref<9x8x8xbf16, #tpu.memory_space<vmem>>, vector<1x8x8xbf16>
    %120 = vector.shape_cast %119 : vector<1x8x8xbf16> to vector<8x8xbf16>
    %cst_57 = arith.constant dense<0.000000e+00> : vector<8x288xf32>
    %121 = tpu.matmul %120, %118, %cst_57 {dimension_numbers = #tpu.dot_dimension_numbers<[1], [0], [0], [1], [0, 0, 1, 1], [], []>} : vector<8x8xbf16>, vector<8x288xbf16>, vector<8x288xf32> -> vector<8x288xf32>
    %122 = vector.extract_strided_slice %62 {offsets = [0, 1], sizes = [8, 288], strides = [1, 1]} : vector<8x342xbf16> to vector<8x288xbf16>
    %c1_58 = arith.constant 1 : index
    %c0_59 = arith.constant 0 : index
    %c0_60 = arith.constant 0 : index
    %123 = vector.load %arg2[%c1_58, %c0_59, %c0_60] : memref<9x8x8xbf16, #tpu.memory_space<vmem>>, vector<1x8x8xbf16>
    %124 = vector.shape_cast %123 : vector<1x8x8xbf16> to vector<8x8xbf16>
    %cst_61 = arith.constant dense<0.000000e+00> : vector<8x288xf32>
    %125 = tpu.matmul %124, %122, %cst_61 {dimension_numbers = #tpu.dot_dimension_numbers<[1], [0], [0], [1], [0, 0, 1, 1], [], []>} : vector<8x8xbf16>, vector<8x288xbf16>, vector<8x288xf32> -> vector<8x288xf32>
    %126 = arith.addf %121, %125 : vector<8x288xf32>
    %127 = vector.extract_strided_slice %60 {offsets = [0, 2], sizes = [8, 288], strides = [1, 1]} : vector<8x342xbf16> to vector<8x288xbf16>
    %c2_62 = arith.constant 2 : index
    %c0_63 = arith.constant 0 : index
    %c0_64 = arith.constant 0 : index
    %128 = vector.load %arg2[%c2_62, %c0_63, %c0_64] : memref<9x8x8xbf16, #tpu.memory_space<vmem>>, vector<1x8x8xbf16>
    %129 = vector.shape_cast %128 : vector<1x8x8xbf16> to vector<8x8xbf16>
    %cst_65 = arith.constant dense<0.000000e+00> : vector<8x288xf32>
    %130 = tpu.matmul %129, %127, %cst_65 {dimension_numbers = #tpu.dot_dimension_numbers<[1], [0], [0], [1], [0, 0, 1, 1], [], []>} : vector<8x8xbf16>, vector<8x288xbf16>, vector<8x288xf32> -> vector<8x288xf32>
    %131 = arith.addf %126, %130 : vector<8x288xf32>
    %132 = vector.extract_strided_slice %38 {offsets = [0, 19], sizes = [8, 288], strides = [1, 1]} : vector<8x342xbf16> to vector<8x288xbf16>
    %c3_66 = arith.constant 3 : index
    %c0_67 = arith.constant 0 : index
    %c0_68 = arith.constant 0 : index
    %133 = vector.load %arg2[%c3_66, %c0_67, %c0_68] : memref<9x8x8xbf16, #tpu.memory_space<vmem>>, vector<1x8x8xbf16>
    %134 = vector.shape_cast %133 : vector<1x8x8xbf16> to vector<8x8xbf16>
    %cst_69 = arith.constant dense<0.000000e+00> : vector<8x288xf32>
    %135 = tpu.matmul %134, %132, %cst_69 {dimension_numbers = #tpu.dot_dimension_numbers<[1], [0], [0], [1], [0, 0, 1, 1], [], []>} : vector<8x8xbf16>, vector<8x288xbf16>, vector<8x288xf32> -> vector<8x288xf32>
    %136 = arith.addf %131, %135 : vector<8x288xf32>
    %137 = vector.extract_strided_slice %40 {offsets = [0, 19], sizes = [8, 288], strides = [1, 1]} : vector<8x342xbf16> to vector<8x288xbf16>
    %c4_70 = arith.constant 4 : index
    %c0_71 = arith.constant 0 : index
    %c0_72 = arith.constant 0 : index
    %138 = vector.load %arg2[%c4_70, %c0_71, %c0_72] : memref<9x8x8xbf16, #tpu.memory_space<vmem>>, vector<1x8x8xbf16>
    %139 = vector.shape_cast %138 : vector<1x8x8xbf16> to vector<8x8xbf16>
    %cst_73 = arith.constant dense<0.000000e+00> : vector<8x288xf32>
    %140 = tpu.matmul %139, %137, %cst_73 {dimension_numbers = #tpu.dot_dimension_numbers<[1], [0], [0], [1], [0, 0, 1, 1], [], []>} : vector<8x8xbf16>, vector<8x288xbf16>, vector<8x288xf32> -> vector<8x288xf32>
    %141 = arith.addf %136, %140 : vector<8x288xf32>
    %142 = vector.extract_strided_slice %38 {offsets = [0, 20], sizes = [8, 288], strides = [1, 1]} : vector<8x342xbf16> to vector<8x288xbf16>
    %c5_74 = arith.constant 5 : index
    %c0_75 = arith.constant 0 : index
    %c0_76 = arith.constant 0 : index
    %143 = vector.load %arg2[%c5_74, %c0_75, %c0_76] : memref<9x8x8xbf16, #tpu.memory_space<vmem>>, vector<1x8x8xbf16>
    %144 = vector.shape_cast %143 : vector<1x8x8xbf16> to vector<8x8xbf16>
    %cst_77 = arith.constant dense<0.000000e+00> : vector<8x288xf32>
    %145 = tpu.matmul %144, %142, %cst_77 {dimension_numbers = #tpu.dot_dimension_numbers<[1], [0], [0], [1], [0, 0, 1, 1], [], []>} : vector<8x8xbf16>, vector<8x288xbf16>, vector<8x288xf32> -> vector<8x288xf32>
    %146 = arith.addf %141, %145 : vector<8x288xf32>
    %147 = vector.extract_strided_slice %60 {offsets = [0, 19], sizes = [8, 288], strides = [1, 1]} : vector<8x342xbf16> to vector<8x288xbf16>
    %c6_78 = arith.constant 6 : index
    %c0_79 = arith.constant 0 : index
    %c0_80 = arith.constant 0 : index
    %148 = vector.load %arg2[%c6_78, %c0_79, %c0_80] : memref<9x8x8xbf16, #tpu.memory_space<vmem>>, vector<1x8x8xbf16>
    %149 = vector.shape_cast %148 : vector<1x8x8xbf16> to vector<8x8xbf16>
    %cst_81 = arith.constant dense<0.000000e+00> : vector<8x288xf32>
    %150 = tpu.matmul %149, %147, %cst_81 {dimension_numbers = #tpu.dot_dimension_numbers<[1], [0], [0], [1], [0, 0, 1, 1], [], []>} : vector<8x8xbf16>, vector<8x288xbf16>, vector<8x288xf32> -> vector<8x288xf32>
    %151 = arith.addf %146, %150 : vector<8x288xf32>
    %152 = vector.extract_strided_slice %62 {offsets = [0, 19], sizes = [8, 288], strides = [1, 1]} : vector<8x342xbf16> to vector<8x288xbf16>
    %c7_82 = arith.constant 7 : index
    %c0_83 = arith.constant 0 : index
    %c0_84 = arith.constant 0 : index
    %153 = vector.load %arg2[%c7_82, %c0_83, %c0_84] : memref<9x8x8xbf16, #tpu.memory_space<vmem>>, vector<1x8x8xbf16>
    %154 = vector.shape_cast %153 : vector<1x8x8xbf16> to vector<8x8xbf16>
    %cst_85 = arith.constant dense<0.000000e+00> : vector<8x288xf32>
    %155 = tpu.matmul %154, %152, %cst_85 {dimension_numbers = #tpu.dot_dimension_numbers<[1], [0], [0], [1], [0, 0, 1, 1], [], []>} : vector<8x8xbf16>, vector<8x288xbf16>, vector<8x288xf32> -> vector<8x288xf32>
    %156 = arith.addf %151, %155 : vector<8x288xf32>
    %157 = vector.extract_strided_slice %60 {offsets = [0, 20], sizes = [8, 288], strides = [1, 1]} : vector<8x342xbf16> to vector<8x288xbf16>
    %c8_86 = arith.constant 8 : index
    %c0_87 = arith.constant 0 : index
    %c0_88 = arith.constant 0 : index
    %158 = vector.load %arg2[%c8_86, %c0_87, %c0_88] : memref<9x8x8xbf16, #tpu.memory_space<vmem>>, vector<1x8x8xbf16>
    %159 = vector.shape_cast %158 : vector<1x8x8xbf16> to vector<8x8xbf16>
    %cst_89 = arith.constant dense<0.000000e+00> : vector<8x288xf32>
    %160 = tpu.matmul %159, %157, %cst_89 {dimension_numbers = #tpu.dot_dimension_numbers<[1], [0], [0], [1], [0, 0, 1, 1], [], []>} : vector<8x8xbf16>, vector<8x288xbf16>, vector<8x288xf32> -> vector<8x288xf32>
    %161 = arith.addf %156, %160 : vector<8x288xf32>
    %c0_90 = arith.constant 0 : index
    %c0_91 = arith.constant 0 : index
    %162 = vector.load %arg3[%c0_90, %c0_91] : memref<8x1xf32, #tpu.memory_space<vmem>>, vector<8x1xf32>
    %163 = vector.broadcast %162 : vector<8x1xf32> to vector<8x288xf32>
    %164 = arith.addf %161, %163 : vector<8x288xf32>
    %cst_92 = arith.constant 0.000000e+00 : f32
    %165 = vector.broadcast %cst_92 : f32 to vector<8x288xf32>
    %166 = arith.maximumf %164, %165 : vector<8x288xf32>
    %167 = vector.broadcast %3 : vector<1x288xf32> to vector<8x288xf32>
    %168 = arith.mulf %166, %167 : vector<8x288xf32>
    %169 = arith.truncf %168 : vector<8x288xf32> to vector<8x288xbf16>
    %170 = tpu.concatenate %63, %169, %64 in 1 : vector<8x19xbf16>, vector<8x288xbf16>, vector<8x35xbf16> -> vector<8x342xbf16>
    %171 = vector.extract_strided_slice %40 {offsets = [0, 18], sizes = [8, 288], strides = [1, 1]} : vector<8x342xbf16> to vector<8x288xbf16>
    %c0_93 = arith.constant 0 : index
    %c0_94 = arith.constant 0 : index
    %c0_95 = arith.constant 0 : index
    %172 = vector.load %arg2[%c0_93, %c0_94, %c0_95] : memref<9x8x8xbf16, #tpu.memory_space<vmem>>, vector<1x8x8xbf16>
    %173 = vector.shape_cast %172 : vector<1x8x8xbf16> to vector<8x8xbf16>
    %cst_96 = arith.constant dense<0.000000e+00> : vector<8x288xf32>
    %174 = tpu.matmul %173, %171, %cst_96 {dimension_numbers = #tpu.dot_dimension_numbers<[1], [0], [0], [1], [0, 0, 1, 1], [], []>} : vector<8x8xbf16>, vector<8x288xbf16>, vector<8x288xf32> -> vector<8x288xf32>
    %175 = vector.extract_strided_slice %38 {offsets = [0, 19], sizes = [8, 288], strides = [1, 1]} : vector<8x342xbf16> to vector<8x288xbf16>
    %c1_97 = arith.constant 1 : index
    %c0_98 = arith.constant 0 : index
    %c0_99 = arith.constant 0 : index
    %176 = vector.load %arg2[%c1_97, %c0_98, %c0_99] : memref<9x8x8xbf16, #tpu.memory_space<vmem>>, vector<1x8x8xbf16>
    %177 = vector.shape_cast %176 : vector<1x8x8xbf16> to vector<8x8xbf16>
    %cst_100 = arith.constant dense<0.000000e+00> : vector<8x288xf32>
    %178 = tpu.matmul %177, %175, %cst_100 {dimension_numbers = #tpu.dot_dimension_numbers<[1], [0], [0], [1], [0, 0, 1, 1], [], []>} : vector<8x8xbf16>, vector<8x288xbf16>, vector<8x288xf32> -> vector<8x288xf32>
    %179 = arith.addf %174, %178 : vector<8x288xf32>
    %180 = vector.extract_strided_slice %40 {offsets = [0, 19], sizes = [8, 288], strides = [1, 1]} : vector<8x342xbf16> to vector<8x288xbf16>
    %c2_101 = arith.constant 2 : index
    %c0_102 = arith.constant 0 : index
    %c0_103 = arith.constant 0 : index
    %181 = vector.load %arg2[%c2_101, %c0_102, %c0_103] : memref<9x8x8xbf16, #tpu.memory_space<vmem>>, vector<1x8x8xbf16>
    %182 = vector.shape_cast %181 : vector<1x8x8xbf16> to vector<8x8xbf16>
    %cst_104 = arith.constant dense<0.000000e+00> : vector<8x288xf32>
    %183 = tpu.matmul %182, %180, %cst_104 {dimension_numbers = #tpu.dot_dimension_numbers<[1], [0], [0], [1], [0, 0, 1, 1], [], []>} : vector<8x8xbf16>, vector<8x288xbf16>, vector<8x288xf32> -> vector<8x288xf32>
    %184 = arith.addf %179, %183 : vector<8x288xf32>
    %185 = vector.extract_strided_slice %62 {offsets = [0, 18], sizes = [8, 288], strides = [1, 1]} : vector<8x342xbf16> to vector<8x288xbf16>
    %c3_105 = arith.constant 3 : index
    %c0_106 = arith.constant 0 : index
    %c0_107 = arith.constant 0 : index
    %186 = vector.load %arg2[%c3_105, %c0_106, %c0_107] : memref<9x8x8xbf16, #tpu.memory_space<vmem>>, vector<1x8x8xbf16>
    %187 = vector.shape_cast %186 : vector<1x8x8xbf16> to vector<8x8xbf16>
    %cst_108 = arith.constant dense<0.000000e+00> : vector<8x288xf32>
    %188 = tpu.matmul %187, %185, %cst_108 {dimension_numbers = #tpu.dot_dimension_numbers<[1], [0], [0], [1], [0, 0, 1, 1], [], []>} : vector<8x8xbf16>, vector<8x288xbf16>, vector<8x288xf32> -> vector<8x288xf32>
    %189 = arith.addf %184, %188 : vector<8x288xf32>
    %190 = vector.extract_strided_slice %60 {offsets = [0, 19], sizes = [8, 288], strides = [1, 1]} : vector<8x342xbf16> to vector<8x288xbf16>
    %c4_109 = arith.constant 4 : index
    %c0_110 = arith.constant 0 : index
    %c0_111 = arith.constant 0 : index
    %191 = vector.load %arg2[%c4_109, %c0_110, %c0_111] : memref<9x8x8xbf16, #tpu.memory_space<vmem>>, vector<1x8x8xbf16>
    %192 = vector.shape_cast %191 : vector<1x8x8xbf16> to vector<8x8xbf16>
    %cst_112 = arith.constant dense<0.000000e+00> : vector<8x288xf32>
    %193 = tpu.matmul %192, %190, %cst_112 {dimension_numbers = #tpu.dot_dimension_numbers<[1], [0], [0], [1], [0, 0, 1, 1], [], []>} : vector<8x8xbf16>, vector<8x288xbf16>, vector<8x288xf32> -> vector<8x288xf32>
    %194 = arith.addf %189, %193 : vector<8x288xf32>
    %195 = vector.extract_strided_slice %62 {offsets = [0, 19], sizes = [8, 288], strides = [1, 1]} : vector<8x342xbf16> to vector<8x288xbf16>
    %c5_113 = arith.constant 5 : index
    %c0_114 = arith.constant 0 : index
    %c0_115 = arith.constant 0 : index
    %196 = vector.load %arg2[%c5_113, %c0_114, %c0_115] : memref<9x8x8xbf16, #tpu.memory_space<vmem>>, vector<1x8x8xbf16>
    %197 = vector.shape_cast %196 : vector<1x8x8xbf16> to vector<8x8xbf16>
    %cst_116 = arith.constant dense<0.000000e+00> : vector<8x288xf32>
    %198 = tpu.matmul %197, %195, %cst_116 {dimension_numbers = #tpu.dot_dimension_numbers<[1], [0], [0], [1], [0, 0, 1, 1], [], []>} : vector<8x8xbf16>, vector<8x288xbf16>, vector<8x288xf32> -> vector<8x288xf32>
    %199 = arith.addf %194, %198 : vector<8x288xf32>
    %200 = vector.extract_strided_slice %40 {offsets = [0, 36], sizes = [8, 288], strides = [1, 1]} : vector<8x342xbf16> to vector<8x288xbf16>
    %c6_117 = arith.constant 6 : index
    %c0_118 = arith.constant 0 : index
    %c0_119 = arith.constant 0 : index
    %201 = vector.load %arg2[%c6_117, %c0_118, %c0_119] : memref<9x8x8xbf16, #tpu.memory_space<vmem>>, vector<1x8x8xbf16>
    %202 = vector.shape_cast %201 : vector<1x8x8xbf16> to vector<8x8xbf16>
    %cst_120 = arith.constant dense<0.000000e+00> : vector<8x288xf32>
    %203 = tpu.matmul %202, %200, %cst_120 {dimension_numbers = #tpu.dot_dimension_numbers<[1], [0], [0], [1], [0, 0, 1, 1], [], []>} : vector<8x8xbf16>, vector<8x288xbf16>, vector<8x288xf32> -> vector<8x288xf32>
    %204 = arith.addf %199, %203 : vector<8x288xf32>
    %205 = vector.extract_strided_slice %38 {offsets = [0, 37], sizes = [8, 288], strides = [1, 1]} : vector<8x342xbf16> to vector<8x288xbf16>
    %c7_121 = arith.constant 7 : index
    %c0_122 = arith.constant 0 : index
    %c0_123 = arith.constant 0 : index
    %206 = vector.load %arg2[%c7_121, %c0_122, %c0_123] : memref<9x8x8xbf16, #tpu.memory_space<vmem>>, vector<1x8x8xbf16>
    %207 = vector.shape_cast %206 : vector<1x8x8xbf16> to vector<8x8xbf16>
    %cst_124 = arith.constant dense<0.000000e+00> : vector<8x288xf32>
    %208 = tpu.matmul %207, %205, %cst_124 {dimension_numbers = #tpu.dot_dimension_numbers<[1], [0], [0], [1], [0, 0, 1, 1], [], []>} : vector<8x8xbf16>, vector<8x288xbf16>, vector<8x288xf32> -> vector<8x288xf32>
    %209 = arith.addf %204, %208 : vector<8x288xf32>
    %210 = vector.extract_strided_slice %40 {offsets = [0, 37], sizes = [8, 288], strides = [1, 1]} : vector<8x342xbf16> to vector<8x288xbf16>
    %c8_125 = arith.constant 8 : index
    %c0_126 = arith.constant 0 : index
    %c0_127 = arith.constant 0 : index
    %211 = vector.load %arg2[%c8_125, %c0_126, %c0_127] : memref<9x8x8xbf16, #tpu.memory_space<vmem>>, vector<1x8x8xbf16>
    %212 = vector.shape_cast %211 : vector<1x8x8xbf16> to vector<8x8xbf16>
    %cst_128 = arith.constant dense<0.000000e+00> : vector<8x288xf32>
    %213 = tpu.matmul %212, %210, %cst_128 {dimension_numbers = #tpu.dot_dimension_numbers<[1], [0], [0], [1], [0, 0, 1, 1], [], []>} : vector<8x8xbf16>, vector<8x288xbf16>, vector<8x288xf32> -> vector<8x288xf32>
    %214 = arith.addf %209, %213 : vector<8x288xf32>
    %c0_129 = arith.constant 0 : index
    %c0_130 = arith.constant 0 : index
    %215 = vector.load %arg3[%c0_129, %c0_130] : memref<8x1xf32, #tpu.memory_space<vmem>>, vector<8x1xf32>
    %216 = vector.broadcast %215 : vector<8x1xf32> to vector<8x288xf32>
    %217 = arith.addf %214, %216 : vector<8x288xf32>
    %cst_131 = arith.constant 0.000000e+00 : f32
    %218 = vector.broadcast %cst_131 : f32 to vector<8x288xf32>
    %219 = arith.maximumf %217, %218 : vector<8x288xf32>
    %220 = vector.broadcast %3 : vector<1x288xf32> to vector<8x288xf32>
    %221 = arith.mulf %219, %220 : vector<8x288xf32>
    %222 = arith.truncf %221 : vector<8x288xf32> to vector<8x288xbf16>
    %223 = tpu.concatenate %63, %222, %64 in 1 : vector<8x19xbf16>, vector<8x288xbf16>, vector<8x35xbf16> -> vector<8x342xbf16>
    %224 = vector.extract_strided_slice %38 {offsets = [0, 19], sizes = [8, 288], strides = [1, 1]} : vector<8x342xbf16> to vector<8x288xbf16>
    %c0_132 = arith.constant 0 : index
    %c0_133 = arith.constant 0 : index
    %c0_134 = arith.constant 0 : index
    %225 = vector.load %arg2[%c0_132, %c0_133, %c0_134] : memref<9x8x8xbf16, #tpu.memory_space<vmem>>, vector<1x8x8xbf16>
    %226 = vector.shape_cast %225 : vector<1x8x8xbf16> to vector<8x8xbf16>
    %cst_135 = arith.constant dense<0.000000e+00> : vector<8x288xf32>
    %227 = tpu.matmul %226, %224, %cst_135 {dimension_numbers = #tpu.dot_dimension_numbers<[1], [0], [0], [1], [0, 0, 1, 1], [], []>} : vector<8x8xbf16>, vector<8x288xbf16>, vector<8x288xf32> -> vector<8x288xf32>
    %228 = vector.extract_strided_slice %40 {offsets = [0, 19], sizes = [8, 288], strides = [1, 1]} : vector<8x342xbf16> to vector<8x288xbf16>
    %c1_136 = arith.constant 1 : index
    %c0_137 = arith.constant 0 : index
    %c0_138 = arith.constant 0 : index
    %229 = vector.load %arg2[%c1_136, %c0_137, %c0_138] : memref<9x8x8xbf16, #tpu.memory_space<vmem>>, vector<1x8x8xbf16>
    %230 = vector.shape_cast %229 : vector<1x8x8xbf16> to vector<8x8xbf16>
    %cst_139 = arith.constant dense<0.000000e+00> : vector<8x288xf32>
    %231 = tpu.matmul %230, %228, %cst_139 {dimension_numbers = #tpu.dot_dimension_numbers<[1], [0], [0], [1], [0, 0, 1, 1], [], []>} : vector<8x8xbf16>, vector<8x288xbf16>, vector<8x288xf32> -> vector<8x288xf32>
    %232 = arith.addf %227, %231 : vector<8x288xf32>
    %233 = vector.extract_strided_slice %38 {offsets = [0, 20], sizes = [8, 288], strides = [1, 1]} : vector<8x342xbf16> to vector<8x288xbf16>
    %c2_140 = arith.constant 2 : index
    %c0_141 = arith.constant 0 : index
    %c0_142 = arith.constant 0 : index
    %234 = vector.load %arg2[%c2_140, %c0_141, %c0_142] : memref<9x8x8xbf16, #tpu.memory_space<vmem>>, vector<1x8x8xbf16>
    %235 = vector.shape_cast %234 : vector<1x8x8xbf16> to vector<8x8xbf16>
    %cst_143 = arith.constant dense<0.000000e+00> : vector<8x288xf32>
    %236 = tpu.matmul %235, %233, %cst_143 {dimension_numbers = #tpu.dot_dimension_numbers<[1], [0], [0], [1], [0, 0, 1, 1], [], []>} : vector<8x8xbf16>, vector<8x288xbf16>, vector<8x288xf32> -> vector<8x288xf32>
    %237 = arith.addf %232, %236 : vector<8x288xf32>
    %238 = vector.extract_strided_slice %60 {offsets = [0, 19], sizes = [8, 288], strides = [1, 1]} : vector<8x342xbf16> to vector<8x288xbf16>
    %c3_144 = arith.constant 3 : index
    %c0_145 = arith.constant 0 : index
    %c0_146 = arith.constant 0 : index
    %239 = vector.load %arg2[%c3_144, %c0_145, %c0_146] : memref<9x8x8xbf16, #tpu.memory_space<vmem>>, vector<1x8x8xbf16>
    %240 = vector.shape_cast %239 : vector<1x8x8xbf16> to vector<8x8xbf16>
    %cst_147 = arith.constant dense<0.000000e+00> : vector<8x288xf32>
    %241 = tpu.matmul %240, %238, %cst_147 {dimension_numbers = #tpu.dot_dimension_numbers<[1], [0], [0], [1], [0, 0, 1, 1], [], []>} : vector<8x8xbf16>, vector<8x288xbf16>, vector<8x288xf32> -> vector<8x288xf32>
    %242 = arith.addf %237, %241 : vector<8x288xf32>
    %243 = vector.extract_strided_slice %62 {offsets = [0, 19], sizes = [8, 288], strides = [1, 1]} : vector<8x342xbf16> to vector<8x288xbf16>
    %c4_148 = arith.constant 4 : index
    %c0_149 = arith.constant 0 : index
    %c0_150 = arith.constant 0 : index
    %244 = vector.load %arg2[%c4_148, %c0_149, %c0_150] : memref<9x8x8xbf16, #tpu.memory_space<vmem>>, vector<1x8x8xbf16>
    %245 = vector.shape_cast %244 : vector<1x8x8xbf16> to vector<8x8xbf16>
    %cst_151 = arith.constant dense<0.000000e+00> : vector<8x288xf32>
    %246 = tpu.matmul %245, %243, %cst_151 {dimension_numbers = #tpu.dot_dimension_numbers<[1], [0], [0], [1], [0, 0, 1, 1], [], []>} : vector<8x8xbf16>, vector<8x288xbf16>, vector<8x288xf32> -> vector<8x288xf32>
    %247 = arith.addf %242, %246 : vector<8x288xf32>
    %248 = vector.extract_strided_slice %60 {offsets = [0, 20], sizes = [8, 288], strides = [1, 1]} : vector<8x342xbf16> to vector<8x288xbf16>
    %c5_152 = arith.constant 5 : index
    %c0_153 = arith.constant 0 : index
    %c0_154 = arith.constant 0 : index
    %249 = vector.load %arg2[%c5_152, %c0_153, %c0_154] : memref<9x8x8xbf16, #tpu.memory_space<vmem>>, vector<1x8x8xbf16>
    %250 = vector.shape_cast %249 : vector<1x8x8xbf16> to vector<8x8xbf16>
    %cst_155 = arith.constant dense<0.000000e+00> : vector<8x288xf32>
    %251 = tpu.matmul %250, %248, %cst_155 {dimension_numbers = #tpu.dot_dimension_numbers<[1], [0], [0], [1], [0, 0, 1, 1], [], []>} : vector<8x8xbf16>, vector<8x288xbf16>, vector<8x288xf32> -> vector<8x288xf32>
    %252 = arith.addf %247, %251 : vector<8x288xf32>
    %253 = vector.extract_strided_slice %38 {offsets = [0, 37], sizes = [8, 288], strides = [1, 1]} : vector<8x342xbf16> to vector<8x288xbf16>
    %c6_156 = arith.constant 6 : index
    %c0_157 = arith.constant 0 : index
    %c0_158 = arith.constant 0 : index
    %254 = vector.load %arg2[%c6_156, %c0_157, %c0_158] : memref<9x8x8xbf16, #tpu.memory_space<vmem>>, vector<1x8x8xbf16>
    %255 = vector.shape_cast %254 : vector<1x8x8xbf16> to vector<8x8xbf16>
    %cst_159 = arith.constant dense<0.000000e+00> : vector<8x288xf32>
    %256 = tpu.matmul %255, %253, %cst_159 {dimension_numbers = #tpu.dot_dimension_numbers<[1], [0], [0], [1], [0, 0, 1, 1], [], []>} : vector<8x8xbf16>, vector<8x288xbf16>, vector<8x288xf32> -> vector<8x288xf32>
    %257 = arith.addf %252, %256 : vector<8x288xf32>
    %258 = vector.extract_strided_slice %40 {offsets = [0, 37], sizes = [8, 288], strides = [1, 1]} : vector<8x342xbf16> to vector<8x288xbf16>
    %c7_160 = arith.constant 7 : index
    %c0_161 = arith.constant 0 : index
    %c0_162 = arith.constant 0 : index
    %259 = vector.load %arg2[%c7_160, %c0_161, %c0_162] : memref<9x8x8xbf16, #tpu.memory_space<vmem>>, vector<1x8x8xbf16>
    %260 = vector.shape_cast %259 : vector<1x8x8xbf16> to vector<8x8xbf16>
    %cst_163 = arith.constant dense<0.000000e+00> : vector<8x288xf32>
    %261 = tpu.matmul %260, %258, %cst_163 {dimension_numbers = #tpu.dot_dimension_numbers<[1], [0], [0], [1], [0, 0, 1, 1], [], []>} : vector<8x8xbf16>, vector<8x288xbf16>, vector<8x288xf32> -> vector<8x288xf32>
    %262 = arith.addf %257, %261 : vector<8x288xf32>
    %263 = vector.extract_strided_slice %38 {offsets = [0, 38], sizes = [8, 288], strides = [1, 1]} : vector<8x342xbf16> to vector<8x288xbf16>
    %c8_164 = arith.constant 8 : index
    %c0_165 = arith.constant 0 : index
    %c0_166 = arith.constant 0 : index
    %264 = vector.load %arg2[%c8_164, %c0_165, %c0_166] : memref<9x8x8xbf16, #tpu.memory_space<vmem>>, vector<1x8x8xbf16>
    %265 = vector.shape_cast %264 : vector<1x8x8xbf16> to vector<8x8xbf16>
    %cst_167 = arith.constant dense<0.000000e+00> : vector<8x288xf32>
    %266 = tpu.matmul %265, %263, %cst_167 {dimension_numbers = #tpu.dot_dimension_numbers<[1], [0], [0], [1], [0, 0, 1, 1], [], []>} : vector<8x8xbf16>, vector<8x288xbf16>, vector<8x288xf32> -> vector<8x288xf32>
    %267 = arith.addf %262, %266 : vector<8x288xf32>
    %c0_168 = arith.constant 0 : index
    %c0_169 = arith.constant 0 : index
    %268 = vector.load %arg3[%c0_168, %c0_169] : memref<8x1xf32, #tpu.memory_space<vmem>>, vector<8x1xf32>
    %269 = vector.broadcast %268 : vector<8x1xf32> to vector<8x288xf32>
    %270 = arith.addf %267, %269 : vector<8x288xf32>
    %cst_170 = arith.constant 0.000000e+00 : f32
    %271 = vector.broadcast %cst_170 : f32 to vector<8x288xf32>
    %272 = arith.maximumf %270, %271 : vector<8x288xf32>
    %273 = vector.broadcast %3 : vector<1x288xf32> to vector<8x288xf32>
    %274 = arith.mulf %272, %273 : vector<8x288xf32>
    %275 = arith.truncf %274 : vector<8x288xf32> to vector<8x288xbf16>
    %276 = tpu.concatenate %63, %275, %64 in 1 : vector<8x19xbf16>, vector<8x288xbf16>, vector<8x35xbf16> -> vector<8x342xbf16>
    %277 = vector.extract_strided_slice %276 {offsets = [0, 0], sizes = [8, 288], strides = [1, 1]} : vector<8x342xbf16> to vector<8x288xbf16>
    %c0_171 = arith.constant 0 : index
    %c0_172 = arith.constant 0 : index
    %c0_173 = arith.constant 0 : index
    %278 = vector.load %arg4[%c0_171, %c0_172, %c0_173] : memref<9x8x8xbf16, #tpu.memory_space<vmem>>, vector<1x8x8xbf16>
    %279 = vector.shape_cast %278 : vector<1x8x8xbf16> to vector<8x8xbf16>
    %cst_174 = arith.constant dense<0.000000e+00> : vector<8x288xf32>
    %280 = tpu.matmul %279, %277, %cst_174 {dimension_numbers = #tpu.dot_dimension_numbers<[1], [0], [0], [1], [0, 0, 1, 1], [], []>} : vector<8x8xbf16>, vector<8x288xbf16>, vector<8x288xf32> -> vector<8x288xf32>
    %281 = vector.extract_strided_slice %223 {offsets = [0, 1], sizes = [8, 288], strides = [1, 1]} : vector<8x342xbf16> to vector<8x288xbf16>
    %c1_175 = arith.constant 1 : index
    %c0_176 = arith.constant 0 : index
    %c0_177 = arith.constant 0 : index
    %282 = vector.load %arg4[%c1_175, %c0_176, %c0_177] : memref<9x8x8xbf16, #tpu.memory_space<vmem>>, vector<1x8x8xbf16>
    %283 = vector.shape_cast %282 : vector<1x8x8xbf16> to vector<8x8xbf16>
    %cst_178 = arith.constant dense<0.000000e+00> : vector<8x288xf32>
    %284 = tpu.matmul %283, %281, %cst_178 {dimension_numbers = #tpu.dot_dimension_numbers<[1], [0], [0], [1], [0, 0, 1, 1], [], []>} : vector<8x8xbf16>, vector<8x288xbf16>, vector<8x288xf32> -> vector<8x288xf32>
    %285 = arith.addf %280, %284 : vector<8x288xf32>
    %286 = vector.extract_strided_slice %276 {offsets = [0, 1], sizes = [8, 288], strides = [1, 1]} : vector<8x342xbf16> to vector<8x288xbf16>
    %c2_179 = arith.constant 2 : index
    %c0_180 = arith.constant 0 : index
    %c0_181 = arith.constant 0 : index
    %287 = vector.load %arg4[%c2_179, %c0_180, %c0_181] : memref<9x8x8xbf16, #tpu.memory_space<vmem>>, vector<1x8x8xbf16>
    %288 = vector.shape_cast %287 : vector<1x8x8xbf16> to vector<8x8xbf16>
    %cst_182 = arith.constant dense<0.000000e+00> : vector<8x288xf32>
    %289 = tpu.matmul %288, %286, %cst_182 {dimension_numbers = #tpu.dot_dimension_numbers<[1], [0], [0], [1], [0, 0, 1, 1], [], []>} : vector<8x8xbf16>, vector<8x288xbf16>, vector<8x288xf32> -> vector<8x288xf32>
    %290 = arith.addf %285, %289 : vector<8x288xf32>
    %291 = vector.extract_strided_slice %170 {offsets = [0, 18], sizes = [8, 288], strides = [1, 1]} : vector<8x342xbf16> to vector<8x288xbf16>
    %c3_183 = arith.constant 3 : index
    %c0_184 = arith.constant 0 : index
    %c0_185 = arith.constant 0 : index
    %292 = vector.load %arg4[%c3_183, %c0_184, %c0_185] : memref<9x8x8xbf16, #tpu.memory_space<vmem>>, vector<1x8x8xbf16>
    %293 = vector.shape_cast %292 : vector<1x8x8xbf16> to vector<8x8xbf16>
    %cst_186 = arith.constant dense<0.000000e+00> : vector<8x288xf32>
    %294 = tpu.matmul %293, %291, %cst_186 {dimension_numbers = #tpu.dot_dimension_numbers<[1], [0], [0], [1], [0, 0, 1, 1], [], []>} : vector<8x8xbf16>, vector<8x288xbf16>, vector<8x288xf32> -> vector<8x288xf32>
    %295 = arith.addf %290, %294 : vector<8x288xf32>
    %296 = vector.extract_strided_slice %117 {offsets = [0, 19], sizes = [8, 288], strides = [1, 1]} : vector<8x342xbf16> to vector<8x288xbf16>
    %c4_187 = arith.constant 4 : index
    %c0_188 = arith.constant 0 : index
    %c0_189 = arith.constant 0 : index
    %297 = vector.load %arg4[%c4_187, %c0_188, %c0_189] : memref<9x8x8xbf16, #tpu.memory_space<vmem>>, vector<1x8x8xbf16>
    %298 = vector.shape_cast %297 : vector<1x8x8xbf16> to vector<8x8xbf16>
    %cst_190 = arith.constant dense<0.000000e+00> : vector<8x288xf32>
    %299 = tpu.matmul %298, %296, %cst_190 {dimension_numbers = #tpu.dot_dimension_numbers<[1], [0], [0], [1], [0, 0, 1, 1], [], []>} : vector<8x8xbf16>, vector<8x288xbf16>, vector<8x288xf32> -> vector<8x288xf32>
    %300 = arith.addf %295, %299 : vector<8x288xf32>
    %301 = vector.extract_strided_slice %170 {offsets = [0, 19], sizes = [8, 288], strides = [1, 1]} : vector<8x342xbf16> to vector<8x288xbf16>
    %c5_191 = arith.constant 5 : index
    %c0_192 = arith.constant 0 : index
    %c0_193 = arith.constant 0 : index
    %302 = vector.load %arg4[%c5_191, %c0_192, %c0_193] : memref<9x8x8xbf16, #tpu.memory_space<vmem>>, vector<1x8x8xbf16>
    %303 = vector.shape_cast %302 : vector<1x8x8xbf16> to vector<8x8xbf16>
    %cst_194 = arith.constant dense<0.000000e+00> : vector<8x288xf32>
    %304 = tpu.matmul %303, %301, %cst_194 {dimension_numbers = #tpu.dot_dimension_numbers<[1], [0], [0], [1], [0, 0, 1, 1], [], []>} : vector<8x8xbf16>, vector<8x288xbf16>, vector<8x288xf32> -> vector<8x288xf32>
    %305 = arith.addf %300, %304 : vector<8x288xf32>
    %306 = vector.extract_strided_slice %276 {offsets = [0, 18], sizes = [8, 288], strides = [1, 1]} : vector<8x342xbf16> to vector<8x288xbf16>
    %c6_195 = arith.constant 6 : index
    %c0_196 = arith.constant 0 : index
    %c0_197 = arith.constant 0 : index
    %307 = vector.load %arg4[%c6_195, %c0_196, %c0_197] : memref<9x8x8xbf16, #tpu.memory_space<vmem>>, vector<1x8x8xbf16>
    %308 = vector.shape_cast %307 : vector<1x8x8xbf16> to vector<8x8xbf16>
    %cst_198 = arith.constant dense<0.000000e+00> : vector<8x288xf32>
    %309 = tpu.matmul %308, %306, %cst_198 {dimension_numbers = #tpu.dot_dimension_numbers<[1], [0], [0], [1], [0, 0, 1, 1], [], []>} : vector<8x8xbf16>, vector<8x288xbf16>, vector<8x288xf32> -> vector<8x288xf32>
    %310 = arith.addf %305, %309 : vector<8x288xf32>
    %311 = vector.extract_strided_slice %223 {offsets = [0, 19], sizes = [8, 288], strides = [1, 1]} : vector<8x342xbf16> to vector<8x288xbf16>
    %c7_199 = arith.constant 7 : index
    %c0_200 = arith.constant 0 : index
    %c0_201 = arith.constant 0 : index
    %312 = vector.load %arg4[%c7_199, %c0_200, %c0_201] : memref<9x8x8xbf16, #tpu.memory_space<vmem>>, vector<1x8x8xbf16>
    %313 = vector.shape_cast %312 : vector<1x8x8xbf16> to vector<8x8xbf16>
    %cst_202 = arith.constant dense<0.000000e+00> : vector<8x288xf32>
    %314 = tpu.matmul %313, %311, %cst_202 {dimension_numbers = #tpu.dot_dimension_numbers<[1], [0], [0], [1], [0, 0, 1, 1], [], []>} : vector<8x8xbf16>, vector<8x288xbf16>, vector<8x288xf32> -> vector<8x288xf32>
    %315 = arith.addf %310, %314 : vector<8x288xf32>
    %316 = vector.extract_strided_slice %276 {offsets = [0, 19], sizes = [8, 288], strides = [1, 1]} : vector<8x342xbf16> to vector<8x288xbf16>
    %c8_203 = arith.constant 8 : index
    %c0_204 = arith.constant 0 : index
    %c0_205 = arith.constant 0 : index
    %317 = vector.load %arg4[%c8_203, %c0_204, %c0_205] : memref<9x8x8xbf16, #tpu.memory_space<vmem>>, vector<1x8x8xbf16>
    %318 = vector.shape_cast %317 : vector<1x8x8xbf16> to vector<8x8xbf16>
    %cst_206 = arith.constant dense<0.000000e+00> : vector<8x288xf32>
    %319 = tpu.matmul %318, %316, %cst_206 {dimension_numbers = #tpu.dot_dimension_numbers<[1], [0], [0], [1], [0, 0, 1, 1], [], []>} : vector<8x8xbf16>, vector<8x288xbf16>, vector<8x288xf32> -> vector<8x288xf32>
    %320 = arith.addf %315, %319 : vector<8x288xf32>
    %c0_207 = arith.constant 0 : index
    %c0_208 = arith.constant 0 : index
    %321 = vector.load %arg5[%c0_207, %c0_208] : memref<8x1xf32, #tpu.memory_space<vmem>>, vector<8x1xf32>
    %322 = vector.broadcast %321 : vector<8x1xf32> to vector<8x288xf32>
    %323 = arith.addf %320, %322 : vector<8x288xf32>
    %cst_209 = arith.constant 0.000000e+00 : f32
    %324 = vector.broadcast %cst_209 : f32 to vector<8x288xf32>
    %325 = arith.maximumf %323, %324 : vector<8x288xf32>
    %c0_210 = arith.constant 0 : index
    %c0_211 = arith.constant 0 : index
    %c0_212 = arith.constant 0 : index
    %c0_213 = arith.constant 0 : index
    %326 = vector.load %arg8[%c0_210, %c0_211, %c0_212, %c0_213] : memref<1x4x8x288xf32, #tpu.memory_space<vmem>>, vector<1x1x8x288xf32>
    %327 = vector.shape_cast %326 : vector<1x1x8x288xf32> to vector<8x288xf32>
    %328 = vector.shape_cast %325 : vector<8x288xf32> to vector<1x1x8x288xf32>
    tpu.vector_store %arg8[%c0_210, %c0_211, %c0_212, %c0_213], %328 {strides = array<i32>} : memref<1x4x8x288xf32, #tpu.memory_space<vmem>>, vector<1x1x8x288xf32>,
    %329 = vector.extract_strided_slice %223 {offsets = [0, 1], sizes = [8, 288], strides = [1, 1]} : vector<8x342xbf16> to vector<8x288xbf16>
    %c0_214 = arith.constant 0 : index
    %c0_215 = arith.constant 0 : index
    %c0_216 = arith.constant 0 : index
    %330 = vector.load %arg4[%c0_214, %c0_215, %c0_216] : memref<9x8x8xbf16, #tpu.memory_space<vmem>>, vector<1x8x8xbf16>
    %331 = vector.shape_cast %330 : vector<1x8x8xbf16> to vector<8x8xbf16>
    %cst_217 = arith.constant dense<0.000000e+00> : vector<8x288xf32>
    %332 = tpu.matmul %331, %329, %cst_217 {dimension_numbers = #tpu.dot_dimension_numbers<[1], [0], [0], [1], [0, 0, 1, 1], [], []>} : vector<8x8xbf16>, vector<8x288xbf16>, vector<8x288xf32> -> vector<8x288xf32>
    %333 = vector.extract_strided_slice %276 {offsets = [0, 1], sizes = [8, 288], strides = [1, 1]} : vector<8x342xbf16> to vector<8x288xbf16>
    %c1_218 = arith.constant 1 : index
    %c0_219 = arith.constant 0 : index
    %c0_220 = arith.constant 0 : index
    %334 = vector.load %arg4[%c1_218, %c0_219, %c0_220] : memref<9x8x8xbf16, #tpu.memory_space<vmem>>, vector<1x8x8xbf16>
    %335 = vector.shape_cast %334 : vector<1x8x8xbf16> to vector<8x8xbf16>
    %cst_221 = arith.constant dense<0.000000e+00> : vector<8x288xf32>
    %336 = tpu.matmul %335, %333, %cst_221 {dimension_numbers = #tpu.dot_dimension_numbers<[1], [0], [0], [1], [0, 0, 1, 1], [], []>} : vector<8x8xbf16>, vector<8x288xbf16>, vector<8x288xf32> -> vector<8x288xf32>
    %337 = arith.addf %332, %336 : vector<8x288xf32>
    %338 = vector.extract_strided_slice %223 {offsets = [0, 2], sizes = [8, 288], strides = [1, 1]} : vector<8x342xbf16> to vector<8x288xbf16>
    %c2_222 = arith.constant 2 : index
    %c0_223 = arith.constant 0 : index
    %c0_224 = arith.constant 0 : index
    %339 = vector.load %arg4[%c2_222, %c0_223, %c0_224] : memref<9x8x8xbf16, #tpu.memory_space<vmem>>, vector<1x8x8xbf16>
    %340 = vector.shape_cast %339 : vector<1x8x8xbf16> to vector<8x8xbf16>
    %cst_225 = arith.constant dense<0.000000e+00> : vector<8x288xf32>
    %341 = tpu.matmul %340, %338, %cst_225 {dimension_numbers = #tpu.dot_dimension_numbers<[1], [0], [0], [1], [0, 0, 1, 1], [], []>} : vector<8x8xbf16>, vector<8x288xbf16>, vector<8x288xf32> -> vector<8x288xf32>
    %342 = arith.addf %337, %341 : vector<8x288xf32>
    %343 = vector.extract_strided_slice %117 {offsets = [0, 19], sizes = [8, 288], strides = [1, 1]} : vector<8x342xbf16> to vector<8x288xbf16>
    %c3_226 = arith.constant 3 : index
    %c0_227 = arith.constant 0 : index
    %c0_228 = arith.constant 0 : index
    %344 = vector.load %arg4[%c3_226, %c0_227, %c0_228] : memref<9x8x8xbf16, #tpu.memory_space<vmem>>, vector<1x8x8xbf16>
    %345 = vector.shape_cast %344 : vector<1x8x8xbf16> to vector<8x8xbf16>
    %cst_229 = arith.constant dense<0.000000e+00> : vector<8x288xf32>
    %346 = tpu.matmul %345, %343, %cst_229 {dimension_numbers = #tpu.dot_dimension_numbers<[1], [0], [0], [1], [0, 0, 1, 1], [], []>} : vector<8x8xbf16>, vector<8x288xbf16>, vector<8x288xf32> -> vector<8x288xf32>
    %347 = arith.addf %342, %346 : vector<8x288xf32>
    %348 = vector.extract_strided_slice %170 {offsets = [0, 19], sizes = [8, 288], strides = [1, 1]} : vector<8x342xbf16> to vector<8x288xbf16>
    %c4_230 = arith.constant 4 : index
    %c0_231 = arith.constant 0 : index
    %c0_232 = arith.constant 0 : index
    %349 = vector.load %arg4[%c4_230, %c0_231, %c0_232] : memref<9x8x8xbf16, #tpu.memory_space<vmem>>, vector<1x8x8xbf16>
    %350 = vector.shape_cast %349 : vector<1x8x8xbf16> to vector<8x8xbf16>
    %cst_233 = arith.constant dense<0.000000e+00> : vector<8x288xf32>
    %351 = tpu.matmul %350, %348, %cst_233 {dimension_numbers = #tpu.dot_dimension_numbers<[1], [0], [0], [1], [0, 0, 1, 1], [], []>} : vector<8x8xbf16>, vector<8x288xbf16>, vector<8x288xf32> -> vector<8x288xf32>
    %352 = arith.addf %347, %351 : vector<8x288xf32>
    %353 = vector.extract_strided_slice %117 {offsets = [0, 20], sizes = [8, 288], strides = [1, 1]} : vector<8x342xbf16> to vector<8x288xbf16>
    %c5_234 = arith.constant 5 : index
    %c0_235 = arith.constant 0 : index
    %c0_236 = arith.constant 0 : index
    %354 = vector.load %arg4[%c5_234, %c0_235, %c0_236] : memref<9x8x8xbf16, #tpu.memory_space<vmem>>, vector<1x8x8xbf16>
    %355 = vector.shape_cast %354 : vector<1x8x8xbf16> to vector<8x8xbf16>
    %cst_237 = arith.constant dense<0.000000e+00> : vector<8x288xf32>
    %356 = tpu.matmul %355, %353, %cst_237 {dimension_numbers = #tpu.dot_dimension_numbers<[1], [0], [0], [1], [0, 0, 1, 1], [], []>} : vector<8x8xbf16>, vector<8x288xbf16>, vector<8x288xf32> -> vector<8x288xf32>
    %357 = arith.addf %352, %356 : vector<8x288xf32>
    %358 = vector.extract_strided_slice %223 {offsets = [0, 19], sizes = [8, 288], strides = [1, 1]} : vector<8x342xbf16> to vector<8x288xbf16>
    %c6_238 = arith.constant 6 : index
    %c0_239 = arith.constant 0 : index
    %c0_240 = arith.constant 0 : index
    %359 = vector.load %arg4[%c6_238, %c0_239, %c0_240] : memref<9x8x8xbf16, #tpu.memory_space<vmem>>, vector<1x8x8xbf16>
    %360 = vector.shape_cast %359 : vector<1x8x8xbf16> to vector<8x8xbf16>
    %cst_241 = arith.constant dense<0.000000e+00> : vector<8x288xf32>
    %361 = tpu.matmul %360, %358, %cst_241 {dimension_numbers = #tpu.dot_dimension_numbers<[1], [0], [0], [1], [0, 0, 1, 1], [], []>} : vector<8x8xbf16>, vector<8x288xbf16>, vector<8x288xf32> -> vector<8x288xf32>
    %362 = arith.addf %357, %361 : vector<8x288xf32>
    %363 = vector.extract_strided_slice %276 {offsets = [0, 19], sizes = [8, 288], strides = [1, 1]} : vector<8x342xbf16> to vector<8x288xbf16>
    %c7_242 = arith.constant 7 : index
    %c0_243 = arith.constant 0 : index
    %c0_244 = arith.constant 0 : index
    %364 = vector.load %arg4[%c7_242, %c0_243, %c0_244] : memref<9x8x8xbf16, #tpu.memory_space<vmem>>, vector<1x8x8xbf16>
    %365 = vector.shape_cast %364 : vector<1x8x8xbf16> to vector<8x8xbf16>
    %cst_245 = arith.constant dense<0.000000e+00> : vector<8x288xf32>
    %366 = tpu.matmul %365, %363, %cst_245 {dimension_numbers = #tpu.dot_dimension_numbers<[1], [0], [0], [1], [0, 0, 1, 1], [], []>} : vector<8x8xbf16>, vector<8x288xbf16>, vector<8x288xf32> -> vector<8x288xf32>
    %367 = arith.addf %362, %366 : vector<8x288xf32>
    %368 = vector.extract_strided_slice %223 {offsets = [0, 20], sizes = [8, 288], strides = [1, 1]} : vector<8x342xbf16> to vector<8x288xbf16>
    %c8_246 = arith.constant 8 : index
    %c0_247 = arith.constant 0 : index
    %c0_248 = arith.constant 0 : index
    %369 = vector.load %arg4[%c8_246, %c0_247, %c0_248] : memref<9x8x8xbf16, #tpu.memory_space<vmem>>, vector<1x8x8xbf16>
    %370 = vector.shape_cast %369 : vector<1x8x8xbf16> to vector<8x8xbf16>
    %cst_249 = arith.constant dense<0.000000e+00> : vector<8x288xf32>
    %371 = tpu.matmul %370, %368, %cst_249 {dimension_numbers = #tpu.dot_dimension_numbers<[1], [0], [0], [1], [0, 0, 1, 1], [], []>} : vector<8x8xbf16>, vector<8x288xbf16>, vector<8x288xf32> -> vector<8x288xf32>
    %372 = arith.addf %367, %371 : vector<8x288xf32>
    %c0_250 = arith.constant 0 : index
    %c0_251 = arith.constant 0 : index
    %373 = vector.load %arg5[%c0_250, %c0_251] : memref<8x1xf32, #tpu.memory_space<vmem>>, vector<8x1xf32>
    %374 = vector.broadcast %373 : vector<8x1xf32> to vector<8x288xf32>
    %375 = arith.addf %372, %374 : vector<8x288xf32>
    %cst_252 = arith.constant 0.000000e+00 : f32
    %376 = vector.broadcast %cst_252 : f32 to vector<8x288xf32>
    %377 = arith.maximumf %375, %376 : vector<8x288xf32>
    %c0_253 = arith.constant 0 : index
    %c1_254 = arith.constant 1 : index
    %c0_255 = arith.constant 0 : index
    %c0_256 = arith.constant 0 : index
    %378 = vector.load %arg8[%c0_253, %c1_254, %c0_255, %c0_256] : memref<1x4x8x288xf32, #tpu.memory_space<vmem>>, vector<1x1x8x288xf32>
    %379 = vector.shape_cast %378 : vector<1x1x8x288xf32> to vector<8x288xf32>
    %380 = vector.shape_cast %377 : vector<8x288xf32> to vector<1x1x8x288xf32>
    tpu.vector_store %arg8[%c0_253, %c1_254, %c0_255, %c0_256], %380 {strides = array<i32>} : memref<1x4x8x288xf32, #tpu.memory_space<vmem>>, vector<1x1x8x288xf32>,
    %381 = vector.extract_strided_slice %170 {offsets = [0, 18], sizes = [8, 288], strides = [1, 1]} : vector<8x342xbf16> to vector<8x288xbf16>
    %c0_257 = arith.constant 0 : index
    %c0_258 = arith.constant 0 : index
    %c0_259 = arith.constant 0 : index
    %382 = vector.load %arg4[%c0_257, %c0_258, %c0_259] : memref<9x8x8xbf16, #tpu.memory_space<vmem>>, vector<1x8x8xbf16>
    %383 = vector.shape_cast %382 : vector<1x8x8xbf16> to vector<8x8xbf16>
    %cst_260 = arith.constant dense<0.000000e+00> : vector<8x288xf32>
    %384 = tpu.matmul %383, %381, %cst_260 {dimension_numbers = #tpu.dot_dimension_numbers<[1], [0], [0], [1], [0, 0, 1, 1], [], []>} : vector<8x8xbf16>, vector<8x288xbf16>, vector<8x288xf32> -> vector<8x288xf32>
    %385 = vector.extract_strided_slice %117 {offsets = [0, 19], sizes = [8, 288], strides = [1, 1]} : vector<8x342xbf16> to vector<8x288xbf16>
    %c1_261 = arith.constant 1 : index
    %c0_262 = arith.constant 0 : index
    %c0_263 = arith.constant 0 : index
    %386 = vector.load %arg4[%c1_261, %c0_262, %c0_263] : memref<9x8x8xbf16, #tpu.memory_space<vmem>>, vector<1x8x8xbf16>
    %387 = vector.shape_cast %386 : vector<1x8x8xbf16> to vector<8x8xbf16>
    %cst_264 = arith.constant dense<0.000000e+00> : vector<8x288xf32>
    %388 = tpu.matmul %387, %385, %cst_264 {dimension_numbers = #tpu.dot_dimension_numbers<[1], [0], [0], [1], [0, 0, 1, 1], [], []>} : vector<8x8xbf16>, vector<8x288xbf16>, vector<8x288xf32> -> vector<8x288xf32>
    %389 = arith.addf %384, %388 : vector<8x288xf32>
    %390 = vector.extract_strided_slice %170 {offsets = [0, 19], sizes = [8, 288], strides = [1, 1]} : vector<8x342xbf16> to vector<8x288xbf16>
    %c2_265 = arith.constant 2 : index
    %c0_266 = arith.constant 0 : index
    %c0_267 = arith.constant 0 : index
    %391 = vector.load %arg4[%c2_265, %c0_266, %c0_267] : memref<9x8x8xbf16, #tpu.memory_space<vmem>>, vector<1x8x8xbf16>
    %392 = vector.shape_cast %391 : vector<1x8x8xbf16> to vector<8x8xbf16>
    %cst_268 = arith.constant dense<0.000000e+00> : vector<8x288xf32>
    %393 = tpu.matmul %392, %390, %cst_268 {dimension_numbers = #tpu.dot_dimension_numbers<[1], [0], [0], [1], [0, 0, 1, 1], [], []>} : vector<8x8xbf16>, vector<8x288xbf16>, vector<8x288xf32> -> vector<8x288xf32>
    %394 = arith.addf %389, %393 : vector<8x288xf32>
    %395 = vector.extract_strided_slice %276 {offsets = [0, 18], sizes = [8, 288], strides = [1, 1]} : vector<8x342xbf16> to vector<8x288xbf16>
    %c3_269 = arith.constant 3 : index
    %c0_270 = arith.constant 0 : index
    %c0_271 = arith.constant 0 : index
    %396 = vector.load %arg4[%c3_269, %c0_270, %c0_271] : memref<9x8x8xbf16, #tpu.memory_space<vmem>>, vector<1x8x8xbf16>
    %397 = vector.shape_cast %396 : vector<1x8x8xbf16> to vector<8x8xbf16>
    %cst_272 = arith.constant dense<0.000000e+00> : vector<8x288xf32>
    %398 = tpu.matmul %397, %395, %cst_272 {dimension_numbers = #tpu.dot_dimension_numbers<[1], [0], [0], [1], [0, 0, 1, 1], [], []>} : vector<8x8xbf16>, vector<8x288xbf16>, vector<8x288xf32> -> vector<8x288xf32>
    %399 = arith.addf %394, %398 : vector<8x288xf32>
    %400 = vector.extract_strided_slice %223 {offsets = [0, 19], sizes = [8, 288], strides = [1, 1]} : vector<8x342xbf16> to vector<8x288xbf16>
    %c4_273 = arith.constant 4 : index
    %c0_274 = arith.constant 0 : index
    %c0_275 = arith.constant 0 : index
    %401 = vector.load %arg4[%c4_273, %c0_274, %c0_275] : memref<9x8x8xbf16, #tpu.memory_space<vmem>>, vector<1x8x8xbf16>
    %402 = vector.shape_cast %401 : vector<1x8x8xbf16> to vector<8x8xbf16>
    %cst_276 = arith.constant dense<0.000000e+00> : vector<8x288xf32>
    %403 = tpu.matmul %402, %400, %cst_276 {dimension_numbers = #tpu.dot_dimension_numbers<[1], [0], [0], [1], [0, 0, 1, 1], [], []>} : vector<8x8xbf16>, vector<8x288xbf16>, vector<8x288xf32> -> vector<8x288xf32>
    %404 = arith.addf %399, %403 : vector<8x288xf32>
    %405 = vector.extract_strided_slice %276 {offsets = [0, 19], sizes = [8, 288], strides = [1, 1]} : vector<8x342xbf16> to vector<8x288xbf16>
    %c5_277 = arith.constant 5 : index
    %c0_278 = arith.constant 0 : index
    %c0_279 = arith.constant 0 : index
    %406 = vector.load %arg4[%c5_277, %c0_278, %c0_279] : memref<9x8x8xbf16, #tpu.memory_space<vmem>>, vector<1x8x8xbf16>
    %407 = vector.shape_cast %406 : vector<1x8x8xbf16> to vector<8x8xbf16>
    %cst_280 = arith.constant dense<0.000000e+00> : vector<8x288xf32>
    %408 = tpu.matmul %407, %405, %cst_280 {dimension_numbers = #tpu.dot_dimension_numbers<[1], [0], [0], [1], [0, 0, 1, 1], [], []>} : vector<8x8xbf16>, vector<8x288xbf16>, vector<8x288xf32> -> vector<8x288xf32>
    %409 = arith.addf %404, %408 : vector<8x288xf32>
    %410 = vector.extract_strided_slice %170 {offsets = [0, 36], sizes = [8, 288], strides = [1, 1]} : vector<8x342xbf16> to vector<8x288xbf16>
    %c6_281 = arith.constant 6 : index
    %c0_282 = arith.constant 0 : index
    %c0_283 = arith.constant 0 : index
    %411 = vector.load %arg4[%c6_281, %c0_282, %c0_283] : memref<9x8x8xbf16, #tpu.memory_space<vmem>>, vector<1x8x8xbf16>
    %412 = vector.shape_cast %411 : vector<1x8x8xbf16> to vector<8x8xbf16>
    %cst_284 = arith.constant dense<0.000000e+00> : vector<8x288xf32>
    %413 = tpu.matmul %412, %410, %cst_284 {dimension_numbers = #tpu.dot_dimension_numbers<[1], [0], [0], [1], [0, 0, 1, 1], [], []>} : vector<8x8xbf16>, vector<8x288xbf16>, vector<8x288xf32> -> vector<8x288xf32>
    %414 = arith.addf %409, %413 : vector<8x288xf32>
    %415 = vector.extract_strided_slice %117 {offsets = [0, 37], sizes = [8, 288], strides = [1, 1]} : vector<8x342xbf16> to vector<8x288xbf16>
    %c7_285 = arith.constant 7 : index
    %c0_286 = arith.constant 0 : index
    %c0_287 = arith.constant 0 : index
    %416 = vector.load %arg4[%c7_285, %c0_286, %c0_287] : memref<9x8x8xbf16, #tpu.memory_space<vmem>>, vector<1x8x8xbf16>
    %417 = vector.shape_cast %416 : vector<1x8x8xbf16> to vector<8x8xbf16>
    %cst_288 = arith.constant dense<0.000000e+00> : vector<8x288xf32>
    %418 = tpu.matmul %417, %415, %cst_288 {dimension_numbers = #tpu.dot_dimension_numbers<[1], [0], [0], [1], [0, 0, 1, 1], [], []>} : vector<8x8xbf16>, vector<8x288xbf16>, vector<8x288xf32> -> vector<8x288xf32>
    %419 = arith.addf %414, %418 : vector<8x288xf32>
    %420 = vector.extract_strided_slice %170 {offsets = [0, 37], sizes = [8, 288], strides = [1, 1]} : vector<8x342xbf16> to vector<8x288xbf16>
    %c8_289 = arith.constant 8 : index
    %c0_290 = arith.constant 0 : index
    %c0_291 = arith.constant 0 : index
    %421 = vector.load %arg4[%c8_289, %c0_290, %c0_291] : memref<9x8x8xbf16, #tpu.memory_space<vmem>>, vector<1x8x8xbf16>
    %422 = vector.shape_cast %421 : vector<1x8x8xbf16> to vector<8x8xbf16>
    %cst_292 = arith.constant dense<0.000000e+00> : vector<8x288xf32>
    %423 = tpu.matmul %422, %420, %cst_292 {dimension_numbers = #tpu.dot_dimension_numbers<[1], [0], [0], [1], [0, 0, 1, 1], [], []>} : vector<8x8xbf16>, vector<8x288xbf16>, vector<8x288xf32> -> vector<8x288xf32>
    %424 = arith.addf %419, %423 : vector<8x288xf32>
    %c0_293 = arith.constant 0 : index
    %c0_294 = arith.constant 0 : index
    %425 = vector.load %arg5[%c0_293, %c0_294] : memref<8x1xf32, #tpu.memory_space<vmem>>, vector<8x1xf32>
    %426 = vector.broadcast %425 : vector<8x1xf32> to vector<8x288xf32>
    %427 = arith.addf %424, %426 : vector<8x288xf32>
    %cst_295 = arith.constant 0.000000e+00 : f32
    %428 = vector.broadcast %cst_295 : f32 to vector<8x288xf32>
    %429 = arith.maximumf %427, %428 : vector<8x288xf32>
    %c0_296 = arith.constant 0 : index
    %c2_297 = arith.constant 2 : index
    %c0_298 = arith.constant 0 : index
    %c0_299 = arith.constant 0 : index
    %430 = vector.load %arg8[%c0_296, %c2_297, %c0_298, %c0_299] : memref<1x4x8x288xf32, #tpu.memory_space<vmem>>, vector<1x1x8x288xf32>
    %431 = vector.shape_cast %430 : vector<1x1x8x288xf32> to vector<8x288xf32>
    %432 = vector.shape_cast %429 : vector<8x288xf32> to vector<1x1x8x288xf32>
    tpu.vector_store %arg8[%c0_296, %c2_297, %c0_298, %c0_299], %432 {strides = array<i32>} : memref<1x4x8x288xf32, #tpu.memory_space<vmem>>, vector<1x1x8x288xf32>,
    %433 = vector.extract_strided_slice %117 {offsets = [0, 19], sizes = [8, 288], strides = [1, 1]} : vector<8x342xbf16> to vector<8x288xbf16>
    %c0_300 = arith.constant 0 : index
    %c0_301 = arith.constant 0 : index
    %c0_302 = arith.constant 0 : index
    %434 = vector.load %arg4[%c0_300, %c0_301, %c0_302] : memref<9x8x8xbf16, #tpu.memory_space<vmem>>, vector<1x8x8xbf16>
    %435 = vector.shape_cast %434 : vector<1x8x8xbf16> to vector<8x8xbf16>
    %cst_303 = arith.constant dense<0.000000e+00> : vector<8x288xf32>
    %436 = tpu.matmul %435, %433, %cst_303 {dimension_numbers = #tpu.dot_dimension_numbers<[1], [0], [0], [1], [0, 0, 1, 1], [], []>} : vector<8x8xbf16>, vector<8x288xbf16>, vector<8x288xf32> -> vector<8x288xf32>
    %437 = vector.extract_strided_slice %170 {offsets = [0, 19], sizes = [8, 288], strides = [1, 1]} : vector<8x342xbf16> to vector<8x288xbf16>
    %c1_304 = arith.constant 1 : index
    %c0_305 = arith.constant 0 : index
    %c0_306 = arith.constant 0 : index
    %438 = vector.load %arg4[%c1_304, %c0_305, %c0_306] : memref<9x8x8xbf16, #tpu.memory_space<vmem>>, vector<1x8x8xbf16>
    %439 = vector.shape_cast %438 : vector<1x8x8xbf16> to vector<8x8xbf16>
    %cst_307 = arith.constant dense<0.000000e+00> : vector<8x288xf32>
    %440 = tpu.matmul %439, %437, %cst_307 {dimension_numbers = #tpu.dot_dimension_numbers<[1], [0], [0], [1], [0, 0, 1, 1], [], []>} : vector<8x8xbf16>, vector<8x288xbf16>, vector<8x288xf32> -> vector<8x288xf32>
    %441 = arith.addf %436, %440 : vector<8x288xf32>
    %442 = vector.extract_strided_slice %117 {offsets = [0, 20], sizes = [8, 288], strides = [1, 1]} : vector<8x342xbf16> to vector<8x288xbf16>
    %c2_308 = arith.constant 2 : index
    %c0_309 = arith.constant 0 : index
    %c0_310 = arith.constant 0 : index
    %443 = vector.load %arg4[%c2_308, %c0_309, %c0_310] : memref<9x8x8xbf16, #tpu.memory_space<vmem>>, vector<1x8x8xbf16>
    %444 = vector.shape_cast %443 : vector<1x8x8xbf16> to vector<8x8xbf16>
    %cst_311 = arith.constant dense<0.000000e+00> : vector<8x288xf32>
    %445 = tpu.matmul %444, %442, %cst_311 {dimension_numbers = #tpu.dot_dimension_numbers<[1], [0], [0], [1], [0, 0, 1, 1], [], []>} : vector<8x8xbf16>, vector<8x288xbf16>, vector<8x288xf32> -> vector<8x288xf32>
    %446 = arith.addf %441, %445 : vector<8x288xf32>
    %447 = vector.extract_strided_slice %223 {offsets = [0, 19], sizes = [8, 288], strides = [1, 1]} : vector<8x342xbf16> to vector<8x288xbf16>
    %c3_312 = arith.constant 3 : index
    %c0_313 = arith.constant 0 : index
    %c0_314 = arith.constant 0 : index
    %448 = vector.load %arg4[%c3_312, %c0_313, %c0_314] : memref<9x8x8xbf16, #tpu.memory_space<vmem>>, vector<1x8x8xbf16>
    %449 = vector.shape_cast %448 : vector<1x8x8xbf16> to vector<8x8xbf16>
    %cst_315 = arith.constant dense<0.000000e+00> : vector<8x288xf32>
    %450 = tpu.matmul %449, %447, %cst_315 {dimension_numbers = #tpu.dot_dimension_numbers<[1], [0], [0], [1], [0, 0, 1, 1], [], []>} : vector<8x8xbf16>, vector<8x288xbf16>, vector<8x288xf32> -> vector<8x288xf32>
    %451 = arith.addf %446, %450 : vector<8x288xf32>
    %452 = vector.extract_strided_slice %276 {offsets = [0, 19], sizes = [8, 288], strides = [1, 1]} : vector<8x342xbf16> to vector<8x288xbf16>
    %c4_316 = arith.constant 4 : index
    %c0_317 = arith.constant 0 : index
    %c0_318 = arith.constant 0 : index
    %453 = vector.load %arg4[%c4_316, %c0_317, %c0_318] : memref<9x8x8xbf16, #tpu.memory_space<vmem>>, vector<1x8x8xbf16>
    %454 = vector.shape_cast %453 : vector<1x8x8xbf16> to vector<8x8xbf16>
    %cst_319 = arith.constant dense<0.000000e+00> : vector<8x288xf32>
    %455 = tpu.matmul %454, %452, %cst_319 {dimension_numbers = #tpu.dot_dimension_numbers<[1], [0], [0], [1], [0, 0, 1, 1], [], []>} : vector<8x8xbf16>, vector<8x288xbf16>, vector<8x288xf32> -> vector<8x288xf32>
    %456 = arith.addf %451, %455 : vector<8x288xf32>
    %457 = vector.extract_strided_slice %223 {offsets = [0, 20], sizes = [8, 288], strides = [1, 1]} : vector<8x342xbf16> to vector<8x288xbf16>
    %c5_320 = arith.constant 5 : index
    %c0_321 = arith.constant 0 : index
    %c0_322 = arith.constant 0 : index
    %458 = vector.load %arg4[%c5_320, %c0_321, %c0_322] : memref<9x8x8xbf16, #tpu.memory_space<vmem>>, vector<1x8x8xbf16>
    %459 = vector.shape_cast %458 : vector<1x8x8xbf16> to vector<8x8xbf16>
    %cst_323 = arith.constant dense<0.000000e+00> : vector<8x288xf32>
    %460 = tpu.matmul %459, %457, %cst_323 {dimension_numbers = #tpu.dot_dimension_numbers<[1], [0], [0], [1], [0, 0, 1, 1], [], []>} : vector<8x8xbf16>, vector<8x288xbf16>, vector<8x288xf32> -> vector<8x288xf32>
    %461 = arith.addf %456, %460 : vector<8x288xf32>
    %462 = vector.extract_strided_slice %117 {offsets = [0, 37], sizes = [8, 288], strides = [1, 1]} : vector<8x342xbf16> to vector<8x288xbf16>
    %c6_324 = arith.constant 6 : index
    %c0_325 = arith.constant 0 : index
    %c0_326 = arith.constant 0 : index
    %463 = vector.load %arg4[%c6_324, %c0_325, %c0_326] : memref<9x8x8xbf16, #tpu.memory_space<vmem>>, vector<1x8x8xbf16>
    %464 = vector.shape_cast %463 : vector<1x8x8xbf16> to vector<8x8xbf16>
    %cst_327 = arith.constant dense<0.000000e+00> : vector<8x288xf32>
    %465 = tpu.matmul %464, %462, %cst_327 {dimension_numbers = #tpu.dot_dimension_numbers<[1], [0], [0], [1], [0, 0, 1, 1], [], []>} : vector<8x8xbf16>, vector<8x288xbf16>, vector<8x288xf32> -> vector<8x288xf32>
    %466 = arith.addf %461, %465 : vector<8x288xf32>
    %467 = vector.extract_strided_slice %170 {offsets = [0, 37], sizes = [8, 288], strides = [1, 1]} : vector<8x342xbf16> to vector<8x288xbf16>
    %c7_328 = arith.constant 7 : index
    %c0_329 = arith.constant 0 : index
    %c0_330 = arith.constant 0 : index
    %468 = vector.load %arg4[%c7_328, %c0_329, %c0_330] : memref<9x8x8xbf16, #tpu.memory_space<vmem>>, vector<1x8x8xbf16>
    %469 = vector.shape_cast %468 : vector<1x8x8xbf16> to vector<8x8xbf16>
    %cst_331 = arith.constant dense<0.000000e+00> : vector<8x288xf32>
    %470 = tpu.matmul %469, %467, %cst_331 {dimension_numbers = #tpu.dot_dimension_numbers<[1], [0], [0], [1], [0, 0, 1, 1], [], []>} : vector<8x8xbf16>, vector<8x288xbf16>, vector<8x288xf32> -> vector<8x288xf32>
    %471 = arith.addf %466, %470 : vector<8x288xf32>
    %472 = vector.extract_strided_slice %117 {offsets = [0, 38], sizes = [8, 288], strides = [1, 1]} : vector<8x342xbf16> to vector<8x288xbf16>
    %c8_332 = arith.constant 8 : index
    %c0_333 = arith.constant 0 : index
    %c0_334 = arith.constant 0 : index
    %473 = vector.load %arg4[%c8_332, %c0_333, %c0_334] : memref<9x8x8xbf16, #tpu.memory_space<vmem>>, vector<1x8x8xbf16>
    %474 = vector.shape_cast %473 : vector<1x8x8xbf16> to vector<8x8xbf16>
    %cst_335 = arith.constant dense<0.000000e+00> : vector<8x288xf32>
    %475 = tpu.matmul %474, %472, %cst_335 {dimension_numbers = #tpu.dot_dimension_numbers<[1], [0], [0], [1], [0, 0, 1, 1], [], []>} : vector<8x8xbf16>, vector<8x288xbf16>, vector<8x288xf32> -> vector<8x288xf32>
    %476 = arith.addf %471, %475 : vector<8x288xf32>
    %c0_336 = arith.constant 0 : index
    %c0_337 = arith.constant 0 : index
    %477 = vector.load %arg5[%c0_336, %c0_337] : memref<8x1xf32, #tpu.memory_space<vmem>>, vector<8x1xf32>
    %478 = vector.broadcast %477 : vector<8x1xf32> to vector<8x288xf32>
    %479 = arith.addf %476, %478 : vector<8x288xf32>
    %cst_338 = arith.constant 0.000000e+00 : f32
    %480 = vector.broadcast %cst_338 : f32 to vector<8x288xf32>
    %481 = arith.maximumf %479, %480 : vector<8x288xf32>
    %c0_339 = arith.constant 0 : index
    %c3_340 = arith.constant 3 : index
    %c0_341 = arith.constant 0 : index
    %c0_342 = arith.constant 0 : index
    %482 = vector.load %arg8[%c0_339, %c3_340, %c0_341, %c0_342] : memref<1x4x8x288xf32, #tpu.memory_space<vmem>>, vector<1x1x8x288xf32>
    %483 = vector.shape_cast %482 : vector<1x1x8x288xf32> to vector<8x288xf32>
    %484 = vector.shape_cast %481 : vector<8x288xf32> to vector<1x1x8x288xf32>
    tpu.vector_store %arg8[%c0_339, %c3_340, %c0_341, %c0_342], %484 {strides = array<i32>} : memref<1x4x8x288xf32, #tpu.memory_space<vmem>>, vector<1x1x8x288xf32>,
    return
  }
  func.func @transform_0(%arg0: i32) -> (i32, i32, i32) {
    %c0_i32 = arith.constant 0 : i32
    %c0_i32_0 = arith.constant 0 : i32
    %c0_i32_1 = arith.constant 0 : i32
    return %arg0, %c0_i32, %c0_i32_0 : i32, i32, i32
  }
  func.func @transform_1(%arg0: i32) -> (i32, i32, i32) {
    %c0_i32 = arith.constant 0 : i32
    %c0_i32_0 = arith.constant 0 : i32
    %c0_i32_1 = arith.constant 0 : i32
    %c0_i32_2 = arith.constant 0 : i32
    return %c0_i32, %c0_i32_0, %c0_i32_1 : i32, i32, i32
  }
  func.func @transform_2(%arg0: i32) -> (i32, i32) {
    %c0_i32 = arith.constant 0 : i32
    %c0_i32_0 = arith.constant 0 : i32
    %c0_i32_1 = arith.constant 0 : i32
    return %c0_i32, %c0_i32_0 : i32, i32
  }
  func.func @transform_3(%arg0: i32) -> (i32, i32, i32) {
    %c0_i32 = arith.constant 0 : i32
    %c0_i32_0 = arith.constant 0 : i32
    %c0_i32_1 = arith.constant 0 : i32
    %c0_i32_2 = arith.constant 0 : i32
    return %c0_i32, %c0_i32_0, %c0_i32_1 : i32, i32, i32
  }
  func.func @transform_4(%arg0: i32) -> (i32, i32) {
    %c0_i32 = arith.constant 0 : i32
    %c0_i32_0 = arith.constant 0 : i32
    %c0_i32_1 = arith.constant 0 : i32
    return %c0_i32, %c0_i32_0 : i32, i32
  }
  func.func @transform_5(%arg0: i32) -> (i32, i32) {
    %c0_i32 = arith.constant 0 : i32
    %c0_i32_0 = arith.constant 0 : i32
    %c0_i32_1 = arith.constant 0 : i32
    return %c0_i32, %c0_i32_0 : i32, i32
  }
  func.func @transform_6(%arg0: i32) -> (i32, i32) {
    %c0_i32 = arith.constant 0 : i32
    %c0_i32_0 = arith.constant 0 : i32
    %c0_i32_1 = arith.constant 0 : i32
    return %c0_i32, %c0_i32_0 : i32, i32
  }
  func.func @transform_7(%arg0: i32) -> (i32, i32, i32, i32) {
    %c0_i32 = arith.constant 0 : i32
    %c0_i32_0 = arith.constant 0 : i32
    %c0_i32_1 = arith.constant 0 : i32
    %c0_i32_2 = arith.constant 0 : i32
    return %arg0, %c0_i32, %c0_i32_0, %c0_i32_1 : i32, i32, i32, i32
  }
}

</mosaic_0001>

<llo_original>
// kernel: decoder_module_forward.1
$region0: #{decoder_module_forward.1}
  #allocation0 [shape = 'u32[]', space=smem, size = 0x4, offset = 0x4, fixed_abs, tag = 'smem constant byte address 0x4 - core index']
  #allocation1 [shape = 'u32[144,128]{1,0:T(1,128)}', space=vmem, size = 0x12000, scoped, tag = 'internal scratch']
  %s0 = inlined_call_operand.hbm [shape: f32[2,8,324], index: 0, kind: input, shape index: {}]
  %s1 = inlined_call_operand.hbm [shape: bf16[9,8,8], index: 1, kind: input, shape index: {}]
  %s2 = inlined_call_operand.hbm [shape: f32[8,1], index: 2, kind: input, shape index: {}]
  %s3 = inlined_call_operand.hbm [shape: bf16[9,8,8], index: 3, kind: input, shape index: {}]
  %s4 = inlined_call_operand.hbm [shape: f32[8,1], index: 4, kind: input, shape index: {}]
  %s5 = inlined_call_operand.hbm [shape: f32[1,324], index: 5, kind: input, shape index: {}]
  %s6 = inlined_call_operand.hbm [shape: f32[1,288], index: 6, kind: input, shape index: {}]
  %s7 = inlined_call_operand.hbm [shape: f32[2,4,8,288], index: 7, kind: output, shape index: {}]
  %s8 = sld [smem:[#allocation0]]
  $region89: #{decoder_module_forward.1} parent=0
    _
  %s10 = ssub.s32 1, %s8
  %s11 = scalar_select 0, %s10, %s8
  $region1: #{decoder_module_forward.1} parent=0
    #allocation2 [shape = 'u8[24576]{0}', space=vmem, size = 0x6000, scoped, tag = 'input window, operand 0']
    #allocation3 [shape = 's32[2]{0}', space=sflag, size = 0x8, scoped, tag = 'scoped memory for decoder_module_forward.1']
    #allocation4 [shape = 's32[2]{0}', space=sflag, size = 0x8, scoped, tag = 'scoped memory for decoder_module_forward.1']
    #allocation5 [shape = 'u8[18432]{0}', space=vmem, size = 0x4800, scoped, tag = 'input window, operand 1, single buffered']
    #allocation6 [shape = 's32[1]{0}', space=sflag, size = 0x4, scoped, tag = 'scoped memory for decoder_module_forward.1']
    #allocation7 [shape = 'u8[4096]{0}', space=vmem, size = 0x1000, scoped, tag = 'input window, operand 2, single buffered']
    #allocation8 [shape = 'u8[18432]{0}', space=vmem, size = 0x4800, scoped, tag = 'input window, operand 3, single buffered']
    #allocation9 [shape = 's32[1]{0}', space=sflag, size = 0x4, scoped, tag = 'scoped memory for decoder_module_forward.1']
    #allocation10 [shape = 'u8[4096]{0}', space=vmem, size = 0x1000, scoped, tag = 'input window, operand 4, single buffered']
    #allocation11 [shape = 'u8[1536]{0}', space=vmem, size = 0x800, scoped, tag = 'input window, operand 5, single buffered']
    #allocation12 [shape = 's32[1]{0}', space=sflag, size = 0x4, scoped, tag = 'scoped memory for decoder_module_forward.1']
    #allocation13 [shape = 'u8[1536]{0}', space=vmem, size = 0x800, scoped, tag = 'input window, operand 6, single buffered']
    #allocation14 [shape = 'u8[98304]{0}', space=vmem, size = 0x18000, scoped, tag = 'output window, operand 0']
    %12 = vsyncpa [#allocation3], 0
    %s13 = scalar_lea.sflag [#allocation3], 1
    %14 = vsyncpa %s13, 0
    %15 = vsyncpa [#allocation6], 0
    %16 = vsyncpa [#allocation9], 0
    %17 = vsyncpa [#allocation12], 0
    %18 = vsyncpa [#allocation4], 0
    %s19 = scalar_lea.sflag [#allocation4], 1
    %20 = vsyncpa %s19, 0
    loop: start=0, step=1, limit=4
    $region2: #{decoder_module_forward.1} parent=1 // loop_pre_header
      _
    $region3: #{decoder_module_forward.1} parent=1 // loop_header
      %s22 = sphi 0, %s26
      %p23 = scmp.ge.s32.totalorder %s22, 4
      %s32 = sphi 0, %s34
      %s35 = sphi 0, %s32
      %s36 = sphi 0, %s35
      %s52 = sphi 0, %s36
      %s56 = sphi 0, %s56
      %s58 = sphi 0, %s56
      %s59 = sphi 0, %s58
      %s73 = sphi 0, %s59
      %s77 = sphi 0, %s77
      %s79 = sphi 0, %s77
      %s80 = sphi 0, %s79
      %s94 = sphi 0, %s80
      %s98 = sphi 0, %s98
      %s100 = sphi 0, %s98
      %s101 = sphi 0, %s100
      %s115 = sphi 0, %s101
      %s119 = sphi 0, %s119
      %s121 = sphi 0, %s119
      %s122 = sphi 0, %s121
      %s136 = sphi 0, %s122
      %s140 = sphi 0, %s140
      %s142 = sphi 0, %s140
      %s143 = sphi 0, %s142
      %s157 = sphi 0, %s143
      %s161 = sphi 0, %s161
      %s163 = sphi 0, %s161
      %s164 = sphi 0, %s163
      %s178 = sphi 0, %s164
      %s184 = sphi 0, %s186
      %s187 = sphi 0, %s184
      %s188 = sphi 0, %s187
      %s204 = sphi 0, %s188
    $region4: #{decoder_module_forward.1} parent=1 // loop_header_branch
      %25 = sbr.rel (%p23) target = $region8
    $region5: #{decoder_module_forward.1} parent=1 // loop_body
      %s27 = ssub.s32 %s22, 1
      %s28 = ssub.s32 %s22, 2
      %s29 = sadd.s32 %s22, 1
      %s30 = ssub.s32 %s22, %s29
      %p31 = scmp.eq.s32.totalorder %s30, 0
      %s33 = sadd.s32 %s32, 1
      %s34 = scalar_select %p31, %s32, %s33
      %p37 = pneg %p31
      %p38 = scmp.eq.s32.totalorder %s22, 1
      %p39 = por %p37, %p38
      %p40 = scmp.ne.s32.totalorder %s32, %s35
      %p41 = scmp.eq.s32.totalorder %s22, 0
      %p42 = por %p40, %p41
      %p43 = scmp.ne.s32.totalorder %s32, %s35
      %p44 = scmp.eq.s32.totalorder %s27, 1
      %p45 = por %p43, %p44
      %p46 = scmp.ne.s32.totalorder %s35, %s36
      %p47 = scmp.eq.s32.totalorder %s27, 0
      %p48 = por %p46, %p47
      %p49 = scmp.ne.s32.totalorder %s35, %s36
      %p50 = scmp.eq.s32.totalorder %s28, 1
      %p51 = por %p49, %p50
      %p53 = scmp.ne.s32.totalorder %s36, %s52
      %p54 = scmp.eq.s32.totalorder %s28, 0
      %p55 = por %p53, %p54
      %s57 = sadd.s32 %s56, 1
      %p60 = scmp.eq.s32.totalorder %s22, 1
      %p61 = scmp.ne.s32.totalorder %s56, %s58
      %p62 = scmp.eq.s32.totalorder %s22, 0
      %p63 = por %p61, %p62
      %p64 = scmp.ne.s32.totalorder %s56, %s58
      %p65 = scmp.eq.s32.totalorder %s27, 1
      %p66 = por %p64, %p65
      %p67 = scmp.ne.s32.totalorder %s58, %s59
      %p68 = scmp.eq.s32.totalorder %s27, 0
      %p69 = por %p67, %p68
      %p70 = scmp.ne.s32.totalorder %s58, %s59
      %p71 = scmp.eq.s32.totalorder %s28, 1
      %p72 = por %p70, %p71
      %p74 = scmp.ne.s32.totalorder %s59, %s73
      %p75 = scmp.eq.s32.totalorder %s28, 0
      %p76 = por %p74, %p75
      %s78 = sadd.s32 %s77, 1
      %p81 = scmp.eq.s32.totalorder %s22, 1
      %p82 = scmp.ne.s32.totalorder %s77, %s79
      %p83 = scmp.eq.s32.totalorder %s22, 0
      %p84 = por %p82, %p83
      %p85 = scmp.ne.s32.totalorder %s77, %s79
      %p86 = scmp.eq.s32.totalorder %s27, 1
      %p87 = por %p85, %p86
      %p88 = scmp.ne.s32.totalorder %s79, %s80
      %p89 = scmp.eq.s32.totalorder %s27, 0
      %p90 = por %p88, %p89
      %p91 = scmp.ne.s32.totalorder %s79, %s80
      %p92 = scmp.eq.s32.totalorder %s28, 1
      %p93 = por %p91, %p92
      %p95 = scmp.ne.s32.totalorder %s80, %s94
      %p96 = scmp.eq.s32.totalorder %s28, 0
      %p97 = por %p95, %p96
      %s99 = sadd.s32 %s98, 1
      %p102 = scmp.eq.s32.totalorder %s22, 1
      %p103 = scmp.ne.s32.totalorder %s98, %s100
      %p104 = scmp.eq.s32.totalorder %s22, 0
      %p105 = por %p103, %p104
      %p106 = scmp.ne.s32.totalorder %s98, %s100
      %p107 = scmp.eq.s32.totalorder %s27, 1
      %p108 = por %p106, %p107
      %p109 = scmp.ne.s32.totalorder %s100, %s101
      %p110 = scmp.eq.s32.totalorder %s27, 0
      %p111 = por %p109, %p110
      %p112 = scmp.ne.s32.totalorder %s100, %s101
      %p113 = scmp.eq.s32.totalorder %s28, 1
      %p114 = por %p112, %p113
      %p116 = scmp.ne.s32.totalorder %s101, %s115
      %p117 = scmp.eq.s32.totalorder %s28, 0
      %p118 = por %p116, %p117
      %s120 = sadd.s32 %s119, 1
      %p123 = scmp.eq.s32.totalorder %s22, 1
      %p124 = scmp.ne.s32.totalorder %s119, %s121
      %p125 = scmp.eq.s32.totalorder %s22, 0
      %p126 = por %p124, %p125
      %p127 = scmp.ne.s32.totalorder %s119, %s121
      %p128 = scmp.eq.s32.totalorder %s27, 1
      %p129 = por %p127, %p128
      %p130 = scmp.ne.s32.totalorder %s121, %s122
      %p131 = scmp.eq.s32.totalorder %s27, 0
      %p132 = por %p130, %p131
      %p133 = scmp.ne.s32.totalorder %s121, %s122
      %p134 = scmp.eq.s32.totalorder %s28, 1
      %p135 = por %p133, %p134
      %p137 = scmp.ne.s32.totalorder %s122, %s136
      %p138 = scmp.eq.s32.totalorder %s28, 0
      %p139 = por %p137, %p138
      %s141 = sadd.s32 %s140, 1
      %p144 = scmp.eq.s32.totalorder %s22, 1
      %p145 = scmp.ne.s32.totalorder %s140, %s142
      %p146 = scmp.eq.s32.totalorder %s22, 0
      %p147 = por %p145, %p146
      %p148 = scmp.ne.s32.totalorder %s140, %s142
      %p149 = scmp.eq.s32.totalorder %s27, 1
      %p150 = por %p148, %p149
      %p151 = scmp.ne.s32.totalorder %s142, %s143
      %p152 = scmp.eq.s32.totalorder %s27, 0
      %p153 = por %p151, %p152
      %p154 = scmp.ne.s32.totalorder %s142, %s143
      %p155 = scmp.eq.s32.totalorder %s28, 1
      %p156 = por %p154, %p155
      %p158 = scmp.ne.s32.totalorder %s143, %s157
      %p159 = scmp.eq.s32.totalorder %s28, 0
      %p160 = por %p158, %p159
      %s162 = sadd.s32 %s161, 1
      %p165 = scmp.eq.s32.totalorder %s22, 1
      %p166 = scmp.ne.s32.totalorder %s161, %s163
      %p167 = scmp.eq.s32.totalorder %s22, 0
      %p168 = por %p166, %p167
      %p169 = scmp.ne.s32.totalorder %s161, %s163
      %p170 = scmp.eq.s32.totalorder %s27, 1
      %p171 = por %p169, %p170
      %p172 = scmp.ne.s32.totalorder %s163, %s164
      %p173 = scmp.eq.s32.totalorder %s27, 0
      %p174 = por %p172, %p173
      %p175 = scmp.ne.s32.totalorder %s163, %s164
      %p176 = scmp.eq.s32.totalorder %s28, 1
      %p177 = por %p175, %p176
      %p179 = scmp.ne.s32.totalorder %s164, %s178
      %p180 = scmp.eq.s32.totalorder %s28, 0
      %p181 = por %p179, %p180
      %s182 = ssub.s32 %s22, %s29
      %p183 = scmp.eq.s32.totalorder %s182, 0
      %s185 = sadd.s32 %s184, 1
      %s186 = scalar_select %p183, %s184, %s185
      %p189 = pneg %p183
      %p190 = scmp.eq.s32.totalorder %s22, 1
      %p191 = por %p189, %p190
      %p192 = scmp.ne.s32.totalorder %s184, %s187
      %p193 = scmp.eq.s32.totalorder %s22, 0
      %p194 = por %p192, %p193
      %p195 = scmp.ne.s32.totalorder %s184, %s187
      %p196 = scmp.eq.s32.totalorder %s27, 1
      %p197 = por %p195, %p196
      %p198 = scmp.ne.s32.totalorder %s187, %s188
      %p199 = scmp.eq.s32.totalorder %s27, 0
      %p200 = por %p198, %p199
      %p201 = scmp.ne.s32.totalorder %s187, %s188
      %p202 = scmp.eq.s32.totalorder %s28, 1
      %p203 = por %p201, %p202
      %p205 = scmp.ne.s32.totalorder %s188, %s204
      %p206 = scmp.eq.s32.totalorder %s28, 0
      %p207 = por %p205, %p206
      %p208 = scmp.le.s32.totalorder 1, %s22
      %p209 = scmp.lt.s32.totalorder %s22, 3
      %p210 = pnand %p208, %p209
      %p211 = pneg %p210
      // Predicated region
      $region9: #{decoder_module_forward.1} parent=5 // pred_check
        _
      $region10: #{decoder_module_forward.1} parent=5 // pred_check_branch
        %213 = sbr.rel (%p210) target = $region12
      $region11: #{decoder_module_forward.1} parent=5 // pred_region
        %s214 = ssub.s32 %s22, 1
        // Predicated region
        $region13: #{decoder_module_forward.1} parent=11 // pred_check
          %p215 = pneg %p69
        $region14: #{decoder_module_forward.1} parent=11 // pred_check_branch
          %217 = sbr.rel (%p215) target = $region16
        $region15: #{decoder_module_forward.1} parent=11 // pred_region
          %s219 = ssub.s32 576, 576
          %220 = vsyncadd [#allocation6], %s219
          %s221 = sshll.u32 [#allocation5], 4
          %s222 = int_to_ptr.vmem [resolvable:$true] %s221
          %227 = dma.hbm_to_vmem [thread:$0]  %s1, 576, %s222, [#allocation6], 64, 64, 4
        $region16: #{decoder_module_forward.1} parent=11 // pred_fallthru
          _
        // Predicated region
        $region17: #{decoder_module_forward.1} parent=11 // pred_check
          %p228 = pneg %p90
        $region18: #{decoder_module_forward.1} parent=11 // pred_check_branch
          %230 = sbr.rel (%p228) target = $region20
        $region19: #{decoder_module_forward.1} parent=11 // pred_region
          %s232 = ssub.s32 128, 128
          %233 = vsyncadd [#allocation6], %s232
          %s235 = sshll.u32 [#allocation7], 4
          %s236 = int_to_ptr.vmem [resolvable:$true] %s235
          %238 = dma.hbm_to_vmem [thread:$0]  %s2, 128, %s236, [#allocation6]
        $region20: #{decoder_module_forward.1} parent=11 // pred_fallthru
          _
        // Predicated region
        $region21: #{decoder_module_forward.1} parent=11 // pred_check
          %p239 = pneg %p111
        $region22: #{decoder_module_forward.1} parent=11 // pred_check_branch
          %241 = sbr.rel (%p239) target = $region24
        $region23: #{decoder_module_forward.1} parent=11 // pred_region
          %s243 = ssub.s32 576, 576
          %244 = vsyncadd [#allocation9], %s243
          %s245 = sshll.u32 [#allocation8], 4
          %s246 = int_to_ptr.vmem [resolvable:$true] %s245
          %251 = dma.hbm_to_vmem [thread:$0]  %s3, 576, %s246, [#allocation9], 64, 64, 4
        $region24: #{decoder_module_forward.1} parent=11 // pred_fallthru
          _
        // Predicated region
        $region25: #{decoder_module_forward.1} parent=11 // pred_check
          %p252 = pneg %p132
        $region26: #{decoder_module_forward.1} parent=11 // pred_check_branch
          %254 = sbr.rel (%p252) target = $region28
        $region27: #{decoder_module_forward.1} parent=11 // pred_region
          %s256 = ssub.s32 128, 128
          %257 = vsyncadd [#allocation9], %s256
          %s259 = sshll.u32 [#allocation10], 4
          %s260 = int_to_ptr.vmem [resolvable:$true] %s259
          %262 = dma.hbm_to_vmem [thread:$0]  %s4, 128, %s260, [#allocation9]
        $region28: #{decoder_module_forward.1} parent=11 // pred_fallthru
          _
        // Predicated region
        $region29: #{decoder_module_forward.1} parent=11 // pred_check
          %p263 = pneg %p153
        $region30: #{decoder_module_forward.1} parent=11 // pred_check_branch
          %265 = sbr.rel (%p263) target = $region32
        $region31: #{decoder_module_forward.1} parent=11 // pred_region
          %s267 = ssub.s32 48, 48
          %268 = vsyncadd [#allocation12], %s267
          %s270 = sshll.u32 [#allocation11], 4
          %s271 = int_to_ptr.vmem [resolvable:$true] %s270
          %273 = dma.hbm_to_vmem [thread:$0]  %s5, 48, %s271, [#allocation12]
        $region32: #{decoder_module_forward.1} parent=11 // pred_fallthru
          _
        // Predicated region
        $region33: #{decoder_module_forward.1} parent=11 // pred_check
          %p274 = pneg %p174
        $region34: #{decoder_module_forward.1} parent=11 // pred_check_branch
          %276 = sbr.rel (%p274) target = $region36
        $region35: #{decoder_module_forward.1} parent=11 // pred_region
          %s278 = ssub.s32 48, 48
          %279 = vsyncadd [#allocation12], %s278
          %s281 = sshll.u32 [#allocation13], 4
          %s282 = int_to_ptr.vmem [resolvable:$true] %s281
          %284 = dma.hbm_to_vmem [thread:$0]  %s6, 48, %s282, [#allocation12]
        $region36: #{decoder_module_forward.1} parent=11 // pred_fallthru
          _
      $region12: #{decoder_module_forward.1} parent=5 // pred_fallthru
        _
      %p285 = scmp.lt.s32.totalorder %s22, 2
      // Predicated region
      $region37: #{decoder_module_forward.1} parent=5 // pred_check
        %p286 = pneg %p285
      $region38: #{decoder_module_forward.1} parent=5 // pred_check_branch
        %288 = sbr.rel (%p286) target = $region40
      $region39: #{decoder_module_forward.1} parent=5 // pred_region
        // Predicated region
        $region41: #{decoder_module_forward.1} parent=39 // pred_check
          %p289 = pneg %p42
        $region42: #{decoder_module_forward.1} parent=39 // pred_check_branch
          %291 = sbr.rel (%p289) target = $region44
        $region43: #{decoder_module_forward.1} parent=39 // pred_region
          %s292 = sand.u32 %s32, 1
          %s293 = scalar_lea.sflag [#allocation3], %s292
          %s294 = sand.u32 %s32, 1
          %s295 = smul.addr %s294, 24
          %s296 = scalar_lea.vmem [#allocation2], %s295
          %s298 = ssub.s32 384, 384
          %299 = vsyncadd %s293, %s298
          %s300 = smul.addr %s22, 3
          %s301 = smul.addr %s300, 128
          %s302 = scalar_lea.hbm %s0, %s301
          %s304 = sshll.u32 %s296, 4
          %s305 = int_to_ptr.vmem [resolvable:$true] %s304
          %307 = dma.hbm_to_vmem [thread:$0]  %s302, 384, %s305, %s293
        $region44: #{decoder_module_forward.1} parent=39 // pred_fallthru
          _
      $region40: #{decoder_module_forward.1} parent=5 // pred_fallthru
        _
      %p308 = scmp.le.s32.totalorder 1, %s22
      %p309 = scmp.lt.s32.totalorder %s22, 3
      %p310 = pnand %p308, %p309
      %p311 = pneg %p310
      // Predicated region
      $region45: #{decoder_module_forward.1} parent=5 // pred_check
        _
      $region46: #{decoder_module_forward.1} parent=5 // pred_check_branch
        %313 = sbr.rel (%p310) target = $region48
      $region47: #{decoder_module_forward.1} parent=5 // pred_region
        %s314 = ssub.s32 %s22, 1
        %s315 = sand.u32 %s35, 1
        %s316 = scalar_lea.sflag [#allocation3], %s315
        %s317 = sand.u32 %s35, 1
        %s318 = smul.addr %s317, 24
        %s319 = scalar_lea.vmem [#allocation2], %s318
        // Predicated region
        $region49: #{decoder_module_forward.1} parent=47 // pred_check
          %p320 = pneg %p48
        $region50: #{decoder_module_forward.1} parent=47 // pred_check_branch
          %322 = sbr.rel (%p320) target = $region52
        $region51: #{decoder_module_forward.1} parent=47 // pred_region
          %323 = dma.done %s316, 384
        $region52: #{decoder_module_forward.1} parent=47 // pred_fallthru
          _
        // Predicated region
        $region53: #{decoder_module_forward.1} parent=47 // pred_check
          %p324 = pneg %p69
        $region54: #{decoder_module_forward.1} parent=47 // pred_check_branch
          %326 = sbr.rel (%p324) target = $region56
        $region55: #{decoder_module_forward.1} parent=47 // pred_region
          %327 = dma.done [#allocation6], 576
        $region56: #{decoder_module_forward.1} parent=47 // pred_fallthru
          _
        // Predicated region
        $region57: #{decoder_module_forward.1} parent=47 // pred_check
          %p328 = pneg %p90
        $region58: #{decoder_module_forward.1} parent=47 // pred_check_branch
          %330 = sbr.rel (%p328) target = $region60
        $region59: #{decoder_module_forward.1} parent=47 // pred_region
          %331 = dma.done [#allocation6], 128
        $region60: #{decoder_module_forward.1} parent=47 // pred_fallthru
          _
        // Predicated region
        $region61: #{decoder_module_forward.1} parent=47 // pred_check
          %p332 = pneg %p111
        $region62: #{decoder_module_forward.1} parent=47 // pred_check_branch
          %334 = sbr.rel (%p332) target = $region64
        $region63: #{decoder_module_forward.1} parent=47 // pred_region
          %335 = dma.done [#allocation9], 576
        $region64: #{decoder_module_forward.1} parent=47 // pred_fallthru
          _
        // Predicated region
        $region65: #{decoder_module_forward.1} parent=47 // pred_check
          %p336 = pneg %p132
        $region66: #{decoder_module_forward.1} parent=47 // pred_check_branch
          %338 = sbr.rel (%p336) target = $region68
        $region67: #{decoder_module_forward.1} parent=47 // pred_region
          %339 = dma.done [#allocation9], 128
        $region68: #{decoder_module_forward.1} parent=47 // pred_fallthru
          _
        // Predicated region
        $region69: #{decoder_module_forward.1} parent=47 // pred_check
          %p340 = pneg %p153
        $region70: #{decoder_module_forward.1} parent=47 // pred_check_branch
          %342 = sbr.rel (%p340) target = $region72
        $region71: #{decoder_module_forward.1} parent=47 // pred_region
          %343 = dma.done [#allocation12], 48
        $region72: #{decoder_module_forward.1} parent=47 // pred_fallthru
          _
        // Predicated region
        $region73: #{decoder_module_forward.1} parent=47 // pred_check
          %p344 = pneg %p174
        $region74: #{decoder_module_forward.1} parent=47 // pred_check_branch
          %346 = sbr.rel (%p344) target = $region76
        $region75: #{decoder_module_forward.1} parent=47 // pred_region
          %347 = dma.done [#allocation12], 48
        $region76: #{decoder_module_forward.1} parent=47 // pred_fallthru
          _
        %s348 = sand.u32 %s35, 1
        %s349 = scalar_lea.sflag [#allocation3], %s348
        %s350 = sand.u32 %s35, 1
        %s351 = smul.addr %s350, 24
        %s352 = scalar_lea.vmem [#allocation2], %s351
        %p353 = pneg %p48
        %p354 = pneg %p45
        %p355 = pneg %p69
        %p356 = pneg %p66
        %p357 = pneg %p90
        %p358 = pneg %p87
        %p359 = pneg %p111
        %p360 = pneg %p108
        %p361 = pneg %p132
        %p362 = pneg %p129
        %p363 = pneg %p153
        %p364 = pneg %p150
        %p365 = pneg %p174
        %p366 = pneg %p171
        %p367 = pneg %p200
        %p368 = pneg %p197
        %s369 = sand.u32 %s187, 1
        %s370 = scalar_lea.sflag [#allocation4], %s369
        %s371 = sand.u32 %s187, 1
        %s372 = smul.addr %s371, 96
        %s373 = scalar_lea.vmem [#allocation14], %s372
        %v375 = vld [vmem:[%s319] sm:$0xff]
        %v376 = vld [vmem:[%s319 + $0x8] sm:$0xff]
        %v377 = vld [vmem:[%s319 + $0x10] sm:$0xff]
        %v378 = vld [vmem:[#allocation11] sm:$0x7]
        %v379 = vld [vmem:[#allocation13] sm:$0x7]
        %383 = vrot.lane.b32.xlu0 %v375, 18
        %v384 = vpop.permute.xlu0 %383
        %385 = vrot.lane.b32.xlu0 %v376, 18
        %v386 = vpop.permute.xlu0 %385
        %387 = vrot.lane.b32.xlu0 %v377, 18
        %v388 = vpop.permute.xlu0 %387
        %vm389 = vcmask 146432
        %v390 = vsel %vm389, %v384, %v386
        %v391 = vsel %vm389, %v386, %v388
        %v395 = vsel %vm389, 0.0, %v384
        %vm396 = vcmask 703488
        %v397 = vsel %vm396, %v391, 0.0
        %v398 = vmul.f32 %v395, 0.25
        %v399 = vmul.f32 %v390, 0.25
        %v400 = vmul.f32 %v397, 0.25
        %v401 = vmul.f32 %v375, 0.75
        %v402 = vmul.f32 %v376, 0.75
        %v403 = vmul.f32 %v377, 0.75
        %v404 = vadd.f32 %v398, %v401
        %v405 = vadd.f32 %v399, %v402
        %v406 = vadd.f32 %v400, %v403
        %410 = vrot.lane.b32.xlu0 %v398, 92
        %v411 = vpop.permute.xlu0 %410
        %412 = vrot.lane.b32.xlu0 %v399, 92
        %v413 = vpop.permute.xlu0 %412
        %414 = vrot.lane.b32.xlu0 %v400, 92
        %v415 = vpop.permute.xlu0 %414
        %vm416 = vcmask 752640
        %v417 = vsel %vm416, %v411, %v413
        %v418 = vsel %vm416, %v413, %v415
        %v422 = vadd.f32 %v401, %v417
        %v423 = vadd.f32 %v402, %v418
        %v424 = vadd.f32 %v403, %v415
        %428 = vrot.lane.b32.xlu0 %v404, 1
        %v429 = vpop.permute.xlu0 %428
        %430 = vrot.lane.b32.xlu0 %v405, 1
        %v431 = vpop.permute.xlu0 %430
        %432 = vrot.lane.b32.xlu0 %v406, 1
        %v433 = vpop.permute.xlu0 %432
        %vm434 = vcmask 7168
        %v435 = vsel %vm434, %v429, %v431
        %v436 = vsel %vm434, %v431, %v433
        %v440 = vsel %vm434, 0.0, %v429
        %vm441 = vcmask 564224
        %v442 = vsel %vm441, %v436, 0.0
        %v443 = vmul.f32 %v440, 0.25
        %v444 = vmul.f32 %v435, 0.25
        %v445 = vmul.f32 %v442, 0.25
        %v446 = vmul.f32 %v404, 0.75
        %v447 = vmul.f32 %v405, 0.75
        %v448 = vmul.f32 %v406, 0.75
        %v449 = vadd.f32 %v443, %v446
        %v450 = vadd.f32 %v444, %v447
        %v451 = vadd.f32 %v445, %v448
        %v453 = vlaneseq
        %v454 = vshrl.u32 %v453, 7
        %v455 = vsub.s32 0, %v454
        %v456 = vrot.slane %v378, %v455
        %v457 = vlaneseq
        %v458 = vshrl.u32 %v457, 7
        %v459 = vsub.s32 1, %v458
        %v460 = vrot.slane %v378, %v459
        %v461 = vlaneseq
        %v462 = vshrl.u32 %v461, 7
        %v463 = vsub.s32 2, %v462
        %v464 = vrot.slane %v378, %v463
        %v468 = vmul.f32 %v449, %v456
        %v469 = vmul.f32 %v450, %v460
        %v470 = vmul.f32 %v451, %v464
        %474 = vrot.lane.b32.xlu0 %v443, 126
        %v475 = vpop.permute.xlu0 %474
        %476 = vrot.lane.b32.xlu0 %v444, 126
        %v477 = vpop.permute.xlu0 %476
        %478 = vrot.lane.b32.xlu0 %v445, 126
        %v479 = vpop.permute.xlu0 %478
        %vm480 = vcmask 1031168
        %v481 = vsel %vm480, %v475, %v477
        %v482 = vsel %vm480, %v477, %v479
        %v486 = vadd.f32 %v446, %v481
        %v487 = vadd.f32 %v447, %v482
        %v488 = vadd.f32 %v448, %v479
        %v489 = vmul.f32 %v486, %v456
        %v490 = vmul.f32 %v487, %v460
        %v491 = vmul.f32 %v488, %v464
        %v492 = vpack.c.bf16 %v468, %v468
        %v493 = vpack.c.bf16 %v469, %v469
        %v494 = vpack.c.bf16 %v470, %v470
        %vm495 = vcmask 556032
        %v498 = vsel %vm495, %v494, 0
        %v499 = vpack.c.bf16 %v489, %v489
        %v500 = vpack.c.bf16 %v490, %v490
        %v501 = vpack.c.bf16 %v491, %v491
        %v503 = vsel %vm495, %v501, 0
        %507 = vrot.lane.b32.xlu0 %v422, 1
        %v508 = vpop.permute.xlu0 %507
        %509 = vrot.lane.b32.xlu0 %v423, 1
        %v510 = vpop.permute.xlu0 %509
        %511 = vrot.lane.b32.xlu0 %v424, 1
        %v512 = vpop.permute.xlu0 %511
        %v513 = vsel %vm434, %v508, %v510
        %v514 = vsel %vm434, %v510, %v512
        %v518 = vsel %vm434, 0.0, %v508
        %v519 = vsel %vm441, %v514, 0.0
        %v520 = vmul.f32 %v518, 0.25
        %v521 = vmul.f32 %v513, 0.25
        %v522 = vmul.f32 %v519, 0.25
        %v523 = vmul.f32 %v422, 0.75
        %v524 = vmul.f32 %v423, 0.75
        %v525 = vmul.f32 %v424, 0.75
        %v526 = vadd.f32 %v520, %v523
        %v527 = vadd.f32 %v521, %v524
        %v528 = vadd.f32 %v522, %v525
        %v529 = vmul.f32 %v526, %v456
        %v530 = vmul.f32 %v527, %v460
        %v531 = vmul.f32 %v528, %v464
        %535 = vrot.lane.b32.xlu0 %v520, 126
        %v536 = vpop.permute.xlu0 %535
        %537 = vrot.lane.b32.xlu0 %v521, 126
        %v538 = vpop.permute.xlu0 %537
        %539 = vrot.lane.b32.xlu0 %v522, 126
        %v540 = vpop.permute.xlu0 %539
        %v541 = vsel %vm480, %v536, %v538
        %v542 = vsel %vm480, %v538, %v540
        %v546 = vadd.f32 %v523, %v541
        %v547 = vadd.f32 %v524, %v542
        %v548 = vadd.f32 %v525, %v540
        %v549 = vmul.f32 %v546, %v456
        %v550 = vmul.f32 %v547, %v460
        %v551 = vmul.f32 %v548, %v464
        %v552 = vpack.c.bf16 %v529, %v529
        %v553 = vpack.c.bf16 %v530, %v530
        %v554 = vpack.c.bf16 %v531, %v531
        %v556 = vsel %vm495, %v554, 0
        %v557 = vpack.c.bf16 %v549, %v549
        %v558 = vpack.c.bf16 %v550, %v550
        %v559 = vpack.c.bf16 %v551, %v551
        %v561 = vsel %vm495, %v559, 0
        %v562 = vld [vmem:[#allocation5] sm:$0xf]
        %s563 = scalar_lea.vmem [#allocation5], 4
        %v564 = vld [vmem:[%s563] sm:$0xf]
        %568 = vrot.lane.b32.xlu0 %v552, 127
        %v569 = vpop.permute.xlu0 %568
        %570 = vrot.lane.b32.xlu0 %v553, 127
        %v571 = vpop.permute.xlu0 %570
        %572 = vrot.lane.b32.xlu0 %v556, 127
        %v573 = vpop.permute.xlu0 %572
        %vm574 = vcmask 1039360
        %v575 = vsel %vm574, %v569, %v571
        %v576 = vsel %vm574, %v571, %v573
        %vm577 = vcmask 64512
        %v579 = vsel %vm577, %v564, 0
        %vm581 = vcmask 1043456
        %v583 = vsel %vm581, %v575, 0
        %v586 = vsel %vm581, %v576, 0
        %v589 = vsel %vm581, %v573, 0
        %591 = vmatprep.subr.bf16.mxu0 %v586
        %592 = vmatpush1.bf16.msra.mxu0 %v583
        %593 = vmatprep.subr.bf16.mxu0 0
        %594 = vmatpush1.bf16.msra.mxu0 0
        %595 = vmatprep.subr.bf16.mxu0 0
        %596 = vmatpush1.bf16.msra.mxu0 0
        %597 = vmatprep.subr.bf16.mxu0 0
        %598 = vmatpush1.bf16.msra.mxu0 0
        %599 = vmatprep.subr.bf16.mxu0 0
        %600 = vmatpush1.bf16.msra.mxu0 0
        %601 = vmatprep.subr.bf16.mxu0 0
        %602 = vmatpush1.bf16.msra.mxu0 0
        %603 = vmatprep.subr.bf16.mxu0 0
        %604 = vmatpush1.bf16.msra.mxu0 0
        %605 = vmatprep.subr.bf16.mxu0 0
        %606 = vmatpush1.bf16.msra.mxu0 0
        %607 = vmatprep.subr.bf16.mxu0 0
        %608 = vmatpush1.bf16.msra.mxu0 0
        %609 = vmatprep.subr.bf16.mxu0 0
        %610 = vmatpush1.bf16.msra.mxu0 0
        %611 = vmatprep.subr.bf16.mxu0 0
        %612 = vmatpush1.bf16.msra.mxu0 0
        %613 = vmatprep.subr.bf16.mxu0 0
        %614 = vmatpush1.bf16.msra.mxu0 0
        %615 = vmatprep.subr.bf16.mxu0 0
        %616 = vmatpush1.bf16.msra.mxu0 0
        %617 = vmatprep.subr.bf16.mxu0 0
        %618 = vmatpush1.bf16.msra.mxu0 0
        %619 = vmatprep.subr.bf16.mxu0 0
        %620 = vmatpush1.bf16.msra.mxu0 0
        %621 = vmatprep.subr.bf16.mxu0 0
        %622 = vmatpush1.bf16.msra.mxu0 0
        %623 = vmatprep.mubr.bf16.mxu0 0
        %624 = vmatmul.mubr.bf16.gmra.mrb[0].mxu0 %v579
        %v625 = vpop.f32.mrb[0].mxu0
        %v626 = vadd.f32 0.0, %v625
        %v627 = vpop.f32.mrb[0].mxu0
        %v628 = vadd.f32 0.0, %v627
        %v629 = vpop.f32.mrb[0].mxu0
        %v630 = vpop.f32.mrb[0].mxu0
        %631 = vdwg.mxu0
        %632 = vmatprep.subr.bf16.mxu0 0
        %633 = vmatpush1.bf16.msra.mxu0 %v589
        %634 = vmatprep.subr.bf16.mxu0 0
        %635 = vmatpush1.bf16.msra.mxu0 0
        %636 = vmatprep.subr.bf16.mxu0 0
        %637 = vmatpush1.bf16.msra.mxu0 0
        %638 = vmatprep.subr.bf16.mxu0 0
        %639 = vmatpush1.bf16.msra.mxu0 0
        %640 = vmatprep.subr.bf16.mxu0 0
        %641 = vmatpush1.bf16.msra.mxu0 0
        %642 = vmatprep.subr.bf16.mxu0 0
        %643 = vmatpush1.bf16.msra.mxu0 0
        %644 = vmatprep.subr.bf16.mxu0 0
        %645 = vmatpush1.bf16.msra.mxu0 0
        %646 = vmatprep.subr.bf16.mxu0 0
        %647 = vmatpush1.bf16.msra.mxu0 0
        %648 = vmatprep.subr.bf16.mxu0 0
        %649 = vmatpush1.bf16.msra.mxu0 0
        %650 = vmatprep.subr.bf16.mxu0 0
        %651 = vmatpush1.bf16.msra.mxu0 0
        %652 = vmatprep.subr.bf16.mxu0 0
        %653 = vmatpush1.bf16.msra.mxu0 0
        %654 = vmatprep.subr.bf16.mxu0 0
        %655 = vmatpush1.bf16.msra.mxu0 0
        %656 = vmatprep.subr.bf16.mxu0 0
        %657 = vmatpush1.bf16.msra.mxu0 0
        %658 = vmatprep.subr.bf16.mxu0 0
        %659 = vmatpush1.bf16.msra.mxu0 0
        %660 = vmatprep.subr.bf16.mxu0 0
        %661 = vmatpush1.bf16.msra.mxu0 0
        %662 = vmatprep.subr.bf16.mxu0 0
        %663 = vmatpush1.bf16.msra.mxu0 0
        %664 = vmatprep.mubr.bf16.mxu0 0
        %665 = vmatmul.mubr.bf16.gmra.mrb[0].mxu0 %v579
        %v666 = vpop.f32.mrb[0].mxu0
        %v667 = vadd.f32 0.0, %v666
        %v668 = vpop.f32.mrb[0].mxu0
        %v669 = vpop.f32.mrb[0].mxu0
        %v670 = vpop.f32.mrb[0].mxu0
        %671 = vdwg.mxu0
        %v673 = vsel %vm577, %v562, 0
        %v676 = vsel %vm581, %v557, 0
        %v679 = vsel %vm581, %v558, 0
        %v681 = vsel %vm581, %v561, 0
        %683 = vmatprep.subr.bf16.mxu0 %v679
        %684 = vmatpush1.bf16.msra.mxu0 %v676
        %685 = vmatprep.subr.bf16.mxu0 0
        %686 = vmatpush1.bf16.msra.mxu0 0
        %687 = vmatprep.subr.bf16.mxu0 0
        %688 = vmatpush1.bf16.msra.mxu0 0
        %689 = vmatprep.subr.bf16.mxu0 0
        %690 = vmatpush1.bf16.msra.mxu0 0
        %691 = vmatprep.subr.bf16.mxu0 0
        %692 = vmatpush1.bf16.msra.mxu0 0
        %693 = vmatprep.subr.bf16.mxu0 0
        %694 = vmatpush1.bf16.msra.mxu0 0
        %695 = vmatprep.subr.bf16.mxu0 0
        %696 = vmatpush1.bf16.msra.mxu0 0
        %697 = vmatprep.subr.bf16.mxu0 0
        %698 = vmatpush1.bf16.msra.mxu0 0
        %699 = vmatprep.subr.bf16.mxu0 0
        %700 = vmatpush1.bf16.msra.mxu0 0
        %701 = vmatprep.subr.bf16.mxu0 0
        %702 = vmatpush1.bf16.msra.mxu0 0
        %703 = vmatprep.subr.bf16.mxu0 0
        %704 = vmatpush1.bf16.msra.mxu0 0
        %705 = vmatprep.subr.bf16.mxu0 0
        %706 = vmatpush1.bf16.msra.mxu0 0
        %707 = vmatprep.subr.bf16.mxu0 0
        %708 = vmatpush1.bf16.msra.mxu0 0
        %709 = vmatprep.subr.bf16.mxu0 0
        %710 = vmatpush1.bf16.msra.mxu0 0
        %711 = vmatprep.subr.bf16.mxu0 0
        %712 = vmatpush1.bf16.msra.mxu0 0
        %713 = vmatprep.subr.bf16.mxu0 0
        %714 = vmatpush1.bf16.msra.mxu0 0
        %715 = vmatprep.mubr.bf16.mxu0 0
        %716 = vmatmul.mubr.bf16.gmra.mrb[0].mxu0 %v673
        %v717 = vpop.f32.mrb[0].mxu0
        %v718 = vadd.f32 %v626, %v717
        %v719 = vpop.f32.mrb[0].mxu0
        %v720 = vadd.f32 %v628, %v719
        %v721 = vpop.f32.mrb[0].mxu0
        %v722 = vpop.f32.mrb[0].mxu0
        %723 = vdwg.mxu0
        %724 = vmatprep.subr.bf16.mxu0 0
        %725 = vmatpush1.bf16.msra.mxu0 %v681
        %726 = vmatprep.subr.bf16.mxu0 0
        %727 = vmatpush1.bf16.msra.mxu0 0
        %728 = vmatprep.subr.bf16.mxu0 0
        %729 = vmatpush1.bf16.msra.mxu0 0
        %730 = vmatprep.subr.bf16.mxu0 0
        %731 = vmatpush1.bf16.msra.mxu0 0
        %732 = vmatprep.subr.bf16.mxu0 0
        %733 = vmatpush1.bf16.msra.mxu0 0
        %734 = vmatprep.subr.bf16.mxu0 0
        %735 = vmatpush1.bf16.msra.mxu0 0
        %736 = vmatprep.subr.bf16.mxu0 0
        %737 = vmatpush1.bf16.msra.mxu0 0
        %738 = vmatprep.subr.bf16.mxu0 0
        %739 = vmatpush1.bf16.msra.mxu0 0
        %740 = vmatprep.subr.bf16.mxu0 0
        %741 = vmatpush1.bf16.msra.mxu0 0
        %742 = vmatprep.subr.bf16.mxu0 0
        %743 = vmatpush1.bf16.msra.mxu0 0
        %744 = vmatprep.subr.bf16.mxu0 0
        %745 = vmatpush1.bf16.msra.mxu0 0
        %746 = vmatprep.subr.bf16.mxu0 0
        %747 = vmatpush1.bf16.msra.mxu0 0
        %748 = vmatprep.subr.bf16.mxu0 0
        %749 = vmatpush1.bf16.msra.mxu0 0
        %750 = vmatprep.subr.bf16.mxu0 0
        %751 = vmatpush1.bf16.msra.mxu0 0
        %752 = vmatprep.subr.bf16.mxu0 0
        %753 = vmatpush1.bf16.msra.mxu0 0
        %754 = vmatprep.subr.bf16.mxu0 0
        %755 = vmatpush1.bf16.msra.mxu0 0
        %756 = vmatprep.mubr.bf16.mxu0 0
        %757 = vmatmul.mubr.bf16.gmra.mrb[0].mxu0 %v673
        %v758 = vpop.f32.mrb[0].mxu0
        %v759 = vadd.f32 %v667, %v758
        %v760 = vpop.f32.mrb[0].mxu0
        %v761 = vpop.f32.mrb[0].mxu0
        %v762 = vpop.f32.mrb[0].mxu0
        %763 = vdwg.mxu0
        %s764 = scalar_lea.vmem [#allocation5], 8
        %v765 = vld [vmem:[%s764] sm:$0xf]
        %769 = vrot.lane.b32.xlu0 %v557, 127
        %v770 = vpop.permute.xlu0 %769
        %771 = vrot.lane.b32.xlu0 %v558, 127
        %v772 = vpop.permute.xlu0 %771
        %773 = vrot.lane.b32.xlu0 %v561, 127
        %v774 = vpop.permute.xlu0 %773
        %v775 = vsel %vm574, %v770, %v772
        %v776 = vsel %vm574, %v772, %v774
        %v778 = vsel %vm577, %v765, 0
        %v781 = vsel %vm581, %v775, 0
        %v784 = vsel %vm581, %v776, 0
        %v787 = vsel %vm581, %v774, 0
        %789 = vmatprep.subr.bf16.mxu0 %v784
        %790 = vmatpush1.bf16.msra.mxu0 %v781
        %791 = vmatprep.subr.bf16.mxu0 0
        %792 = vmatpush1.bf16.msra.mxu0 0
        %793 = vmatprep.subr.bf16.mxu0 0
        %794 = vmatpush1.bf16.msra.mxu0 0
        %795 = vmatprep.subr.bf16.mxu0 0
        %796 = vmatpush1.bf16.msra.mxu0 0
        %797 = vmatprep.subr.bf16.mxu0 0
        %798 = vmatpush1.bf16.msra.mxu0 0
        %799 = vmatprep.subr.bf16.mxu0 0
        %800 = vmatpush1.bf16.msra.mxu0 0
        %801 = vmatprep.subr.bf16.mxu0 0
        %802 = vmatpush1.bf16.msra.mxu0 0
        %803 = vmatprep.subr.bf16.mxu0 0
        %804 = vmatpush1.bf16.msra.mxu0 0
        %805 = vmatprep.subr.bf16.mxu0 0
        %806 = vmatpush1.bf16.msra.mxu0 0
        %807 = vmatprep.subr.bf16.mxu0 0
        %808 = vmatpush1.bf16.msra.mxu0 0
        %809 = vmatprep.subr.bf16.mxu0 0
        %810 = vmatpush1.bf16.msra.mxu0 0
        %811 = vmatprep.subr.bf16.mxu0 0
        %812 = vmatpush1.bf16.msra.mxu0 0
        %813 = vmatprep.subr.bf16.mxu0 0
        %814 = vmatpush1.bf16.msra.mxu0 0
        %815 = vmatprep.subr.bf16.mxu0 0
        %816 = vmatpush1.bf16.msra.mxu0 0
        %817 = vmatprep.subr.bf16.mxu0 0
        %818 = vmatpush1.bf16.msra.mxu0 0
        %819 = vmatprep.subr.bf16.mxu0 0
        %820 = vmatpush1.bf16.msra.mxu0 0
        %821 = vmatprep.mubr.bf16.mxu0 0
        %822 = vmatmul.mubr.bf16.gmra.mrb[0].mxu0 %v778
        %v823 = vpop.f32.mrb[0].mxu0
        %v824 = vadd.f32 0.0, %v823
        %v825 = vpop.f32.mrb[0].mxu0
        %v826 = vadd.f32 0.0, %v825
        %v827 = vpop.f32.mrb[0].mxu0
        %v828 = vpop.f32.mrb[0].mxu0
        %829 = vdwg.mxu0
        %830 = vmatprep.subr.bf16.mxu0 0
        %831 = vmatpush1.bf16.msra.mxu0 %v787
        %832 = vmatprep.subr.bf16.mxu0 0
        %833 = vmatpush1.bf16.msra.mxu0 0
        %834 = vmatprep.subr.bf16.mxu0 0
        %835 = vmatpush1.bf16.msra.mxu0 0
        %836 = vmatprep.subr.bf16.mxu0 0
        %837 = vmatpush1.bf16.msra.mxu0 0
        %838 = vmatprep.subr.bf16.mxu0 0
        %839 = vmatpush1.bf16.msra.mxu0 0
        %840 = vmatprep.subr.bf16.mxu0 0
        %841 = vmatpush1.bf16.msra.mxu0 0
        %842 = vmatprep.subr.bf16.mxu0 0
        %843 = vmatpush1.bf16.msra.mxu0 0
        %844 = vmatprep.subr.bf16.mxu0 0
        %845 = vmatpush1.bf16.msra.mxu0 0
        %846 = vmatprep.subr.bf16.mxu0 0
        %847 = vmatpush1.bf16.msra.mxu0 0
        %848 = vmatprep.subr.bf16.mxu0 0
        %849 = vmatpush1.bf16.msra.mxu0 0
        %850 = vmatprep.subr.bf16.mxu0 0
        %851 = vmatpush1.bf16.msra.mxu0 0
        %852 = vmatprep.subr.bf16.mxu0 0
        %853 = vmatpush1.bf16.msra.mxu0 0
        %854 = vmatprep.subr.bf16.mxu0 0
        %855 = vmatpush1.bf16.msra.mxu0 0
        %856 = vmatprep.subr.bf16.mxu0 0
        %857 = vmatpush1.bf16.msra.mxu0 0
        %858 = vmatprep.subr.bf16.mxu0 0
        %859 = vmatpush1.bf16.msra.mxu0 0
        %860 = vmatprep.subr.bf16.mxu0 0
        %861 = vmatpush1.bf16.msra.mxu0 0
        %862 = vmatprep.mubr.bf16.mxu0 0
        %863 = vmatmul.mubr.bf16.gmra.mrb[0].mxu0 %v778
        %v864 = vpop.f32.mrb[0].mxu0
        %v865 = vadd.f32 0.0, %v864
        %v866 = vpop.f32.mrb[0].mxu0
        %v867 = vpop.f32.mrb[0].mxu0
        %v868 = vpop.f32.mrb[0].mxu0
        %869 = vdwg.mxu0
        %v870 = vadd.f32 %v718, %v824
        %v871 = vadd.f32 %v720, %v826
        %v872 = vadd.f32 %v759, %v865
        %s873 = scalar_lea.vmem [#allocation5], 12
        %v874 = vld [vmem:[%s873] sm:$0xf]
        %878 = vrot.lane.b32.xlu0 %v499, 110
        %v879 = vpop.permute.xlu0 %878
        %880 = vrot.lane.b32.xlu0 %v500, 110
        %v881 = vpop.permute.xlu0 %880
        %882 = vrot.lane.b32.xlu0 %v503, 110
        %v883 = vpop.permute.xlu0 %882
        %vm884 = vcmask 900096
        %v885 = vsel %vm884, %v879, %v881
        %v886 = vsel %vm884, %v881, %v883
        %v888 = vsel %vm577, %v874, 0
        %v891 = vsel %vm581, %v885, 0
        %v894 = vsel %vm581, %v886, 0
        %v897 = vsel %vm581, %v883, 0
        %899 = vmatprep.subr.bf16.mxu0 %v894
        %900 = vmatpush1.bf16.msra.mxu0 %v891
        %901 = vmatprep.subr.bf16.mxu0 0
        %902 = vmatpush1.bf16.msra.mxu0 0
        %903 = vmatprep.subr.bf16.mxu0 0
        %904 = vmatpush1.bf16.msra.mxu0 0
        %905 = vmatprep.subr.bf16.mxu0 0
        %906 = vmatpush1.bf16.msra.mxu0 0
        %907 = vmatprep.subr.bf16.mxu0 0
        %908 = vmatpush1.bf16.msra.mxu0 0
        %909 = vmatprep.subr.bf16.mxu0 0
        %910 = vmatpush1.bf16.msra.mxu0 0
        %911 = vmatprep.subr.bf16.mxu0 0
        %912 = vmatpush1.bf16.msra.mxu0 0
        %913 = vmatprep.subr.bf16.mxu0 0
        %914 = vmatpush1.bf16.msra.mxu0 0
        %915 = vmatprep.subr.bf16.mxu0 0
        %916 = vmatpush1.bf16.msra.mxu0 0
        %917 = vmatprep.subr.bf16.mxu0 0
        %918 = vmatpush1.bf16.msra.mxu0 0
        %919 = vmatprep.subr.bf16.mxu0 0
        %920 = vmatpush1.bf16.msra.mxu0 0
        %921 = vmatprep.subr.bf16.mxu0 0
        %922 = vmatpush1.bf16.msra.mxu0 0
        %923 = vmatprep.subr.bf16.mxu0 0
        %924 = vmatpush1.bf16.msra.mxu0 0
        %925 = vmatprep.subr.bf16.mxu0 0
        %926 = vmatpush1.bf16.msra.mxu0 0
        %927 = vmatprep.subr.bf16.mxu0 0
        %928 = vmatpush1.bf16.msra.mxu0 0
        %929 = vmatprep.subr.bf16.mxu0 0
        %930 = vmatpush1.bf16.msra.mxu0 0
        %931 = vmatprep.mubr.bf16.mxu0 0
        %932 = vmatmul.mubr.bf16.gmra.mrb[0].mxu0 %v888
        %v933 = vpop.f32.mrb[0].mxu0
        %v934 = vadd.f32 0.0, %v933
        %v935 = vpop.f32.mrb[0].mxu0
        %v936 = vadd.f32 0.0, %v935
        %v937 = vpop.f32.mrb[0].mxu0
        %v938 = vpop.f32.mrb[0].mxu0
        %939 = vdwg.mxu0
        %940 = vmatprep.subr.bf16.mxu0 0
        %941 = vmatpush1.bf16.msra.mxu0 %v897
        %942 = vmatprep.subr.bf16.mxu0 0
        %943 = vmatpush1.bf16.msra.mxu0 0
        %944 = vmatprep.subr.bf16.mxu0 0
        %945 = vmatpush1.bf16.msra.mxu0 0
        %946 = vmatprep.subr.bf16.mxu0 0
        %947 = vmatpush1.bf16.msra.mxu0 0
        %948 = vmatprep.subr.bf16.mxu0 0
        %949 = vmatpush1.bf16.msra.mxu0 0
        %950 = vmatprep.subr.bf16.mxu0 0
        %951 = vmatpush1.bf16.msra.mxu0 0
        %952 = vmatprep.subr.bf16.mxu0 0
        %953 = vmatpush1.bf16.msra.mxu0 0
        %954 = vmatprep.subr.bf16.mxu0 0
        %955 = vmatpush1.bf16.msra.mxu0 0
        %956 = vmatprep.subr.bf16.mxu0 0
        %957 = vmatpush1.bf16.msra.mxu0 0
        %958 = vmatprep.subr.bf16.mxu0 0
        %959 = vmatpush1.bf16.msra.mxu0 0
        %960 = vmatprep.subr.bf16.mxu0 0
        %961 = vmatpush1.bf16.msra.mxu0 0
        %962 = vmatprep.subr.bf16.mxu0 0
        %963 = vmatpush1.bf16.msra.mxu0 0
        %964 = vmatprep.subr.bf16.mxu0 0
        %965 = vmatpush1.bf16.msra.mxu0 0
        %966 = vmatprep.subr.bf16.mxu0 0
        %967 = vmatpush1.bf16.msra.mxu0 0
        %968 = vmatprep.subr.bf16.mxu0 0
        %969 = vmatpush1.bf16.msra.mxu0 0
        %970 = vmatprep.subr.bf16.mxu0 0
        %971 = vmatpush1.bf16.msra.mxu0 0
        %972 = vmatprep.mubr.bf16.mxu0 0
        %973 = vmatmul.mubr.bf16.gmra.mrb[0].mxu0 %v888
        %v974 = vpop.f32.mrb[0].mxu0
        %v975 = vadd.f32 0.0, %v974
        %v976 = vpop.f32.mrb[0].mxu0
        %v977 = vpop.f32.mrb[0].mxu0
        %v978 = vpop.f32.mrb[0].mxu0
        %979 = vdwg.mxu0
        %v980 = vadd.f32 %v870, %v934
        %v981 = vadd.f32 %v871, %v936
        %v982 = vadd.f32 %v872, %v975
        %s983 = scalar_lea.vmem [#allocation5], 16
        %v984 = vld [vmem:[%s983] sm:$0xf]
        %988 = vrot.lane.b32.xlu0 %v492, 109
        %v989 = vpop.permute.xlu0 %988
        %990 = vrot.lane.b32.xlu0 %v493, 109
        %v991 = vpop.permute.xlu0 %990
        %992 = vrot.lane.b32.xlu0 %v498, 109
        %v993 = vpop.permute.xlu0 %992
        %vm994 = vcmask 891904
        %v995 = vsel %vm994, %v989, %v991
        %v996 = vsel %vm994, %v991, %v993
        %v998 = vsel %vm577, %v984, 0
        %v1001 = vsel %vm581, %v995, 0
        %v1004 = vsel %vm581, %v996, 0
        %v1007 = vsel %vm581, %v993, 0
        %1009 = vmatprep.subr.bf16.mxu0 %v1004
        %1010 = vmatpush1.bf16.msra.mxu0 %v1001
        %1011 = vmatprep.subr.bf16.mxu0 0
        %1012 = vmatpush1.bf16.msra.mxu0 0
        %1013 = vmatprep.subr.bf16.mxu0 0
        %1014 = vmatpush1.bf16.msra.mxu0 0
        %1015 = vmatprep.subr.bf16.mxu0 0
        %1016 = vmatpush1.bf16.msra.mxu0 0
        %1017 = vmatprep.subr.bf16.mxu0 0
        %1018 = vmatpush1.bf16.msra.mxu0 0
        %1019 = vmatprep.subr.bf16.mxu0 0
        %1020 = vmatpush1.bf16.msra.mxu0 0
        %1021 = vmatprep.subr.bf16.mxu0 0
        %1022 = vmatpush1.bf16.msra.mxu0 0
        %1023 = vmatprep.subr.bf16.mxu0 0
        %1024 = vmatpush1.bf16.msra.mxu0 0
        %1025 = vmatprep.subr.bf16.mxu0 0
        %1026 = vmatpush1.bf16.msra.mxu0 0
        %1027 = vmatprep.subr.bf16.mxu0 0
        %1028 = vmatpush1.bf16.msra.mxu0 0
        %1029 = vmatprep.subr.bf16.mxu0 0
        %1030 = vmatpush1.bf16.msra.mxu0 0
        %1031 = vmatprep.subr.bf16.mxu0 0
        %1032 = vmatpush1.bf16.msra.mxu0 0
        %1033 = vmatprep.subr.bf16.mxu0 0
        %1034 = vmatpush1.bf16.msra.mxu0 0
        %1035 = vmatprep.subr.bf16.mxu0 0
        %1036 = vmatpush1.bf16.msra.mxu0 0
        %1037 = vmatprep.subr.bf16.mxu0 0
        %1038 = vmatpush1.bf16.msra.mxu0 0
        %1039 = vmatprep.subr.bf16.mxu0 0
        %1040 = vmatpush1.bf16.msra.mxu0 0
        %1041 = vmatprep.mubr.bf16.mxu0 0
        %1042 = vmatmul.mubr.bf16.gmra.mrb[0].mxu0 %v998
        %v1043 = vpop.f32.mrb[0].mxu0
        %v1044 = vadd.f32 0.0, %v1043
        %v1045 = vpop.f32.mrb[0].mxu0
        %v1046 = vadd.f32 0.0, %v1045
        %v1047 = vpop.f32.mrb[0].mxu0
        %v1048 = vpop.f32.mrb[0].mxu0
        %1049 = vdwg.mxu0
        %1050 = vmatprep.subr.bf16.mxu0 0
        %1051 = vmatpush1.bf16.msra.mxu0 %v1007
        %1052 = vmatprep.subr.bf16.mxu0 0
        %1053 = vmatpush1.bf16.msra.mxu0 0
        %1054 = vmatprep.subr.bf16.mxu0 0
        %1055 = vmatpush1.bf16.msra.mxu0 0
        %1056 = vmatprep.subr.bf16.mxu0 0
        %1057 = vmatpush1.bf16.msra.mxu0 0
        %1058 = vmatprep.subr.bf16.mxu0 0
        %1059 = vmatpush1.bf16.msra.mxu0 0
        %1060 = vmatprep.subr.bf16.mxu0 0
        %1061 = vmatpush1.bf16.msra.mxu0 0
        %1062 = vmatprep.subr.bf16.mxu0 0
        %1063 = vmatpush1.bf16.msra.mxu0 0
        %1064 = vmatprep.subr.bf16.mxu0 0
        %1065 = vmatpush1.bf16.msra.mxu0 0
        %1066 = vmatprep.subr.bf16.mxu0 0
        %1067 = vmatpush1.bf16.msra.mxu0 0
        %1068 = vmatprep.subr.bf16.mxu0 0
        %1069 = vmatpush1.bf16.msra.mxu0 0
        %1070 = vmatprep.subr.bf16.mxu0 0
        %1071 = vmatpush1.bf16.msra.mxu0 0
        %1072 = vmatprep.subr.bf16.mxu0 0
        %1073 = vmatpush1.bf16.msra.mxu0 0
        %1074 = vmatprep.subr.bf16.mxu0 0
        %1075 = vmatpush1.bf16.msra.mxu0 0
        %1076 = vmatprep.subr.bf16.mxu0 0
        %1077 = vmatpush1.bf16.msra.mxu0 0
        %1078 = vmatprep.subr.bf16.mxu0 0
        %1079 = vmatpush1.bf16.msra.mxu0 0
        %1080 = vmatprep.subr.bf16.mxu0 0
        %1081 = vmatpush1.bf16.msra.mxu0 0
        %1082 = vmatprep.mubr.bf16.mxu0 0
        %1083 = vmatmul.mubr.bf16.gmra.mrb[0].mxu0 %v998
        %v1084 = vpop.f32.mrb[0].mxu0
        %v1085 = vadd.f32 0.0, %v1084
        %v1086 = vpop.f32.mrb[0].mxu0
        %v1087 = vpop.f32.mrb[0].mxu0
        %v1088 = vpop.f32.mrb[0].mxu0
        %1089 = vdwg.mxu0
        %v1090 = vadd.f32 %v980, %v1044
        %v1091 = vadd.f32 %v981, %v1046
        %v1092 = vadd.f32 %v982, %v1085
        %s1093 = scalar_lea.vmem [#allocation5], 20
        %v1094 = vld [vmem:[%s1093] sm:$0xf]
        %1095 = vrot.lane.b32.xlu0 %v499, 109
        %v1096 = vpop.permute.xlu0 %1095
        %1097 = vrot.lane.b32.xlu0 %v500, 109
        %v1098 = vpop.permute.xlu0 %1097
        %1099 = vrot.lane.b32.xlu0 %v503, 109
        %v1100 = vpop.permute.xlu0 %1099
        %v1101 = vsel %vm994, %v1096, %v1098
        %v1102 = vsel %vm994, %v1098, %v1100
        %v1104 = vsel %vm577, %v1094, 0
        %v1107 = vsel %vm581, %v1101, 0
        %v1110 = vsel %vm581, %v1102, 0
        %v1113 = vsel %vm581, %v1100, 0
        %1115 = vmatprep.subr.bf16.mxu0 %v1110
        %1116 = vmatpush1.bf16.msra.mxu0 %v1107
        %1117 = vmatprep.subr.bf16.mxu0 0
        %1118 = vmatpush1.bf16.msra.mxu0 0
        %1119 = vmatprep.subr.bf16.mxu0 0
        %1120 = vmatpush1.bf16.msra.mxu0 0
        %1121 = vmatprep.subr.bf16.mxu0 0
        %1122 = vmatpush1.bf16.msra.mxu0 0
        %1123 = vmatprep.subr.bf16.mxu0 0
        %1124 = vmatpush1.bf16.msra.mxu0 0
        %1125 = vmatprep.subr.bf16.mxu0 0
        %1126 = vmatpush1.bf16.msra.mxu0 0
        %1127 = vmatprep.subr.bf16.mxu0 0
        %1128 = vmatpush1.bf16.msra.mxu0 0
        %1129 = vmatprep.subr.bf16.mxu0 0
        %1130 = vmatpush1.bf16.msra.mxu0 0
        %1131 = vmatprep.subr.bf16.mxu0 0
        %1132 = vmatpush1.bf16.msra.mxu0 0
        %1133 = vmatprep.subr.bf16.mxu0 0
        %1134 = vmatpush1.bf16.msra.mxu0 0
        %1135 = vmatprep.subr.bf16.mxu0 0
        %1136 = vmatpush1.bf16.msra.mxu0 0
        %1137 = vmatprep.subr.bf16.mxu0 0
        %1138 = vmatpush1.bf16.msra.mxu0 0
        %1139 = vmatprep.subr.bf16.mxu0 0
        %1140 = vmatpush1.bf16.msra.mxu0 0
        %1141 = vmatprep.subr.bf16.mxu0 0
        %1142 = vmatpush1.bf16.msra.mxu0 0
        %1143 = vmatprep.subr.bf16.mxu0 0
        %1144 = vmatpush1.bf16.msra.mxu0 0
        %1145 = vmatprep.subr.bf16.mxu0 0
        %1146 = vmatpush1.bf16.msra.mxu0 0
        %1147 = vmatprep.mubr.bf16.mxu0 0
        %1148 = vmatmul.mubr.bf16.gmra.mrb[0].mxu0 %v1104
        %v1149 = vpop.f32.mrb[0].mxu0
        %v1150 = vadd.f32 0.0, %v1149
        %v1151 = vpop.f32.mrb[0].mxu0
        %v1152 = vadd.f32 0.0, %v1151
        %v1153 = vpop.f32.mrb[0].mxu0
        %v1154 = vpop.f32.mrb[0].mxu0
        %1155 = vdwg.mxu0
        %1156 = vmatprep.subr.bf16.mxu0 0
        %1157 = vmatpush1.bf16.msra.mxu0 %v1113
        %1158 = vmatprep.subr.bf16.mxu0 0
        %1159 = vmatpush1.bf16.msra.mxu0 0
        %1160 = vmatprep.subr.bf16.mxu0 0
        %1161 = vmatpush1.bf16.msra.mxu0 0
        %1162 = vmatprep.subr.bf16.mxu0 0
        %1163 = vmatpush1.bf16.msra.mxu0 0
        %1164 = vmatprep.subr.bf16.mxu0 0
        %1165 = vmatpush1.bf16.msra.mxu0 0
        %1166 = vmatprep.subr.bf16.mxu0 0
        %1167 = vmatpush1.bf16.msra.mxu0 0
        %1168 = vmatprep.subr.bf16.mxu0 0
        %1169 = vmatpush1.bf16.msra.mxu0 0
        %1170 = vmatprep.subr.bf16.mxu0 0
        %1171 = vmatpush1.bf16.msra.mxu0 0
        %1172 = vmatprep.subr.bf16.mxu0 0
        %1173 = vmatpush1.bf16.msra.mxu0 0
        %1174 = vmatprep.subr.bf16.mxu0 0
        %1175 = vmatpush1.bf16.msra.mxu0 0
        %1176 = vmatprep.subr.bf16.mxu0 0
        %1177 = vmatpush1.bf16.msra.mxu0 0
        %1178 = vmatprep.subr.bf16.mxu0 0
        %1179 = vmatpush1.bf16.msra.mxu0 0
        %1180 = vmatprep.subr.bf16.mxu0 0
        %1181 = vmatpush1.bf16.msra.mxu0 0
        %1182 = vmatprep.subr.bf16.mxu0 0
        %1183 = vmatpush1.bf16.msra.mxu0 0
        %1184 = vmatprep.subr.bf16.mxu0 0
        %1185 = vmatpush1.bf16.msra.mxu0 0
        %1186 = vmatprep.subr.bf16.mxu0 0
        %1187 = vmatpush1.bf16.msra.mxu0 0
        %1188 = vmatprep.mubr.bf16.mxu0 0
        %1189 = vmatmul.mubr.bf16.gmra.mrb[0].mxu0 %v1104
        %v1190 = vpop.f32.mrb[0].mxu0
        %v1191 = vadd.f32 0.0, %v1190
        %v1192 = vpop.f32.mrb[0].mxu0
        %v1193 = vpop.f32.mrb[0].mxu0
        %v1194 = vpop.f32.mrb[0].mxu0
        %1195 = vdwg.mxu0
        %v1196 = vadd.f32 %v1090, %v1150
        %v1197 = vadd.f32 %v1091, %v1152
        %v1198 = vadd.f32 %v1092, %v1191
        %s1199 = scalar_lea.vmem [#allocation5], 24
        %v1200 = vld [vmem:[%s1199] sm:$0xf]
        %1201 = vrot.lane.b32.xlu0 %v557, 110
        %v1202 = vpop.permute.xlu0 %1201
        %1203 = vrot.lane.b32.xlu0 %v558, 110
        %v1204 = vpop.permute.xlu0 %1203
        %1205 = vrot.lane.b32.xlu0 %v561, 110
        %v1206 = vpop.permute.xlu0 %1205
        %v1207 = vsel %vm884, %v1202, %v1204
        %v1208 = vsel %vm884, %v1204, %v1206
        %v1210 = vsel %vm577, %v1200, 0
        %v1213 = vsel %vm581, %v1207, 0
        %v1216 = vsel %vm581, %v1208, 0
        %v1219 = vsel %vm581, %v1206, 0
        %1221 = vmatprep.subr.bf16.mxu0 %v1216
        %1222 = vmatpush1.bf16.msra.mxu0 %v1213
        %1223 = vmatprep.subr.bf16.mxu0 0
        %1224 = vmatpush1.bf16.msra.mxu0 0
        %1225 = vmatprep.subr.bf16.mxu0 0
        %1226 = vmatpush1.bf16.msra.mxu0 0
        %1227 = vmatprep.subr.bf16.mxu0 0
        %1228 = vmatpush1.bf16.msra.mxu0 0
        %1229 = vmatprep.subr.bf16.mxu0 0
        %1230 = vmatpush1.bf16.msra.mxu0 0
        %1231 = vmatprep.subr.bf16.mxu0 0
        %1232 = vmatpush1.bf16.msra.mxu0 0
        %1233 = vmatprep.subr.bf16.mxu0 0
        %1234 = vmatpush1.bf16.msra.mxu0 0
        %1235 = vmatprep.subr.bf16.mxu0 0
        %1236 = vmatpush1.bf16.msra.mxu0 0
        %1237 = vmatprep.subr.bf16.mxu0 0
        %1238 = vmatpush1.bf16.msra.mxu0 0
        %1239 = vmatprep.subr.bf16.mxu0 0
        %1240 = vmatpush1.bf16.msra.mxu0 0
        %1241 = vmatprep.subr.bf16.mxu0 0
        %1242 = vmatpush1.bf16.msra.mxu0 0
        %1243 = vmatprep.subr.bf16.mxu0 0
        %1244 = vmatpush1.bf16.msra.mxu0 0
        %1245 = vmatprep.subr.bf16.mxu0 0
        %1246 = vmatpush1.bf16.msra.mxu0 0
        %1247 = vmatprep.subr.bf16.mxu0 0
        %1248 = vmatpush1.bf16.msra.mxu0 0
        %1249 = vmatprep.subr.bf16.mxu0 0
        %1250 = vmatpush1.bf16.msra.mxu0 0
        %1251 = vmatprep.subr.bf16.mxu0 0
        %1252 = vmatpush1.bf16.msra.mxu0 0
        %1253 = vmatprep.mubr.bf16.mxu0 0
        %1254 = vmatmul.mubr.bf16.gmra.mrb[0].mxu0 %v1210
        %v1255 = vpop.f32.mrb[0].mxu0
        %v1256 = vadd.f32 0.0, %v1255
        %v1257 = vpop.f32.mrb[0].mxu0
        %v1258 = vadd.f32 0.0, %v1257
        %v1259 = vpop.f32.mrb[0].mxu0
        %v1260 = vpop.f32.mrb[0].mxu0
        %1261 = vdwg.mxu0
        %1262 = vmatprep.subr.bf16.mxu0 0
        %1263 = vmatpush1.bf16.msra.mxu0 %v1219
        %1264 = vmatprep.subr.bf16.mxu0 0
        %1265 = vmatpush1.bf16.msra.mxu0 0
        %1266 = vmatprep.subr.bf16.mxu0 0
        %1267 = vmatpush1.bf16.msra.mxu0 0
        %1268 = vmatprep.subr.bf16.mxu0 0
        %1269 = vmatpush1.bf16.msra.mxu0 0
        %1270 = vmatprep.subr.bf16.mxu0 0
        %1271 = vmatpush1.bf16.msra.mxu0 0
        %1272 = vmatprep.subr.bf16.mxu0 0
        %1273 = vmatpush1.bf16.msra.mxu0 0
        %1274 = vmatprep.subr.bf16.mxu0 0
        %1275 = vmatpush1.bf16.msra.mxu0 0
        %1276 = vmatprep.subr.bf16.mxu0 0
        %1277 = vmatpush1.bf16.msra.mxu0 0
        %1278 = vmatprep.subr.bf16.mxu0 0
        %1279 = vmatpush1.bf16.msra.mxu0 0
        %1280 = vmatprep.subr.bf16.mxu0 0
        %1281 = vmatpush1.bf16.msra.mxu0 0
        %1282 = vmatprep.subr.bf16.mxu0 0
        %1283 = vmatpush1.bf16.msra.mxu0 0
        %1284 = vmatprep.subr.bf16.mxu0 0
        %1285 = vmatpush1.bf16.msra.mxu0 0
        %1286 = vmatprep.subr.bf16.mxu0 0
        %1287 = vmatpush1.bf16.msra.mxu0 0
        %1288 = vmatprep.subr.bf16.mxu0 0
        %1289 = vmatpush1.bf16.msra.mxu0 0
        %1290 = vmatprep.subr.bf16.mxu0 0
        %1291 = vmatpush1.bf16.msra.mxu0 0
        %1292 = vmatprep.subr.bf16.mxu0 0
        %1293 = vmatpush1.bf16.msra.mxu0 0
        %1294 = vmatprep.mubr.bf16.mxu0 0
        %1295 = vmatmul.mubr.bf16.gmra.mrb[0].mxu0 %v1210
        %v1296 = vpop.f32.mrb[0].mxu0
        %v1297 = vadd.f32 0.0, %v1296
        %v1298 = vpop.f32.mrb[0].mxu0
        %v1299 = vpop.f32.mrb[0].mxu0
        %v1300 = vpop.f32.mrb[0].mxu0
        %1301 = vdwg.mxu0
        %v1302 = vadd.f32 %v1196, %v1256
        %v1303 = vadd.f32 %v1197, %v1258
        %v1304 = vadd.f32 %v1198, %v1297
        %s1305 = scalar_lea.vmem [#allocation5], 28
        %v1306 = vld [vmem:[%s1305] sm:$0xf]
        %1307 = vrot.lane.b32.xlu0 %v552, 109
        %v1308 = vpop.permute.xlu0 %1307
        %1309 = vrot.lane.b32.xlu0 %v553, 109
        %v1310 = vpop.permute.xlu0 %1309
        %1311 = vrot.lane.b32.xlu0 %v556, 109
        %v1312 = vpop.permute.xlu0 %1311
        %v1313 = vsel %vm994, %v1308, %v1310
        %v1314 = vsel %vm994, %v1310, %v1312
        %v1316 = vsel %vm577, %v1306, 0
        %v1319 = vsel %vm581, %v1313, 0
        %v1322 = vsel %vm581, %v1314, 0
        %v1325 = vsel %vm581, %v1312, 0
        %1327 = vmatprep.subr.bf16.mxu0 %v1322
        %1328 = vmatpush1.bf16.msra.mxu0 %v1319
        %1329 = vmatprep.subr.bf16.mxu0 0
        %1330 = vmatpush1.bf16.msra.mxu0 0
        %1331 = vmatprep.subr.bf16.mxu0 0
        %1332 = vmatpush1.bf16.msra.mxu0 0
        %1333 = vmatprep.subr.bf16.mxu0 0
        %1334 = vmatpush1.bf16.msra.mxu0 0
        %1335 = vmatprep.subr.bf16.mxu0 0
        %1336 = vmatpush1.bf16.msra.mxu0 0
        %1337 = vmatprep.subr.bf16.mxu0 0
        %1338 = vmatpush1.bf16.msra.mxu0 0
        %1339 = vmatprep.subr.bf16.mxu0 0
        %1340 = vmatpush1.bf16.msra.mxu0 0
        %1341 = vmatprep.subr.bf16.mxu0 0
        %1342 = vmatpush1.bf16.msra.mxu0 0
        %1343 = vmatprep.subr.bf16.mxu0 0
        %1344 = vmatpush1.bf16.msra.mxu0 0
        %1345 = vmatprep.subr.bf16.mxu0 0
        %1346 = vmatpush1.bf16.msra.mxu0 0
        %1347 = vmatprep.subr.bf16.mxu0 0
        %1348 = vmatpush1.bf16.msra.mxu0 0
        %1349 = vmatprep.subr.bf16.mxu0 0
        %1350 = vmatpush1.bf16.msra.mxu0 0
        %1351 = vmatprep.subr.bf16.mxu0 0
        %1352 = vmatpush1.bf16.msra.mxu0 0
        %1353 = vmatprep.subr.bf16.mxu0 0
        %1354 = vmatpush1.bf16.msra.mxu0 0
        %1355 = vmatprep.subr.bf16.mxu0 0
        %1356 = vmatpush1.bf16.msra.mxu0 0
        %1357 = vmatprep.subr.bf16.mxu0 0
        %1358 = vmatpush1.bf16.msra.mxu0 0
        %1359 = vmatprep.mubr.bf16.mxu0 0
        %1360 = vmatmul.mubr.bf16.gmra.mrb[0].mxu0 %v1316
        %v1361 = vpop.f32.mrb[0].mxu0
        %v1362 = vadd.f32 0.0, %v1361
        %v1363 = vpop.f32.mrb[0].mxu0
        %v1364 = vadd.f32 0.0, %v1363
        %v1365 = vpop.f32.mrb[0].mxu0
        %v1366 = vpop.f32.mrb[0].mxu0
        %1367 = vdwg.mxu0
        %1368 = vmatprep.subr.bf16.mxu0 0
        %1369 = vmatpush1.bf16.msra.mxu0 %v1325
        %1370 = vmatprep.subr.bf16.mxu0 0
        %1371 = vmatpush1.bf16.msra.mxu0 0
        %1372 = vmatprep.subr.bf16.mxu0 0
        %1373 = vmatpush1.bf16.msra.mxu0 0
        %1374 = vmatprep.subr.bf16.mxu0 0
        %1375 = vmatpush1.bf16.msra.mxu0 0
        %1376 = vmatprep.subr.bf16.mxu0 0
        %1377 = vmatpush1.bf16.msra.mxu0 0
        %1378 = vmatprep.subr.bf16.mxu0 0
        %1379 = vmatpush1.bf16.msra.mxu0 0
        %1380 = vmatprep.subr.bf16.mxu0 0
        %1381 = vmatpush1.bf16.msra.mxu0 0
        %1382 = vmatprep.subr.bf16.mxu0 0
        %1383 = vmatpush1.bf16.msra.mxu0 0
        %1384 = vmatprep.subr.bf16.mxu0 0
        %1385 = vmatpush1.bf16.msra.mxu0 0
        %1386 = vmatprep.subr.bf16.mxu0 0
        %1387 = vmatpush1.bf16.msra.mxu0 0
        %1388 = vmatprep.subr.bf16.mxu0 0
        %1389 = vmatpush1.bf16.msra.mxu0 0
        %1390 = vmatprep.subr.bf16.mxu0 0
        %1391 = vmatpush1.bf16.msra.mxu0 0
        %1392 = vmatprep.subr.bf16.mxu0 0
        %1393 = vmatpush1.bf16.msra.mxu0 0
        %1394 = vmatprep.subr.bf16.mxu0 0
        %1395 = vmatpush1.bf16.msra.mxu0 0
        %1396 = vmatprep.subr.bf16.mxu0 0
        %1397 = vmatpush1.bf16.msra.mxu0 0
        %1398 = vmatprep.subr.bf16.mxu0 0
        %1399 = vmatpush1.bf16.msra.mxu0 0
        %1400 = vmatprep.mubr.bf16.mxu0 0
        %1401 = vmatmul.mubr.bf16.gmra.mrb[0].mxu0 %v1316
        %v1402 = vpop.f32.mrb[0].mxu0
        %v1403 = vadd.f32 0.0, %v1402
        %v1404 = vpop.f32.mrb[0].mxu0
        %v1405 = vpop.f32.mrb[0].mxu0
        %v1406 = vpop.f32.mrb[0].mxu0
        %1407 = vdwg.mxu0
        %v1408 = vadd.f32 %v1302, %v1362
        %v1409 = vadd.f32 %v1303, %v1364
        %v1410 = vadd.f32 %v1304, %v1403
        %s1411 = scalar_lea.vmem [#allocation5], 32
        %v1412 = vld [vmem:[%s1411] sm:$0xf]
        %1413 = vrot.lane.b32.xlu0 %v557, 109
        %v1414 = vpop.permute.xlu0 %1413
        %1415 = vrot.lane.b32.xlu0 %v558, 109
        %v1416 = vpop.permute.xlu0 %1415
        %1417 = vrot.lane.b32.xlu0 %v561, 109
        %v1418 = vpop.permute.xlu0 %1417
        %v1419 = vsel %vm994, %v1414, %v1416
        %v1420 = vsel %vm994, %v1416, %v1418
        %v1422 = vsel %vm577, %v1412, 0
        %v1425 = vsel %vm581, %v1419, 0
        %v1428 = vsel %vm581, %v1420, 0
        %v1431 = vsel %vm581, %v1418, 0
        %1433 = vmatprep.subr.bf16.mxu0 %v1428
        %1434 = vmatpush1.bf16.msra.mxu0 %v1425
        %1435 = vmatprep.subr.bf16.mxu0 0
        %1436 = vmatpush1.bf16.msra.mxu0 0
        %1437 = vmatprep.subr.bf16.mxu0 0
        %1438 = vmatpush1.bf16.msra.mxu0 0
        %1439 = vmatprep.subr.bf16.mxu0 0
        %1440 = vmatpush1.bf16.msra.mxu0 0
        %1441 = vmatprep.subr.bf16.mxu0 0
        %1442 = vmatpush1.bf16.msra.mxu0 0
        %1443 = vmatprep.subr.bf16.mxu0 0
        %1444 = vmatpush1.bf16.msra.mxu0 0
        %1445 = vmatprep.subr.bf16.mxu0 0
        %1446 = vmatpush1.bf16.msra.mxu0 0
        %1447 = vmatprep.subr.bf16.mxu0 0
        %1448 = vmatpush1.bf16.msra.mxu0 0
        %1449 = vmatprep.subr.bf16.mxu0 0
        %1450 = vmatpush1.bf16.msra.mxu0 0
        %1451 = vmatprep.subr.bf16.mxu0 0
        %1452 = vmatpush1.bf16.msra.mxu0 0
        %1453 = vmatprep.subr.bf16.mxu0 0
        %1454 = vmatpush1.bf16.msra.mxu0 0
        %1455 = vmatprep.subr.bf16.mxu0 0
        %1456 = vmatpush1.bf16.msra.mxu0 0
        %1457 = vmatprep.subr.bf16.mxu0 0
        %1458 = vmatpush1.bf16.msra.mxu0 0
        %1459 = vmatprep.subr.bf16.mxu0 0
        %1460 = vmatpush1.bf16.msra.mxu0 0
        %1461 = vmatprep.subr.bf16.mxu0 0
        %1462 = vmatpush1.bf16.msra.mxu0 0
        %1463 = vmatprep.subr.bf16.mxu0 0
        %1464 = vmatpush1.bf16.msra.mxu0 0
        %1465 = vmatprep.mubr.bf16.mxu0 0
        %1466 = vmatmul.mubr.bf16.gmra.mrb[0].mxu0 %v1422
        %v1467 = vpop.f32.mrb[0].mxu0
        %v1468 = vadd.f32 0.0, %v1467
        %v1469 = vpop.f32.mrb[0].mxu0
        %v1470 = vadd.f32 0.0, %v1469
        %v1471 = vpop.f32.mrb[0].mxu0
        %v1472 = vpop.f32.mrb[0].mxu0
        %1473 = vdwg.mxu0
        %1474 = vmatprep.subr.bf16.mxu0 0
        %1475 = vmatpush1.bf16.msra.mxu0 %v1431
        %1476 = vmatprep.subr.bf16.mxu0 0
        %1477 = vmatpush1.bf16.msra.mxu0 0
        %1478 = vmatprep.subr.bf16.mxu0 0
        %1479 = vmatpush1.bf16.msra.mxu0 0
        %1480 = vmatprep.subr.bf16.mxu0 0
        %1481 = vmatpush1.bf16.msra.mxu0 0
        %1482 = vmatprep.subr.bf16.mxu0 0
        %1483 = vmatpush1.bf16.msra.mxu0 0
        %1484 = vmatprep.subr.bf16.mxu0 0
        %1485 = vmatpush1.bf16.msra.mxu0 0
        %1486 = vmatprep.subr.bf16.mxu0 0
        %1487 = vmatpush1.bf16.msra.mxu0 0
        %1488 = vmatprep.subr.bf16.mxu0 0
        %1489 = vmatpush1.bf16.msra.mxu0 0
        %1490 = vmatprep.subr.bf16.mxu0 0
        %1491 = vmatpush1.bf16.msra.mxu0 0
        %1492 = vmatprep.subr.bf16.mxu0 0
        %1493 = vmatpush1.bf16.msra.mxu0 0
        %1494 = vmatprep.subr.bf16.mxu0 0
        %1495 = vmatpush1.bf16.msra.mxu0 0
        %1496 = vmatprep.subr.bf16.mxu0 0
        %1497 = vmatpush1.bf16.msra.mxu0 0
        %1498 = vmatprep.subr.bf16.mxu0 0
        %1499 = vmatpush1.bf16.msra.mxu0 0
        %1500 = vmatprep.subr.bf16.mxu0 0
        %1501 = vmatpush1.bf16.msra.mxu0 0
        %1502 = vmatprep.subr.bf16.mxu0 0
        %1503 = vmatpush1.bf16.msra.mxu0 0
        %1504 = vmatprep.subr.bf16.mxu0 0
        %1505 = vmatpush1.bf16.msra.mxu0 0
        %1506 = vmatprep.mubr.bf16.mxu0 0
        %1507 = vmatmul.mubr.bf16.gmra.mrb[0].mxu0 %v1422
        %v1508 = vpop.f32.mrb[0].mxu0
        %v1509 = vadd.f32 0.0, %v1508
        %v1510 = vpop.f32.mrb[0].mxu0
        %v1511 = vpop.f32.mrb[0].mxu0
        %v1512 = vpop.f32.mrb[0].mxu0
        %1513 = vdwg.mxu0
        %v1514 = vadd.f32 %v1408, %v1468
        %v1515 = vadd.f32 %v1409, %v1470
        %v1516 = vadd.f32 %v1410, %v1509
        %v1517 = vld [vmem:[#allocation7] sm:$0xff]
        %1519 = vset.pattern.permute.xlu0 0
        %1520 = vperm.xlu0 %1519, %v1517
        %v1521 = vpop.permute.xlu0 %1520
        %v1523 = vadd.f32 %v1514, %v1521
        %v1524 = vadd.f32 %v1515, %v1521
        %v1525 = vadd.f32 %v1516, %v1521
        %v1526 = vmax.f32 %v1523, 0.0
        %v1527 = vmax.f32 %v1524, 0.0
        %v1528 = vmax.f32 %v1525, 0.0
        %v1530 = vlaneseq
        %v1531 = vshrl.u32 %v1530, 7
        %v1532 = vsub.s32 0, %v1531
        %v1533 = vrot.slane %v379, %v1532
        %v1534 = vlaneseq
        %v1535 = vshrl.u32 %v1534, 7
        %v1536 = vsub.s32 1, %v1535
        %v1537 = vrot.slane %v379, %v1536
        %v1538 = vlaneseq
        %v1539 = vshrl.u32 %v1538, 7
        %v1540 = vsub.s32 2, %v1539
        %v1541 = vrot.slane %v379, %v1540
        %v1545 = vmul.f32 %v1526, %v1533
        %v1546 = vmul.f32 %v1527, %v1537
        %v1547 = vmul.f32 %v1528, %v1541
        %v1548 = vpack.c.bf16 %v1545, %v1545
        %v1549 = vpack.c.bf16 %v1546, %v1546
        %v1550 = vpack.c.bf16 %v1547, %v1547
        %1554 = vrot.lane.b32.xlu0 %v1548, 19
        %v1555 = vpop.permute.xlu0 %1554
        %1556 = vrot.lane.b32.xlu0 %v1549, 19
        %v1557 = vpop.permute.xlu0 %1556
        %1558 = vrot.lane.b32.xlu0 %v1550, 19
        %v1559 = vpop.permute.xlu0 %1558
        %vm1560 = vcmask 154624
        %v1561 = vsel %vm1560, %v1555, %v1557
        %v1562 = vsel %vm1560, %v1557, %v1559
        %vm1563 = vcmask 154624
        %v1565 = vsel %vm1563, 0, %v1555
        %vm1566 = vcmask 416768
        %v1568 = vsel %vm1566, %v1562, 0
        %1569 = vmatprep.subr.bf16.mxu0 %v784
        %1570 = vmatpush1.bf16.msra.mxu0 %v781
        %1571 = vmatprep.subr.bf16.mxu0 0
        %1572 = vmatpush1.bf16.msra.mxu0 0
        %1573 = vmatprep.subr.bf16.mxu0 0
        %1574 = vmatpush1.bf16.msra.mxu0 0
        %1575 = vmatprep.subr.bf16.mxu0 0
        %1576 = vmatpush1.bf16.msra.mxu0 0
        %1577 = vmatprep.subr.bf16.mxu0 0
        %1578 = vmatpush1.bf16.msra.mxu0 0
        %1579 = vmatprep.subr.bf16.mxu0 0
        %1580 = vmatpush1.bf16.msra.mxu0 0
        %1581 = vmatprep.subr.bf16.mxu0 0
        %1582 = vmatpush1.bf16.msra.mxu0 0
        %1583 = vmatprep.subr.bf16.mxu0 0
        %1584 = vmatpush1.bf16.msra.mxu0 0
        %1585 = vmatprep.subr.bf16.mxu0 0
        %1586 = vmatpush1.bf16.msra.mxu0 0
        %1587 = vmatprep.subr.bf16.mxu0 0
        %1588 = vmatpush1.bf16.msra.mxu0 0
        %1589 = vmatprep.subr.bf16.mxu0 0
        %1590 = vmatpush1.bf16.msra.mxu0 0
        %1591 = vmatprep.subr.bf16.mxu0 0
        %1592 = vmatpush1.bf16.msra.mxu0 0
        %1593 = vmatprep.subr.bf16.mxu0 0
        %1594 = vmatpush1.bf16.msra.mxu0 0
        %1595 = vmatprep.subr.bf16.mxu0 0
        %1596 = vmatpush1.bf16.msra.mxu0 0
        %1597 = vmatprep.subr.bf16.mxu0 0
        %1598 = vmatpush1.bf16.msra.mxu0 0
        %1599 = vmatprep.subr.bf16.mxu0 0
        %1600 = vmatpush1.bf16.msra.mxu0 0
        %1601 = vmatprep.mubr.bf16.mxu0 0
        %1602 = vmatmul.mubr.bf16.gmra.mrb[0].mxu0 %v579
        %v1603 = vpop.f32.mrb[0].mxu0
        %v1604 = vadd.f32 0.0, %v1603
        %v1605 = vpop.f32.mrb[0].mxu0
        %v1606 = vadd.f32 0.0, %v1605
        %v1607 = vpop.f32.mrb[0].mxu0
        %v1608 = vpop.f32.mrb[0].mxu0
        %1609 = vdwg.mxu0
        %1610 = vmatprep.subr.bf16.mxu0 0
        %1611 = vmatpush1.bf16.msra.mxu0 %v787
        %1612 = vmatprep.subr.bf16.mxu0 0
        %1613 = vmatpush1.bf16.msra.mxu0 0
        %1614 = vmatprep.subr.bf16.mxu0 0
        %1615 = vmatpush1.bf16.msra.mxu0 0
        %1616 = vmatprep.subr.bf16.mxu0 0
        %1617 = vmatpush1.bf16.msra.mxu0 0
        %1618 = vmatprep.subr.bf16.mxu0 0
        %1619 = vmatpush1.bf16.msra.mxu0 0
        %1620 = vmatprep.subr.bf16.mxu0 0
        %1621 = vmatpush1.bf16.msra.mxu0 0
        %1622 = vmatprep.subr.bf16.mxu0 0
        %1623 = vmatpush1.bf16.msra.mxu0 0
        %1624 = vmatprep.subr.bf16.mxu0 0
        %1625 = vmatpush1.bf16.msra.mxu0 0
        %1626 = vmatprep.subr.bf16.mxu0 0
        %1627 = vmatpush1.bf16.msra.mxu0 0
        %1628 = vmatprep.subr.bf16.mxu0 0
        %1629 = vmatpush1.bf16.msra.mxu0 0
        %1630 = vmatprep.subr.bf16.mxu0 0
        %1631 = vmatpush1.bf16.msra.mxu0 0
        %1632 = vmatprep.subr.bf16.mxu0 0
        %1633 = vmatpush1.bf16.msra.mxu0 0
        %1634 = vmatprep.subr.bf16.mxu0 0
        %1635 = vmatpush1.bf16.msra.mxu0 0
        %1636 = vmatprep.subr.bf16.mxu0 0
        %1637 = vmatpush1.bf16.msra.mxu0 0
        %1638 = vmatprep.subr.bf16.mxu0 0
        %1639 = vmatpush1.bf16.msra.mxu0 0
        %1640 = vmatprep.subr.bf16.mxu0 0
        %1641 = vmatpush1.bf16.msra.mxu0 0
        %1642 = vmatprep.mubr.bf16.mxu0 0
        %1643 = vmatmul.mubr.bf16.gmra.mrb[0].mxu0 %v579
        %v1644 = vpop.f32.mrb[0].mxu0
        %v1645 = vadd.f32 0.0, %v1644
        %v1646 = vpop.f32.mrb[0].mxu0
        %v1647 = vpop.f32.mrb[0].mxu0
        %v1648 = vpop.f32.mrb[0].mxu0
        %1649 = vdwg.mxu0
        %1650 = vmatprep.subr.bf16.mxu0 %v586
        %1651 = vmatpush1.bf16.msra.mxu0 %v583
        %1652 = vmatprep.subr.bf16.mxu0 0
        %1653 = vmatpush1.bf16.msra.mxu0 0
        %1654 = vmatprep.subr.bf16.mxu0 0
        %1655 = vmatpush1.bf16.msra.mxu0 0
        %1656 = vmatprep.subr.bf16.mxu0 0
        %1657 = vmatpush1.bf16.msra.mxu0 0
        %1658 = vmatprep.subr.bf16.mxu0 0
        %1659 = vmatpush1.bf16.msra.mxu0 0
        %1660 = vmatprep.subr.bf16.mxu0 0
        %1661 = vmatpush1.bf16.msra.mxu0 0
        %1662 = vmatprep.subr.bf16.mxu0 0
        %1663 = vmatpush1.bf16.msra.mxu0 0
        %1664 = vmatprep.subr.bf16.mxu0 0
        %1665 = vmatpush1.bf16.msra.mxu0 0
        %1666 = vmatprep.subr.bf16.mxu0 0
        %1667 = vmatpush1.bf16.msra.mxu0 0
        %1668 = vmatprep.subr.bf16.mxu0 0
        %1669 = vmatpush1.bf16.msra.mxu0 0
        %1670 = vmatprep.subr.bf16.mxu0 0
        %1671 = vmatpush1.bf16.msra.mxu0 0
        %1672 = vmatprep.subr.bf16.mxu0 0
        %1673 = vmatpush1.bf16.msra.mxu0 0
        %1674 = vmatprep.subr.bf16.mxu0 0
        %1675 = vmatpush1.bf16.msra.mxu0 0
        %1676 = vmatprep.subr.bf16.mxu0 0
        %1677 = vmatpush1.bf16.msra.mxu0 0
        %1678 = vmatprep.subr.bf16.mxu0 0
        %1679 = vmatpush1.bf16.msra.mxu0 0
        %1680 = vmatprep.subr.bf16.mxu0 0
        %1681 = vmatpush1.bf16.msra.mxu0 0
        %1682 = vmatprep.mubr.bf16.mxu0 0
        %1683 = vmatmul.mubr.bf16.gmra.mrb[0].mxu0 %v673
        %v1684 = vpop.f32.mrb[0].mxu0
        %v1685 = vadd.f32 %v1604, %v1684
        %v1686 = vpop.f32.mrb[0].mxu0
        %v1687 = vadd.f32 %v1606, %v1686
        %v1688 = vpop.f32.mrb[0].mxu0
        %v1689 = vpop.f32.mrb[0].mxu0
        %1690 = vdwg.mxu0
        %1691 = vmatprep.subr.bf16.mxu0 0
        %1692 = vmatpush1.bf16.msra.mxu0 %v589
        %1693 = vmatprep.subr.bf16.mxu0 0
        %1694 = vmatpush1.bf16.msra.mxu0 0
        %1695 = vmatprep.subr.bf16.mxu0 0
        %1696 = vmatpush1.bf16.msra.mxu0 0
        %1697 = vmatprep.subr.bf16.mxu0 0
        %1698 = vmatpush1.bf16.msra.mxu0 0
        %1699 = vmatprep.subr.bf16.mxu0 0
        %1700 = vmatpush1.bf16.msra.mxu0 0
        %1701 = vmatprep.subr.bf16.mxu0 0
        %1702 = vmatpush1.bf16.msra.mxu0 0
        %1703 = vmatprep.subr.bf16.mxu0 0
        %1704 = vmatpush1.bf16.msra.mxu0 0
        %1705 = vmatprep.subr.bf16.mxu0 0
        %1706 = vmatpush1.bf16.msra.mxu0 0
        %1707 = vmatprep.subr.bf16.mxu0 0
        %1708 = vmatpush1.bf16.msra.mxu0 0
        %1709 = vmatprep.subr.bf16.mxu0 0
        %1710 = vmatpush1.bf16.msra.mxu0 0
        %1711 = vmatprep.subr.bf16.mxu0 0
        %1712 = vmatpush1.bf16.msra.mxu0 0
        %1713 = vmatprep.subr.bf16.mxu0 0
        %1714 = vmatpush1.bf16.msra.mxu0 0
        %1715 = vmatprep.subr.bf16.mxu0 0
        %1716 = vmatpush1.bf16.msra.mxu0 0
        %1717 = vmatprep.subr.bf16.mxu0 0
        %1718 = vmatpush1.bf16.msra.mxu0 0
        %1719 = vmatprep.subr.bf16.mxu0 0
        %1720 = vmatpush1.bf16.msra.mxu0 0
        %1721 = vmatprep.subr.bf16.mxu0 0
        %1722 = vmatpush1.bf16.msra.mxu0 0
        %1723 = vmatprep.mubr.bf16.mxu0 0
        %1724 = vmatmul.mubr.bf16.gmra.mrb[0].mxu0 %v673
        %v1725 = vpop.f32.mrb[0].mxu0
        %v1726 = vadd.f32 %v1645, %v1725
        %v1727 = vpop.f32.mrb[0].mxu0
        %v1728 = vpop.f32.mrb[0].mxu0
        %v1729 = vpop.f32.mrb[0].mxu0
        %1730 = vdwg.mxu0
        %1731 = vrot.lane.b32.xlu0 %v552, 126
        %v1732 = vpop.permute.xlu0 %1731
        %1733 = vrot.lane.b32.xlu0 %v553, 126
        %v1734 = vpop.permute.xlu0 %1733
        %1735 = vrot.lane.b32.xlu0 %v556, 126
        %v1736 = vpop.permute.xlu0 %1735
        %vm1737 = vcmask 1031168
        %v1738 = vsel %vm1737, %v1732, %v1734
        %v1739 = vsel %vm1737, %v1734, %v1736
        %v1741 = vsel %vm581, %v1738, 0
        %v1744 = vsel %vm581, %v1739, 0
        %v1747 = vsel %vm581, %v1736, 0
        %1749 = vmatprep.subr.bf16.mxu0 %v1744
        %1750 = vmatpush1.bf16.msra.mxu0 %v1741
        %1751 = vmatprep.subr.bf16.mxu0 0
        %1752 = vmatpush1.bf16.msra.mxu0 0
        %1753 = vmatprep.subr.bf16.mxu0 0
        %1754 = vmatpush1.bf16.msra.mxu0 0
        %1755 = vmatprep.subr.bf16.mxu0 0
        %1756 = vmatpush1.bf16.msra.mxu0 0
        %1757 = vmatprep.subr.bf16.mxu0 0
        %1758 = vmatpush1.bf16.msra.mxu0 0
        %1759 = vmatprep.subr.bf16.mxu0 0
        %1760 = vmatpush1.bf16.msra.mxu0 0
        %1761 = vmatprep.subr.bf16.mxu0 0
        %1762 = vmatpush1.bf16.msra.mxu0 0
        %1763 = vmatprep.subr.bf16.mxu0 0
        %1764 = vmatpush1.bf16.msra.mxu0 0
        %1765 = vmatprep.subr.bf16.mxu0 0
        %1766 = vmatpush1.bf16.msra.mxu0 0
        %1767 = vmatprep.subr.bf16.mxu0 0
        %1768 = vmatpush1.bf16.msra.mxu0 0
        %1769 = vmatprep.subr.bf16.mxu0 0
        %1770 = vmatpush1.bf16.msra.mxu0 0
        %1771 = vmatprep.subr.bf16.mxu0 0
        %1772 = vmatpush1.bf16.msra.mxu0 0
        %1773 = vmatprep.subr.bf16.mxu0 0
        %1774 = vmatpush1.bf16.msra.mxu0 0
        %1775 = vmatprep.subr.bf16.mxu0 0
        %1776 = vmatpush1.bf16.msra.mxu0 0
        %1777 = vmatprep.subr.bf16.mxu0 0
        %1778 = vmatpush1.bf16.msra.mxu0 0
        %1779 = vmatprep.subr.bf16.mxu0 0
        %1780 = vmatpush1.bf16.msra.mxu0 0
        %1781 = vmatprep.mubr.bf16.mxu0 0
        %1782 = vmatmul.mubr.bf16.gmra.mrb[0].mxu0 %v778
        %v1783 = vpop.f32.mrb[0].mxu0
        %v1784 = vadd.f32 0.0, %v1783
        %v1785 = vpop.f32.mrb[0].mxu0
        %v1786 = vadd.f32 0.0, %v1785
        %v1787 = vpop.f32.mrb[0].mxu0
        %v1788 = vpop.f32.mrb[0].mxu0
        %1789 = vdwg.mxu0
        %1790 = vmatprep.subr.bf16.mxu0 0
        %1791 = vmatpush1.bf16.msra.mxu0 %v1747
        %1792 = vmatprep.subr.bf16.mxu0 0
        %1793 = vmatpush1.bf16.msra.mxu0 0
        %1794 = vmatprep.subr.bf16.mxu0 0
        %1795 = vmatpush1.bf16.msra.mxu0 0
        %1796 = vmatprep.subr.bf16.mxu0 0
        %1797 = vmatpush1.bf16.msra.mxu0 0
        %1798 = vmatprep.subr.bf16.mxu0 0
        %1799 = vmatpush1.bf16.msra.mxu0 0
        %1800 = vmatprep.subr.bf16.mxu0 0
        %1801 = vmatpush1.bf16.msra.mxu0 0
        %1802 = vmatprep.subr.bf16.mxu0 0
        %1803 = vmatpush1.bf16.msra.mxu0 0
        %1804 = vmatprep.subr.bf16.mxu0 0
        %1805 = vmatpush1.bf16.msra.mxu0 0
        %1806 = vmatprep.subr.bf16.mxu0 0
        %1807 = vmatpush1.bf16.msra.mxu0 0
        %1808 = vmatprep.subr.bf16.mxu0 0
        %1809 = vmatpush1.bf16.msra.mxu0 0
        %1810 = vmatprep.subr.bf16.mxu0 0
        %1811 = vmatpush1.bf16.msra.mxu0 0
        %1812 = vmatprep.subr.bf16.mxu0 0
        %1813 = vmatpush1.bf16.msra.mxu0 0
        %1814 = vmatprep.subr.bf16.mxu0 0
        %1815 = vmatpush1.bf16.msra.mxu0 0
        %1816 = vmatprep.subr.bf16.mxu0 0
        %1817 = vmatpush1.bf16.msra.mxu0 0
        %1818 = vmatprep.subr.bf16.mxu0 0
        %1819 = vmatpush1.bf16.msra.mxu0 0
        %1820 = vmatprep.subr.bf16.mxu0 0
        %1821 = vmatpush1.bf16.msra.mxu0 0
        %1822 = vmatprep.mubr.bf16.mxu0 0
        %1823 = vmatmul.mubr.bf16.gmra.mrb[0].mxu0 %v778
        %v1824 = vpop.f32.mrb[0].mxu0
        %v1825 = vadd.f32 0.0, %v1824
        %v1826 = vpop.f32.mrb[0].mxu0
        %v1827 = vpop.f32.mrb[0].mxu0
        %v1828 = vpop.f32.mrb[0].mxu0
        %1829 = vdwg.mxu0
        %v1830 = vadd.f32 %v1685, %v1784
        %v1831 = vadd.f32 %v1687, %v1786
        %v1832 = vadd.f32 %v1726, %v1825
        %1833 = vmatprep.subr.bf16.mxu0 %v1004
        %1834 = vmatpush1.bf16.msra.mxu0 %v1001
        %1835 = vmatprep.subr.bf16.mxu0 0
        %1836 = vmatpush1.bf16.msra.mxu0 0
        %1837 = vmatprep.subr.bf16.mxu0 0
        %1838 = vmatpush1.bf16.msra.mxu0 0
        %1839 = vmatprep.subr.bf16.mxu0 0
        %1840 = vmatpush1.bf16.msra.mxu0 0
        %1841 = vmatprep.subr.bf16.mxu0 0
        %1842 = vmatpush1.bf16.msra.mxu0 0
        %1843 = vmatprep.subr.bf16.mxu0 0
        %1844 = vmatpush1.bf16.msra.mxu0 0
        %1845 = vmatprep.subr.bf16.mxu0 0
        %1846 = vmatpush1.bf16.msra.mxu0 0
        %1847 = vmatprep.subr.bf16.mxu0 0
        %1848 = vmatpush1.bf16.msra.mxu0 0
        %1849 = vmatprep.subr.bf16.mxu0 0
        %1850 = vmatpush1.bf16.msra.mxu0 0
        %1851 = vmatprep.subr.bf16.mxu0 0
        %1852 = vmatpush1.bf16.msra.mxu0 0
        %1853 = vmatprep.subr.bf16.mxu0 0
        %1854 = vmatpush1.bf16.msra.mxu0 0
        %1855 = vmatprep.subr.bf16.mxu0 0
        %1856 = vmatpush1.bf16.msra.mxu0 0
        %1857 = vmatprep.subr.bf16.mxu0 0
        %1858 = vmatpush1.bf16.msra.mxu0 0
        %1859 = vmatprep.subr.bf16.mxu0 0
        %1860 = vmatpush1.bf16.msra.mxu0 0
        %1861 = vmatprep.subr.bf16.mxu0 0
        %1862 = vmatpush1.bf16.msra.mxu0 0
        %1863 = vmatprep.subr.bf16.mxu0 0
        %1864 = vmatpush1.bf16.msra.mxu0 0
        %1865 = vmatprep.mubr.bf16.mxu0 0
        %1866 = vmatmul.mubr.bf16.gmra.mrb[0].mxu0 %v888
        %v1867 = vpop.f32.mrb[0].mxu0
        %v1868 = vadd.f32 0.0, %v1867
        %v1869 = vpop.f32.mrb[0].mxu0
        %v1870 = vadd.f32 0.0, %v1869
        %v1871 = vpop.f32.mrb[0].mxu0
        %v1872 = vpop.f32.mrb[0].mxu0
        %1873 = vdwg.mxu0
        %1874 = vmatprep.subr.bf16.mxu0 0
        %1875 = vmatpush1.bf16.msra.mxu0 %v1007
        %1876 = vmatprep.subr.bf16.mxu0 0
        %1877 = vmatpush1.bf16.msra.mxu0 0
        %1878 = vmatprep.subr.bf16.mxu0 0
        %1879 = vmatpush1.bf16.msra.mxu0 0
        %1880 = vmatprep.subr.bf16.mxu0 0
        %1881 = vmatpush1.bf16.msra.mxu0 0
        %1882 = vmatprep.subr.bf16.mxu0 0
        %1883 = vmatpush1.bf16.msra.mxu0 0
        %1884 = vmatprep.subr.bf16.mxu0 0
        %1885 = vmatpush1.bf16.msra.mxu0 0
        %1886 = vmatprep.subr.bf16.mxu0 0
        %1887 = vmatpush1.bf16.msra.mxu0 0
        %1888 = vmatprep.subr.bf16.mxu0 0
        %1889 = vmatpush1.bf16.msra.mxu0 0
        %1890 = vmatprep.subr.bf16.mxu0 0
        %1891 = vmatpush1.bf16.msra.mxu0 0
        %1892 = vmatprep.subr.bf16.mxu0 0
        %1893 = vmatpush1.bf16.msra.mxu0 0
        %1894 = vmatprep.subr.bf16.mxu0 0
        %1895 = vmatpush1.bf16.msra.mxu0 0
        %1896 = vmatprep.subr.bf16.mxu0 0
        %1897 = vmatpush1.bf16.msra.mxu0 0
        %1898 = vmatprep.subr.bf16.mxu0 0
        %1899 = vmatpush1.bf16.msra.mxu0 0
        %1900 = vmatprep.subr.bf16.mxu0 0
        %1901 = vmatpush1.bf16.msra.mxu0 0
        %1902 = vmatprep.subr.bf16.mxu0 0
        %1903 = vmatpush1.bf16.msra.mxu0 0
        %1904 = vmatprep.subr.bf16.mxu0 0
        %1905 = vmatpush1.bf16.msra.mxu0 0
        %1906 = vmatprep.mubr.bf16.mxu0 0
        %1907 = vmatmul.mubr.bf16.gmra.mrb[0].mxu0 %v888
        %v1908 = vpop.f32.mrb[0].mxu0
        %v1909 = vadd.f32 0.0, %v1908
        %v1910 = vpop.f32.mrb[0].mxu0
        %v1911 = vpop.f32.mrb[0].mxu0
        %v1912 = vpop.f32.mrb[0].mxu0
        %1913 = vdwg.mxu0
        %v1914 = vadd.f32 %v1830, %v1868
        %v1915 = vadd.f32 %v1831, %v1870
        %v1916 = vadd.f32 %v1832, %v1909
        %1917 = vmatprep.subr.bf16.mxu0 %v1110
        %1918 = vmatpush1.bf16.msra.mxu0 %v1107
        %1919 = vmatprep.subr.bf16.mxu0 0
        %1920 = vmatpush1.bf16.msra.mxu0 0
        %1921 = vmatprep.subr.bf16.mxu0 0
        %1922 = vmatpush1.bf16.msra.mxu0 0
        %1923 = vmatprep.subr.bf16.mxu0 0
        %1924 = vmatpush1.bf16.msra.mxu0 0
        %1925 = vmatprep.subr.bf16.mxu0 0
        %1926 = vmatpush1.bf16.msra.mxu0 0
        %1927 = vmatprep.subr.bf16.mxu0 0
        %1928 = vmatpush1.bf16.msra.mxu0 0
        %1929 = vmatprep.subr.bf16.mxu0 0
        %1930 = vmatpush1.bf16.msra.mxu0 0
        %1931 = vmatprep.subr.bf16.mxu0 0
        %1932 = vmatpush1.bf16.msra.mxu0 0
        %1933 = vmatprep.subr.bf16.mxu0 0
        %1934 = vmatpush1.bf16.msra.mxu0 0
        %1935 = vmatprep.subr.bf16.mxu0 0
        %1936 = vmatpush1.bf16.msra.mxu0 0
        %1937 = vmatprep.subr.bf16.mxu0 0
        %1938 = vmatpush1.bf16.msra.mxu0 0
        %1939 = vmatprep.subr.bf16.mxu0 0
        %1940 = vmatpush1.bf16.msra.mxu0 0
        %1941 = vmatprep.subr.bf16.mxu0 0
        %1942 = vmatpush1.bf16.msra.mxu0 0
        %1943 = vmatprep.subr.bf16.mxu0 0
        %1944 = vmatpush1.bf16.msra.mxu0 0
        %1945 = vmatprep.subr.bf16.mxu0 0
        %1946 = vmatpush1.bf16.msra.mxu0 0
        %1947 = vmatprep.subr.bf16.mxu0 0
        %1948 = vmatpush1.bf16.msra.mxu0 0
        %1949 = vmatprep.mubr.bf16.mxu0 0
        %1950 = vmatmul.mubr.bf16.gmra.mrb[0].mxu0 %v998
        %v1951 = vpop.f32.mrb[0].mxu0
        %v1952 = vadd.f32 0.0, %v1951
        %v1953 = vpop.f32.mrb[0].mxu0
        %v1954 = vadd.f32 0.0, %v1953
        %v1955 = vpop.f32.mrb[0].mxu0
        %v1956 = vpop.f32.mrb[0].mxu0
        %1957 = vdwg.mxu0
        %1958 = vmatprep.subr.bf16.mxu0 0
        %1959 = vmatpush1.bf16.msra.mxu0 %v1113
        %1960 = vmatprep.subr.bf16.mxu0 0
        %1961 = vmatpush1.bf16.msra.mxu0 0
        %1962 = vmatprep.subr.bf16.mxu0 0
        %1963 = vmatpush1.bf16.msra.mxu0 0
        %1964 = vmatprep.subr.bf16.mxu0 0
        %1965 = vmatpush1.bf16.msra.mxu0 0
        %1966 = vmatprep.subr.bf16.mxu0 0
        %1967 = vmatpush1.bf16.msra.mxu0 0
        %1968 = vmatprep.subr.bf16.mxu0 0
        %1969 = vmatpush1.bf16.msra.mxu0 0
        %1970 = vmatprep.subr.bf16.mxu0 0
        %1971 = vmatpush1.bf16.msra.mxu0 0
        %1972 = vmatprep.subr.bf16.mxu0 0
        %1973 = vmatpush1.bf16.msra.mxu0 0
        %1974 = vmatprep.subr.bf16.mxu0 0
        %1975 = vmatpush1.bf16.msra.mxu0 0
        %1976 = vmatprep.subr.bf16.mxu0 0
        %1977 = vmatpush1.bf16.msra.mxu0 0
        %1978 = vmatprep.subr.bf16.mxu0 0
        %1979 = vmatpush1.bf16.msra.mxu0 0
        %1980 = vmatprep.subr.bf16.mxu0 0
        %1981 = vmatpush1.bf16.msra.mxu0 0
        %1982 = vmatprep.subr.bf16.mxu0 0
        %1983 = vmatpush1.bf16.msra.mxu0 0
        %1984 = vmatprep.subr.bf16.mxu0 0
        %1985 = vmatpush1.bf16.msra.mxu0 0
        %1986 = vmatprep.subr.bf16.mxu0 0
        %1987 = vmatpush1.bf16.msra.mxu0 0
        %1988 = vmatprep.subr.bf16.mxu0 0
        %1989 = vmatpush1.bf16.msra.mxu0 0
        %1990 = vmatprep.mubr.bf16.mxu0 0
        %1991 = vmatmul.mubr.bf16.gmra.mrb[0].mxu0 %v998
        %v1992 = vpop.f32.mrb[0].mxu0
        %v1993 = vadd.f32 0.0, %v1992
        %v1994 = vpop.f32.mrb[0].mxu0
        %v1995 = vpop.f32.mrb[0].mxu0
        %v1996 = vpop.f32.mrb[0].mxu0
        %1997 = vdwg.mxu0
        %v1998 = vadd.f32 %v1914, %v1952
        %v1999 = vadd.f32 %v1915, %v1954
        %v2000 = vadd.f32 %v1916, %v1993
        %2001 = vrot.lane.b32.xlu0 %v492, 108
        %v2002 = vpop.permute.xlu0 %2001
        %2003 = vrot.lane.b32.xlu0 %v493, 108
        %v2004 = vpop.permute.xlu0 %2003
        %2005 = vrot.lane.b32.xlu0 %v498, 108
        %v2006 = vpop.permute.xlu0 %2005
        %vm2007 = vcmask 883712
        %v2008 = vsel %vm2007, %v2002, %v2004
        %v2009 = vsel %vm2007, %v2004, %v2006
        %v2011 = vsel %vm581, %v2008, 0
        %v2014 = vsel %vm581, %v2009, 0
        %v2017 = vsel %vm581, %v2006, 0
        %2019 = vmatprep.subr.bf16.mxu0 %v2014
        %2020 = vmatpush1.bf16.msra.mxu0 %v2011
        %2021 = vmatprep.subr.bf16.mxu0 0
        %2022 = vmatpush1.bf16.msra.mxu0 0
        %2023 = vmatprep.subr.bf16.mxu0 0
        %2024 = vmatpush1.bf16.msra.mxu0 0
        %2025 = vmatprep.subr.bf16.mxu0 0
        %2026 = vmatpush1.bf16.msra.mxu0 0
        %2027 = vmatprep.subr.bf16.mxu0 0
        %2028 = vmatpush1.bf16.msra.mxu0 0
        %2029 = vmatprep.subr.bf16.mxu0 0
        %2030 = vmatpush1.bf16.msra.mxu0 0
        %2031 = vmatprep.subr.bf16.mxu0 0
        %2032 = vmatpush1.bf16.msra.mxu0 0
        %2033 = vmatprep.subr.bf16.mxu0 0
        %2034 = vmatpush1.bf16.msra.mxu0 0
        %2035 = vmatprep.subr.bf16.mxu0 0
        %2036 = vmatpush1.bf16.msra.mxu0 0
        %2037 = vmatprep.subr.bf16.mxu0 0
        %2038 = vmatpush1.bf16.msra.mxu0 0
        %2039 = vmatprep.subr.bf16.mxu0 0
        %2040 = vmatpush1.bf16.msra.mxu0 0
        %2041 = vmatprep.subr.bf16.mxu0 0
        %2042 = vmatpush1.bf16.msra.mxu0 0
        %2043 = vmatprep.subr.bf16.mxu0 0
        %2044 = vmatpush1.bf16.msra.mxu0 0
        %2045 = vmatprep.subr.bf16.mxu0 0
        %2046 = vmatpush1.bf16.msra.mxu0 0
        %2047 = vmatprep.subr.bf16.mxu0 0
        %2048 = vmatpush1.bf16.msra.mxu0 0
        %2049 = vmatprep.subr.bf16.mxu0 0
        %2050 = vmatpush1.bf16.msra.mxu0 0
        %2051 = vmatprep.mubr.bf16.mxu0 0
        %2052 = vmatmul.mubr.bf16.gmra.mrb[0].mxu0 %v1104
        %v2053 = vpop.f32.mrb[0].mxu0
        %v2054 = vadd.f32 0.0, %v2053
        %v2055 = vpop.f32.mrb[0].mxu0
        %v2056 = vadd.f32 0.0, %v2055
        %v2057 = vpop.f32.mrb[0].mxu0
        %v2058 = vpop.f32.mrb[0].mxu0
        %2059 = vdwg.mxu0
        %2060 = vmatprep.subr.bf16.mxu0 0
        %2061 = vmatpush1.bf16.msra.mxu0 %v2017
        %2062 = vmatprep.subr.bf16.mxu0 0
        %2063 = vmatpush1.bf16.msra.mxu0 0
        %2064 = vmatprep.subr.bf16.mxu0 0
        %2065 = vmatpush1.bf16.msra.mxu0 0
        %2066 = vmatprep.subr.bf16.mxu0 0
        %2067 = vmatpush1.bf16.msra.mxu0 0
        %2068 = vmatprep.subr.bf16.mxu0 0
        %2069 = vmatpush1.bf16.msra.mxu0 0
        %2070 = vmatprep.subr.bf16.mxu0 0
        %2071 = vmatpush1.bf16.msra.mxu0 0
        %2072 = vmatprep.subr.bf16.mxu0 0
        %2073 = vmatpush1.bf16.msra.mxu0 0
        %2074 = vmatprep.subr.bf16.mxu0 0
        %2075 = vmatpush1.bf16.msra.mxu0 0
        %2076 = vmatprep.subr.bf16.mxu0 0
        %2077 = vmatpush1.bf16.msra.mxu0 0
        %2078 = vmatprep.subr.bf16.mxu0 0
        %2079 = vmatpush1.bf16.msra.mxu0 0
        %2080 = vmatprep.subr.bf16.mxu0 0
        %2081 = vmatpush1.bf16.msra.mxu0 0
        %2082 = vmatprep.subr.bf16.mxu0 0
        %2083 = vmatpush1.bf16.msra.mxu0 0
        %2084 = vmatprep.subr.bf16.mxu0 0
        %2085 = vmatpush1.bf16.msra.mxu0 0
        %2086 = vmatprep.subr.bf16.mxu0 0
        %2087 = vmatpush1.bf16.msra.mxu0 0
        %2088 = vmatprep.subr.bf16.mxu0 0
        %2089 = vmatpush1.bf16.msra.mxu0 0
        %2090 = vmatprep.subr.bf16.mxu0 0
        %2091 = vmatpush1.bf16.msra.mxu0 0
        %2092 = vmatprep.mubr.bf16.mxu0 0
        %2093 = vmatmul.mubr.bf16.gmra.mrb[0].mxu0 %v1104
        %v2094 = vpop.f32.mrb[0].mxu0
        %v2095 = vadd.f32 0.0, %v2094
        %v2096 = vpop.f32.mrb[0].mxu0
        %v2097 = vpop.f32.mrb[0].mxu0
        %v2098 = vpop.f32.mrb[0].mxu0
        %2099 = vdwg.mxu0
        %v2100 = vadd.f32 %v1998, %v2054
        %v2101 = vadd.f32 %v1999, %v2056
        %v2102 = vadd.f32 %v2000, %v2095
        %2103 = vmatprep.subr.bf16.mxu0 %v1322
        %2104 = vmatpush1.bf16.msra.mxu0 %v1319
        %2105 = vmatprep.subr.bf16.mxu0 0
        %2106 = vmatpush1.bf16.msra.mxu0 0
        %2107 = vmatprep.subr.bf16.mxu0 0
        %2108 = vmatpush1.bf16.msra.mxu0 0
        %2109 = vmatprep.subr.bf16.mxu0 0
        %2110 = vmatpush1.bf16.msra.mxu0 0
        %2111 = vmatprep.subr.bf16.mxu0 0
        %2112 = vmatpush1.bf16.msra.mxu0 0
        %2113 = vmatprep.subr.bf16.mxu0 0
        %2114 = vmatpush1.bf16.msra.mxu0 0
        %2115 = vmatprep.subr.bf16.mxu0 0
        %2116 = vmatpush1.bf16.msra.mxu0 0
        %2117 = vmatprep.subr.bf16.mxu0 0
        %2118 = vmatpush1.bf16.msra.mxu0 0
        %2119 = vmatprep.subr.bf16.mxu0 0
        %2120 = vmatpush1.bf16.msra.mxu0 0
        %2121 = vmatprep.subr.bf16.mxu0 0
        %2122 = vmatpush1.bf16.msra.mxu0 0
        %2123 = vmatprep.subr.bf16.mxu0 0
        %2124 = vmatpush1.bf16.msra.mxu0 0
        %2125 = vmatprep.subr.bf16.mxu0 0
        %2126 = vmatpush1.bf16.msra.mxu0 0
        %2127 = vmatprep.subr.bf16.mxu0 0
        %2128 = vmatpush1.bf16.msra.mxu0 0
        %2129 = vmatprep.subr.bf16.mxu0 0
        %2130 = vmatpush1.bf16.msra.mxu0 0
        %2131 = vmatprep.subr.bf16.mxu0 0
        %2132 = vmatpush1.bf16.msra.mxu0 0
        %2133 = vmatprep.subr.bf16.mxu0 0
        %2134 = vmatpush1.bf16.msra.mxu0 0
        %2135 = vmatprep.mubr.bf16.mxu0 0
        %2136 = vmatmul.mubr.bf16.gmra.mrb[0].mxu0 %v1210
        %v2137 = vpop.f32.mrb[0].mxu0
        %v2138 = vadd.f32 0.0, %v2137
        %v2139 = vpop.f32.mrb[0].mxu0
        %v2140 = vadd.f32 0.0, %v2139
        %v2141 = vpop.f32.mrb[0].mxu0
        %v2142 = vpop.f32.mrb[0].mxu0
        %2143 = vdwg.mxu0
        %2144 = vmatprep.subr.bf16.mxu0 0
        %2145 = vmatpush1.bf16.msra.mxu0 %v1325
        %2146 = vmatprep.subr.bf16.mxu0 0
        %2147 = vmatpush1.bf16.msra.mxu0 0
        %2148 = vmatprep.subr.bf16.mxu0 0
        %2149 = vmatpush1.bf16.msra.mxu0 0
        %2150 = vmatprep.subr.bf16.mxu0 0
        %2151 = vmatpush1.bf16.msra.mxu0 0
        %2152 = vmatprep.subr.bf16.mxu0 0
        %2153 = vmatpush1.bf16.msra.mxu0 0
        %2154 = vmatprep.subr.bf16.mxu0 0
        %2155 = vmatpush1.bf16.msra.mxu0 0
        %2156 = vmatprep.subr.bf16.mxu0 0
        %2157 = vmatpush1.bf16.msra.mxu0 0
        %2158 = vmatprep.subr.bf16.mxu0 0
        %2159 = vmatpush1.bf16.msra.mxu0 0
        %2160 = vmatprep.subr.bf16.mxu0 0
        %2161 = vmatpush1.bf16.msra.mxu0 0
        %2162 = vmatprep.subr.bf16.mxu0 0
        %2163 = vmatpush1.bf16.msra.mxu0 0
        %2164 = vmatprep.subr.bf16.mxu0 0
        %2165 = vmatpush1.bf16.msra.mxu0 0
        %2166 = vmatprep.subr.bf16.mxu0 0
        %2167 = vmatpush1.bf16.msra.mxu0 0
        %2168 = vmatprep.subr.bf16.mxu0 0
        %2169 = vmatpush1.bf16.msra.mxu0 0
        %2170 = vmatprep.subr.bf16.mxu0 0
        %2171 = vmatpush1.bf16.msra.mxu0 0
        %2172 = vmatprep.subr.bf16.mxu0 0
        %2173 = vmatpush1.bf16.msra.mxu0 0
        %2174 = vmatprep.subr.bf16.mxu0 0
        %2175 = vmatpush1.bf16.msra.mxu0 0
        %2176 = vmatprep.mubr.bf16.mxu0 0
        %2177 = vmatmul.mubr.bf16.gmra.mrb[0].mxu0 %v1210
        %v2178 = vpop.f32.mrb[0].mxu0
        %v2179 = vadd.f32 0.0, %v2178
        %v2180 = vpop.f32.mrb[0].mxu0
        %v2181 = vpop.f32.mrb[0].mxu0
        %v2182 = vpop.f32.mrb[0].mxu0
        %2183 = vdwg.mxu0
        %v2184 = vadd.f32 %v2100, %v2138
        %v2185 = vadd.f32 %v2101, %v2140
        %v2186 = vadd.f32 %v2102, %v2179
        %2187 = vmatprep.subr.bf16.mxu0 %v1428
        %2188 = vmatpush1.bf16.msra.mxu0 %v1425
        %2189 = vmatprep.subr.bf16.mxu0 0
        %2190 = vmatpush1.bf16.msra.mxu0 0
        %2191 = vmatprep.subr.bf16.mxu0 0
        %2192 = vmatpush1.bf16.msra.mxu0 0
        %2193 = vmatprep.subr.bf16.mxu0 0
        %2194 = vmatpush1.bf16.msra.mxu0 0
        %2195 = vmatprep.subr.bf16.mxu0 0
        %2196 = vmatpush1.bf16.msra.mxu0 0
        %2197 = vmatprep.subr.bf16.mxu0 0
        %2198 = vmatpush1.bf16.msra.mxu0 0
        %2199 = vmatprep.subr.bf16.mxu0 0
        %2200 = vmatpush1.bf16.msra.mxu0 0
        %2201 = vmatprep.subr.bf16.mxu0 0
        %2202 = vmatpush1.bf16.msra.mxu0 0
        %2203 = vmatprep.subr.bf16.mxu0 0
        %2204 = vmatpush1.bf16.msra.mxu0 0
        %2205 = vmatprep.subr.bf16.mxu0 0
        %2206 = vmatpush1.bf16.msra.mxu0 0
        %2207 = vmatprep.subr.bf16.mxu0 0
        %2208 = vmatpush1.bf16.msra.mxu0 0
        %2209 = vmatprep.subr.bf16.mxu0 0
        %2210 = vmatpush1.bf16.msra.mxu0 0
        %2211 = vmatprep.subr.bf16.mxu0 0
        %2212 = vmatpush1.bf16.msra.mxu0 0
        %2213 = vmatprep.subr.bf16.mxu0 0
        %2214 = vmatpush1.bf16.msra.mxu0 0
        %2215 = vmatprep.subr.bf16.mxu0 0
        %2216 = vmatpush1.bf16.msra.mxu0 0
        %2217 = vmatprep.subr.bf16.mxu0 0
        %2218 = vmatpush1.bf16.msra.mxu0 0
        %2219 = vmatprep.mubr.bf16.mxu0 0
        %2220 = vmatmul.mubr.bf16.gmra.mrb[0].mxu0 %v1316
        %v2221 = vpop.f32.mrb[0].mxu0
        %v2222 = vadd.f32 0.0, %v2221
        %v2223 = vpop.f32.mrb[0].mxu0
        %v2224 = vadd.f32 0.0, %v2223
        %v2225 = vpop.f32.mrb[0].mxu0
        %v2226 = vpop.f32.mrb[0].mxu0
        %2227 = vdwg.mxu0
        %2228 = vmatprep.subr.bf16.mxu0 0
        %2229 = vmatpush1.bf16.msra.mxu0 %v1431
        %2230 = vmatprep.subr.bf16.mxu0 0
        %2231 = vmatpush1.bf16.msra.mxu0 0
        %2232 = vmatprep.subr.bf16.mxu0 0
        %2233 = vmatpush1.bf16.msra.mxu0 0
        %2234 = vmatprep.subr.bf16.mxu0 0
        %2235 = vmatpush1.bf16.msra.mxu0 0
        %2236 = vmatprep.subr.bf16.mxu0 0
        %2237 = vmatpush1.bf16.msra.mxu0 0
        %2238 = vmatprep.subr.bf16.mxu0 0
        %2239 = vmatpush1.bf16.msra.mxu0 0
        %2240 = vmatprep.subr.bf16.mxu0 0
        %2241 = vmatpush1.bf16.msra.mxu0 0
        %2242 = vmatprep.subr.bf16.mxu0 0
        %2243 = vmatpush1.bf16.msra.mxu0 0
        %2244 = vmatprep.subr.bf16.mxu0 0
        %2245 = vmatpush1.bf16.msra.mxu0 0
        %2246 = vmatprep.subr.bf16.mxu0 0
        %2247 = vmatpush1.bf16.msra.mxu0 0
        %2248 = vmatprep.subr.bf16.mxu0 0
        %2249 = vmatpush1.bf16.msra.mxu0 0
        %2250 = vmatprep.subr.bf16.mxu0 0
        %2251 = vmatpush1.bf16.msra.mxu0 0
        %2252 = vmatprep.subr.bf16.mxu0 0
        %2253 = vmatpush1.bf16.msra.mxu0 0
        %2254 = vmatprep.subr.bf16.mxu0 0
        %2255 = vmatpush1.bf16.msra.mxu0 0
        %2256 = vmatprep.subr.bf16.mxu0 0
        %2257 = vmatpush1.bf16.msra.mxu0 0
        %2258 = vmatprep.subr.bf16.mxu0 0
        %2259 = vmatpush1.bf16.msra.mxu0 0
        %2260 = vmatprep.mubr.bf16.mxu0 0
        %2261 = vmatmul.mubr.bf16.gmra.mrb[0].mxu0 %v1316
        %v2262 = vpop.f32.mrb[0].mxu0
        %v2263 = vadd.f32 0.0, %v2262
        %v2264 = vpop.f32.mrb[0].mxu0
        %v2265 = vpop.f32.mrb[0].mxu0
        %v2266 = vpop.f32.mrb[0].mxu0
        %2267 = vdwg.mxu0
        %v2268 = vadd.f32 %v2184, %v2222
        %v2269 = vadd.f32 %v2185, %v2224
        %v2270 = vadd.f32 %v2186, %v2263
        %2271 = vrot.lane.b32.xlu0 %v552, 108
        %v2272 = vpop.permute.xlu0 %2271
        %2273 = vrot.lane.b32.xlu0 %v553, 108
        %v2274 = vpop.permute.xlu0 %2273
        %2275 = vrot.lane.b32.xlu0 %v556, 108
        %v2276 = vpop.permute.xlu0 %2275
        %v2277 = vsel %vm2007, %v2272, %v2274
        %v2278 = vsel %vm2007, %v2274, %v2276
        %v2280 = vsel %vm581, %v2277, 0
        %v2283 = vsel %vm581, %v2278, 0
        %v2286 = vsel %vm581, %v2276, 0
        %2288 = vmatprep.subr.bf16.mxu0 %v2283
        %2289 = vmatpush1.bf16.msra.mxu0 %v2280
        %2290 = vmatprep.subr.bf16.mxu0 0
        %2291 = vmatpush1.bf16.msra.mxu0 0
        %2292 = vmatprep.subr.bf16.mxu0 0
        %2293 = vmatpush1.bf16.msra.mxu0 0
        %2294 = vmatprep.subr.bf16.mxu0 0
        %2295 = vmatpush1.bf16.msra.mxu0 0
        %2296 = vmatprep.subr.bf16.mxu0 0
        %2297 = vmatpush1.bf16.msra.mxu0 0
        %2298 = vmatprep.subr.bf16.mxu0 0
        %2299 = vmatpush1.bf16.msra.mxu0 0
        %2300 = vmatprep.subr.bf16.mxu0 0
        %2301 = vmatpush1.bf16.msra.mxu0 0
        %2302 = vmatprep.subr.bf16.mxu0 0
        %2303 = vmatpush1.bf16.msra.mxu0 0
        %2304 = vmatprep.subr.bf16.mxu0 0
        %2305 = vmatpush1.bf16.msra.mxu0 0
        %2306 = vmatprep.subr.bf16.mxu0 0
        %2307 = vmatpush1.bf16.msra.mxu0 0
        %2308 = vmatprep.subr.bf16.mxu0 0
        %2309 = vmatpush1.bf16.msra.mxu0 0
        %2310 = vmatprep.subr.bf16.mxu0 0
        %2311 = vmatpush1.bf16.msra.mxu0 0
        %2312 = vmatprep.subr.bf16.mxu0 0
        %2313 = vmatpush1.bf16.msra.mxu0 0
        %2314 = vmatprep.subr.bf16.mxu0 0
        %2315 = vmatpush1.bf16.msra.mxu0 0
        %2316 = vmatprep.subr.bf16.mxu0 0
        %2317 = vmatpush1.bf16.msra.mxu0 0
        %2318 = vmatprep.subr.bf16.mxu0 0
        %2319 = vmatpush1.bf16.msra.mxu0 0
        %2320 = vmatprep.mubr.bf16.mxu0 0
        %2321 = vmatmul.mubr.bf16.gmra.mrb[0].mxu0 %v1422
        %v2322 = vpop.f32.mrb[0].mxu0
        %v2323 = vadd.f32 0.0, %v2322
        %v2324 = vpop.f32.mrb[0].mxu0
        %v2325 = vadd.f32 0.0, %v2324
        %v2326 = vpop.f32.mrb[0].mxu0
        %v2327 = vpop.f32.mrb[0].mxu0
        %2328 = vdwg.mxu0
        %2329 = vmatprep.subr.bf16.mxu0 0
        %2330 = vmatpush1.bf16.msra.mxu0 %v2286
        %2331 = vmatprep.subr.bf16.mxu0 0
        %2332 = vmatpush1.bf16.msra.mxu0 0
        %2333 = vmatprep.subr.bf16.mxu0 0
        %2334 = vmatpush1.bf16.msra.mxu0 0
        %2335 = vmatprep.subr.bf16.mxu0 0
        %2336 = vmatpush1.bf16.msra.mxu0 0
        %2337 = vmatprep.subr.bf16.mxu0 0
        %2338 = vmatpush1.bf16.msra.mxu0 0
        %2339 = vmatprep.subr.bf16.mxu0 0
        %2340 = vmatpush1.bf16.msra.mxu0 0
        %2341 = vmatprep.subr.bf16.mxu0 0
        %2342 = vmatpush1.bf16.msra.mxu0 0
        %2343 = vmatprep.subr.bf16.mxu0 0
        %2344 = vmatpush1.bf16.msra.mxu0 0
        %2345 = vmatprep.subr.bf16.mxu0 0
        %2346 = vmatpush1.bf16.msra.mxu0 0
        %2347 = vmatprep.subr.bf16.mxu0 0
        %2348 = vmatpush1.bf16.msra.mxu0 0
        %2349 = vmatprep.subr.bf16.mxu0 0
        %2350 = vmatpush1.bf16.msra.mxu0 0
        %2351 = vmatprep.subr.bf16.mxu0 0
        %2352 = vmatpush1.bf16.msra.mxu0 0
        %2353 = vmatprep.subr.bf16.mxu0 0
        %2354 = vmatpush1.bf16.msra.mxu0 0
        %2355 = vmatprep.subr.bf16.mxu0 0
        %2356 = vmatpush1.bf16.msra.mxu0 0
        %2357 = vmatprep.subr.bf16.mxu0 0
        %2358 = vmatpush1.bf16.msra.mxu0 0
        %2359 = vmatprep.subr.bf16.mxu0 0
        %2360 = vmatpush1.bf16.msra.mxu0 0
        %2361 = vmatprep.mubr.bf16.mxu0 0
        %2362 = vmatmul.mubr.bf16.gmra.mrb[0].mxu0 %v1422
        %v2363 = vpop.f32.mrb[0].mxu0
        %v2364 = vadd.f32 0.0, %v2363
        %v2365 = vpop.f32.mrb[0].mxu0
        %v2366 = vpop.f32.mrb[0].mxu0
        %v2367 = vpop.f32.mrb[0].mxu0
        %2368 = vdwg.mxu0
        %v2369 = vadd.f32 %v2268, %v2323
        %v2370 = vadd.f32 %v2269, %v2325
        %v2371 = vadd.f32 %v2270, %v2364
        %v2372 = vadd.f32 %v2369, %v1521
        %v2373 = vadd.f32 %v2370, %v1521
        %v2374 = vadd.f32 %v2371, %v1521
        %v2375 = vmax.f32 %v2372, 0.0
        %v2376 = vmax.f32 %v2373, 0.0
        %v2377 = vmax.f32 %v2374, 0.0
        %v2378 = vmul.f32 %v2375, %v1533
        %v2379 = vmul.f32 %v2376, %v1537
        %v2380 = vmul.f32 %v2377, %v1541
        %v2381 = vpack.c.bf16 %v2378, %v2378
        %v2382 = vpack.c.bf16 %v2379, %v2379
        %v2383 = vpack.c.bf16 %v2380, %v2380
        %2387 = vrot.lane.b32.xlu0 %v2381, 19
        %v2388 = vpop.permute.xlu0 %2387
        %2389 = vrot.lane.b32.xlu0 %v2382, 19
        %v2390 = vpop.permute.xlu0 %2389
        %2391 = vrot.lane.b32.xlu0 %v2383, 19
        %v2392 = vpop.permute.xlu0 %2391
        %v2393 = vsel %vm1560, %v2388, %v2390
        %v2394 = vsel %vm1560, %v2390, %v2392
        %v2396 = vsel %vm1563, 0, %v2388
        %v2398 = vsel %vm1566, %v2394, 0
        %2399 = vmatprep.subr.bf16.mxu0 %v1004
        %2400 = vmatpush1.bf16.msra.mxu0 %v1001
        %2401 = vmatprep.subr.bf16.mxu0 0
        %2402 = vmatpush1.bf16.msra.mxu0 0
        %2403 = vmatprep.subr.bf16.mxu0 0
        %2404 = vmatpush1.bf16.msra.mxu0 0
        %2405 = vmatprep.subr.bf16.mxu0 0
        %2406 = vmatpush1.bf16.msra.mxu0 0
        %2407 = vmatprep.subr.bf16.mxu0 0
        %2408 = vmatpush1.bf16.msra.mxu0 0
        %2409 = vmatprep.subr.bf16.mxu0 0
        %2410 = vmatpush1.bf16.msra.mxu0 0
        %2411 = vmatprep.subr.bf16.mxu0 0
        %2412 = vmatpush1.bf16.msra.mxu0 0
        %2413 = vmatprep.subr.bf16.mxu0 0
        %2414 = vmatpush1.bf16.msra.mxu0 0
        %2415 = vmatprep.subr.bf16.mxu0 0
        %2416 = vmatpush1.bf16.msra.mxu0 0
        %2417 = vmatprep.subr.bf16.mxu0 0
        %2418 = vmatpush1.bf16.msra.mxu0 0
        %2419 = vmatprep.subr.bf16.mxu0 0
        %2420 = vmatpush1.bf16.msra.mxu0 0
        %2421 = vmatprep.subr.bf16.mxu0 0
        %2422 = vmatpush1.bf16.msra.mxu0 0
        %2423 = vmatprep.subr.bf16.mxu0 0
        %2424 = vmatpush1.bf16.msra.mxu0 0
        %2425 = vmatprep.subr.bf16.mxu0 0
        %2426 = vmatpush1.bf16.msra.mxu0 0
        %2427 = vmatprep.subr.bf16.mxu0 0
        %2428 = vmatpush1.bf16.msra.mxu0 0
        %2429 = vmatprep.subr.bf16.mxu0 0
        %2430 = vmatpush1.bf16.msra.mxu0 0
        %2431 = vmatprep.mubr.bf16.mxu0 0
        %2432 = vmatmul.mubr.bf16.gmra.mrb[0].mxu0 %v579
        %v2433 = vpop.f32.mrb[0].mxu0
        %v2434 = vadd.f32 0.0, %v2433
        %v2435 = vpop.f32.mrb[0].mxu0
        %v2436 = vadd.f32 0.0, %v2435
        %v2437 = vpop.f32.mrb[0].mxu0
        %v2438 = vpop.f32.mrb[0].mxu0
        %2439 = vdwg.mxu0
        %2440 = vmatprep.subr.bf16.mxu0 0
        %2441 = vmatpush1.bf16.msra.mxu0 %v1007
        %2442 = vmatprep.subr.bf16.mxu0 0
        %2443 = vmatpush1.bf16.msra.mxu0 0
        %2444 = vmatprep.subr.bf16.mxu0 0
        %2445 = vmatpush1.bf16.msra.mxu0 0
        %2446 = vmatprep.subr.bf16.mxu0 0
        %2447 = vmatpush1.bf16.msra.mxu0 0
        %2448 = vmatprep.subr.bf16.mxu0 0
        %2449 = vmatpush1.bf16.msra.mxu0 0
        %2450 = vmatprep.subr.bf16.mxu0 0
        %2451 = vmatpush1.bf16.msra.mxu0 0
        %2452 = vmatprep.subr.bf16.mxu0 0
        %2453 = vmatpush1.bf16.msra.mxu0 0
        %2454 = vmatprep.subr.bf16.mxu0 0
        %2455 = vmatpush1.bf16.msra.mxu0 0
        %2456 = vmatprep.subr.bf16.mxu0 0
        %2457 = vmatpush1.bf16.msra.mxu0 0
        %2458 = vmatprep.subr.bf16.mxu0 0
        %2459 = vmatpush1.bf16.msra.mxu0 0
        %2460 = vmatprep.subr.bf16.mxu0 0
        %2461 = vmatpush1.bf16.msra.mxu0 0
        %2462 = vmatprep.subr.bf16.mxu0 0
        %2463 = vmatpush1.bf16.msra.mxu0 0
        %2464 = vmatprep.subr.bf16.mxu0 0
        %2465 = vmatpush1.bf16.msra.mxu0 0
        %2466 = vmatprep.subr.bf16.mxu0 0
        %2467 = vmatpush1.bf16.msra.mxu0 0
        %2468 = vmatprep.subr.bf16.mxu0 0
        %2469 = vmatpush1.bf16.msra.mxu0 0
        %2470 = vmatprep.subr.bf16.mxu0 0
        %2471 = vmatpush1.bf16.msra.mxu0 0
        %2472 = vmatprep.mubr.bf16.mxu0 0
        %2473 = vmatmul.mubr.bf16.gmra.mrb[0].mxu0 %v579
        %v2474 = vpop.f32.mrb[0].mxu0
        %v2475 = vadd.f32 0.0, %v2474
        %v2476 = vpop.f32.mrb[0].mxu0
        %v2477 = vpop.f32.mrb[0].mxu0
        %v2478 = vpop.f32.mrb[0].mxu0
        %2479 = vdwg.mxu0
        %2480 = vmatprep.subr.bf16.mxu0 %v894
        %2481 = vmatpush1.bf16.msra.mxu0 %v891
        %2482 = vmatprep.subr.bf16.mxu0 0
        %2483 = vmatpush1.bf16.msra.mxu0 0
        %2484 = vmatprep.subr.bf16.mxu0 0
        %2485 = vmatpush1.bf16.msra.mxu0 0
        %2486 = vmatprep.subr.bf16.mxu0 0
        %2487 = vmatpush1.bf16.msra.mxu0 0
        %2488 = vmatprep.subr.bf16.mxu0 0
        %2489 = vmatpush1.bf16.msra.mxu0 0
        %2490 = vmatprep.subr.bf16.mxu0 0
        %2491 = vmatpush1.bf16.msra.mxu0 0
        %2492 = vmatprep.subr.bf16.mxu0 0
        %2493 = vmatpush1.bf16.msra.mxu0 0
        %2494 = vmatprep.subr.bf16.mxu0 0
        %2495 = vmatpush1.bf16.msra.mxu0 0
        %2496 = vmatprep.subr.bf16.mxu0 0
        %2497 = vmatpush1.bf16.msra.mxu0 0
        %2498 = vmatprep.subr.bf16.mxu0 0
        %2499 = vmatpush1.bf16.msra.mxu0 0
        %2500 = vmatprep.subr.bf16.mxu0 0
        %2501 = vmatpush1.bf16.msra.mxu0 0
        %2502 = vmatprep.subr.bf16.mxu0 0
        %2503 = vmatpush1.bf16.msra.mxu0 0
        %2504 = vmatprep.subr.bf16.mxu0 0
        %2505 = vmatpush1.bf16.msra.mxu0 0
        %2506 = vmatprep.subr.bf16.mxu0 0
        %2507 = vmatpush1.bf16.msra.mxu0 0
        %2508 = vmatprep.subr.bf16.mxu0 0
        %2509 = vmatpush1.bf16.msra.mxu0 0
        %2510 = vmatprep.subr.bf16.mxu0 0
        %2511 = vmatpush1.bf16.msra.mxu0 0
        %2512 = vmatprep.mubr.bf16.mxu0 0
        %2513 = vmatmul.mubr.bf16.gmra.mrb[0].mxu0 %v673
        %v2514 = vpop.f32.mrb[0].mxu0
        %v2515 = vadd.f32 %v2434, %v2514
        %v2516 = vpop.f32.mrb[0].mxu0
        %v2517 = vadd.f32 %v2436, %v2516
        %v2518 = vpop.f32.mrb[0].mxu0
        %v2519 = vpop.f32.mrb[0].mxu0
        %2520 = vdwg.mxu0
        %2521 = vmatprep.subr.bf16.mxu0 0
        %2522 = vmatpush1.bf16.msra.mxu0 %v897
        %2523 = vmatprep.subr.bf16.mxu0 0
        %2524 = vmatpush1.bf16.msra.mxu0 0
        %2525 = vmatprep.subr.bf16.mxu0 0
        %2526 = vmatpush1.bf16.msra.mxu0 0
        %2527 = vmatprep.subr.bf16.mxu0 0
        %2528 = vmatpush1.bf16.msra.mxu0 0
        %2529 = vmatprep.subr.bf16.mxu0 0
        %2530 = vmatpush1.bf16.msra.mxu0 0
        %2531 = vmatprep.subr.bf16.mxu0 0
        %2532 = vmatpush1.bf16.msra.mxu0 0
        %2533 = vmatprep.subr.bf16.mxu0 0
        %2534 = vmatpush1.bf16.msra.mxu0 0
        %2535 = vmatprep.subr.bf16.mxu0 0
        %2536 = vmatpush1.bf16.msra.mxu0 0
        %2537 = vmatprep.subr.bf16.mxu0 0
        %2538 = vmatpush1.bf16.msra.mxu0 0
        %2539 = vmatprep.subr.bf16.mxu0 0
        %2540 = vmatpush1.bf16.msra.mxu0 0
        %2541 = vmatprep.subr.bf16.mxu0 0
        %2542 = vmatpush1.bf16.msra.mxu0 0
        %2543 = vmatprep.subr.bf16.mxu0 0
        %2544 = vmatpush1.bf16.msra.mxu0 0
        %2545 = vmatprep.subr.bf16.mxu0 0
        %2546 = vmatpush1.bf16.msra.mxu0 0
        %2547 = vmatprep.subr.bf16.mxu0 0
        %2548 = vmatpush1.bf16.msra.mxu0 0
        %2549 = vmatprep.subr.bf16.mxu0 0
        %2550 = vmatpush1.bf16.msra.mxu0 0
        %2551 = vmatprep.subr.bf16.mxu0 0
        %2552 = vmatpush1.bf16.msra.mxu0 0
        %2553 = vmatprep.mubr.bf16.mxu0 0
        %2554 = vmatmul.mubr.bf16.gmra.mrb[0].mxu0 %v673
        %v2555 = vpop.f32.mrb[0].mxu0
        %v2556 = vadd.f32 %v2475, %v2555
        %v2557 = vpop.f32.mrb[0].mxu0
        %v2558 = vpop.f32.mrb[0].mxu0
        %v2559 = vpop.f32.mrb[0].mxu0
        %2560 = vdwg.mxu0
        %2561 = vmatprep.subr.bf16.mxu0 %v1110
        %2562 = vmatpush1.bf16.msra.mxu0 %v1107
        %2563 = vmatprep.subr.bf16.mxu0 0
        %2564 = vmatpush1.bf16.msra.mxu0 0
        %2565 = vmatprep.subr.bf16.mxu0 0
        %2566 = vmatpush1.bf16.msra.mxu0 0
        %2567 = vmatprep.subr.bf16.mxu0 0
        %2568 = vmatpush1.bf16.msra.mxu0 0
        %2569 = vmatprep.subr.bf16.mxu0 0
        %2570 = vmatpush1.bf16.msra.mxu0 0
        %2571 = vmatprep.subr.bf16.mxu0 0
        %2572 = vmatpush1.bf16.msra.mxu0 0
        %2573 = vmatprep.subr.bf16.mxu0 0
        %2574 = vmatpush1.bf16.msra.mxu0 0
        %2575 = vmatprep.subr.bf16.mxu0 0
        %2576 = vmatpush1.bf16.msra.mxu0 0
        %2577 = vmatprep.subr.bf16.mxu0 0
        %2578 = vmatpush1.bf16.msra.mxu0 0
        %2579 = vmatprep.subr.bf16.mxu0 0
        %2580 = vmatpush1.bf16.msra.mxu0 0
        %2581 = vmatprep.subr.bf16.mxu0 0
        %2582 = vmatpush1.bf16.msra.mxu0 0
        %2583 = vmatprep.subr.bf16.mxu0 0
        %2584 = vmatpush1.bf16.msra.mxu0 0
        %2585 = vmatprep.subr.bf16.mxu0 0
        %2586 = vmatpush1.bf16.msra.mxu0 0
        %2587 = vmatprep.subr.bf16.mxu0 0
        %2588 = vmatpush1.bf16.msra.mxu0 0
        %2589 = vmatprep.subr.bf16.mxu0 0
        %2590 = vmatpush1.bf16.msra.mxu0 0
        %2591 = vmatprep.subr.bf16.mxu0 0
        %2592 = vmatpush1.bf16.msra.mxu0 0
        %2593 = vmatprep.mubr.bf16.mxu0 0
        %2594 = vmatmul.mubr.bf16.gmra.mrb[0].mxu0 %v778
        %v2595 = vpop.f32.mrb[0].mxu0
        %v2596 = vadd.f32 0.0, %v2595
        %v2597 = vpop.f32.mrb[0].mxu0
        %v2598 = vadd.f32 0.0, %v2597
        %v2599 = vpop.f32.mrb[0].mxu0
        %v2600 = vpop.f32.mrb[0].mxu0
        %2601 = vdwg.mxu0
        %2602 = vmatprep.subr.bf16.mxu0 0
        %2603 = vmatpush1.bf16.msra.mxu0 %v1113
        %2604 = vmatprep.subr.bf16.mxu0 0
        %2605 = vmatpush1.bf16.msra.mxu0 0
        %2606 = vmatprep.subr.bf16.mxu0 0
        %2607 = vmatpush1.bf16.msra.mxu0 0
        %2608 = vmatprep.subr.bf16.mxu0 0
        %2609 = vmatpush1.bf16.msra.mxu0 0
        %2610 = vmatprep.subr.bf16.mxu0 0
        %2611 = vmatpush1.bf16.msra.mxu0 0
        %2612 = vmatprep.subr.bf16.mxu0 0
        %2613 = vmatpush1.bf16.msra.mxu0 0
        %2614 = vmatprep.subr.bf16.mxu0 0
        %2615 = vmatpush1.bf16.msra.mxu0 0
        %2616 = vmatprep.subr.bf16.mxu0 0
        %2617 = vmatpush1.bf16.msra.mxu0 0
        %2618 = vmatprep.subr.bf16.mxu0 0
        %2619 = vmatpush1.bf16.msra.mxu0 0
        %2620 = vmatprep.subr.bf16.mxu0 0
        %2621 = vmatpush1.bf16.msra.mxu0 0
        %2622 = vmatprep.subr.bf16.mxu0 0
        %2623 = vmatpush1.bf16.msra.mxu0 0
        %2624 = vmatprep.subr.bf16.mxu0 0
        %2625 = vmatpush1.bf16.msra.mxu0 0
        %2626 = vmatprep.subr.bf16.mxu0 0
        %2627 = vmatpush1.bf16.msra.mxu0 0
        %2628 = vmatprep.subr.bf16.mxu0 0
        %2629 = vmatpush1.bf16.msra.mxu0 0
        %2630 = vmatprep.subr.bf16.mxu0 0
        %2631 = vmatpush1.bf16.msra.mxu0 0
        %2632 = vmatprep.subr.bf16.mxu0 0
        %2633 = vmatpush1.bf16.msra.mxu0 0
        %2634 = vmatprep.mubr.bf16.mxu0 0
        %2635 = vmatmul.mubr.bf16.gmra.mrb[0].mxu0 %v778
        %v2636 = vpop.f32.mrb[0].mxu0
        %v2637 = vadd.f32 0.0, %v2636
        %v2638 = vpop.f32.mrb[0].mxu0
        %v2639 = vpop.f32.mrb[0].mxu0
        %v2640 = vpop.f32.mrb[0].mxu0
        %2641 = vdwg.mxu0
        %v2642 = vadd.f32 %v2515, %v2596
        %v2643 = vadd.f32 %v2517, %v2598
        %v2644 = vadd.f32 %v2556, %v2637
        %2645 = vmatprep.subr.bf16.mxu0 %v1216
        %2646 = vmatpush1.bf16.msra.mxu0 %v1213
        %2647 = vmatprep.subr.bf16.mxu0 0
        %2648 = vmatpush1.bf16.msra.mxu0 0
        %2649 = vmatprep.subr.bf16.mxu0 0
        %2650 = vmatpush1.bf16.msra.mxu0 0
        %2651 = vmatprep.subr.bf16.mxu0 0
        %2652 = vmatpush1.bf16.msra.mxu0 0
        %2653 = vmatprep.subr.bf16.mxu0 0
        %2654 = vmatpush1.bf16.msra.mxu0 0
        %2655 = vmatprep.subr.bf16.mxu0 0
        %2656 = vmatpush1.bf16.msra.mxu0 0
        %2657 = vmatprep.subr.bf16.mxu0 0
        %2658 = vmatpush1.bf16.msra.mxu0 0
        %2659 = vmatprep.subr.bf16.mxu0 0
        %2660 = vmatpush1.bf16.msra.mxu0 0
        %2661 = vmatprep.subr.bf16.mxu0 0
        %2662 = vmatpush1.bf16.msra.mxu0 0
        %2663 = vmatprep.subr.bf16.mxu0 0
        %2664 = vmatpush1.bf16.msra.mxu0 0
        %2665 = vmatprep.subr.bf16.mxu0 0
        %2666 = vmatpush1.bf16.msra.mxu0 0
        %2667 = vmatprep.subr.bf16.mxu0 0
        %2668 = vmatpush1.bf16.msra.mxu0 0
        %2669 = vmatprep.subr.bf16.mxu0 0
        %2670 = vmatpush1.bf16.msra.mxu0 0
        %2671 = vmatprep.subr.bf16.mxu0 0
        %2672 = vmatpush1.bf16.msra.mxu0 0
        %2673 = vmatprep.subr.bf16.mxu0 0
        %2674 = vmatpush1.bf16.msra.mxu0 0
        %2675 = vmatprep.subr.bf16.mxu0 0
        %2676 = vmatpush1.bf16.msra.mxu0 0
        %2677 = vmatprep.mubr.bf16.mxu0 0
        %2678 = vmatmul.mubr.bf16.gmra.mrb[0].mxu0 %v888
        %v2679 = vpop.f32.mrb[0].mxu0
        %v2680 = vadd.f32 0.0, %v2679
        %v2681 = vpop.f32.mrb[0].mxu0
        %v2682 = vadd.f32 0.0, %v2681
        %v2683 = vpop.f32.mrb[0].mxu0
        %v2684 = vpop.f32.mrb[0].mxu0
        %2685 = vdwg.mxu0
        %2686 = vmatprep.subr.bf16.mxu0 0
        %2687 = vmatpush1.bf16.msra.mxu0 %v1219
        %2688 = vmatprep.subr.bf16.mxu0 0
        %2689 = vmatpush1.bf16.msra.mxu0 0
        %2690 = vmatprep.subr.bf16.mxu0 0
        %2691 = vmatpush1.bf16.msra.mxu0 0
        %2692 = vmatprep.subr.bf16.mxu0 0
        %2693 = vmatpush1.bf16.msra.mxu0 0
        %2694 = vmatprep.subr.bf16.mxu0 0
        %2695 = vmatpush1.bf16.msra.mxu0 0
        %2696 = vmatprep.subr.bf16.mxu0 0
        %2697 = vmatpush1.bf16.msra.mxu0 0
        %2698 = vmatprep.subr.bf16.mxu0 0
        %2699 = vmatpush1.bf16.msra.mxu0 0
        %2700 = vmatprep.subr.bf16.mxu0 0
        %2701 = vmatpush1.bf16.msra.mxu0 0
        %2702 = vmatprep.subr.bf16.mxu0 0
        %2703 = vmatpush1.bf16.msra.mxu0 0
        %2704 = vmatprep.subr.bf16.mxu0 0
        %2705 = vmatpush1.bf16.msra.mxu0 0
        %2706 = vmatprep.subr.bf16.mxu0 0
        %2707 = vmatpush1.bf16.msra.mxu0 0
        %2708 = vmatprep.subr.bf16.mxu0 0
        %2709 = vmatpush1.bf16.msra.mxu0 0
        %2710 = vmatprep.subr.bf16.mxu0 0
        %2711 = vmatpush1.bf16.msra.mxu0 0
        %2712 = vmatprep.subr.bf16.mxu0 0
        %2713 = vmatpush1.bf16.msra.mxu0 0
        %2714 = vmatprep.subr.bf16.mxu0 0
        %2715 = vmatpush1.bf16.msra.mxu0 0
        %2716 = vmatprep.subr.bf16.mxu0 0
        %2717 = vmatpush1.bf16.msra.mxu0 0
        %2718 = vmatprep.mubr.bf16.mxu0 0
        %2719 = vmatmul.mubr.bf16.gmra.mrb[0].mxu0 %v888
        %v2720 = vpop.f32.mrb[0].mxu0
        %v2721 = vadd.f32 0.0, %v2720
        %v2722 = vpop.f32.mrb[0].mxu0
        %v2723 = vpop.f32.mrb[0].mxu0
        %v2724 = vpop.f32.mrb[0].mxu0
        %2725 = vdwg.mxu0
        %v2726 = vadd.f32 %v2642, %v2680
        %v2727 = vadd.f32 %v2643, %v2682
        %v2728 = vadd.f32 %v2644, %v2721
        %2729 = vmatprep.subr.bf16.mxu0 %v1322
        %2730 = vmatpush1.bf16.msra.mxu0 %v1319
        %2731 = vmatprep.subr.bf16.mxu0 0
        %2732 = vmatpush1.bf16.msra.mxu0 0
        %2733 = vmatprep.subr.bf16.mxu0 0
        %2734 = vmatpush1.bf16.msra.mxu0 0
        %2735 = vmatprep.subr.bf16.mxu0 0
        %2736 = vmatpush1.bf16.msra.mxu0 0
        %2737 = vmatprep.subr.bf16.mxu0 0
        %2738 = vmatpush1.bf16.msra.mxu0 0
        %2739 = vmatprep.subr.bf16.mxu0 0
        %2740 = vmatpush1.bf16.msra.mxu0 0
        %2741 = vmatprep.subr.bf16.mxu0 0
        %2742 = vmatpush1.bf16.msra.mxu0 0
        %2743 = vmatprep.subr.bf16.mxu0 0
        %2744 = vmatpush1.bf16.msra.mxu0 0
        %2745 = vmatprep.subr.bf16.mxu0 0
        %2746 = vmatpush1.bf16.msra.mxu0 0
        %2747 = vmatprep.subr.bf16.mxu0 0
        %2748 = vmatpush1.bf16.msra.mxu0 0
        %2749 = vmatprep.subr.bf16.mxu0 0
        %2750 = vmatpush1.bf16.msra.mxu0 0
        %2751 = vmatprep.subr.bf16.mxu0 0
        %2752 = vmatpush1.bf16.msra.mxu0 0
        %2753 = vmatprep.subr.bf16.mxu0 0
        %2754 = vmatpush1.bf16.msra.mxu0 0
        %2755 = vmatprep.subr.bf16.mxu0 0
        %2756 = vmatpush1.bf16.msra.mxu0 0
        %2757 = vmatprep.subr.bf16.mxu0 0
        %2758 = vmatpush1.bf16.msra.mxu0 0
        %2759 = vmatprep.subr.bf16.mxu0 0
        %2760 = vmatpush1.bf16.msra.mxu0 0
        %2761 = vmatprep.mubr.bf16.mxu0 0
        %2762 = vmatmul.mubr.bf16.gmra.mrb[0].mxu0 %v998
        %v2763 = vpop.f32.mrb[0].mxu0
        %v2764 = vadd.f32 0.0, %v2763
        %v2765 = vpop.f32.mrb[0].mxu0
        %v2766 = vadd.f32 0.0, %v2765
        %v2767 = vpop.f32.mrb[0].mxu0
        %v2768 = vpop.f32.mrb[0].mxu0
        %2769 = vdwg.mxu0
        %2770 = vmatprep.subr.bf16.mxu0 0
        %2771 = vmatpush1.bf16.msra.mxu0 %v1325
        %2772 = vmatprep.subr.bf16.mxu0 0
        %2773 = vmatpush1.bf16.msra.mxu0 0
        %2774 = vmatprep.subr.bf16.mxu0 0
        %2775 = vmatpush1.bf16.msra.mxu0 0
        %2776 = vmatprep.subr.bf16.mxu0 0
        %2777 = vmatpush1.bf16.msra.mxu0 0
        %2778 = vmatprep.subr.bf16.mxu0 0
        %2779 = vmatpush1.bf16.msra.mxu0 0
        %2780 = vmatprep.subr.bf16.mxu0 0
        %2781 = vmatpush1.bf16.msra.mxu0 0
        %2782 = vmatprep.subr.bf16.mxu0 0
        %2783 = vmatpush1.bf16.msra.mxu0 0
        %2784 = vmatprep.subr.bf16.mxu0 0
        %2785 = vmatpush1.bf16.msra.mxu0 0
        %2786 = vmatprep.subr.bf16.mxu0 0
        %2787 = vmatpush1.bf16.msra.mxu0 0
        %2788 = vmatprep.subr.bf16.mxu0 0
        %2789 = vmatpush1.bf16.msra.mxu0 0
        %2790 = vmatprep.subr.bf16.mxu0 0
        %2791 = vmatpush1.bf16.msra.mxu0 0
        %2792 = vmatprep.subr.bf16.mxu0 0
        %2793 = vmatpush1.bf16.msra.mxu0 0
        %2794 = vmatprep.subr.bf16.mxu0 0
        %2795 = vmatpush1.bf16.msra.mxu0 0
        %2796 = vmatprep.subr.bf16.mxu0 0
        %2797 = vmatpush1.bf16.msra.mxu0 0
        %2798 = vmatprep.subr.bf16.mxu0 0
        %2799 = vmatpush1.bf16.msra.mxu0 0
        %2800 = vmatprep.subr.bf16.mxu0 0
        %2801 = vmatpush1.bf16.msra.mxu0 0
        %2802 = vmatprep.mubr.bf16.mxu0 0
        %2803 = vmatmul.mubr.bf16.gmra.mrb[0].mxu0 %v998
        %v2804 = vpop.f32.mrb[0].mxu0
        %v2805 = vadd.f32 0.0, %v2804
        %v2806 = vpop.f32.mrb[0].mxu0
        %v2807 = vpop.f32.mrb[0].mxu0
        %v2808 = vpop.f32.mrb[0].mxu0
        %2809 = vdwg.mxu0
        %v2810 = vadd.f32 %v2726, %v2764
        %v2811 = vadd.f32 %v2727, %v2766
        %v2812 = vadd.f32 %v2728, %v2805
        %2813 = vmatprep.subr.bf16.mxu0 %v1428
        %2814 = vmatpush1.bf16.msra.mxu0 %v1425
        %2815 = vmatprep.subr.bf16.mxu0 0
        %2816 = vmatpush1.bf16.msra.mxu0 0
        %2817 = vmatprep.subr.bf16.mxu0 0
        %2818 = vmatpush1.bf16.msra.mxu0 0
        %2819 = vmatprep.subr.bf16.mxu0 0
        %2820 = vmatpush1.bf16.msra.mxu0 0
        %2821 = vmatprep.subr.bf16.mxu0 0
        %2822 = vmatpush1.bf16.msra.mxu0 0
        %2823 = vmatprep.subr.bf16.mxu0 0
        %2824 = vmatpush1.bf16.msra.mxu0 0
        %2825 = vmatprep.subr.bf16.mxu0 0
        %2826 = vmatpush1.bf16.msra.mxu0 0
        %2827 = vmatprep.subr.bf16.mxu0 0
        %2828 = vmatpush1.bf16.msra.mxu0 0
        %2829 = vmatprep.subr.bf16.mxu0 0
        %2830 = vmatpush1.bf16.msra.mxu0 0
        %2831 = vmatprep.subr.bf16.mxu0 0
        %2832 = vmatpush1.bf16.msra.mxu0 0
        %2833 = vmatprep.subr.bf16.mxu0 0
        %2834 = vmatpush1.bf16.msra.mxu0 0
        %2835 = vmatprep.subr.bf16.mxu0 0
        %2836 = vmatpush1.bf16.msra.mxu0 0
        %2837 = vmatprep.subr.bf16.mxu0 0
        %2838 = vmatpush1.bf16.msra.mxu0 0
        %2839 = vmatprep.subr.bf16.mxu0 0
        %2840 = vmatpush1.bf16.msra.mxu0 0
        %2841 = vmatprep.subr.bf16.mxu0 0
        %2842 = vmatpush1.bf16.msra.mxu0 0
        %2843 = vmatprep.subr.bf16.mxu0 0
        %2844 = vmatpush1.bf16.msra.mxu0 0
        %2845 = vmatprep.mubr.bf16.mxu0 0
        %2846 = vmatmul.mubr.bf16.gmra.mrb[0].mxu0 %v1104
        %v2847 = vpop.f32.mrb[0].mxu0
        %v2848 = vadd.f32 0.0, %v2847
        %v2849 = vpop.f32.mrb[0].mxu0
        %v2850 = vadd.f32 0.0, %v2849
        %v2851 = vpop.f32.mrb[0].mxu0
        %v2852 = vpop.f32.mrb[0].mxu0
        %2853 = vdwg.mxu0
        %2854 = vmatprep.subr.bf16.mxu0 0
        %2855 = vmatpush1.bf16.msra.mxu0 %v1431
        %2856 = vmatprep.subr.bf16.mxu0 0
        %2857 = vmatpush1.bf16.msra.mxu0 0
        %2858 = vmatprep.subr.bf16.mxu0 0
        %2859 = vmatpush1.bf16.msra.mxu0 0
        %2860 = vmatprep.subr.bf16.mxu0 0
        %2861 = vmatpush1.bf16.msra.mxu0 0
        %2862 = vmatprep.subr.bf16.mxu0 0
        %2863 = vmatpush1.bf16.msra.mxu0 0
        %2864 = vmatprep.subr.bf16.mxu0 0
        %2865 = vmatpush1.bf16.msra.mxu0 0
        %2866 = vmatprep.subr.bf16.mxu0 0
        %2867 = vmatpush1.bf16.msra.mxu0 0
        %2868 = vmatprep.subr.bf16.mxu0 0
        %2869 = vmatpush1.bf16.msra.mxu0 0
        %2870 = vmatprep.subr.bf16.mxu0 0
        %2871 = vmatpush1.bf16.msra.mxu0 0
        %2872 = vmatprep.subr.bf16.mxu0 0
        %2873 = vmatpush1.bf16.msra.mxu0 0
        %2874 = vmatprep.subr.bf16.mxu0 0
        %2875 = vmatpush1.bf16.msra.mxu0 0
        %2876 = vmatprep.subr.bf16.mxu0 0
        %2877 = vmatpush1.bf16.msra.mxu0 0
        %2878 = vmatprep.subr.bf16.mxu0 0
        %2879 = vmatpush1.bf16.msra.mxu0 0
        %2880 = vmatprep.subr.bf16.mxu0 0
        %2881 = vmatpush1.bf16.msra.mxu0 0
        %2882 = vmatprep.subr.bf16.mxu0 0
        %2883 = vmatpush1.bf16.msra.mxu0 0
        %2884 = vmatprep.subr.bf16.mxu0 0
        %2885 = vmatpush1.bf16.msra.mxu0 0
        %2886 = vmatprep.mubr.bf16.mxu0 0
        %2887 = vmatmul.mubr.bf16.gmra.mrb[0].mxu0 %v1104
        %v2888 = vpop.f32.mrb[0].mxu0
        %v2889 = vadd.f32 0.0, %v2888
        %v2890 = vpop.f32.mrb[0].mxu0
        %v2891 = vpop.f32.mrb[0].mxu0
        %v2892 = vpop.f32.mrb[0].mxu0
        %2893 = vdwg.mxu0
        %v2894 = vadd.f32 %v2810, %v2848
        %v2895 = vadd.f32 %v2811, %v2850
        %v2896 = vadd.f32 %v2812, %v2889
        %2897 = vrot.lane.b32.xlu0 %v499, 92
        %v2898 = vpop.permute.xlu0 %2897
        %2899 = vrot.lane.b32.xlu0 %v500, 92
        %v2900 = vpop.permute.xlu0 %2899
        %2901 = vrot.lane.b32.xlu0 %v503, 92
        %v2902 = vpop.permute.xlu0 %2901
        %vm2903 = vcmask 752640
        %v2904 = vsel %vm2903, %v2898, %v2900
        %v2905 = vsel %vm2903, %v2900, %v2902
        %v2907 = vsel %vm581, %v2904, 0
        %v2910 = vsel %vm581, %v2905, 0
        %v2913 = vsel %vm581, %v2902, 0
        %2915 = vmatprep.subr.bf16.mxu0 %v2910
        %2916 = vmatpush1.bf16.msra.mxu0 %v2907
        %2917 = vmatprep.subr.bf16.mxu0 0
        %2918 = vmatpush1.bf16.msra.mxu0 0
        %2919 = vmatprep.subr.bf16.mxu0 0
        %2920 = vmatpush1.bf16.msra.mxu0 0
        %2921 = vmatprep.subr.bf16.mxu0 0
        %2922 = vmatpush1.bf16.msra.mxu0 0
        %2923 = vmatprep.subr.bf16.mxu0 0
        %2924 = vmatpush1.bf16.msra.mxu0 0
        %2925 = vmatprep.subr.bf16.mxu0 0
        %2926 = vmatpush1.bf16.msra.mxu0 0
        %2927 = vmatprep.subr.bf16.mxu0 0
        %2928 = vmatpush1.bf16.msra.mxu0 0
        %2929 = vmatprep.subr.bf16.mxu0 0
        %2930 = vmatpush1.bf16.msra.mxu0 0
        %2931 = vmatprep.subr.bf16.mxu0 0
        %2932 = vmatpush1.bf16.msra.mxu0 0
        %2933 = vmatprep.subr.bf16.mxu0 0
        %2934 = vmatpush1.bf16.msra.mxu0 0
        %2935 = vmatprep.subr.bf16.mxu0 0
        %2936 = vmatpush1.bf16.msra.mxu0 0
        %2937 = vmatprep.subr.bf16.mxu0 0
        %2938 = vmatpush1.bf16.msra.mxu0 0
        %2939 = vmatprep.subr.bf16.mxu0 0
        %2940 = vmatpush1.bf16.msra.mxu0 0
        %2941 = vmatprep.subr.bf16.mxu0 0
        %2942 = vmatpush1.bf16.msra.mxu0 0
        %2943 = vmatprep.subr.bf16.mxu0 0
        %2944 = vmatpush1.bf16.msra.mxu0 0
        %2945 = vmatprep.subr.bf16.mxu0 0
        %2946 = vmatpush1.bf16.msra.mxu0 0
        %2947 = vmatprep.mubr.bf16.mxu0 0
        %2948 = vmatmul.mubr.bf16.gmra.mrb[0].mxu0 %v1210
        %v2949 = vpop.f32.mrb[0].mxu0
        %v2950 = vadd.f32 0.0, %v2949
        %v2951 = vpop.f32.mrb[0].mxu0
        %v2952 = vadd.f32 0.0, %v2951
        %v2953 = vpop.f32.mrb[0].mxu0
        %v2954 = vpop.f32.mrb[0].mxu0
        %2955 = vdwg.mxu0
        %2956 = vmatprep.subr.bf16.mxu0 0
        %2957 = vmatpush1.bf16.msra.mxu0 %v2913
        %2958 = vmatprep.subr.bf16.mxu0 0
        %2959 = vmatpush1.bf16.msra.mxu0 0
        %2960 = vmatprep.subr.bf16.mxu0 0
        %2961 = vmatpush1.bf16.msra.mxu0 0
        %2962 = vmatprep.subr.bf16.mxu0 0
        %2963 = vmatpush1.bf16.msra.mxu0 0
        %2964 = vmatprep.subr.bf16.mxu0 0
        %2965 = vmatpush1.bf16.msra.mxu0 0
        %2966 = vmatprep.subr.bf16.mxu0 0
        %2967 = vmatpush1.bf16.msra.mxu0 0
        %2968 = vmatprep.subr.bf16.mxu0 0
        %2969 = vmatpush1.bf16.msra.mxu0 0
        %2970 = vmatprep.subr.bf16.mxu0 0
        %2971 = vmatpush1.bf16.msra.mxu0 0
        %2972 = vmatprep.subr.bf16.mxu0 0
        %2973 = vmatpush1.bf16.msra.mxu0 0
        %2974 = vmatprep.subr.bf16.mxu0 0
        %2975 = vmatpush1.bf16.msra.mxu0 0
        %2976 = vmatprep.subr.bf16.mxu0 0
        %2977 = vmatpush1.bf16.msra.mxu0 0
        %2978 = vmatprep.subr.bf16.mxu0 0
        %2979 = vmatpush1.bf16.msra.mxu0 0
        %2980 = vmatprep.subr.bf16.mxu0 0
        %2981 = vmatpush1.bf16.msra.mxu0 0
        %2982 = vmatprep.subr.bf16.mxu0 0
        %2983 = vmatpush1.bf16.msra.mxu0 0
        %2984 = vmatprep.subr.bf16.mxu0 0
        %2985 = vmatpush1.bf16.msra.mxu0 0
        %2986 = vmatprep.subr.bf16.mxu0 0
        %2987 = vmatpush1.bf16.msra.mxu0 0
        %2988 = vmatprep.mubr.bf16.mxu0 0
        %2989 = vmatmul.mubr.bf16.gmra.mrb[0].mxu0 %v1210
        %v2990 = vpop.f32.mrb[0].mxu0
        %v2991 = vadd.f32 0.0, %v2990
        %v2992 = vpop.f32.mrb[0].mxu0
        %v2993 = vpop.f32.mrb[0].mxu0
        %v2994 = vpop.f32.mrb[0].mxu0
        %2995 = vdwg.mxu0
        %v2996 = vadd.f32 %v2894, %v2950
        %v2997 = vadd.f32 %v2895, %v2952
        %v2998 = vadd.f32 %v2896, %v2991
        %2999 = vrot.lane.b32.xlu0 %v492, 91
        %v3000 = vpop.permute.xlu0 %2999
        %3001 = vrot.lane.b32.xlu0 %v493, 91
        %v3002 = vpop.permute.xlu0 %3001
        %3003 = vrot.lane.b32.xlu0 %v498, 91
        %v3004 = vpop.permute.xlu0 %3003
        %vm3005 = vcmask 744448
        %v3006 = vsel %vm3005, %v3000, %v3002
        %v3007 = vsel %vm3005, %v3002, %v3004
        %v3009 = vsel %vm581, %v3006, 0
        %v3012 = vsel %vm581, %v3007, 0
        %v3015 = vsel %vm581, %v3004, 0
        %3017 = vmatprep.subr.bf16.mxu0 %v3012
        %3018 = vmatpush1.bf16.msra.mxu0 %v3009
        %3019 = vmatprep.subr.bf16.mxu0 0
        %3020 = vmatpush1.bf16.msra.mxu0 0
        %3021 = vmatprep.subr.bf16.mxu0 0
        %3022 = vmatpush1.bf16.msra.mxu0 0
        %3023 = vmatprep.subr.bf16.mxu0 0
        %3024 = vmatpush1.bf16.msra.mxu0 0
        %3025 = vmatprep.subr.bf16.mxu0 0
        %3026 = vmatpush1.bf16.msra.mxu0 0
        %3027 = vmatprep.subr.bf16.mxu0 0
        %3028 = vmatpush1.bf16.msra.mxu0 0
        %3029 = vmatprep.subr.bf16.mxu0 0
        %3030 = vmatpush1.bf16.msra.mxu0 0
        %3031 = vmatprep.subr.bf16.mxu0 0
        %3032 = vmatpush1.bf16.msra.mxu0 0
        %3033 = vmatprep.subr.bf16.mxu0 0
        %3034 = vmatpush1.bf16.msra.mxu0 0
        %3035 = vmatprep.subr.bf16.mxu0 0
        %3036 = vmatpush1.bf16.msra.mxu0 0
        %3037 = vmatprep.subr.bf16.mxu0 0
        %3038 = vmatpush1.bf16.msra.mxu0 0
        %3039 = vmatprep.subr.bf16.mxu0 0
        %3040 = vmatpush1.bf16.msra.mxu0 0
        %3041 = vmatprep.subr.bf16.mxu0 0
        %3042 = vmatpush1.bf16.msra.mxu0 0
        %3043 = vmatprep.subr.bf16.mxu0 0
        %3044 = vmatpush1.bf16.msra.mxu0 0
        %3045 = vmatprep.subr.bf16.mxu0 0
        %3046 = vmatpush1.bf16.msra.mxu0 0
        %3047 = vmatprep.subr.bf16.mxu0 0
        %3048 = vmatpush1.bf16.msra.mxu0 0
        %3049 = vmatprep.mubr.bf16.mxu0 0
        %3050 = vmatmul.mubr.bf16.gmra.mrb[0].mxu0 %v1316
        %v3051 = vpop.f32.mrb[0].mxu0
        %v3052 = vadd.f32 0.0, %v3051
        %v3053 = vpop.f32.mrb[0].mxu0
        %v3054 = vadd.f32 0.0, %v3053
        %v3055 = vpop.f32.mrb[0].mxu0
        %v3056 = vpop.f32.mrb[0].mxu0
        %3057 = vdwg.mxu0
        %3058 = vmatprep.subr.bf16.mxu0 0
        %3059 = vmatpush1.bf16.msra.mxu0 %v3015
        %3060 = vmatprep.subr.bf16.mxu0 0
        %3061 = vmatpush1.bf16.msra.mxu0 0
        %3062 = vmatprep.subr.bf16.mxu0 0
        %3063 = vmatpush1.bf16.msra.mxu0 0
        %3064 = vmatprep.subr.bf16.mxu0 0
        %3065 = vmatpush1.bf16.msra.mxu0 0
        %3066 = vmatprep.subr.bf16.mxu0 0
        %3067 = vmatpush1.bf16.msra.mxu0 0
        %3068 = vmatprep.subr.bf16.mxu0 0
        %3069 = vmatpush1.bf16.msra.mxu0 0
        %3070 = vmatprep.subr.bf16.mxu0 0
        %3071 = vmatpush1.bf16.msra.mxu0 0
        %3072 = vmatprep.subr.bf16.mxu0 0
        %3073 = vmatpush1.bf16.msra.mxu0 0
        %3074 = vmatprep.subr.bf16.mxu0 0
        %3075 = vmatpush1.bf16.msra.mxu0 0
        %3076 = vmatprep.subr.bf16.mxu0 0
        %3077 = vmatpush1.bf16.msra.mxu0 0
        %3078 = vmatprep.subr.bf16.mxu0 0
        %3079 = vmatpush1.bf16.msra.mxu0 0
        %3080 = vmatprep.subr.bf16.mxu0 0
        %3081 = vmatpush1.bf16.msra.mxu0 0
        %3082 = vmatprep.subr.bf16.mxu0 0
        %3083 = vmatpush1.bf16.msra.mxu0 0
        %3084 = vmatprep.subr.bf16.mxu0 0
        %3085 = vmatpush1.bf16.msra.mxu0 0
        %3086 = vmatprep.subr.bf16.mxu0 0
        %3087 = vmatpush1.bf16.msra.mxu0 0
        %3088 = vmatprep.subr.bf16.mxu0 0
        %3089 = vmatpush1.bf16.msra.mxu0 0
        %3090 = vmatprep.mubr.bf16.mxu0 0
        %3091 = vmatmul.mubr.bf16.gmra.mrb[0].mxu0 %v1316
        %v3092 = vpop.f32.mrb[0].mxu0
        %v3093 = vadd.f32 0.0, %v3092
        %v3094 = vpop.f32.mrb[0].mxu0
        %v3095 = vpop.f32.mrb[0].mxu0
        %v3096 = vpop.f32.mrb[0].mxu0
        %3097 = vdwg.mxu0
        %v3098 = vadd.f32 %v2996, %v3052
        %v3099 = vadd.f32 %v2997, %v3054
        %v3100 = vadd.f32 %v2998, %v3093
        %3101 = vrot.lane.b32.xlu0 %v499, 91
        %v3102 = vpop.permute.xlu0 %3101
        %3103 = vrot.lane.b32.xlu0 %v500, 91
        %v3104 = vpop.permute.xlu0 %3103
        %3105 = vrot.lane.b32.xlu0 %v503, 91
        %v3106 = vpop.permute.xlu0 %3105
        %v3107 = vsel %vm3005, %v3102, %v3104
        %v3108 = vsel %vm3005, %v3104, %v3106
        %v3110 = vsel %vm581, %v3107, 0
        %v3113 = vsel %vm581, %v3108, 0
        %v3116 = vsel %vm581, %v3106, 0
        %3118 = vmatprep.subr.bf16.mxu0 %v3113
        %3119 = vmatpush1.bf16.msra.mxu0 %v3110
        %3120 = vmatprep.subr.bf16.mxu0 0
        %3121 = vmatpush1.bf16.msra.mxu0 0
        %3122 = vmatprep.subr.bf16.mxu0 0
        %3123 = vmatpush1.bf16.msra.mxu0 0
        %3124 = vmatprep.subr.bf16.mxu0 0
        %3125 = vmatpush1.bf16.msra.mxu0 0
        %3126 = vmatprep.subr.bf16.mxu0 0
        %3127 = vmatpush1.bf16.msra.mxu0 0
        %3128 = vmatprep.subr.bf16.mxu0 0
        %3129 = vmatpush1.bf16.msra.mxu0 0
        %3130 = vmatprep.subr.bf16.mxu0 0
        %3131 = vmatpush1.bf16.msra.mxu0 0
        %3132 = vmatprep.subr.bf16.mxu0 0
        %3133 = vmatpush1.bf16.msra.mxu0 0
        %3134 = vmatprep.subr.bf16.mxu0 0
        %3135 = vmatpush1.bf16.msra.mxu0 0
        %3136 = vmatprep.subr.bf16.mxu0 0
        %3137 = vmatpush1.bf16.msra.mxu0 0
        %3138 = vmatprep.subr.bf16.mxu0 0
        %3139 = vmatpush1.bf16.msra.mxu0 0
        %3140 = vmatprep.subr.bf16.mxu0 0
        %3141 = vmatpush1.bf16.msra.mxu0 0
        %3142 = vmatprep.subr.bf16.mxu0 0
        %3143 = vmatpush1.bf16.msra.mxu0 0
        %3144 = vmatprep.subr.bf16.mxu0 0
        %3145 = vmatpush1.bf16.msra.mxu0 0
        %3146 = vmatprep.subr.bf16.mxu0 0
        %3147 = vmatpush1.bf16.msra.mxu0 0
        %3148 = vmatprep.subr.bf16.mxu0 0
        %3149 = vmatpush1.bf16.msra.mxu0 0
        %3150 = vmatprep.mubr.bf16.mxu0 0
        %3151 = vmatmul.mubr.bf16.gmra.mrb[0].mxu0 %v1422
        %v3152 = vpop.f32.mrb[0].mxu0
        %v3153 = vadd.f32 0.0, %v3152
        %v3154 = vpop.f32.mrb[0].mxu0
        %v3155 = vadd.f32 0.0, %v3154
        %v3156 = vpop.f32.mrb[0].mxu0
        %v3157 = vpop.f32.mrb[0].mxu0
        %3158 = vdwg.mxu0
        %3159 = vmatprep.subr.bf16.mxu0 0
        %3160 = vmatpush1.bf16.msra.mxu0 %v3116
        %3161 = vmatprep.subr.bf16.mxu0 0
        %3162 = vmatpush1.bf16.msra.mxu0 0
        %3163 = vmatprep.subr.bf16.mxu0 0
        %3164 = vmatpush1.bf16.msra.mxu0 0
        %3165 = vmatprep.subr.bf16.mxu0 0
        %3166 = vmatpush1.bf16.msra.mxu0 0
        %3167 = vmatprep.subr.bf16.mxu0 0
        %3168 = vmatpush1.bf16.msra.mxu0 0
        %3169 = vmatprep.subr.bf16.mxu0 0
        %3170 = vmatpush1.bf16.msra.mxu0 0
        %3171 = vmatprep.subr.bf16.mxu0 0
        %3172 = vmatpush1.bf16.msra.mxu0 0
        %3173 = vmatprep.subr.bf16.mxu0 0
        %3174 = vmatpush1.bf16.msra.mxu0 0
        %3175 = vmatprep.subr.bf16.mxu0 0
        %3176 = vmatpush1.bf16.msra.mxu0 0
        %3177 = vmatprep.subr.bf16.mxu0 0
        %3178 = vmatpush1.bf16.msra.mxu0 0
        %3179 = vmatprep.subr.bf16.mxu0 0
        %3180 = vmatpush1.bf16.msra.mxu0 0
        %3181 = vmatprep.subr.bf16.mxu0 0
        %3182 = vmatpush1.bf16.msra.mxu0 0
        %3183 = vmatprep.subr.bf16.mxu0 0
        %3184 = vmatpush1.bf16.msra.mxu0 0
        %3185 = vmatprep.subr.bf16.mxu0 0
        %3186 = vmatpush1.bf16.msra.mxu0 0
        %3187 = vmatprep.subr.bf16.mxu0 0
        %3188 = vmatpush1.bf16.msra.mxu0 0
        %3189 = vmatprep.subr.bf16.mxu0 0
        %3190 = vmatpush1.bf16.msra.mxu0 0
        %3191 = vmatprep.mubr.bf16.mxu0 0
        %3192 = vmatmul.mubr.bf16.gmra.mrb[0].mxu0 %v1422
        %v3193 = vpop.f32.mrb[0].mxu0
        %v3194 = vadd.f32 0.0, %v3193
        %v3195 = vpop.f32.mrb[0].mxu0
        %v3196 = vpop.f32.mrb[0].mxu0
        %v3197 = vpop.f32.mrb[0].mxu0
        %3198 = vdwg.mxu0
        %v3199 = vadd.f32 %v3098, %v3153
        %v3200 = vadd.f32 %v3099, %v3155
        %v3201 = vadd.f32 %v3100, %v3194
        %v3202 = vadd.f32 %v3199, %v1521
        %v3203 = vadd.f32 %v3200, %v1521
        %v3204 = vadd.f32 %v3201, %v1521
        %v3205 = vmax.f32 %v3202, 0.0
        %v3206 = vmax.f32 %v3203, 0.0
        %v3207 = vmax.f32 %v3204, 0.0
        %v3208 = vmul.f32 %v3205, %v1533
        %v3209 = vmul.f32 %v3206, %v1537
        %v3210 = vmul.f32 %v3207, %v1541
        %v3211 = vpack.c.bf16 %v3208, %v3208
        %v3212 = vpack.c.bf16 %v3209, %v3209
        %v3213 = vpack.c.bf16 %v3210, %v3210
        %3217 = vrot.lane.b32.xlu0 %v3211, 19
        %v3218 = vpop.permute.xlu0 %3217
        %3219 = vrot.lane.b32.xlu0 %v3212, 19
        %v3220 = vpop.permute.xlu0 %3219
        %3221 = vrot.lane.b32.xlu0 %v3213, 19
        %v3222 = vpop.permute.xlu0 %3221
        %v3223 = vsel %vm1560, %v3218, %v3220
        %v3224 = vsel %vm1560, %v3220, %v3222
        %v3226 = vsel %vm1563, 0, %v3218
        %v3228 = vsel %vm1566, %v3224, 0
        %3229 = vmatprep.subr.bf16.mxu0 %v1110
        %3230 = vmatpush1.bf16.msra.mxu0 %v1107
        %3231 = vmatprep.subr.bf16.mxu0 0
        %3232 = vmatpush1.bf16.msra.mxu0 0
        %3233 = vmatprep.subr.bf16.mxu0 0
        %3234 = vmatpush1.bf16.msra.mxu0 0
        %3235 = vmatprep.subr.bf16.mxu0 0
        %3236 = vmatpush1.bf16.msra.mxu0 0
        %3237 = vmatprep.subr.bf16.mxu0 0
        %3238 = vmatpush1.bf16.msra.mxu0 0
        %3239 = vmatprep.subr.bf16.mxu0 0
        %3240 = vmatpush1.bf16.msra.mxu0 0
        %3241 = vmatprep.subr.bf16.mxu0 0
        %3242 = vmatpush1.bf16.msra.mxu0 0
        %3243 = vmatprep.subr.bf16.mxu0 0
        %3244 = vmatpush1.bf16.msra.mxu0 0
        %3245 = vmatprep.subr.bf16.mxu0 0
        %3246 = vmatpush1.bf16.msra.mxu0 0
        %3247 = vmatprep.subr.bf16.mxu0 0
        %3248 = vmatpush1.bf16.msra.mxu0 0
        %3249 = vmatprep.subr.bf16.mxu0 0
        %3250 = vmatpush1.bf16.msra.mxu0 0
        %3251 = vmatprep.subr.bf16.mxu0 0
        %3252 = vmatpush1.bf16.msra.mxu0 0
        %3253 = vmatprep.subr.bf16.mxu0 0
        %3254 = vmatpush1.bf16.msra.mxu0 0
        %3255 = vmatprep.subr.bf16.mxu0 0
        %3256 = vmatpush1.bf16.msra.mxu0 0
        %3257 = vmatprep.subr.bf16.mxu0 0
        %3258 = vmatpush1.bf16.msra.mxu0 0
        %3259 = vmatprep.subr.bf16.mxu0 0
        %3260 = vmatpush1.bf16.msra.mxu0 0
        %3261 = vmatprep.mubr.bf16.mxu0 0
        %3262 = vmatmul.mubr.bf16.gmra.mrb[0].mxu0 %v579
        %v3263 = vpop.f32.mrb[0].mxu0
        %v3264 = vadd.f32 0.0, %v3263
        %v3265 = vpop.f32.mrb[0].mxu0
        %v3266 = vadd.f32 0.0, %v3265
        %v3267 = vpop.f32.mrb[0].mxu0
        %v3268 = vpop.f32.mrb[0].mxu0
        %3269 = vdwg.mxu0
        %3270 = vmatprep.subr.bf16.mxu0 0
        %3271 = vmatpush1.bf16.msra.mxu0 %v1113
        %3272 = vmatprep.subr.bf16.mxu0 0
        %3273 = vmatpush1.bf16.msra.mxu0 0
        %3274 = vmatprep.subr.bf16.mxu0 0
        %3275 = vmatpush1.bf16.msra.mxu0 0
        %3276 = vmatprep.subr.bf16.mxu0 0
        %3277 = vmatpush1.bf16.msra.mxu0 0
        %3278 = vmatprep.subr.bf16.mxu0 0
        %3279 = vmatpush1.bf16.msra.mxu0 0
        %3280 = vmatprep.subr.bf16.mxu0 0
        %3281 = vmatpush1.bf16.msra.mxu0 0
        %3282 = vmatprep.subr.bf16.mxu0 0
        %3283 = vmatpush1.bf16.msra.mxu0 0
        %3284 = vmatprep.subr.bf16.mxu0 0
        %3285 = vmatpush1.bf16.msra.mxu0 0
        %3286 = vmatprep.subr.bf16.mxu0 0
        %3287 = vmatpush1.bf16.msra.mxu0 0
        %3288 = vmatprep.subr.bf16.mxu0 0
        %3289 = vmatpush1.bf16.msra.mxu0 0
        %3290 = vmatprep.subr.bf16.mxu0 0
        %3291 = vmatpush1.bf16.msra.mxu0 0
        %3292 = vmatprep.subr.bf16.mxu0 0
        %3293 = vmatpush1.bf16.msra.mxu0 0
        %3294 = vmatprep.subr.bf16.mxu0 0
        %3295 = vmatpush1.bf16.msra.mxu0 0
        %3296 = vmatprep.subr.bf16.mxu0 0
        %3297 = vmatpush1.bf16.msra.mxu0 0
        %3298 = vmatprep.subr.bf16.mxu0 0
        %3299 = vmatpush1.bf16.msra.mxu0 0
        %3300 = vmatprep.subr.bf16.mxu0 0
        %3301 = vmatpush1.bf16.msra.mxu0 0
        %3302 = vmatprep.mubr.bf16.mxu0 0
        %3303 = vmatmul.mubr.bf16.gmra.mrb[0].mxu0 %v579
        %v3304 = vpop.f32.mrb[0].mxu0
        %v3305 = vadd.f32 0.0, %v3304
        %v3306 = vpop.f32.mrb[0].mxu0
        %v3307 = vpop.f32.mrb[0].mxu0
        %v3308 = vpop.f32.mrb[0].mxu0
        %3309 = vdwg.mxu0
        %3310 = vmatprep.subr.bf16.mxu0 %v1004
        %3311 = vmatpush1.bf16.msra.mxu0 %v1001
        %3312 = vmatprep.subr.bf16.mxu0 0
        %3313 = vmatpush1.bf16.msra.mxu0 0
        %3314 = vmatprep.subr.bf16.mxu0 0
        %3315 = vmatpush1.bf16.msra.mxu0 0
        %3316 = vmatprep.subr.bf16.mxu0 0
        %3317 = vmatpush1.bf16.msra.mxu0 0
        %3318 = vmatprep.subr.bf16.mxu0 0
        %3319 = vmatpush1.bf16.msra.mxu0 0
        %3320 = vmatprep.subr.bf16.mxu0 0
        %3321 = vmatpush1.bf16.msra.mxu0 0
        %3322 = vmatprep.subr.bf16.mxu0 0
        %3323 = vmatpush1.bf16.msra.mxu0 0
        %3324 = vmatprep.subr.bf16.mxu0 0
        %3325 = vmatpush1.bf16.msra.mxu0 0
        %3326 = vmatprep.subr.bf16.mxu0 0
        %3327 = vmatpush1.bf16.msra.mxu0 0
        %3328 = vmatprep.subr.bf16.mxu0 0
        %3329 = vmatpush1.bf16.msra.mxu0 0
        %3330 = vmatprep.subr.bf16.mxu0 0
        %3331 = vmatpush1.bf16.msra.mxu0 0
        %3332 = vmatprep.subr.bf16.mxu0 0
        %3333 = vmatpush1.bf16.msra.mxu0 0
        %3334 = vmatprep.subr.bf16.mxu0 0
        %3335 = vmatpush1.bf16.msra.mxu0 0
        %3336 = vmatprep.subr.bf16.mxu0 0
        %3337 = vmatpush1.bf16.msra.mxu0 0
        %3338 = vmatprep.subr.bf16.mxu0 0
        %3339 = vmatpush1.bf16.msra.mxu0 0
        %3340 = vmatprep.subr.bf16.mxu0 0
        %3341 = vmatpush1.bf16.msra.mxu0 0
        %3342 = vmatprep.mubr.bf16.mxu0 0
        %3343 = vmatmul.mubr.bf16.gmra.mrb[0].mxu0 %v673
        %v3344 = vpop.f32.mrb[0].mxu0
        %v3345 = vadd.f32 %v3264, %v3344
        %v3346 = vpop.f32.mrb[0].mxu0
        %v3347 = vadd.f32 %v3266, %v3346
        %v3348 = vpop.f32.mrb[0].mxu0
        %v3349 = vpop.f32.mrb[0].mxu0
        %3350 = vdwg.mxu0
        %3351 = vmatprep.subr.bf16.mxu0 0
        %3352 = vmatpush1.bf16.msra.mxu0 %v1007
        %3353 = vmatprep.subr.bf16.mxu0 0
        %3354 = vmatpush1.bf16.msra.mxu0 0
        %3355 = vmatprep.subr.bf16.mxu0 0
        %3356 = vmatpush1.bf16.msra.mxu0 0
        %3357 = vmatprep.subr.bf16.mxu0 0
        %3358 = vmatpush1.bf16.msra.mxu0 0
        %3359 = vmatprep.subr.bf16.mxu0 0
        %3360 = vmatpush1.bf16.msra.mxu0 0
        %3361 = vmatprep.subr.bf16.mxu0 0
        %3362 = vmatpush1.bf16.msra.mxu0 0
        %3363 = vmatprep.subr.bf16.mxu0 0
        %3364 = vmatpush1.bf16.msra.mxu0 0
        %3365 = vmatprep.subr.bf16.mxu0 0
        %3366 = vmatpush1.bf16.msra.mxu0 0
        %3367 = vmatprep.subr.bf16.mxu0 0
        %3368 = vmatpush1.bf16.msra.mxu0 0
        %3369 = vmatprep.subr.bf16.mxu0 0
        %3370 = vmatpush1.bf16.msra.mxu0 0
        %3371 = vmatprep.subr.bf16.mxu0 0
        %3372 = vmatpush1.bf16.msra.mxu0 0
        %3373 = vmatprep.subr.bf16.mxu0 0
        %3374 = vmatpush1.bf16.msra.mxu0 0
        %3375 = vmatprep.subr.bf16.mxu0 0
        %3376 = vmatpush1.bf16.msra.mxu0 0
        %3377 = vmatprep.subr.bf16.mxu0 0
        %3378 = vmatpush1.bf16.msra.mxu0 0
        %3379 = vmatprep.subr.bf16.mxu0 0
        %3380 = vmatpush1.bf16.msra.mxu0 0
        %3381 = vmatprep.subr.bf16.mxu0 0
        %3382 = vmatpush1.bf16.msra.mxu0 0
        %3383 = vmatprep.mubr.bf16.mxu0 0
        %3384 = vmatmul.mubr.bf16.gmra.mrb[0].mxu0 %v673
        %v3385 = vpop.f32.mrb[0].mxu0
        %v3386 = vadd.f32 %v3305, %v3385
        %v3387 = vpop.f32.mrb[0].mxu0
        %v3388 = vpop.f32.mrb[0].mxu0
        %v3389 = vpop.f32.mrb[0].mxu0
        %3390 = vdwg.mxu0
        %3391 = vmatprep.subr.bf16.mxu0 %v2014
        %3392 = vmatpush1.bf16.msra.mxu0 %v2011
        %3393 = vmatprep.subr.bf16.mxu0 0
        %3394 = vmatpush1.bf16.msra.mxu0 0
        %3395 = vmatprep.subr.bf16.mxu0 0
        %3396 = vmatpush1.bf16.msra.mxu0 0
        %3397 = vmatprep.subr.bf16.mxu0 0
        %3398 = vmatpush1.bf16.msra.mxu0 0
        %3399 = vmatprep.subr.bf16.mxu0 0
        %3400 = vmatpush1.bf16.msra.mxu0 0
        %3401 = vmatprep.subr.bf16.mxu0 0
        %3402 = vmatpush1.bf16.msra.mxu0 0
        %3403 = vmatprep.subr.bf16.mxu0 0
        %3404 = vmatpush1.bf16.msra.mxu0 0
        %3405 = vmatprep.subr.bf16.mxu0 0
        %3406 = vmatpush1.bf16.msra.mxu0 0
        %3407 = vmatprep.subr.bf16.mxu0 0
        %3408 = vmatpush1.bf16.msra.mxu0 0
        %3409 = vmatprep.subr.bf16.mxu0 0
        %3410 = vmatpush1.bf16.msra.mxu0 0
        %3411 = vmatprep.subr.bf16.mxu0 0
        %3412 = vmatpush1.bf16.msra.mxu0 0
        %3413 = vmatprep.subr.bf16.mxu0 0
        %3414 = vmatpush1.bf16.msra.mxu0 0
        %3415 = vmatprep.subr.bf16.mxu0 0
        %3416 = vmatpush1.bf16.msra.mxu0 0
        %3417 = vmatprep.subr.bf16.mxu0 0
        %3418 = vmatpush1.bf16.msra.mxu0 0
        %3419 = vmatprep.subr.bf16.mxu0 0
        %3420 = vmatpush1.bf16.msra.mxu0 0
        %3421 = vmatprep.subr.bf16.mxu0 0
        %3422 = vmatpush1.bf16.msra.mxu0 0
        %3423 = vmatprep.mubr.bf16.mxu0 0
        %3424 = vmatmul.mubr.bf16.gmra.mrb[0].mxu0 %v778
        %v3425 = vpop.f32.mrb[0].mxu0
        %v3426 = vadd.f32 0.0, %v3425
        %v3427 = vpop.f32.mrb[0].mxu0
        %v3428 = vadd.f32 0.0, %v3427
        %v3429 = vpop.f32.mrb[0].mxu0
        %v3430 = vpop.f32.mrb[0].mxu0
        %3431 = vdwg.mxu0
        %3432 = vmatprep.subr.bf16.mxu0 0
        %3433 = vmatpush1.bf16.msra.mxu0 %v2017
        %3434 = vmatprep.subr.bf16.mxu0 0
        %3435 = vmatpush1.bf16.msra.mxu0 0
        %3436 = vmatprep.subr.bf16.mxu0 0
        %3437 = vmatpush1.bf16.msra.mxu0 0
        %3438 = vmatprep.subr.bf16.mxu0 0
        %3439 = vmatpush1.bf16.msra.mxu0 0
        %3440 = vmatprep.subr.bf16.mxu0 0
        %3441 = vmatpush1.bf16.msra.mxu0 0
        %3442 = vmatprep.subr.bf16.mxu0 0
        %3443 = vmatpush1.bf16.msra.mxu0 0
        %3444 = vmatprep.subr.bf16.mxu0 0
        %3445 = vmatpush1.bf16.msra.mxu0 0
        %3446 = vmatprep.subr.bf16.mxu0 0
        %3447 = vmatpush1.bf16.msra.mxu0 0
        %3448 = vmatprep.subr.bf16.mxu0 0
        %3449 = vmatpush1.bf16.msra.mxu0 0
        %3450 = vmatprep.subr.bf16.mxu0 0
        %3451 = vmatpush1.bf16.msra.mxu0 0
        %3452 = vmatprep.subr.bf16.mxu0 0
        %3453 = vmatpush1.bf16.msra.mxu0 0
        %3454 = vmatprep.subr.bf16.mxu0 0
        %3455 = vmatpush1.bf16.msra.mxu0 0
        %3456 = vmatprep.subr.bf16.mxu0 0
        %3457 = vmatpush1.bf16.msra.mxu0 0
        %3458 = vmatprep.subr.bf16.mxu0 0
        %3459 = vmatpush1.bf16.msra.mxu0 0
        %3460 = vmatprep.subr.bf16.mxu0 0
        %3461 = vmatpush1.bf16.msra.mxu0 0
        %3462 = vmatprep.subr.bf16.mxu0 0
        %3463 = vmatpush1.bf16.msra.mxu0 0
        %3464 = vmatprep.mubr.bf16.mxu0 0
        %3465 = vmatmul.mubr.bf16.gmra.mrb[0].mxu0 %v778
        %v3466 = vpop.f32.mrb[0].mxu0
        %v3467 = vadd.f32 0.0, %v3466
        %v3468 = vpop.f32.mrb[0].mxu0
        %v3469 = vpop.f32.mrb[0].mxu0
        %v3470 = vpop.f32.mrb[0].mxu0
        %3471 = vdwg.mxu0
        %v3472 = vadd.f32 %v3345, %v3426
        %v3473 = vadd.f32 %v3347, %v3428
        %v3474 = vadd.f32 %v3386, %v3467
        %3475 = vmatprep.subr.bf16.mxu0 %v1322
        %3476 = vmatpush1.bf16.msra.mxu0 %v1319
        %3477 = vmatprep.subr.bf16.mxu0 0
        %3478 = vmatpush1.bf16.msra.mxu0 0
        %3479 = vmatprep.subr.bf16.mxu0 0
        %3480 = vmatpush1.bf16.msra.mxu0 0
        %3481 = vmatprep.subr.bf16.mxu0 0
        %3482 = vmatpush1.bf16.msra.mxu0 0
        %3483 = vmatprep.subr.bf16.mxu0 0
        %3484 = vmatpush1.bf16.msra.mxu0 0
        %3485 = vmatprep.subr.bf16.mxu0 0
        %3486 = vmatpush1.bf16.msra.mxu0 0
        %3487 = vmatprep.subr.bf16.mxu0 0
        %3488 = vmatpush1.bf16.msra.mxu0 0
        %3489 = vmatprep.subr.bf16.mxu0 0
        %3490 = vmatpush1.bf16.msra.mxu0 0
        %3491 = vmatprep.subr.bf16.mxu0 0
        %3492 = vmatpush1.bf16.msra.mxu0 0
        %3493 = vmatprep.subr.bf16.mxu0 0
        %3494 = vmatpush1.bf16.msra.mxu0 0
        %3495 = vmatprep.subr.bf16.mxu0 0
        %3496 = vmatpush1.bf16.msra.mxu0 0
        %3497 = vmatprep.subr.bf16.mxu0 0
        %3498 = vmatpush1.bf16.msra.mxu0 0
        %3499 = vmatprep.subr.bf16.mxu0 0
        %3500 = vmatpush1.bf16.msra.mxu0 0
        %3501 = vmatprep.subr.bf16.mxu0 0
        %3502 = vmatpush1.bf16.msra.mxu0 0
        %3503 = vmatprep.subr.bf16.mxu0 0
        %3504 = vmatpush1.bf16.msra.mxu0 0
        %3505 = vmatprep.subr.bf16.mxu0 0
        %3506 = vmatpush1.bf16.msra.mxu0 0
        %3507 = vmatprep.mubr.bf16.mxu0 0
        %3508 = vmatmul.mubr.bf16.gmra.mrb[0].mxu0 %v888
        %v3509 = vpop.f32.mrb[0].mxu0
        %v3510 = vadd.f32 0.0, %v3509
        %v3511 = vpop.f32.mrb[0].mxu0
        %v3512 = vadd.f32 0.0, %v3511
        %v3513 = vpop.f32.mrb[0].mxu0
        %v3514 = vpop.f32.mrb[0].mxu0
        %3515 = vdwg.mxu0
        %3516 = vmatprep.subr.bf16.mxu0 0
        %3517 = vmatpush1.bf16.msra.mxu0 %v1325
        %3518 = vmatprep.subr.bf16.mxu0 0
        %3519 = vmatpush1.bf16.msra.mxu0 0
        %3520 = vmatprep.subr.bf16.mxu0 0
        %3521 = vmatpush1.bf16.msra.mxu0 0
        %3522 = vmatprep.subr.bf16.mxu0 0
        %3523 = vmatpush1.bf16.msra.mxu0 0
        %3524 = vmatprep.subr.bf16.mxu0 0
        %3525 = vmatpush1.bf16.msra.mxu0 0
        %3526 = vmatprep.subr.bf16.mxu0 0
        %3527 = vmatpush1.bf16.msra.mxu0 0
        %3528 = vmatprep.subr.bf16.mxu0 0
        %3529 = vmatpush1.bf16.msra.mxu0 0
        %3530 = vmatprep.subr.bf16.mxu0 0
        %3531 = vmatpush1.bf16.msra.mxu0 0
        %3532 = vmatprep.subr.bf16.mxu0 0
        %3533 = vmatpush1.bf16.msra.mxu0 0
        %3534 = vmatprep.subr.bf16.mxu0 0
        %3535 = vmatpush1.bf16.msra.mxu0 0
        %3536 = vmatprep.subr.bf16.mxu0 0
        %3537 = vmatpush1.bf16.msra.mxu0 0
        %3538 = vmatprep.subr.bf16.mxu0 0
        %3539 = vmatpush1.bf16.msra.mxu0 0
        %3540 = vmatprep.subr.bf16.mxu0 0
        %3541 = vmatpush1.bf16.msra.mxu0 0
        %3542 = vmatprep.subr.bf16.mxu0 0
        %3543 = vmatpush1.bf16.msra.mxu0 0
        %3544 = vmatprep.subr.bf16.mxu0 0
        %3545 = vmatpush1.bf16.msra.mxu0 0
        %3546 = vmatprep.subr.bf16.mxu0 0
        %3547 = vmatpush1.bf16.msra.mxu0 0
        %3548 = vmatprep.mubr.bf16.mxu0 0
        %3549 = vmatmul.mubr.bf16.gmra.mrb[0].mxu0 %v888
        %v3550 = vpop.f32.mrb[0].mxu0
        %v3551 = vadd.f32 0.0, %v3550
        %v3552 = vpop.f32.mrb[0].mxu0
        %v3553 = vpop.f32.mrb[0].mxu0
        %v3554 = vpop.f32.mrb[0].mxu0
        %3555 = vdwg.mxu0
        %v3556 = vadd.f32 %v3472, %v3510
        %v3557 = vadd.f32 %v3473, %v3512
        %v3558 = vadd.f32 %v3474, %v3551
        %3559 = vmatprep.subr.bf16.mxu0 %v1428
        %3560 = vmatpush1.bf16.msra.mxu0 %v1425
        %3561 = vmatprep.subr.bf16.mxu0 0
        %3562 = vmatpush1.bf16.msra.mxu0 0
        %3563 = vmatprep.subr.bf16.mxu0 0
        %3564 = vmatpush1.bf16.msra.mxu0 0
        %3565 = vmatprep.subr.bf16.mxu0 0
        %3566 = vmatpush1.bf16.msra.mxu0 0
        %3567 = vmatprep.subr.bf16.mxu0 0
        %3568 = vmatpush1.bf16.msra.mxu0 0
        %3569 = vmatprep.subr.bf16.mxu0 0
        %3570 = vmatpush1.bf16.msra.mxu0 0
        %3571 = vmatprep.subr.bf16.mxu0 0
        %3572 = vmatpush1.bf16.msra.mxu0 0
        %3573 = vmatprep.subr.bf16.mxu0 0
        %3574 = vmatpush1.bf16.msra.mxu0 0
        %3575 = vmatprep.subr.bf16.mxu0 0
        %3576 = vmatpush1.bf16.msra.mxu0 0
        %3577 = vmatprep.subr.bf16.mxu0 0
        %3578 = vmatpush1.bf16.msra.mxu0 0
        %3579 = vmatprep.subr.bf16.mxu0 0
        %3580 = vmatpush1.bf16.msra.mxu0 0
        %3581 = vmatprep.subr.bf16.mxu0 0
        %3582 = vmatpush1.bf16.msra.mxu0 0
        %3583 = vmatprep.subr.bf16.mxu0 0
        %3584 = vmatpush1.bf16.msra.mxu0 0
        %3585 = vmatprep.subr.bf16.mxu0 0
        %3586 = vmatpush1.bf16.msra.mxu0 0
        %3587 = vmatprep.subr.bf16.mxu0 0
        %3588 = vmatpush1.bf16.msra.mxu0 0
        %3589 = vmatprep.subr.bf16.mxu0 0
        %3590 = vmatpush1.bf16.msra.mxu0 0
        %3591 = vmatprep.mubr.bf16.mxu0 0
        %3592 = vmatmul.mubr.bf16.gmra.mrb[0].mxu0 %v998
        %v3593 = vpop.f32.mrb[0].mxu0
        %v3594 = vadd.f32 0.0, %v3593
        %v3595 = vpop.f32.mrb[0].mxu0
        %v3596 = vadd.f32 0.0, %v3595
        %v3597 = vpop.f32.mrb[0].mxu0
        %v3598 = vpop.f32.mrb[0].mxu0
        %3599 = vdwg.mxu0
        %3600 = vmatprep.subr.bf16.mxu0 0
        %3601 = vmatpush1.bf16.msra.mxu0 %v1431
        %3602 = vmatprep.subr.bf16.mxu0 0
        %3603 = vmatpush1.bf16.msra.mxu0 0
        %3604 = vmatprep.subr.bf16.mxu0 0
        %3605 = vmatpush1.bf16.msra.mxu0 0
        %3606 = vmatprep.subr.bf16.mxu0 0
        %3607 = vmatpush1.bf16.msra.mxu0 0
        %3608 = vmatprep.subr.bf16.mxu0 0
        %3609 = vmatpush1.bf16.msra.mxu0 0
        %3610 = vmatprep.subr.bf16.mxu0 0
        %3611 = vmatpush1.bf16.msra.mxu0 0
        %3612 = vmatprep.subr.bf16.mxu0 0
        %3613 = vmatpush1.bf16.msra.mxu0 0
        %3614 = vmatprep.subr.bf16.mxu0 0
        %3615 = vmatpush1.bf16.msra.mxu0 0
        %3616 = vmatprep.subr.bf16.mxu0 0
        %3617 = vmatpush1.bf16.msra.mxu0 0
        %3618 = vmatprep.subr.bf16.mxu0 0
        %3619 = vmatpush1.bf16.msra.mxu0 0
        %3620 = vmatprep.subr.bf16.mxu0 0
        %3621 = vmatpush1.bf16.msra.mxu0 0
        %3622 = vmatprep.subr.bf16.mxu0 0
        %3623 = vmatpush1.bf16.msra.mxu0 0
        %3624 = vmatprep.subr.bf16.mxu0 0
        %3625 = vmatpush1.bf16.msra.mxu0 0
        %3626 = vmatprep.subr.bf16.mxu0 0
        %3627 = vmatpush1.bf16.msra.mxu0 0
        %3628 = vmatprep.subr.bf16.mxu0 0
        %3629 = vmatpush1.bf16.msra.mxu0 0
        %3630 = vmatprep.subr.bf16.mxu0 0
        %3631 = vmatpush1.bf16.msra.mxu0 0
        %3632 = vmatprep.mubr.bf16.mxu0 0
        %3633 = vmatmul.mubr.bf16.gmra.mrb[0].mxu0 %v998
        %v3634 = vpop.f32.mrb[0].mxu0
        %v3635 = vadd.f32 0.0, %v3634
        %v3636 = vpop.f32.mrb[0].mxu0
        %v3637 = vpop.f32.mrb[0].mxu0
        %v3638 = vpop.f32.mrb[0].mxu0
        %3639 = vdwg.mxu0
        %v3640 = vadd.f32 %v3556, %v3594
        %v3641 = vadd.f32 %v3557, %v3596
        %v3642 = vadd.f32 %v3558, %v3635
        %3643 = vmatprep.subr.bf16.mxu0 %v2283
        %3644 = vmatpush1.bf16.msra.mxu0 %v2280
        %3645 = vmatprep.subr.bf16.mxu0 0
        %3646 = vmatpush1.bf16.msra.mxu0 0
        %3647 = vmatprep.subr.bf16.mxu0 0
        %3648 = vmatpush1.bf16.msra.mxu0 0
        %3649 = vmatprep.subr.bf16.mxu0 0
        %3650 = vmatpush1.bf16.msra.mxu0 0
        %3651 = vmatprep.subr.bf16.mxu0 0
        %3652 = vmatpush1.bf16.msra.mxu0 0
        %3653 = vmatprep.subr.bf16.mxu0 0
        %3654 = vmatpush1.bf16.msra.mxu0 0
        %3655 = vmatprep.subr.bf16.mxu0 0
        %3656 = vmatpush1.bf16.msra.mxu0 0
        %3657 = vmatprep.subr.bf16.mxu0 0
        %3658 = vmatpush1.bf16.msra.mxu0 0
        %3659 = vmatprep.subr.bf16.mxu0 0
        %3660 = vmatpush1.bf16.msra.mxu0 0
        %3661 = vmatprep.subr.bf16.mxu0 0
        %3662 = vmatpush1.bf16.msra.mxu0 0
        %3663 = vmatprep.subr.bf16.mxu0 0
        %3664 = vmatpush1.bf16.msra.mxu0 0
        %3665 = vmatprep.subr.bf16.mxu0 0
        %3666 = vmatpush1.bf16.msra.mxu0 0
        %3667 = vmatprep.subr.bf16.mxu0 0
        %3668 = vmatpush1.bf16.msra.mxu0 0
        %3669 = vmatprep.subr.bf16.mxu0 0
        %3670 = vmatpush1.bf16.msra.mxu0 0
        %3671 = vmatprep.subr.bf16.mxu0 0
        %3672 = vmatpush1.bf16.msra.mxu0 0
        %3673 = vmatprep.subr.bf16.mxu0 0
        %3674 = vmatpush1.bf16.msra.mxu0 0
        %3675 = vmatprep.mubr.bf16.mxu0 0
        %3676 = vmatmul.mubr.bf16.gmra.mrb[0].mxu0 %v1104
        %v3677 = vpop.f32.mrb[0].mxu0
        %v3678 = vadd.f32 0.0, %v3677
        %v3679 = vpop.f32.mrb[0].mxu0
        %v3680 = vadd.f32 0.0, %v3679
        %v3681 = vpop.f32.mrb[0].mxu0
        %v3682 = vpop.f32.mrb[0].mxu0
        %3683 = vdwg.mxu0
        %3684 = vmatprep.subr.bf16.mxu0 0
        %3685 = vmatpush1.bf16.msra.mxu0 %v2286
        %3686 = vmatprep.subr.bf16.mxu0 0
        %3687 = vmatpush1.bf16.msra.mxu0 0
        %3688 = vmatprep.subr.bf16.mxu0 0
        %3689 = vmatpush1.bf16.msra.mxu0 0
        %3690 = vmatprep.subr.bf16.mxu0 0
        %3691 = vmatpush1.bf16.msra.mxu0 0
        %3692 = vmatprep.subr.bf16.mxu0 0
        %3693 = vmatpush1.bf16.msra.mxu0 0
        %3694 = vmatprep.subr.bf16.mxu0 0
        %3695 = vmatpush1.bf16.msra.mxu0 0
        %3696 = vmatprep.subr.bf16.mxu0 0
        %3697 = vmatpush1.bf16.msra.mxu0 0
        %3698 = vmatprep.subr.bf16.mxu0 0
        %3699 = vmatpush1.bf16.msra.mxu0 0
        %3700 = vmatprep.subr.bf16.mxu0 0
        %3701 = vmatpush1.bf16.msra.mxu0 0
        %3702 = vmatprep.subr.bf16.mxu0 0
        %3703 = vmatpush1.bf16.msra.mxu0 0
        %3704 = vmatprep.subr.bf16.mxu0 0
        %3705 = vmatpush1.bf16.msra.mxu0 0
        %3706 = vmatprep.subr.bf16.mxu0 0
        %3707 = vmatpush1.bf16.msra.mxu0 0
        %3708 = vmatprep.subr.bf16.mxu0 0
        %3709 = vmatpush1.bf16.msra.mxu0 0
        %3710 = vmatprep.subr.bf16.mxu0 0
        %3711 = vmatpush1.bf16.msra.mxu0 0
        %3712 = vmatprep.subr.bf16.mxu0 0
        %3713 = vmatpush1.bf16.msra.mxu0 0
        %3714 = vmatprep.subr.bf16.mxu0 0
        %3715 = vmatpush1.bf16.msra.mxu0 0
        %3716 = vmatprep.mubr.bf16.mxu0 0
        %3717 = vmatmul.mubr.bf16.gmra.mrb[0].mxu0 %v1104
        %v3718 = vpop.f32.mrb[0].mxu0
        %v3719 = vadd.f32 0.0, %v3718
        %v3720 = vpop.f32.mrb[0].mxu0
        %v3721 = vpop.f32.mrb[0].mxu0
        %v3722 = vpop.f32.mrb[0].mxu0
        %3723 = vdwg.mxu0
        %v3724 = vadd.f32 %v3640, %v3678
        %v3725 = vadd.f32 %v3641, %v3680
        %v3726 = vadd.f32 %v3642, %v3719
        %3727 = vmatprep.subr.bf16.mxu0 %v3012
        %3728 = vmatpush1.bf16.msra.mxu0 %v3009
        %3729 = vmatprep.subr.bf16.mxu0 0
        %3730 = vmatpush1.bf16.msra.mxu0 0
        %3731 = vmatprep.subr.bf16.mxu0 0
        %3732 = vmatpush1.bf16.msra.mxu0 0
        %3733 = vmatprep.subr.bf16.mxu0 0
        %3734 = vmatpush1.bf16.msra.mxu0 0
        %3735 = vmatprep.subr.bf16.mxu0 0
        %3736 = vmatpush1.bf16.msra.mxu0 0
        %3737 = vmatprep.subr.bf16.mxu0 0
        %3738 = vmatpush1.bf16.msra.mxu0 0
        %3739 = vmatprep.subr.bf16.mxu0 0
        %3740 = vmatpush1.bf16.msra.mxu0 0
        %3741 = vmatprep.subr.bf16.mxu0 0
        %3742 = vmatpush1.bf16.msra.mxu0 0
        %3743 = vmatprep.subr.bf16.mxu0 0
        %3744 = vmatpush1.bf16.msra.mxu0 0
        %3745 = vmatprep.subr.bf16.mxu0 0
        %3746 = vmatpush1.bf16.msra.mxu0 0
        %3747 = vmatprep.subr.bf16.mxu0 0
        %3748 = vmatpush1.bf16.msra.mxu0 0
        %3749 = vmatprep.subr.bf16.mxu0 0
        %3750 = vmatpush1.bf16.msra.mxu0 0
        %3751 = vmatprep.subr.bf16.mxu0 0
        %3752 = vmatpush1.bf16.msra.mxu0 0
        %3753 = vmatprep.subr.bf16.mxu0 0
        %3754 = vmatpush1.bf16.msra.mxu0 0
        %3755 = vmatprep.subr.bf16.mxu0 0
        %3756 = vmatpush1.bf16.msra.mxu0 0
        %3757 = vmatprep.subr.bf16.mxu0 0
        %3758 = vmatpush1.bf16.msra.mxu0 0
        %3759 = vmatprep.mubr.bf16.mxu0 0
        %3760 = vmatmul.mubr.bf16.gmra.mrb[0].mxu0 %v1210
        %v3761 = vpop.f32.mrb[0].mxu0
        %v3762 = vadd.f32 0.0, %v3761
        %v3763 = vpop.f32.mrb[0].mxu0
        %v3764 = vadd.f32 0.0, %v3763
        %v3765 = vpop.f32.mrb[0].mxu0
        %v3766 = vpop.f32.mrb[0].mxu0
        %3767 = vdwg.mxu0
        %3768 = vmatprep.subr.bf16.mxu0 0
        %3769 = vmatpush1.bf16.msra.mxu0 %v3015
        %3770 = vmatprep.subr.bf16.mxu0 0
        %3771 = vmatpush1.bf16.msra.mxu0 0
        %3772 = vmatprep.subr.bf16.mxu0 0
        %3773 = vmatpush1.bf16.msra.mxu0 0
        %3774 = vmatprep.subr.bf16.mxu0 0
        %3775 = vmatpush1.bf16.msra.mxu0 0
        %3776 = vmatprep.subr.bf16.mxu0 0
        %3777 = vmatpush1.bf16.msra.mxu0 0
        %3778 = vmatprep.subr.bf16.mxu0 0
        %3779 = vmatpush1.bf16.msra.mxu0 0
        %3780 = vmatprep.subr.bf16.mxu0 0
        %3781 = vmatpush1.bf16.msra.mxu0 0
        %3782 = vmatprep.subr.bf16.mxu0 0
        %3783 = vmatpush1.bf16.msra.mxu0 0
        %3784 = vmatprep.subr.bf16.mxu0 0
        %3785 = vmatpush1.bf16.msra.mxu0 0
        %3786 = vmatprep.subr.bf16.mxu0 0
        %3787 = vmatpush1.bf16.msra.mxu0 0
        %3788 = vmatprep.subr.bf16.mxu0 0
        %3789 = vmatpush1.bf16.msra.mxu0 0
        %3790 = vmatprep.subr.bf16.mxu0 0
        %3791 = vmatpush1.bf16.msra.mxu0 0
        %3792 = vmatprep.subr.bf16.mxu0 0
        %3793 = vmatpush1.bf16.msra.mxu0 0
        %3794 = vmatprep.subr.bf16.mxu0 0
        %3795 = vmatpush1.bf16.msra.mxu0 0
        %3796 = vmatprep.subr.bf16.mxu0 0
        %3797 = vmatpush1.bf16.msra.mxu0 0
        %3798 = vmatprep.subr.bf16.mxu0 0
        %3799 = vmatpush1.bf16.msra.mxu0 0
        %3800 = vmatprep.mubr.bf16.mxu0 0
        %3801 = vmatmul.mubr.bf16.gmra.mrb[0].mxu0 %v1210
        %v3802 = vpop.f32.mrb[0].mxu0
        %v3803 = vadd.f32 0.0, %v3802
        %v3804 = vpop.f32.mrb[0].mxu0
        %v3805 = vpop.f32.mrb[0].mxu0
        %v3806 = vpop.f32.mrb[0].mxu0
        %3807 = vdwg.mxu0
        %v3808 = vadd.f32 %v3724, %v3762
        %v3809 = vadd.f32 %v3725, %v3764
        %v3810 = vadd.f32 %v3726, %v3803
        %3811 = vmatprep.subr.bf16.mxu0 %v3113
        %3812 = vmatpush1.bf16.msra.mxu0 %v3110
        %3813 = vmatprep.subr.bf16.mxu0 0
        %3814 = vmatpush1.bf16.msra.mxu0 0
        %3815 = vmatprep.subr.bf16.mxu0 0
        %3816 = vmatpush1.bf16.msra.mxu0 0
        %3817 = vmatprep.subr.bf16.mxu0 0
        %3818 = vmatpush1.bf16.msra.mxu0 0
        %3819 = vmatprep.subr.bf16.mxu0 0
        %3820 = vmatpush1.bf16.msra.mxu0 0
        %3821 = vmatprep.subr.bf16.mxu0 0
        %3822 = vmatpush1.bf16.msra.mxu0 0
        %3823 = vmatprep.subr.bf16.mxu0 0
        %3824 = vmatpush1.bf16.msra.mxu0 0
        %3825 = vmatprep.subr.bf16.mxu0 0
        %3826 = vmatpush1.bf16.msra.mxu0 0
        %3827 = vmatprep.subr.bf16.mxu0 0
        %3828 = vmatpush1.bf16.msra.mxu0 0
        %3829 = vmatprep.subr.bf16.mxu0 0
        %3830 = vmatpush1.bf16.msra.mxu0 0
        %3831 = vmatprep.subr.bf16.mxu0 0
        %3832 = vmatpush1.bf16.msra.mxu0 0
        %3833 = vmatprep.subr.bf16.mxu0 0
        %3834 = vmatpush1.bf16.msra.mxu0 0
        %3835 = vmatprep.subr.bf16.mxu0 0
        %3836 = vmatpush1.bf16.msra.mxu0 0
        %3837 = vmatprep.subr.bf16.mxu0 0
        %3838 = vmatpush1.bf16.msra.mxu0 0
        %3839 = vmatprep.subr.bf16.mxu0 0
        %3840 = vmatpush1.bf16.msra.mxu0 0
        %3841 = vmatprep.subr.bf16.mxu0 0
        %3842 = vmatpush1.bf16.msra.mxu0 0
        %3843 = vmatprep.mubr.bf16.mxu0 0
        %3844 = vmatmul.mubr.bf16.gmra.mrb[0].mxu0 %v1316
        %v3845 = vpop.f32.mrb[0].mxu0
        %v3846 = vadd.f32 0.0, %v3845
        %v3847 = vpop.f32.mrb[0].mxu0
        %v3848 = vadd.f32 0.0, %v3847
        %v3849 = vpop.f32.mrb[0].mxu0
        %v3850 = vpop.f32.mrb[0].mxu0
        %3851 = vdwg.mxu0
        %3852 = vmatprep.subr.bf16.mxu0 0
        %3853 = vmatpush1.bf16.msra.mxu0 %v3116
        %3854 = vmatprep.subr.bf16.mxu0 0
        %3855 = vmatpush1.bf16.msra.mxu0 0
        %3856 = vmatprep.subr.bf16.mxu0 0
        %3857 = vmatpush1.bf16.msra.mxu0 0
        %3858 = vmatprep.subr.bf16.mxu0 0
        %3859 = vmatpush1.bf16.msra.mxu0 0
        %3860 = vmatprep.subr.bf16.mxu0 0
        %3861 = vmatpush1.bf16.msra.mxu0 0
        %3862 = vmatprep.subr.bf16.mxu0 0
        %3863 = vmatpush1.bf16.msra.mxu0 0
        %3864 = vmatprep.subr.bf16.mxu0 0
        %3865 = vmatpush1.bf16.msra.mxu0 0
        %3866 = vmatprep.subr.bf16.mxu0 0
        %3867 = vmatpush1.bf16.msra.mxu0 0
        %3868 = vmatprep.subr.bf16.mxu0 0
        %3869 = vmatpush1.bf16.msra.mxu0 0
        %3870 = vmatprep.subr.bf16.mxu0 0
        %3871 = vmatpush1.bf16.msra.mxu0 0
        %3872 = vmatprep.subr.bf16.mxu0 0
        %3873 = vmatpush1.bf16.msra.mxu0 0
        %3874 = vmatprep.subr.bf16.mxu0 0
        %3875 = vmatpush1.bf16.msra.mxu0 0
        %3876 = vmatprep.subr.bf16.mxu0 0
        %3877 = vmatpush1.bf16.msra.mxu0 0
        %3878 = vmatprep.subr.bf16.mxu0 0
        %3879 = vmatpush1.bf16.msra.mxu0 0
        %3880 = vmatprep.subr.bf16.mxu0 0
        %3881 = vmatpush1.bf16.msra.mxu0 0
        %3882 = vmatprep.subr.bf16.mxu0 0
        %3883 = vmatpush1.bf16.msra.mxu0 0
        %3884 = vmatprep.mubr.bf16.mxu0 0
        %3885 = vmatmul.mubr.bf16.gmra.mrb[0].mxu0 %v1316
        %v3886 = vpop.f32.mrb[0].mxu0
        %v3887 = vadd.f32 0.0, %v3886
        %v3888 = vpop.f32.mrb[0].mxu0
        %v3889 = vpop.f32.mrb[0].mxu0
        %v3890 = vpop.f32.mrb[0].mxu0
        %3891 = vdwg.mxu0
        %v3892 = vadd.f32 %v3808, %v3846
        %v3893 = vadd.f32 %v3809, %v3848
        %v3894 = vadd.f32 %v3810, %v3887
        %3895 = vrot.lane.b32.xlu0 %v492, 90
        %v3896 = vpop.permute.xlu0 %3895
        %3897 = vrot.lane.b32.xlu0 %v493, 90
        %v3898 = vpop.permute.xlu0 %3897
        %3899 = vrot.lane.b32.xlu0 %v498, 90
        %v3900 = vpop.permute.xlu0 %3899
        %vm3901 = vcmask 736256
        %v3902 = vsel %vm3901, %v3896, %v3898
        %v3903 = vsel %vm3901, %v3898, %v3900
        %v3905 = vsel %vm581, %v3902, 0
        %v3908 = vsel %vm581, %v3903, 0
        %v3911 = vsel %vm581, %v3900, 0
        %3913 = vmatprep.subr.bf16.mxu0 %v3908
        %3914 = vmatpush1.bf16.msra.mxu0 %v3905
        %3915 = vmatprep.subr.bf16.mxu0 0
        %3916 = vmatpush1.bf16.msra.mxu0 0
        %3917 = vmatprep.subr.bf16.mxu0 0
        %3918 = vmatpush1.bf16.msra.mxu0 0
        %3919 = vmatprep.subr.bf16.mxu0 0
        %3920 = vmatpush1.bf16.msra.mxu0 0
        %3921 = vmatprep.subr.bf16.mxu0 0
        %3922 = vmatpush1.bf16.msra.mxu0 0
        %3923 = vmatprep.subr.bf16.mxu0 0
        %3924 = vmatpush1.bf16.msra.mxu0 0
        %3925 = vmatprep.subr.bf16.mxu0 0
        %3926 = vmatpush1.bf16.msra.mxu0 0
        %3927 = vmatprep.subr.bf16.mxu0 0
        %3928 = vmatpush1.bf16.msra.mxu0 0
        %3929 = vmatprep.subr.bf16.mxu0 0
        %3930 = vmatpush1.bf16.msra.mxu0 0
        %3931 = vmatprep.subr.bf16.mxu0 0
        %3932 = vmatpush1.bf16.msra.mxu0 0
        %3933 = vmatprep.subr.bf16.mxu0 0
        %3934 = vmatpush1.bf16.msra.mxu0 0
        %3935 = vmatprep.subr.bf16.mxu0 0
        %3936 = vmatpush1.bf16.msra.mxu0 0
        %3937 = vmatprep.subr.bf16.mxu0 0
        %3938 = vmatpush1.bf16.msra.mxu0 0
        %3939 = vmatprep.subr.bf16.mxu0 0
        %3940 = vmatpush1.bf16.msra.mxu0 0
        %3941 = vmatprep.subr.bf16.mxu0 0
        %3942 = vmatpush1.bf16.msra.mxu0 0
        %3943 = vmatprep.subr.bf16.mxu0 0
        %3944 = vmatpush1.bf16.msra.mxu0 0
        %3945 = vmatprep.mubr.bf16.mxu0 0
        %3946 = vmatmul.mubr.bf16.gmra.mrb[0].mxu0 %v1422
        %v3947 = vpop.f32.mrb[0].mxu0
        %v3948 = vadd.f32 0.0, %v3947
        %v3949 = vpop.f32.mrb[0].mxu0
        %v3950 = vadd.f32 0.0, %v3949
        %v3951 = vpop.f32.mrb[0].mxu0
        %v3952 = vpop.f32.mrb[0].mxu0
        %3953 = vdwg.mxu0
        %3954 = vmatprep.subr.bf16.mxu0 0
        %3955 = vmatpush1.bf16.msra.mxu0 %v3911
        %3956 = vmatprep.subr.bf16.mxu0 0
        %3957 = vmatpush1.bf16.msra.mxu0 0
        %3958 = vmatprep.subr.bf16.mxu0 0
        %3959 = vmatpush1.bf16.msra.mxu0 0
        %3960 = vmatprep.subr.bf16.mxu0 0
        %3961 = vmatpush1.bf16.msra.mxu0 0
        %3962 = vmatprep.subr.bf16.mxu0 0
        %3963 = vmatpush1.bf16.msra.mxu0 0
        %3964 = vmatprep.subr.bf16.mxu0 0
        %3965 = vmatpush1.bf16.msra.mxu0 0
        %3966 = vmatprep.subr.bf16.mxu0 0
        %3967 = vmatpush1.bf16.msra.mxu0 0
        %3968 = vmatprep.subr.bf16.mxu0 0
        %3969 = vmatpush1.bf16.msra.mxu0 0
        %3970 = vmatprep.subr.bf16.mxu0 0
        %3971 = vmatpush1.bf16.msra.mxu0 0
        %3972 = vmatprep.subr.bf16.mxu0 0
        %3973 = vmatpush1.bf16.msra.mxu0 0
        %3974 = vmatprep.subr.bf16.mxu0 0
        %3975 = vmatpush1.bf16.msra.mxu0 0
        %3976 = vmatprep.subr.bf16.mxu0 0
        %3977 = vmatpush1.bf16.msra.mxu0 0
        %3978 = vmatprep.subr.bf16.mxu0 0
        %3979 = vmatpush1.bf16.msra.mxu0 0
        %3980 = vmatprep.subr.bf16.mxu0 0
        %3981 = vmatpush1.bf16.msra.mxu0 0
        %3982 = vmatprep.subr.bf16.mxu0 0
        %3983 = vmatpush1.bf16.msra.mxu0 0
        %3984 = vmatprep.subr.bf16.mxu0 0
        %3985 = vmatpush1.bf16.msra.mxu0 0
        %3986 = vmatprep.mubr.bf16.mxu0 0
        %3987 = vmatmul.mubr.bf16.gmra.mrb[0].mxu0 %v1422
        %v3988 = vpop.f32.mrb[0].mxu0
        %v3989 = vadd.f32 0.0, %v3988
        %v3990 = vpop.f32.mrb[0].mxu0
        %v3991 = vpop.f32.mrb[0].mxu0
        %v3992 = vpop.f32.mrb[0].mxu0
        %3993 = vdwg.mxu0
        %v3994 = vadd.f32 %v3892, %v3948
        %v3995 = vadd.f32 %v3893, %v3950
        %v3996 = vadd.f32 %v3894, %v3989
        %v3997 = vadd.f32 %v3994, %v1521
        %v3998 = vadd.f32 %v3995, %v1521
        %v3999 = vadd.f32 %v3996, %v1521
        %v4000 = vmax.f32 %v3997, 0.0
        %v4001 = vmax.f32 %v3998, 0.0
        %v4002 = vmax.f32 %v3999, 0.0
        %v4003 = vmul.f32 %v4000, %v1533
        %v4004 = vmul.f32 %v4001, %v1537
        %v4005 = vmul.f32 %v4002, %v1541
        %v4006 = vpack.c.bf16 %v4003, %v4003
        %v4007 = vpack.c.bf16 %v4004, %v4004
        %v4008 = vpack.c.bf16 %v4005, %v4005
        %4012 = vrot.lane.b32.xlu0 %v4006, 19
        %v4013 = vpop.permute.xlu0 %4012
        %4014 = vrot.lane.b32.xlu0 %v4007, 19
        %v4015 = vpop.permute.xlu0 %4014
        %4016 = vrot.lane.b32.xlu0 %v4008, 19
        %v4017 = vpop.permute.xlu0 %4016
        %v4018 = vsel %vm1560, %v4013, %v4015
        %v4019 = vsel %vm1560, %v4015, %v4017
        %v4021 = vsel %vm1563, 0, %v4013
        %v4023 = vsel %vm1566, %v4019, 0
        %v4024 = vld [vmem:[#allocation8] sm:$0xf]
        %s4025 = scalar_lea.vmem [#allocation8], 4
        %v4026 = vld [vmem:[%s4025] sm:$0xf]
        %4029 = vrot.lane.b32.xlu0 %v3226, 127
        %v4030 = vpop.permute.xlu0 %4029
        %4031 = vrot.lane.b32.xlu0 %v3223, 127
        %v4032 = vpop.permute.xlu0 %4031
        %4033 = vrot.lane.b32.xlu0 %v3228, 127
        %v4034 = vpop.permute.xlu0 %4033
        %v4035 = vsel %vm574, %v4030, %v4032
        %v4036 = vsel %vm574, %v4032, %v4034
        %v4038 = vsel %vm577, %v4026, 0
        %v4041 = vsel %vm581, %v4035, 0
        %v4044 = vsel %vm581, %v4036, 0
        %v4047 = vsel %vm581, %v4034, 0
        %4049 = vmatprep.subr.bf16.mxu0 %v4044
        %4050 = vmatpush1.bf16.msra.mxu0 %v4041
        %4051 = vmatprep.subr.bf16.mxu0 0
        %4052 = vmatpush1.bf16.msra.mxu0 0
        %4053 = vmatprep.subr.bf16.mxu0 0
        %4054 = vmatpush1.bf16.msra.mxu0 0
        %4055 = vmatprep.subr.bf16.mxu0 0
        %4056 = vmatpush1.bf16.msra.mxu0 0
        %4057 = vmatprep.subr.bf16.mxu0 0
        %4058 = vmatpush1.bf16.msra.mxu0 0
        %4059 = vmatprep.subr.bf16.mxu0 0
        %4060 = vmatpush1.bf16.msra.mxu0 0
        %4061 = vmatprep.subr.bf16.mxu0 0
        %4062 = vmatpush1.bf16.msra.mxu0 0
        %4063 = vmatprep.subr.bf16.mxu0 0
        %4064 = vmatpush1.bf16.msra.mxu0 0
        %4065 = vmatprep.subr.bf16.mxu0 0
        %4066 = vmatpush1.bf16.msra.mxu0 0
        %4067 = vmatprep.subr.bf16.mxu0 0
        %4068 = vmatpush1.bf16.msra.mxu0 0
        %4069 = vmatprep.subr.bf16.mxu0 0
        %4070 = vmatpush1.bf16.msra.mxu0 0
        %4071 = vmatprep.subr.bf16.mxu0 0
        %4072 = vmatpush1.bf16.msra.mxu0 0
        %4073 = vmatprep.subr.bf16.mxu0 0
        %4074 = vmatpush1.bf16.msra.mxu0 0
        %4075 = vmatprep.subr.bf16.mxu0 0
        %4076 = vmatpush1.bf16.msra.mxu0 0
        %4077 = vmatprep.subr.bf16.mxu0 0
        %4078 = vmatpush1.bf16.msra.mxu0 0
        %4079 = vmatprep.subr.bf16.mxu0 0
        %4080 = vmatpush1.bf16.msra.mxu0 0
        %4081 = vmatprep.mubr.bf16.mxu0 0
        %4082 = vmatmul.mubr.bf16.gmra.mrb[0].mxu0 %v4038
        %v4083 = vpop.f32.mrb[0].mxu0
        %v4084 = vadd.f32 0.0, %v4083
        %v4085 = vpop.f32.mrb[0].mxu0
        %v4086 = vadd.f32 0.0, %v4085
        %v4087 = vpop.f32.mrb[0].mxu0
        %v4088 = vpop.f32.mrb[0].mxu0
        %4089 = vdwg.mxu0
        %4090 = vmatprep.subr.bf16.mxu0 0
        %4091 = vmatpush1.bf16.msra.mxu0 %v4047
        %4092 = vmatprep.subr.bf16.mxu0 0
        %4093 = vmatpush1.bf16.msra.mxu0 0
        %4094 = vmatprep.subr.bf16.mxu0 0
        %4095 = vmatpush1.bf16.msra.mxu0 0
        %4096 = vmatprep.subr.bf16.mxu0 0
        %4097 = vmatpush1.bf16.msra.mxu0 0
        %4098 = vmatprep.subr.bf16.mxu0 0
        %4099 = vmatpush1.bf16.msra.mxu0 0
        %4100 = vmatprep.subr.bf16.mxu0 0
        %4101 = vmatpush1.bf16.msra.mxu0 0
        %4102 = vmatprep.subr.bf16.mxu0 0
        %4103 = vmatpush1.bf16.msra.mxu0 0
        %4104 = vmatprep.subr.bf16.mxu0 0
        %4105 = vmatpush1.bf16.msra.mxu0 0
        %4106 = vmatprep.subr.bf16.mxu0 0
        %4107 = vmatpush1.bf16.msra.mxu0 0
        %4108 = vmatprep.subr.bf16.mxu0 0
        %4109 = vmatpush1.bf16.msra.mxu0 0
        %4110 = vmatprep.subr.bf16.mxu0 0
        %4111 = vmatpush1.bf16.msra.mxu0 0
        %4112 = vmatprep.subr.bf16.mxu0 0
        %4113 = vmatpush1.bf16.msra.mxu0 0
        %4114 = vmatprep.subr.bf16.mxu0 0
        %4115 = vmatpush1.bf16.msra.mxu0 0
        %4116 = vmatprep.subr.bf16.mxu0 0
        %4117 = vmatpush1.bf16.msra.mxu0 0
        %4118 = vmatprep.subr.bf16.mxu0 0
        %4119 = vmatpush1.bf16.msra.mxu0 0
        %4120 = vmatprep.subr.bf16.mxu0 0
        %4121 = vmatpush1.bf16.msra.mxu0 0
        %4122 = vmatprep.mubr.bf16.mxu0 0
        %4123 = vmatmul.mubr.bf16.gmra.mrb[0].mxu0 %v4038
        %v4124 = vpop.f32.mrb[0].mxu0
        %v4125 = vadd.f32 0.0, %v4124
        %v4126 = vpop.f32.mrb[0].mxu0
        %v4127 = vpop.f32.mrb[0].mxu0
        %v4128 = vpop.f32.mrb[0].mxu0
        %4129 = vdwg.mxu0
        %v4131 = vsel %vm577, %v4024, 0
        %v4133 = vsel %vm581, %v4021, 0
        %v4136 = vsel %vm581, %v4018, 0
        %v4138 = vsel %vm581, %v4023, 0
        %4140 = vmatprep.subr.bf16.mxu0 %v4136
        %4141 = vmatpush1.bf16.msra.mxu0 %v4133
        %4142 = vmatprep.subr.bf16.mxu0 0
        %4143 = vmatpush1.bf16.msra.mxu0 0
        %4144 = vmatprep.subr.bf16.mxu0 0
        %4145 = vmatpush1.bf16.msra.mxu0 0
        %4146 = vmatprep.subr.bf16.mxu0 0
        %4147 = vmatpush1.bf16.msra.mxu0 0
        %4148 = vmatprep.subr.bf16.mxu0 0
        %4149 = vmatpush1.bf16.msra.mxu0 0
        %4150 = vmatprep.subr.bf16.mxu0 0
        %4151 = vmatpush1.bf16.msra.mxu0 0
        %4152 = vmatprep.subr.bf16.mxu0 0
        %4153 = vmatpush1.bf16.msra.mxu0 0
        %4154 = vmatprep.subr.bf16.mxu0 0
        %4155 = vmatpush1.bf16.msra.mxu0 0
        %4156 = vmatprep.subr.bf16.mxu0 0
        %4157 = vmatpush1.bf16.msra.mxu0 0
        %4158 = vmatprep.subr.bf16.mxu0 0
        %4159 = vmatpush1.bf16.msra.mxu0 0
        %4160 = vmatprep.subr.bf16.mxu0 0
        %4161 = vmatpush1.bf16.msra.mxu0 0
        %4162 = vmatprep.subr.bf16.mxu0 0
        %4163 = vmatpush1.bf16.msra.mxu0 0
        %4164 = vmatprep.subr.bf16.mxu0 0
        %4165 = vmatpush1.bf16.msra.mxu0 0
        %4166 = vmatprep.subr.bf16.mxu0 0
        %4167 = vmatpush1.bf16.msra.mxu0 0
        %4168 = vmatprep.subr.bf16.mxu0 0
        %4169 = vmatpush1.bf16.msra.mxu0 0
        %4170 = vmatprep.subr.bf16.mxu0 0
        %4171 = vmatpush1.bf16.msra.mxu0 0
        %4172 = vmatprep.mubr.bf16.mxu0 0
        %4173 = vmatmul.mubr.bf16.gmra.mrb[0].mxu0 %v4131
        %v4174 = vpop.f32.mrb[0].mxu0
        %v4175 = vadd.f32 %v4084, %v4174
        %v4176 = vpop.f32.mrb[0].mxu0
        %v4177 = vadd.f32 %v4086, %v4176
        %v4178 = vpop.f32.mrb[0].mxu0
        %v4179 = vpop.f32.mrb[0].mxu0
        %4180 = vdwg.mxu0
        %4181 = vmatprep.subr.bf16.mxu0 0
        %4182 = vmatpush1.bf16.msra.mxu0 %v4138
        %4183 = vmatprep.subr.bf16.mxu0 0
        %4184 = vmatpush1.bf16.msra.mxu0 0
        %4185 = vmatprep.subr.bf16.mxu0 0
        %4186 = vmatpush1.bf16.msra.mxu0 0
        %4187 = vmatprep.subr.bf16.mxu0 0
        %4188 = vmatpush1.bf16.msra.mxu0 0
        %4189 = vmatprep.subr.bf16.mxu0 0
        %4190 = vmatpush1.bf16.msra.mxu0 0
        %4191 = vmatprep.subr.bf16.mxu0 0
        %4192 = vmatpush1.bf16.msra.mxu0 0
        %4193 = vmatprep.subr.bf16.mxu0 0
        %4194 = vmatpush1.bf16.msra.mxu0 0
        %4195 = vmatprep.subr.bf16.mxu0 0
        %4196 = vmatpush1.bf16.msra.mxu0 0
        %4197 = vmatprep.subr.bf16.mxu0 0
        %4198 = vmatpush1.bf16.msra.mxu0 0
        %4199 = vmatprep.subr.bf16.mxu0 0
        %4200 = vmatpush1.bf16.msra.mxu0 0
        %4201 = vmatprep.subr.bf16.mxu0 0
        %4202 = vmatpush1.bf16.msra.mxu0 0
        %4203 = vmatprep.subr.bf16.mxu0 0
        %4204 = vmatpush1.bf16.msra.mxu0 0
        %4205 = vmatprep.subr.bf16.mxu0 0
        %4206 = vmatpush1.bf16.msra.mxu0 0
        %4207 = vmatprep.subr.bf16.mxu0 0
        %4208 = vmatpush1.bf16.msra.mxu0 0
        %4209 = vmatprep.subr.bf16.mxu0 0
        %4210 = vmatpush1.bf16.msra.mxu0 0
        %4211 = vmatprep.subr.bf16.mxu0 0
        %4212 = vmatpush1.bf16.msra.mxu0 0
        %4213 = vmatprep.mubr.bf16.mxu0 0
        %4214 = vmatmul.mubr.bf16.gmra.mrb[0].mxu0 %v4131
        %v4215 = vpop.f32.mrb[0].mxu0
        %v4216 = vadd.f32 %v4125, %v4215
        %v4217 = vpop.f32.mrb[0].mxu0
        %v4218 = vpop.f32.mrb[0].mxu0
        %v4219 = vpop.f32.mrb[0].mxu0
        %4220 = vdwg.mxu0
        %s4221 = scalar_lea.vmem [#allocation8], 8
        %v4222 = vld [vmem:[%s4221] sm:$0xf]
        %4225 = vrot.lane.b32.xlu0 %v4021, 127
        %v4226 = vpop.permute.xlu0 %4225
        %4227 = vrot.lane.b32.xlu0 %v4018, 127
        %v4228 = vpop.permute.xlu0 %4227
        %4229 = vrot.lane.b32.xlu0 %v4023, 127
        %v4230 = vpop.permute.xlu0 %4229
        %v4231 = vsel %vm574, %v4226, %v4228
        %v4232 = vsel %vm574, %v4228, %v4230
        %v4234 = vsel %vm577, %v4222, 0
        %v4237 = vsel %vm581, %v4231, 0
        %v4240 = vsel %vm581, %v4232, 0
        %v4243 = vsel %vm581, %v4230, 0
        %4245 = vmatprep.subr.bf16.mxu0 %v4240
        %4246 = vmatpush1.bf16.msra.mxu0 %v4237
        %4247 = vmatprep.subr.bf16.mxu0 0
        %4248 = vmatpush1.bf16.msra.mxu0 0
        %4249 = vmatprep.subr.bf16.mxu0 0
        %4250 = vmatpush1.bf16.msra.mxu0 0
        %4251 = vmatprep.subr.bf16.mxu0 0
        %4252 = vmatpush1.bf16.msra.mxu0 0
        %4253 = vmatprep.subr.bf16.mxu0 0
        %4254 = vmatpush1.bf16.msra.mxu0 0
        %4255 = vmatprep.subr.bf16.mxu0 0
        %4256 = vmatpush1.bf16.msra.mxu0 0
        %4257 = vmatprep.subr.bf16.mxu0 0
        %4258 = vmatpush1.bf16.msra.mxu0 0
        %4259 = vmatprep.subr.bf16.mxu0 0
        %4260 = vmatpush1.bf16.msra.mxu0 0
        %4261 = vmatprep.subr.bf16.mxu0 0
        %4262 = vmatpush1.bf16.msra.mxu0 0
        %4263 = vmatprep.subr.bf16.mxu0 0
        %4264 = vmatpush1.bf16.msra.mxu0 0
        %4265 = vmatprep.subr.bf16.mxu0 0
        %4266 = vmatpush1.bf16.msra.mxu0 0
        %4267 = vmatprep.subr.bf16.mxu0 0
        %4268 = vmatpush1.bf16.msra.mxu0 0
        %4269 = vmatprep.subr.bf16.mxu0 0
        %4270 = vmatpush1.bf16.msra.mxu0 0
        %4271 = vmatprep.subr.bf16.mxu0 0
        %4272 = vmatpush1.bf16.msra.mxu0 0
        %4273 = vmatprep.subr.bf16.mxu0 0
        %4274 = vmatpush1.bf16.msra.mxu0 0
        %4275 = vmatprep.subr.bf16.mxu0 0
        %4276 = vmatpush1.bf16.msra.mxu0 0
        %4277 = vmatprep.mubr.bf16.mxu0 0
        %4278 = vmatmul.mubr.bf16.gmra.mrb[0].mxu0 %v4234
        %v4279 = vpop.f32.mrb[0].mxu0
        %v4280 = vadd.f32 0.0, %v4279
        %v4281 = vpop.f32.mrb[0].mxu0
        %v4282 = vadd.f32 0.0, %v4281
        %v4283 = vpop.f32.mrb[0].mxu0
        %v4284 = vpop.f32.mrb[0].mxu0
        %4285 = vdwg.mxu0
        %4286 = vmatprep.subr.bf16.mxu0 0
        %4287 = vmatpush1.bf16.msra.mxu0 %v4243
        %4288 = vmatprep.subr.bf16.mxu0 0
        %4289 = vmatpush1.bf16.msra.mxu0 0
        %4290 = vmatprep.subr.bf16.mxu0 0
        %4291 = vmatpush1.bf16.msra.mxu0 0
        %4292 = vmatprep.subr.bf16.mxu0 0
        %4293 = vmatpush1.bf16.msra.mxu0 0
        %4294 = vmatprep.subr.bf16.mxu0 0
        %4295 = vmatpush1.bf16.msra.mxu0 0
        %4296 = vmatprep.subr.bf16.mxu0 0
        %4297 = vmatpush1.bf16.msra.mxu0 0
        %4298 = vmatprep.subr.bf16.mxu0 0
        %4299 = vmatpush1.bf16.msra.mxu0 0
        %4300 = vmatprep.subr.bf16.mxu0 0
        %4301 = vmatpush1.bf16.msra.mxu0 0
        %4302 = vmatprep.subr.bf16.mxu0 0
        %4303 = vmatpush1.bf16.msra.mxu0 0
        %4304 = vmatprep.subr.bf16.mxu0 0
        %4305 = vmatpush1.bf16.msra.mxu0 0
        %4306 = vmatprep.subr.bf16.mxu0 0
        %4307 = vmatpush1.bf16.msra.mxu0 0
        %4308 = vmatprep.subr.bf16.mxu0 0
        %4309 = vmatpush1.bf16.msra.mxu0 0
        %4310 = vmatprep.subr.bf16.mxu0 0
        %4311 = vmatpush1.bf16.msra.mxu0 0
        %4312 = vmatprep.subr.bf16.mxu0 0
        %4313 = vmatpush1.bf16.msra.mxu0 0
        %4314 = vmatprep.subr.bf16.mxu0 0
        %4315 = vmatpush1.bf16.msra.mxu0 0
        %4316 = vmatprep.subr.bf16.mxu0 0
        %4317 = vmatpush1.bf16.msra.mxu0 0
        %4318 = vmatprep.mubr.bf16.mxu0 0
        %4319 = vmatmul.mubr.bf16.gmra.mrb[0].mxu0 %v4234
        %v4320 = vpop.f32.mrb[0].mxu0
        %v4321 = vadd.f32 0.0, %v4320
        %v4322 = vpop.f32.mrb[0].mxu0
        %v4323 = vpop.f32.mrb[0].mxu0
        %v4324 = vpop.f32.mrb[0].mxu0
        %4325 = vdwg.mxu0
        %v4326 = vadd.f32 %v4175, %v4280
        %v4327 = vadd.f32 %v4177, %v4282
        %v4328 = vadd.f32 %v4216, %v4321
        %s4329 = scalar_lea.vmem [#allocation8], 12
        %v4330 = vld [vmem:[%s4329] sm:$0xf]
        %4333 = vrot.lane.b32.xlu0 %v2396, 110
        %v4334 = vpop.permute.xlu0 %4333
        %4335 = vrot.lane.b32.xlu0 %v2393, 110
        %v4336 = vpop.permute.xlu0 %4335
        %4337 = vrot.lane.b32.xlu0 %v2398, 110
        %v4338 = vpop.permute.xlu0 %4337
        %v4339 = vsel %vm884, %v4334, %v4336
        %v4340 = vsel %vm884, %v4336, %v4338
        %v4342 = vsel %vm577, %v4330, 0
        %v4345 = vsel %vm581, %v4339, 0
        %v4348 = vsel %vm581, %v4340, 0
        %v4351 = vsel %vm581, %v4338, 0
        %4353 = vmatprep.subr.bf16.mxu0 %v4348
        %4354 = vmatpush1.bf16.msra.mxu0 %v4345
        %4355 = vmatprep.subr.bf16.mxu0 0
        %4356 = vmatpush1.bf16.msra.mxu0 0
        %4357 = vmatprep.subr.bf16.mxu0 0
        %4358 = vmatpush1.bf16.msra.mxu0 0
        %4359 = vmatprep.subr.bf16.mxu0 0
        %4360 = vmatpush1.bf16.msra.mxu0 0
        %4361 = vmatprep.subr.bf16.mxu0 0
        %4362 = vmatpush1.bf16.msra.mxu0 0
        %4363 = vmatprep.subr.bf16.mxu0 0
        %4364 = vmatpush1.bf16.msra.mxu0 0
        %4365 = vmatprep.subr.bf16.mxu0 0
        %4366 = vmatpush1.bf16.msra.mxu0 0
        %4367 = vmatprep.subr.bf16.mxu0 0
        %4368 = vmatpush1.bf16.msra.mxu0 0
        %4369 = vmatprep.subr.bf16.mxu0 0
        %4370 = vmatpush1.bf16.msra.mxu0 0
        %4371 = vmatprep.subr.bf16.mxu0 0
        %4372 = vmatpush1.bf16.msra.mxu0 0
        %4373 = vmatprep.subr.bf16.mxu0 0
        %4374 = vmatpush1.bf16.msra.mxu0 0
        %4375 = vmatprep.subr.bf16.mxu0 0
        %4376 = vmatpush1.bf16.msra.mxu0 0
        %4377 = vmatprep.subr.bf16.mxu0 0
        %4378 = vmatpush1.bf16.msra.mxu0 0
        %4379 = vmatprep.subr.bf16.mxu0 0
        %4380 = vmatpush1.bf16.msra.mxu0 0
        %4381 = vmatprep.subr.bf16.mxu0 0
        %4382 = vmatpush1.bf16.msra.mxu0 0
        %4383 = vmatprep.subr.bf16.mxu0 0
        %4384 = vmatpush1.bf16.msra.mxu0 0
        %4385 = vmatprep.mubr.bf16.mxu0 0
        %4386 = vmatmul.mubr.bf16.gmra.mrb[0].mxu0 %v4342
        %v4387 = vpop.f32.mrb[0].mxu0
        %v4388 = vadd.f32 0.0, %v4387
        %v4389 = vpop.f32.mrb[0].mxu0
        %v4390 = vadd.f32 0.0, %v4389
        %v4391 = vpop.f32.mrb[0].mxu0
        %v4392 = vpop.f32.mrb[0].mxu0
        %4393 = vdwg.mxu0
        %4394 = vmatprep.subr.bf16.mxu0 0
        %4395 = vmatpush1.bf16.msra.mxu0 %v4351
        %4396 = vmatprep.subr.bf16.mxu0 0
        %4397 = vmatpush1.bf16.msra.mxu0 0
        %4398 = vmatprep.subr.bf16.mxu0 0
        %4399 = vmatpush1.bf16.msra.mxu0 0
        %4400 = vmatprep.subr.bf16.mxu0 0
        %4401 = vmatpush1.bf16.msra.mxu0 0
        %4402 = vmatprep.subr.bf16.mxu0 0
        %4403 = vmatpush1.bf16.msra.mxu0 0
        %4404 = vmatprep.subr.bf16.mxu0 0
        %4405 = vmatpush1.bf16.msra.mxu0 0
        %4406 = vmatprep.subr.bf16.mxu0 0
        %4407 = vmatpush1.bf16.msra.mxu0 0
        %4408 = vmatprep.subr.bf16.mxu0 0
        %4409 = vmatpush1.bf16.msra.mxu0 0
        %4410 = vmatprep.subr.bf16.mxu0 0
        %4411 = vmatpush1.bf16.msra.mxu0 0
        %4412 = vmatprep.subr.bf16.mxu0 0
        %4413 = vmatpush1.bf16.msra.mxu0 0
        %4414 = vmatprep.subr.bf16.mxu0 0
        %4415 = vmatpush1.bf16.msra.mxu0 0
        %4416 = vmatprep.subr.bf16.mxu0 0
        %4417 = vmatpush1.bf16.msra.mxu0 0
        %4418 = vmatprep.subr.bf16.mxu0 0
        %4419 = vmatpush1.bf16.msra.mxu0 0
        %4420 = vmatprep.subr.bf16.mxu0 0
        %4421 = vmatpush1.bf16.msra.mxu0 0
        %4422 = vmatprep.subr.bf16.mxu0 0
        %4423 = vmatpush1.bf16.msra.mxu0 0
        %4424 = vmatprep.subr.bf16.mxu0 0
        %4425 = vmatpush1.bf16.msra.mxu0 0
        %4426 = vmatprep.mubr.bf16.mxu0 0
        %4427 = vmatmul.mubr.bf16.gmra.mrb[0].mxu0 %v4342
        %v4428 = vpop.f32.mrb[0].mxu0
        %v4429 = vadd.f32 0.0, %v4428
        %v4430 = vpop.f32.mrb[0].mxu0
        %v4431 = vpop.f32.mrb[0].mxu0
        %v4432 = vpop.f32.mrb[0].mxu0
        %4433 = vdwg.mxu0
        %v4434 = vadd.f32 %v4326, %v4388
        %v4435 = vadd.f32 %v4327, %v4390
        %v4436 = vadd.f32 %v4328, %v4429
        %s4437 = scalar_lea.vmem [#allocation8], 16
        %v4438 = vld [vmem:[%s4437] sm:$0xf]
        %4441 = vrot.lane.b32.xlu0 %v1565, 109
        %v4442 = vpop.permute.xlu0 %4441
        %4443 = vrot.lane.b32.xlu0 %v1561, 109
        %v4444 = vpop.permute.xlu0 %4443
        %4445 = vrot.lane.b32.xlu0 %v1568, 109
        %v4446 = vpop.permute.xlu0 %4445
        %v4447 = vsel %vm994, %v4442, %v4444
        %v4448 = vsel %vm994, %v4444, %v4446
        %v4450 = vsel %vm577, %v4438, 0
        %v4453 = vsel %vm581, %v4447, 0
        %v4456 = vsel %vm581, %v4448, 0
        %v4459 = vsel %vm581, %v4446, 0
        %4461 = vmatprep.subr.bf16.mxu0 %v4456
        %4462 = vmatpush1.bf16.msra.mxu0 %v4453
        %4463 = vmatprep.subr.bf16.mxu0 0
        %4464 = vmatpush1.bf16.msra.mxu0 0
        %4465 = vmatprep.subr.bf16.mxu0 0
        %4466 = vmatpush1.bf16.msra.mxu0 0
        %4467 = vmatprep.subr.bf16.mxu0 0
        %4468 = vmatpush1.bf16.msra.mxu0 0
        %4469 = vmatprep.subr.bf16.mxu0 0
        %4470 = vmatpush1.bf16.msra.mxu0 0
        %4471 = vmatprep.subr.bf16.mxu0 0
        %4472 = vmatpush1.bf16.msra.mxu0 0
        %4473 = vmatprep.subr.bf16.mxu0 0
        %4474 = vmatpush1.bf16.msra.mxu0 0
        %4475 = vmatprep.subr.bf16.mxu0 0
        %4476 = vmatpush1.bf16.msra.mxu0 0
        %4477 = vmatprep.subr.bf16.mxu0 0
        %4478 = vmatpush1.bf16.msra.mxu0 0
        %4479 = vmatprep.subr.bf16.mxu0 0
        %4480 = vmatpush1.bf16.msra.mxu0 0
        %4481 = vmatprep.subr.bf16.mxu0 0
        %4482 = vmatpush1.bf16.msra.mxu0 0
        %4483 = vmatprep.subr.bf16.mxu0 0
        %4484 = vmatpush1.bf16.msra.mxu0 0
        %4485 = vmatprep.subr.bf16.mxu0 0
        %4486 = vmatpush1.bf16.msra.mxu0 0
        %4487 = vmatprep.subr.bf16.mxu0 0
        %4488 = vmatpush1.bf16.msra.mxu0 0
        %4489 = vmatprep.subr.bf16.mxu0 0
        %4490 = vmatpush1.bf16.msra.mxu0 0
        %4491 = vmatprep.subr.bf16.mxu0 0
        %4492 = vmatpush1.bf16.msra.mxu0 0
        %4493 = vmatprep.mubr.bf16.mxu0 0
        %4494 = vmatmul.mubr.bf16.gmra.mrb[0].mxu0 %v4450
        %v4495 = vpop.f32.mrb[0].mxu0
        %v4496 = vadd.f32 0.0, %v4495
        %v4497 = vpop.f32.mrb[0].mxu0
        %v4498 = vadd.f32 0.0, %v4497
        %v4499 = vpop.f32.mrb[0].mxu0
        %v4500 = vpop.f32.mrb[0].mxu0
        %4501 = vdwg.mxu0
        %4502 = vmatprep.subr.bf16.mxu0 0
        %4503 = vmatpush1.bf16.msra.mxu0 %v4459
        %4504 = vmatprep.subr.bf16.mxu0 0
        %4505 = vmatpush1.bf16.msra.mxu0 0
        %4506 = vmatprep.subr.bf16.mxu0 0
        %4507 = vmatpush1.bf16.msra.mxu0 0
        %4508 = vmatprep.subr.bf16.mxu0 0
        %4509 = vmatpush1.bf16.msra.mxu0 0
        %4510 = vmatprep.subr.bf16.mxu0 0
        %4511 = vmatpush1.bf16.msra.mxu0 0
        %4512 = vmatprep.subr.bf16.mxu0 0
        %4513 = vmatpush1.bf16.msra.mxu0 0
        %4514 = vmatprep.subr.bf16.mxu0 0
        %4515 = vmatpush1.bf16.msra.mxu0 0
        %4516 = vmatprep.subr.bf16.mxu0 0
        %4517 = vmatpush1.bf16.msra.mxu0 0
        %4518 = vmatprep.subr.bf16.mxu0 0
        %4519 = vmatpush1.bf16.msra.mxu0 0
        %4520 = vmatprep.subr.bf16.mxu0 0
        %4521 = vmatpush1.bf16.msra.mxu0 0
        %4522 = vmatprep.subr.bf16.mxu0 0
        %4523 = vmatpush1.bf16.msra.mxu0 0
        %4524 = vmatprep.subr.bf16.mxu0 0
        %4525 = vmatpush1.bf16.msra.mxu0 0
        %4526 = vmatprep.subr.bf16.mxu0 0
        %4527 = vmatpush1.bf16.msra.mxu0 0
        %4528 = vmatprep.subr.bf16.mxu0 0
        %4529 = vmatpush1.bf16.msra.mxu0 0
        %4530 = vmatprep.subr.bf16.mxu0 0
        %4531 = vmatpush1.bf16.msra.mxu0 0
        %4532 = vmatprep.subr.bf16.mxu0 0
        %4533 = vmatpush1.bf16.msra.mxu0 0
        %4534 = vmatprep.mubr.bf16.mxu0 0
        %4535 = vmatmul.mubr.bf16.gmra.mrb[0].mxu0 %v4450
        %v4536 = vpop.f32.mrb[0].mxu0
        %v4537 = vadd.f32 0.0, %v4536
        %v4538 = vpop.f32.mrb[0].mxu0
        %v4539 = vpop.f32.mrb[0].mxu0
        %v4540 = vpop.f32.mrb[0].mxu0
        %4541 = vdwg.mxu0
        %v4542 = vadd.f32 %v4434, %v4496
        %v4543 = vadd.f32 %v4435, %v4498
        %v4544 = vadd.f32 %v4436, %v4537
        %s4545 = scalar_lea.vmem [#allocation8], 20
        %v4546 = vld [vmem:[%s4545] sm:$0xf]
        %4547 = vrot.lane.b32.xlu0 %v2396, 109
        %v4548 = vpop.permute.xlu0 %4547
        %4549 = vrot.lane.b32.xlu0 %v2393, 109
        %v4550 = vpop.permute.xlu0 %4549
        %4551 = vrot.lane.b32.xlu0 %v2398, 109
        %v4552 = vpop.permute.xlu0 %4551
        %v4553 = vsel %vm994, %v4548, %v4550
        %v4554 = vsel %vm994, %v4550, %v4552
        %v4556 = vsel %vm577, %v4546, 0
        %v4559 = vsel %vm581, %v4553, 0
        %v4562 = vsel %vm581, %v4554, 0
        %v4565 = vsel %vm581, %v4552, 0
        %4567 = vmatprep.subr.bf16.mxu0 %v4562
        %4568 = vmatpush1.bf16.msra.mxu0 %v4559
        %4569 = vmatprep.subr.bf16.mxu0 0
        %4570 = vmatpush1.bf16.msra.mxu0 0
        %4571 = vmatprep.subr.bf16.mxu0 0
        %4572 = vmatpush1.bf16.msra.mxu0 0
        %4573 = vmatprep.subr.bf16.mxu0 0
        %4574 = vmatpush1.bf16.msra.mxu0 0
        %4575 = vmatprep.subr.bf16.mxu0 0
        %4576 = vmatpush1.bf16.msra.mxu0 0
        %4577 = vmatprep.subr.bf16.mxu0 0
        %4578 = vmatpush1.bf16.msra.mxu0 0
        %4579 = vmatprep.subr.bf16.mxu0 0
        %4580 = vmatpush1.bf16.msra.mxu0 0
        %4581 = vmatprep.subr.bf16.mxu0 0
        %4582 = vmatpush1.bf16.msra.mxu0 0
        %4583 = vmatprep.subr.bf16.mxu0 0
        %4584 = vmatpush1.bf16.msra.mxu0 0
        %4585 = vmatprep.subr.bf16.mxu0 0
        %4586 = vmatpush1.bf16.msra.mxu0 0
        %4587 = vmatprep.subr.bf16.mxu0 0
        %4588 = vmatpush1.bf16.msra.mxu0 0
        %4589 = vmatprep.subr.bf16.mxu0 0
        %4590 = vmatpush1.bf16.msra.mxu0 0
        %4591 = vmatprep.subr.bf16.mxu0 0
        %4592 = vmatpush1.bf16.msra.mxu0 0
        %4593 = vmatprep.subr.bf16.mxu0 0
        %4594 = vmatpush1.bf16.msra.mxu0 0
        %4595 = vmatprep.subr.bf16.mxu0 0
        %4596 = vmatpush1.bf16.msra.mxu0 0
        %4597 = vmatprep.subr.bf16.mxu0 0
        %4598 = vmatpush1.bf16.msra.mxu0 0
        %4599 = vmatprep.mubr.bf16.mxu0 0
        %4600 = vmatmul.mubr.bf16.gmra.mrb[0].mxu0 %v4556
        %v4601 = vpop.f32.mrb[0].mxu0
        %v4602 = vadd.f32 0.0, %v4601
        %v4603 = vpop.f32.mrb[0].mxu0
        %v4604 = vadd.f32 0.0, %v4603
        %v4605 = vpop.f32.mrb[0].mxu0
        %v4606 = vpop.f32.mrb[0].mxu0
        %4607 = vdwg.mxu0
        %4608 = vmatprep.subr.bf16.mxu0 0
        %4609 = vmatpush1.bf16.msra.mxu0 %v4565
        %4610 = vmatprep.subr.bf16.mxu0 0
        %4611 = vmatpush1.bf16.msra.mxu0 0
        %4612 = vmatprep.subr.bf16.mxu0 0
        %4613 = vmatpush1.bf16.msra.mxu0 0
        %4614 = vmatprep.subr.bf16.mxu0 0
        %4615 = vmatpush1.bf16.msra.mxu0 0
        %4616 = vmatprep.subr.bf16.mxu0 0
        %4617 = vmatpush1.bf16.msra.mxu0 0
        %4618 = vmatprep.subr.bf16.mxu0 0
        %4619 = vmatpush1.bf16.msra.mxu0 0
        %4620 = vmatprep.subr.bf16.mxu0 0
        %4621 = vmatpush1.bf16.msra.mxu0 0
        %4622 = vmatprep.subr.bf16.mxu0 0
        %4623 = vmatpush1.bf16.msra.mxu0 0
        %4624 = vmatprep.subr.bf16.mxu0 0
        %4625 = vmatpush1.bf16.msra.mxu0 0
        %4626 = vmatprep.subr.bf16.mxu0 0
        %4627 = vmatpush1.bf16.msra.mxu0 0
        %4628 = vmatprep.subr.bf16.mxu0 0
        %4629 = vmatpush1.bf16.msra.mxu0 0
        %4630 = vmatprep.subr.bf16.mxu0 0
        %4631 = vmatpush1.bf16.msra.mxu0 0
        %4632 = vmatprep.subr.bf16.mxu0 0
        %4633 = vmatpush1.bf16.msra.mxu0 0
        %4634 = vmatprep.subr.bf16.mxu0 0
        %4635 = vmatpush1.bf16.msra.mxu0 0
        %4636 = vmatprep.subr.bf16.mxu0 0
        %4637 = vmatpush1.bf16.msra.mxu0 0
        %4638 = vmatprep.subr.bf16.mxu0 0
        %4639 = vmatpush1.bf16.msra.mxu0 0
        %4640 = vmatprep.mubr.bf16.mxu0 0
        %4641 = vmatmul.mubr.bf16.gmra.mrb[0].mxu0 %v4556
        %v4642 = vpop.f32.mrb[0].mxu0
        %v4643 = vadd.f32 0.0, %v4642
        %v4644 = vpop.f32.mrb[0].mxu0
        %v4645 = vpop.f32.mrb[0].mxu0
        %v4646 = vpop.f32.mrb[0].mxu0
        %4647 = vdwg.mxu0
        %v4648 = vadd.f32 %v4542, %v4602
        %v4649 = vadd.f32 %v4543, %v4604
        %v4650 = vadd.f32 %v4544, %v4643
        %s4651 = scalar_lea.vmem [#allocation8], 24
        %v4652 = vld [vmem:[%s4651] sm:$0xf]
        %4653 = vrot.lane.b32.xlu0 %v4021, 110
        %v4654 = vpop.permute.xlu0 %4653
        %4655 = vrot.lane.b32.xlu0 %v4018, 110
        %v4656 = vpop.permute.xlu0 %4655
        %4657 = vrot.lane.b32.xlu0 %v4023, 110
        %v4658 = vpop.permute.xlu0 %4657
        %v4659 = vsel %vm884, %v4654, %v4656
        %v4660 = vsel %vm884, %v4656, %v4658
        %v4662 = vsel %vm577, %v4652, 0
        %v4665 = vsel %vm581, %v4659, 0
        %v4668 = vsel %vm581, %v4660, 0
        %v4671 = vsel %vm581, %v4658, 0
        %4673 = vmatprep.subr.bf16.mxu0 %v4668
        %4674 = vmatpush1.bf16.msra.mxu0 %v4665
        %4675 = vmatprep.subr.bf16.mxu0 0
        %4676 = vmatpush1.bf16.msra.mxu0 0
        %4677 = vmatprep.subr.bf16.mxu0 0
        %4678 = vmatpush1.bf16.msra.mxu0 0
        %4679 = vmatprep.subr.bf16.mxu0 0
        %4680 = vmatpush1.bf16.msra.mxu0 0
        %4681 = vmatprep.subr.bf16.mxu0 0
        %4682 = vmatpush1.bf16.msra.mxu0 0
        %4683 = vmatprep.subr.bf16.mxu0 0
        %4684 = vmatpush1.bf16.msra.mxu0 0
        %4685 = vmatprep.subr.bf16.mxu0 0
        %4686 = vmatpush1.bf16.msra.mxu0 0
        %4687 = vmatprep.subr.bf16.mxu0 0
        %4688 = vmatpush1.bf16.msra.mxu0 0
        %4689 = vmatprep.subr.bf16.mxu0 0
        %4690 = vmatpush1.bf16.msra.mxu0 0
        %4691 = vmatprep.subr.bf16.mxu0 0
        %4692 = vmatpush1.bf16.msra.mxu0 0
        %4693 = vmatprep.subr.bf16.mxu0 0
        %4694 = vmatpush1.bf16.msra.mxu0 0
        %4695 = vmatprep.subr.bf16.mxu0 0
        %4696 = vmatpush1.bf16.msra.mxu0 0
        %4697 = vmatprep.subr.bf16.mxu0 0
        %4698 = vmatpush1.bf16.msra.mxu0 0
        %4699 = vmatprep.subr.bf16.mxu0 0
        %4700 = vmatpush1.bf16.msra.mxu0 0
        %4701 = vmatprep.subr.bf16.mxu0 0
        %4702 = vmatpush1.bf16.msra.mxu0 0
        %4703 = vmatprep.subr.bf16.mxu0 0
        %4704 = vmatpush1.bf16.msra.mxu0 0
        %4705 = vmatprep.mubr.bf16.mxu0 0
        %4706 = vmatmul.mubr.bf16.gmra.mrb[0].mxu0 %v4662
        %v4707 = vpop.f32.mrb[0].mxu0
        %v4708 = vadd.f32 0.0, %v4707
        %v4709 = vpop.f32.mrb[0].mxu0
        %v4710 = vadd.f32 0.0, %v4709
        %v4711 = vpop.f32.mrb[0].mxu0
        %v4712 = vpop.f32.mrb[0].mxu0
        %4713 = vdwg.mxu0
        %4714 = vmatprep.subr.bf16.mxu0 0
        %4715 = vmatpush1.bf16.msra.mxu0 %v4671
        %4716 = vmatprep.subr.bf16.mxu0 0
        %4717 = vmatpush1.bf16.msra.mxu0 0
        %4718 = vmatprep.subr.bf16.mxu0 0
        %4719 = vmatpush1.bf16.msra.mxu0 0
        %4720 = vmatprep.subr.bf16.mxu0 0
        %4721 = vmatpush1.bf16.msra.mxu0 0
        %4722 = vmatprep.subr.bf16.mxu0 0
        %4723 = vmatpush1.bf16.msra.mxu0 0
        %4724 = vmatprep.subr.bf16.mxu0 0
        %4725 = vmatpush1.bf16.msra.mxu0 0
        %4726 = vmatprep.subr.bf16.mxu0 0
        %4727 = vmatpush1.bf16.msra.mxu0 0
        %4728 = vmatprep.subr.bf16.mxu0 0
        %4729 = vmatpush1.bf16.msra.mxu0 0
        %4730 = vmatprep.subr.bf16.mxu0 0
        %4731 = vmatpush1.bf16.msra.mxu0 0
        %4732 = vmatprep.subr.bf16.mxu0 0
        %4733 = vmatpush1.bf16.msra.mxu0 0
        %4734 = vmatprep.subr.bf16.mxu0 0
        %4735 = vmatpush1.bf16.msra.mxu0 0
        %4736 = vmatprep.subr.bf16.mxu0 0
        %4737 = vmatpush1.bf16.msra.mxu0 0
        %4738 = vmatprep.subr.bf16.mxu0 0
        %4739 = vmatpush1.bf16.msra.mxu0 0
        %4740 = vmatprep.subr.bf16.mxu0 0
        %4741 = vmatpush1.bf16.msra.mxu0 0
        %4742 = vmatprep.subr.bf16.mxu0 0
        %4743 = vmatpush1.bf16.msra.mxu0 0
        %4744 = vmatprep.subr.bf16.mxu0 0
        %4745 = vmatpush1.bf16.msra.mxu0 0
        %4746 = vmatprep.mubr.bf16.mxu0 0
        %4747 = vmatmul.mubr.bf16.gmra.mrb[0].mxu0 %v4662
        %v4748 = vpop.f32.mrb[0].mxu0
        %v4749 = vadd.f32 0.0, %v4748
        %v4750 = vpop.f32.mrb[0].mxu0
        %v4751 = vpop.f32.mrb[0].mxu0
        %v4752 = vpop.f32.mrb[0].mxu0
        %4753 = vdwg.mxu0
        %v4754 = vadd.f32 %v4648, %v4708
        %v4755 = vadd.f32 %v4649, %v4710
        %v4756 = vadd.f32 %v4650, %v4749
        %s4757 = scalar_lea.vmem [#allocation8], 28
        %v4758 = vld [vmem:[%s4757] sm:$0xf]
        %4759 = vrot.lane.b32.xlu0 %v3226, 109
        %v4760 = vpop.permute.xlu0 %4759
        %4761 = vrot.lane.b32.xlu0 %v3223, 109
        %v4762 = vpop.permute.xlu0 %4761
        %4763 = vrot.lane.b32.xlu0 %v3228, 109
        %v4764 = vpop.permute.xlu0 %4763
        %v4765 = vsel %vm994, %v4760, %v4762
        %v4766 = vsel %vm994, %v4762, %v4764
        %v4768 = vsel %vm577, %v4758, 0
        %v4771 = vsel %vm581, %v4765, 0
        %v4774 = vsel %vm581, %v4766, 0
        %v4777 = vsel %vm581, %v4764, 0
        %4779 = vmatprep.subr.bf16.mxu0 %v4774
        %4780 = vmatpush1.bf16.msra.mxu0 %v4771
        %4781 = vmatprep.subr.bf16.mxu0 0
        %4782 = vmatpush1.bf16.msra.mxu0 0
        %4783 = vmatprep.subr.bf16.mxu0 0
        %4784 = vmatpush1.bf16.msra.mxu0 0
        %4785 = vmatprep.subr.bf16.mxu0 0
        %4786 = vmatpush1.bf16.msra.mxu0 0
        %4787 = vmatprep.subr.bf16.mxu0 0
        %4788 = vmatpush1.bf16.msra.mxu0 0
        %4789 = vmatprep.subr.bf16.mxu0 0
        %4790 = vmatpush1.bf16.msra.mxu0 0
        %4791 = vmatprep.subr.bf16.mxu0 0
        %4792 = vmatpush1.bf16.msra.mxu0 0
        %4793 = vmatprep.subr.bf16.mxu0 0
        %4794 = vmatpush1.bf16.msra.mxu0 0
        %4795 = vmatprep.subr.bf16.mxu0 0
        %4796 = vmatpush1.bf16.msra.mxu0 0
        %4797 = vmatprep.subr.bf16.mxu0 0
        %4798 = vmatpush1.bf16.msra.mxu0 0
        %4799 = vmatprep.subr.bf16.mxu0 0
        %4800 = vmatpush1.bf16.msra.mxu0 0
        %4801 = vmatprep.subr.bf16.mxu0 0
        %4802 = vmatpush1.bf16.msra.mxu0 0
        %4803 = vmatprep.subr.bf16.mxu0 0
        %4804 = vmatpush1.bf16.msra.mxu0 0
        %4805 = vmatprep.subr.bf16.mxu0 0
        %4806 = vmatpush1.bf16.msra.mxu0 0
        %4807 = vmatprep.subr.bf16.mxu0 0
        %4808 = vmatpush1.bf16.msra.mxu0 0
        %4809 = vmatprep.subr.bf16.mxu0 0
        %4810 = vmatpush1.bf16.msra.mxu0 0
        %4811 = vmatprep.mubr.bf16.mxu0 0
        %4812 = vmatmul.mubr.bf16.gmra.mrb[0].mxu0 %v4768
        %v4813 = vpop.f32.mrb[0].mxu0
        %v4814 = vadd.f32 0.0, %v4813
        %v4815 = vpop.f32.mrb[0].mxu0
        %v4816 = vadd.f32 0.0, %v4815
        %v4817 = vpop.f32.mrb[0].mxu0
        %v4818 = vpop.f32.mrb[0].mxu0
        %4819 = vdwg.mxu0
        %4820 = vmatprep.subr.bf16.mxu0 0
        %4821 = vmatpush1.bf16.msra.mxu0 %v4777
        %4822 = vmatprep.subr.bf16.mxu0 0
        %4823 = vmatpush1.bf16.msra.mxu0 0
        %4824 = vmatprep.subr.bf16.mxu0 0
        %4825 = vmatpush1.bf16.msra.mxu0 0
        %4826 = vmatprep.subr.bf16.mxu0 0
        %4827 = vmatpush1.bf16.msra.mxu0 0
        %4828 = vmatprep.subr.bf16.mxu0 0
        %4829 = vmatpush1.bf16.msra.mxu0 0
        %4830 = vmatprep.subr.bf16.mxu0 0
        %4831 = vmatpush1.bf16.msra.mxu0 0
        %4832 = vmatprep.subr.bf16.mxu0 0
        %4833 = vmatpush1.bf16.msra.mxu0 0
        %4834 = vmatprep.subr.bf16.mxu0 0
        %4835 = vmatpush1.bf16.msra.mxu0 0
        %4836 = vmatprep.subr.bf16.mxu0 0
        %4837 = vmatpush1.bf16.msra.mxu0 0
        %4838 = vmatprep.subr.bf16.mxu0 0
        %4839 = vmatpush1.bf16.msra.mxu0 0
        %4840 = vmatprep.subr.bf16.mxu0 0
        %4841 = vmatpush1.bf16.msra.mxu0 0
        %4842 = vmatprep.subr.bf16.mxu0 0
        %4843 = vmatpush1.bf16.msra.mxu0 0
        %4844 = vmatprep.subr.bf16.mxu0 0
        %4845 = vmatpush1.bf16.msra.mxu0 0
        %4846 = vmatprep.subr.bf16.mxu0 0
        %4847 = vmatpush1.bf16.msra.mxu0 0
        %4848 = vmatprep.subr.bf16.mxu0 0
        %4849 = vmatpush1.bf16.msra.mxu0 0
        %4850 = vmatprep.subr.bf16.mxu0 0
        %4851 = vmatpush1.bf16.msra.mxu0 0
        %4852 = vmatprep.mubr.bf16.mxu0 0
        %4853 = vmatmul.mubr.bf16.gmra.mrb[0].mxu0 %v4768
        %v4854 = vpop.f32.mrb[0].mxu0
        %v4855 = vadd.f32 0.0, %v4854
        %v4856 = vpop.f32.mrb[0].mxu0
        %v4857 = vpop.f32.mrb[0].mxu0
        %v4858 = vpop.f32.mrb[0].mxu0
        %4859 = vdwg.mxu0
        %v4860 = vadd.f32 %v4754, %v4814
        %v4861 = vadd.f32 %v4755, %v4816
        %v4862 = vadd.f32 %v4756, %v4855
        %s4863 = scalar_lea.vmem [#allocation8], 32
        %v4864 = vld [vmem:[%s4863] sm:$0xf]
        %4865 = vrot.lane.b32.xlu0 %v4021, 109
        %v4866 = vpop.permute.xlu0 %4865
        %4867 = vrot.lane.b32.xlu0 %v4018, 109
        %v4868 = vpop.permute.xlu0 %4867
        %4869 = vrot.lane.b32.xlu0 %v4023, 109
        %v4870 = vpop.permute.xlu0 %4869
        %v4871 = vsel %vm994, %v4866, %v4868
        %v4872 = vsel %vm994, %v4868, %v4870
        %v4874 = vsel %vm577, %v4864, 0
        %v4877 = vsel %vm581, %v4871, 0
        %v4880 = vsel %vm581, %v4872, 0
        %v4883 = vsel %vm581, %v4870, 0
        %4885 = vmatprep.subr.bf16.mxu0 %v4880
        %4886 = vmatpush1.bf16.msra.mxu0 %v4877
        %4887 = vmatprep.subr.bf16.mxu0 0
        %4888 = vmatpush1.bf16.msra.mxu0 0
        %4889 = vmatprep.subr.bf16.mxu0 0
        %4890 = vmatpush1.bf16.msra.mxu0 0
        %4891 = vmatprep.subr.bf16.mxu0 0
        %4892 = vmatpush1.bf16.msra.mxu0 0
        %4893 = vmatprep.subr.bf16.mxu0 0
        %4894 = vmatpush1.bf16.msra.mxu0 0
        %4895 = vmatprep.subr.bf16.mxu0 0
        %4896 = vmatpush1.bf16.msra.mxu0 0
        %4897 = vmatprep.subr.bf16.mxu0 0
        %4898 = vmatpush1.bf16.msra.mxu0 0
        %4899 = vmatprep.subr.bf16.mxu0 0
        %4900 = vmatpush1.bf16.msra.mxu0 0
        %4901 = vmatprep.subr.bf16.mxu0 0
        %4902 = vmatpush1.bf16.msra.mxu0 0
        %4903 = vmatprep.subr.bf16.mxu0 0
        %4904 = vmatpush1.bf16.msra.mxu0 0
        %4905 = vmatprep.subr.bf16.mxu0 0
        %4906 = vmatpush1.bf16.msra.mxu0 0
        %4907 = vmatprep.subr.bf16.mxu0 0
        %4908 = vmatpush1.bf16.msra.mxu0 0
        %4909 = vmatprep.subr.bf16.mxu0 0
        %4910 = vmatpush1.bf16.msra.mxu0 0
        %4911 = vmatprep.subr.bf16.mxu0 0
        %4912 = vmatpush1.bf16.msra.mxu0 0
        %4913 = vmatprep.subr.bf16.mxu0 0
        %4914 = vmatpush1.bf16.msra.mxu0 0
        %4915 = vmatprep.subr.bf16.mxu0 0
        %4916 = vmatpush1.bf16.msra.mxu0 0
        %4917 = vmatprep.mubr.bf16.mxu0 0
        %4918 = vmatmul.mubr.bf16.gmra.mrb[0].mxu0 %v4874
        %v4919 = vpop.f32.mrb[0].mxu0
        %v4920 = vadd.f32 0.0, %v4919
        %v4921 = vpop.f32.mrb[0].mxu0
        %v4922 = vadd.f32 0.0, %v4921
        %v4923 = vpop.f32.mrb[0].mxu0
        %v4924 = vpop.f32.mrb[0].mxu0
        %4925 = vdwg.mxu0
        %4926 = vmatprep.subr.bf16.mxu0 0
        %4927 = vmatpush1.bf16.msra.mxu0 %v4883
        %4928 = vmatprep.subr.bf16.mxu0 0
        %4929 = vmatpush1.bf16.msra.mxu0 0
        %4930 = vmatprep.subr.bf16.mxu0 0
        %4931 = vmatpush1.bf16.msra.mxu0 0
        %4932 = vmatprep.subr.bf16.mxu0 0
        %4933 = vmatpush1.bf16.msra.mxu0 0
        %4934 = vmatprep.subr.bf16.mxu0 0
        %4935 = vmatpush1.bf16.msra.mxu0 0
        %4936 = vmatprep.subr.bf16.mxu0 0
        %4937 = vmatpush1.bf16.msra.mxu0 0
        %4938 = vmatprep.subr.bf16.mxu0 0
        %4939 = vmatpush1.bf16.msra.mxu0 0
        %4940 = vmatprep.subr.bf16.mxu0 0
        %4941 = vmatpush1.bf16.msra.mxu0 0
        %4942 = vmatprep.subr.bf16.mxu0 0
        %4943 = vmatpush1.bf16.msra.mxu0 0
        %4944 = vmatprep.subr.bf16.mxu0 0
        %4945 = vmatpush1.bf16.msra.mxu0 0
        %4946 = vmatprep.subr.bf16.mxu0 0
        %4947 = vmatpush1.bf16.msra.mxu0 0
        %4948 = vmatprep.subr.bf16.mxu0 0
        %4949 = vmatpush1.bf16.msra.mxu0 0
        %4950 = vmatprep.subr.bf16.mxu0 0
        %4951 = vmatpush1.bf16.msra.mxu0 0
        %4952 = vmatprep.subr.bf16.mxu0 0
        %4953 = vmatpush1.bf16.msra.mxu0 0
        %4954 = vmatprep.subr.bf16.mxu0 0
        %4955 = vmatpush1.bf16.msra.mxu0 0
        %4956 = vmatprep.subr.bf16.mxu0 0
        %4957 = vmatpush1.bf16.msra.mxu0 0
        %4958 = vmatprep.mubr.bf16.mxu0 0
        %4959 = vmatmul.mubr.bf16.gmra.mrb[0].mxu0 %v4874
        %v4960 = vpop.f32.mrb[0].mxu0
        %v4961 = vadd.f32 0.0, %v4960
        %v4962 = vpop.f32.mrb[0].mxu0
        %v4963 = vpop.f32.mrb[0].mxu0
        %v4964 = vpop.f32.mrb[0].mxu0
        %4965 = vdwg.mxu0
        %v4966 = vadd.f32 %v4860, %v4920
        %v4967 = vadd.f32 %v4861, %v4922
        %v4968 = vadd.f32 %v4862, %v4961
        %v4969 = vld [vmem:[#allocation10] sm:$0xff]
        %4971 = vset.pattern.permute.xlu0 0
        %4972 = vperm.xlu0 %4971, %v4969
        %v4973 = vpop.permute.xlu0 %4972
        %v4975 = vadd.f32 %v4966, %v4973
        %v4976 = vadd.f32 %v4967, %v4973
        %v4977 = vadd.f32 %v4968, %v4973
        %v4978 = vmax.f32 %v4975, 0.0
        %v4979 = vmax.f32 %v4976, 0.0
        %v4980 = vmax.f32 %v4977, 0.0
        %4981 = vst [vmem:[%s373] sm:$0xff] %v4978
        %4982 = vst [vmem:[%s373 + $0x8] sm:$0xff] %v4979
        %vm4983 = vcmask 261120
        %4984 = vst.msk [vmem:[%s373 + $0x10] sm:$0xff] %vm4983, %v4980
        %v4985 = vld [vmem:[#allocation8] sm:$0xf]
        %v4986 = vld [vmem:[%s4025] sm:$0xf]
        %v4988 = vsel %vm577, %v4986, 0
        %4990 = vmatprep.subr.bf16.mxu0 %v4240
        %4991 = vmatpush1.bf16.msra.mxu0 %v4237
        %4992 = vmatprep.subr.bf16.mxu0 0
        %4993 = vmatpush1.bf16.msra.mxu0 0
        %4994 = vmatprep.subr.bf16.mxu0 0
        %4995 = vmatpush1.bf16.msra.mxu0 0
        %4996 = vmatprep.subr.bf16.mxu0 0
        %4997 = vmatpush1.bf16.msra.mxu0 0
        %4998 = vmatprep.subr.bf16.mxu0 0
        %4999 = vmatpush1.bf16.msra.mxu0 0
        %5000 = vmatprep.subr.bf16.mxu0 0
        %5001 = vmatpush1.bf16.msra.mxu0 0
        %5002 = vmatprep.subr.bf16.mxu0 0
        %5003 = vmatpush1.bf16.msra.mxu0 0
        %5004 = vmatprep.subr.bf16.mxu0 0
        %5005 = vmatpush1.bf16.msra.mxu0 0
        %5006 = vmatprep.subr.bf16.mxu0 0
        %5007 = vmatpush1.bf16.msra.mxu0 0
        %5008 = vmatprep.subr.bf16.mxu0 0
        %5009 = vmatpush1.bf16.msra.mxu0 0
        %5010 = vmatprep.subr.bf16.mxu0 0
        %5011 = vmatpush1.bf16.msra.mxu0 0
        %5012 = vmatprep.subr.bf16.mxu0 0
        %5013 = vmatpush1.bf16.msra.mxu0 0
        %5014 = vmatprep.subr.bf16.mxu0 0
        %5015 = vmatpush1.bf16.msra.mxu0 0
        %5016 = vmatprep.subr.bf16.mxu0 0
        %5017 = vmatpush1.bf16.msra.mxu0 0
        %5018 = vmatprep.subr.bf16.mxu0 0
        %5019 = vmatpush1.bf16.msra.mxu0 0
        %5020 = vmatprep.subr.bf16.mxu0 0
        %5021 = vmatpush1.bf16.msra.mxu0 0
        %5022 = vmatprep.mubr.bf16.mxu0 0
        %5023 = vmatmul.mubr.bf16.gmra.mrb[0].mxu0 %v4988
        %v5024 = vpop.f32.mrb[0].mxu0
        %v5025 = vadd.f32 0.0, %v5024
        %v5026 = vpop.f32.mrb[0].mxu0
        %v5027 = vadd.f32 0.0, %v5026
        %v5028 = vpop.f32.mrb[0].mxu0
        %v5029 = vpop.f32.mrb[0].mxu0
        %5030 = vdwg.mxu0
        %5031 = vmatprep.subr.bf16.mxu0 0
        %5032 = vmatpush1.bf16.msra.mxu0 %v4243
        %5033 = vmatprep.subr.bf16.mxu0 0
        %5034 = vmatpush1.bf16.msra.mxu0 0
        %5035 = vmatprep.subr.bf16.mxu0 0
        %5036 = vmatpush1.bf16.msra.mxu0 0
        %5037 = vmatprep.subr.bf16.mxu0 0
        %5038 = vmatpush1.bf16.msra.mxu0 0
        %5039 = vmatprep.subr.bf16.mxu0 0
        %5040 = vmatpush1.bf16.msra.mxu0 0
        %5041 = vmatprep.subr.bf16.mxu0 0
        %5042 = vmatpush1.bf16.msra.mxu0 0
        %5043 = vmatprep.subr.bf16.mxu0 0
        %5044 = vmatpush1.bf16.msra.mxu0 0
        %5045 = vmatprep.subr.bf16.mxu0 0
        %5046 = vmatpush1.bf16.msra.mxu0 0
        %5047 = vmatprep.subr.bf16.mxu0 0
        %5048 = vmatpush1.bf16.msra.mxu0 0
        %5049 = vmatprep.subr.bf16.mxu0 0
        %5050 = vmatpush1.bf16.msra.mxu0 0
        %5051 = vmatprep.subr.bf16.mxu0 0
        %5052 = vmatpush1.bf16.msra.mxu0 0
        %5053 = vmatprep.subr.bf16.mxu0 0
        %5054 = vmatpush1.bf16.msra.mxu0 0
        %5055 = vmatprep.subr.bf16.mxu0 0
        %5056 = vmatpush1.bf16.msra.mxu0 0
        %5057 = vmatprep.subr.bf16.mxu0 0
        %5058 = vmatpush1.bf16.msra.mxu0 0
        %5059 = vmatprep.subr.bf16.mxu0 0
        %5060 = vmatpush1.bf16.msra.mxu0 0
        %5061 = vmatprep.subr.bf16.mxu0 0
        %5062 = vmatpush1.bf16.msra.mxu0 0
        %5063 = vmatprep.mubr.bf16.mxu0 0
        %5064 = vmatmul.mubr.bf16.gmra.mrb[0].mxu0 %v4988
        %v5065 = vpop.f32.mrb[0].mxu0
        %v5066 = vadd.f32 0.0, %v5065
        %v5067 = vpop.f32.mrb[0].mxu0
        %v5068 = vpop.f32.mrb[0].mxu0
        %v5069 = vpop.f32.mrb[0].mxu0
        %5070 = vdwg.mxu0
        %v5072 = vsel %vm577, %v4985, 0
        %5074 = vmatprep.subr.bf16.mxu0 %v4044
        %5075 = vmatpush1.bf16.msra.mxu0 %v4041
        %5076 = vmatprep.subr.bf16.mxu0 0
        %5077 = vmatpush1.bf16.msra.mxu0 0
        %5078 = vmatprep.subr.bf16.mxu0 0
        %5079 = vmatpush1.bf16.msra.mxu0 0
        %5080 = vmatprep.subr.bf16.mxu0 0
        %5081 = vmatpush1.bf16.msra.mxu0 0
        %5082 = vmatprep.subr.bf16.mxu0 0
        %5083 = vmatpush1.bf16.msra.mxu0 0
        %5084 = vmatprep.subr.bf16.mxu0 0
        %5085 = vmatpush1.bf16.msra.mxu0 0
        %5086 = vmatprep.subr.bf16.mxu0 0
        %5087 = vmatpush1.bf16.msra.mxu0 0
        %5088 = vmatprep.subr.bf16.mxu0 0
        %5089 = vmatpush1.bf16.msra.mxu0 0
        %5090 = vmatprep.subr.bf16.mxu0 0
        %5091 = vmatpush1.bf16.msra.mxu0 0
        %5092 = vmatprep.subr.bf16.mxu0 0
        %5093 = vmatpush1.bf16.msra.mxu0 0
        %5094 = vmatprep.subr.bf16.mxu0 0
        %5095 = vmatpush1.bf16.msra.mxu0 0
        %5096 = vmatprep.subr.bf16.mxu0 0
        %5097 = vmatpush1.bf16.msra.mxu0 0
        %5098 = vmatprep.subr.bf16.mxu0 0
        %5099 = vmatpush1.bf16.msra.mxu0 0
        %5100 = vmatprep.subr.bf16.mxu0 0
        %5101 = vmatpush1.bf16.msra.mxu0 0
        %5102 = vmatprep.subr.bf16.mxu0 0
        %5103 = vmatpush1.bf16.msra.mxu0 0
        %5104 = vmatprep.subr.bf16.mxu0 0
        %5105 = vmatpush1.bf16.msra.mxu0 0
        %5106 = vmatprep.mubr.bf16.mxu0 0
        %5107 = vmatmul.mubr.bf16.gmra.mrb[0].mxu0 %v5072
        %v5108 = vpop.f32.mrb[0].mxu0
        %v5109 = vadd.f32 %v5025, %v5108
        %v5110 = vpop.f32.mrb[0].mxu0
        %v5111 = vadd.f32 %v5027, %v5110
        %v5112 = vpop.f32.mrb[0].mxu0
        %v5113 = vpop.f32.mrb[0].mxu0
        %5114 = vdwg.mxu0
        %5115 = vmatprep.subr.bf16.mxu0 0
        %5116 = vmatpush1.bf16.msra.mxu0 %v4047
        %5117 = vmatprep.subr.bf16.mxu0 0
        %5118 = vmatpush1.bf16.msra.mxu0 0
        %5119 = vmatprep.subr.bf16.mxu0 0
        %5120 = vmatpush1.bf16.msra.mxu0 0
        %5121 = vmatprep.subr.bf16.mxu0 0
        %5122 = vmatpush1.bf16.msra.mxu0 0
        %5123 = vmatprep.subr.bf16.mxu0 0
        %5124 = vmatpush1.bf16.msra.mxu0 0
        %5125 = vmatprep.subr.bf16.mxu0 0
        %5126 = vmatpush1.bf16.msra.mxu0 0
        %5127 = vmatprep.subr.bf16.mxu0 0
        %5128 = vmatpush1.bf16.msra.mxu0 0
        %5129 = vmatprep.subr.bf16.mxu0 0
        %5130 = vmatpush1.bf16.msra.mxu0 0
        %5131 = vmatprep.subr.bf16.mxu0 0
        %5132 = vmatpush1.bf16.msra.mxu0 0
        %5133 = vmatprep.subr.bf16.mxu0 0
        %5134 = vmatpush1.bf16.msra.mxu0 0
        %5135 = vmatprep.subr.bf16.mxu0 0
        %5136 = vmatpush1.bf16.msra.mxu0 0
        %5137 = vmatprep.subr.bf16.mxu0 0
        %5138 = vmatpush1.bf16.msra.mxu0 0
        %5139 = vmatprep.subr.bf16.mxu0 0
        %5140 = vmatpush1.bf16.msra.mxu0 0
        %5141 = vmatprep.subr.bf16.mxu0 0
        %5142 = vmatpush1.bf16.msra.mxu0 0
        %5143 = vmatprep.subr.bf16.mxu0 0
        %5144 = vmatpush1.bf16.msra.mxu0 0
        %5145 = vmatprep.subr.bf16.mxu0 0
        %5146 = vmatpush1.bf16.msra.mxu0 0
        %5147 = vmatprep.mubr.bf16.mxu0 0
        %5148 = vmatmul.mubr.bf16.gmra.mrb[0].mxu0 %v5072
        %v5149 = vpop.f32.mrb[0].mxu0
        %v5150 = vadd.f32 %v5066, %v5149
        %v5151 = vpop.f32.mrb[0].mxu0
        %v5152 = vpop.f32.mrb[0].mxu0
        %v5153 = vpop.f32.mrb[0].mxu0
        %5154 = vdwg.mxu0
        %v5155 = vld [vmem:[%s4221] sm:$0xf]
        %5156 = vrot.lane.b32.xlu0 %v3226, 126
        %v5157 = vpop.permute.xlu0 %5156
        %5158 = vrot.lane.b32.xlu0 %v3223, 126
        %v5159 = vpop.permute.xlu0 %5158
        %5160 = vrot.lane.b32.xlu0 %v3228, 126
        %v5161 = vpop.permute.xlu0 %5160
        %v5162 = vsel %vm1737, %v5157, %v5159
        %v5163 = vsel %vm1737, %v5159, %v5161
        %v5165 = vsel %vm577, %v5155, 0
        %v5168 = vsel %vm581, %v5162, 0
        %v5171 = vsel %vm581, %v5163, 0
        %v5174 = vsel %vm581, %v5161, 0
        %5176 = vmatprep.subr.bf16.mxu0 %v5171
        %5177 = vmatpush1.bf16.msra.mxu0 %v5168
        %5178 = vmatprep.subr.bf16.mxu0 0
        %5179 = vmatpush1.bf16.msra.mxu0 0
        %5180 = vmatprep.subr.bf16.mxu0 0
        %5181 = vmatpush1.bf16.msra.mxu0 0
        %5182 = vmatprep.subr.bf16.mxu0 0
        %5183 = vmatpush1.bf16.msra.mxu0 0
        %5184 = vmatprep.subr.bf16.mxu0 0
        %5185 = vmatpush1.bf16.msra.mxu0 0
        %5186 = vmatprep.subr.bf16.mxu0 0
        %5187 = vmatpush1.bf16.msra.mxu0 0
        %5188 = vmatprep.subr.bf16.mxu0 0
        %5189 = vmatpush1.bf16.msra.mxu0 0
        %5190 = vmatprep.subr.bf16.mxu0 0
        %5191 = vmatpush1.bf16.msra.mxu0 0
        %5192 = vmatprep.subr.bf16.mxu0 0
        %5193 = vmatpush1.bf16.msra.mxu0 0
        %5194 = vmatprep.subr.bf16.mxu0 0
        %5195 = vmatpush1.bf16.msra.mxu0 0
        %5196 = vmatprep.subr.bf16.mxu0 0
        %5197 = vmatpush1.bf16.msra.mxu0 0
        %5198 = vmatprep.subr.bf16.mxu0 0
        %5199 = vmatpush1.bf16.msra.mxu0 0
        %5200 = vmatprep.subr.bf16.mxu0 0
        %5201 = vmatpush1.bf16.msra.mxu0 0
        %5202 = vmatprep.subr.bf16.mxu0 0
        %5203 = vmatpush1.bf16.msra.mxu0 0
        %5204 = vmatprep.subr.bf16.mxu0 0
        %5205 = vmatpush1.bf16.msra.mxu0 0
        %5206 = vmatprep.subr.bf16.mxu0 0
        %5207 = vmatpush1.bf16.msra.mxu0 0
        %5208 = vmatprep.mubr.bf16.mxu0 0
        %5209 = vmatmul.mubr.bf16.gmra.mrb[0].mxu0 %v5165
        %v5210 = vpop.f32.mrb[0].mxu0
        %v5211 = vadd.f32 0.0, %v5210
        %v5212 = vpop.f32.mrb[0].mxu0
        %v5213 = vadd.f32 0.0, %v5212
        %v5214 = vpop.f32.mrb[0].mxu0
        %v5215 = vpop.f32.mrb[0].mxu0
        %5216 = vdwg.mxu0
        %5217 = vmatprep.subr.bf16.mxu0 0
        %5218 = vmatpush1.bf16.msra.mxu0 %v5174
        %5219 = vmatprep.subr.bf16.mxu0 0
        %5220 = vmatpush1.bf16.msra.mxu0 0
        %5221 = vmatprep.subr.bf16.mxu0 0
        %5222 = vmatpush1.bf16.msra.mxu0 0
        %5223 = vmatprep.subr.bf16.mxu0 0
        %5224 = vmatpush1.bf16.msra.mxu0 0
        %5225 = vmatprep.subr.bf16.mxu0 0
        %5226 = vmatpush1.bf16.msra.mxu0 0
        %5227 = vmatprep.subr.bf16.mxu0 0
        %5228 = vmatpush1.bf16.msra.mxu0 0
        %5229 = vmatprep.subr.bf16.mxu0 0
        %5230 = vmatpush1.bf16.msra.mxu0 0
        %5231 = vmatprep.subr.bf16.mxu0 0
        %5232 = vmatpush1.bf16.msra.mxu0 0
        %5233 = vmatprep.subr.bf16.mxu0 0
        %5234 = vmatpush1.bf16.msra.mxu0 0
        %5235 = vmatprep.subr.bf16.mxu0 0
        %5236 = vmatpush1.bf16.msra.mxu0 0
        %5237 = vmatprep.subr.bf16.mxu0 0
        %5238 = vmatpush1.bf16.msra.mxu0 0
        %5239 = vmatprep.subr.bf16.mxu0 0
        %5240 = vmatpush1.bf16.msra.mxu0 0
        %5241 = vmatprep.subr.bf16.mxu0 0
        %5242 = vmatpush1.bf16.msra.mxu0 0
        %5243 = vmatprep.subr.bf16.mxu0 0
        %5244 = vmatpush1.bf16.msra.mxu0 0
        %5245 = vmatprep.subr.bf16.mxu0 0
        %5246 = vmatpush1.bf16.msra.mxu0 0
        %5247 = vmatprep.subr.bf16.mxu0 0
        %5248 = vmatpush1.bf16.msra.mxu0 0
        %5249 = vmatprep.mubr.bf16.mxu0 0
        %5250 = vmatmul.mubr.bf16.gmra.mrb[0].mxu0 %v5165
        %v5251 = vpop.f32.mrb[0].mxu0
        %v5252 = vadd.f32 0.0, %v5251
        %v5253 = vpop.f32.mrb[0].mxu0
        %v5254 = vpop.f32.mrb[0].mxu0
        %v5255 = vpop.f32.mrb[0].mxu0
        %5256 = vdwg.mxu0
        %v5257 = vadd.f32 %v5109, %v5211
        %v5258 = vadd.f32 %v5111, %v5213
        %v5259 = vadd.f32 %v5150, %v5252
        %v5260 = vld [vmem:[%s4329] sm:$0xf]
        %v5262 = vsel %vm577, %v5260, 0
        %5264 = vmatprep.subr.bf16.mxu0 %v4456
        %5265 = vmatpush1.bf16.msra.mxu0 %v4453
        %5266 = vmatprep.subr.bf16.mxu0 0
        %5267 = vmatpush1.bf16.msra.mxu0 0
        %5268 = vmatprep.subr.bf16.mxu0 0
        %5269 = vmatpush1.bf16.msra.mxu0 0
        %5270 = vmatprep.subr.bf16.mxu0 0
        %5271 = vmatpush1.bf16.msra.mxu0 0
        %5272 = vmatprep.subr.bf16.mxu0 0
        %5273 = vmatpush1.bf16.msra.mxu0 0
        %5274 = vmatprep.subr.bf16.mxu0 0
        %5275 = vmatpush1.bf16.msra.mxu0 0
        %5276 = vmatprep.subr.bf16.mxu0 0
        %5277 = vmatpush1.bf16.msra.mxu0 0
        %5278 = vmatprep.subr.bf16.mxu0 0
        %5279 = vmatpush1.bf16.msra.mxu0 0
        %5280 = vmatprep.subr.bf16.mxu0 0
        %5281 = vmatpush1.bf16.msra.mxu0 0
        %5282 = vmatprep.subr.bf16.mxu0 0
        %5283 = vmatpush1.bf16.msra.mxu0 0
        %5284 = vmatprep.subr.bf16.mxu0 0
        %5285 = vmatpush1.bf16.msra.mxu0 0
        %5286 = vmatprep.subr.bf16.mxu0 0
        %5287 = vmatpush1.bf16.msra.mxu0 0
        %5288 = vmatprep.subr.bf16.mxu0 0
        %5289 = vmatpush1.bf16.msra.mxu0 0
        %5290 = vmatprep.subr.bf16.mxu0 0
        %5291 = vmatpush1.bf16.msra.mxu0 0
        %5292 = vmatprep.subr.bf16.mxu0 0
        %5293 = vmatpush1.bf16.msra.mxu0 0
        %5294 = vmatprep.subr.bf16.mxu0 0
        %5295 = vmatpush1.bf16.msra.mxu0 0
        %5296 = vmatprep.mubr.bf16.mxu0 0
        %5297 = vmatmul.mubr.bf16.gmra.mrb[0].mxu0 %v5262
        %v5298 = vpop.f32.mrb[0].mxu0
        %v5299 = vadd.f32 0.0, %v5298
        %v5300 = vpop.f32.mrb[0].mxu0
        %v5301 = vadd.f32 0.0, %v5300
        %v5302 = vpop.f32.mrb[0].mxu0
        %v5303 = vpop.f32.mrb[0].mxu0
        %5304 = vdwg.mxu0
        %5305 = vmatprep.subr.bf16.mxu0 0
        %5306 = vmatpush1.bf16.msra.mxu0 %v4459
        %5307 = vmatprep.subr.bf16.mxu0 0
        %5308 = vmatpush1.bf16.msra.mxu0 0
        %5309 = vmatprep.subr.bf16.mxu0 0
        %5310 = vmatpush1.bf16.msra.mxu0 0
        %5311 = vmatprep.subr.bf16.mxu0 0
        %5312 = vmatpush1.bf16.msra.mxu0 0
        %5313 = vmatprep.subr.bf16.mxu0 0
        %5314 = vmatpush1.bf16.msra.mxu0 0
        %5315 = vmatprep.subr.bf16.mxu0 0
        %5316 = vmatpush1.bf16.msra.mxu0 0
        %5317 = vmatprep.subr.bf16.mxu0 0
        %5318 = vmatpush1.bf16.msra.mxu0 0
        %5319 = vmatprep.subr.bf16.mxu0 0
        %5320 = vmatpush1.bf16.msra.mxu0 0
        %5321 = vmatprep.subr.bf16.mxu0 0
        %5322 = vmatpush1.bf16.msra.mxu0 0
        %5323 = vmatprep.subr.bf16.mxu0 0
        %5324 = vmatpush1.bf16.msra.mxu0 0
        %5325 = vmatprep.subr.bf16.mxu0 0
        %5326 = vmatpush1.bf16.msra.mxu0 0
        %5327 = vmatprep.subr.bf16.mxu0 0
        %5328 = vmatpush1.bf16.msra.mxu0 0
        %5329 = vmatprep.subr.bf16.mxu0 0
        %5330 = vmatpush1.bf16.msra.mxu0 0
        %5331 = vmatprep.subr.bf16.mxu0 0
        %5332 = vmatpush1.bf16.msra.mxu0 0
        %5333 = vmatprep.subr.bf16.mxu0 0
        %5334 = vmatpush1.bf16.msra.mxu0 0
        %5335 = vmatprep.subr.bf16.mxu0 0
        %5336 = vmatpush1.bf16.msra.mxu0 0
        %5337 = vmatprep.mubr.bf16.mxu0 0
        %5338 = vmatmul.mubr.bf16.gmra.mrb[0].mxu0 %v5262
        %v5339 = vpop.f32.mrb[0].mxu0
        %v5340 = vadd.f32 0.0, %v5339
        %v5341 = vpop.f32.mrb[0].mxu0
        %v5342 = vpop.f32.mrb[0].mxu0
        %v5343 = vpop.f32.mrb[0].mxu0
        %5344 = vdwg.mxu0
        %v5345 = vadd.f32 %v5257, %v5299
        %v5346 = vadd.f32 %v5258, %v5301
        %v5347 = vadd.f32 %v5259, %v5340
        %v5348 = vld [vmem:[%s4437] sm:$0xf]
        %v5350 = vsel %vm577, %v5348, 0
        %5352 = vmatprep.subr.bf16.mxu0 %v4562
        %5353 = vmatpush1.bf16.msra.mxu0 %v4559
        %5354 = vmatprep.subr.bf16.mxu0 0
        %5355 = vmatpush1.bf16.msra.mxu0 0
        %5356 = vmatprep.subr.bf16.mxu0 0
        %5357 = vmatpush1.bf16.msra.mxu0 0
        %5358 = vmatprep.subr.bf16.mxu0 0
        %5359 = vmatpush1.bf16.msra.mxu0 0
        %5360 = vmatprep.subr.bf16.mxu0 0
        %5361 = vmatpush1.bf16.msra.mxu0 0
        %5362 = vmatprep.subr.bf16.mxu0 0
        %5363 = vmatpush1.bf16.msra.mxu0 0
        %5364 = vmatprep.subr.bf16.mxu0 0
        %5365 = vmatpush1.bf16.msra.mxu0 0
        %5366 = vmatprep.subr.bf16.mxu0 0
        %5367 = vmatpush1.bf16.msra.mxu0 0
        %5368 = vmatprep.subr.bf16.mxu0 0
        %5369 = vmatpush1.bf16.msra.mxu0 0
        %5370 = vmatprep.subr.bf16.mxu0 0
        %5371 = vmatpush1.bf16.msra.mxu0 0
        %5372 = vmatprep.subr.bf16.mxu0 0
        %5373 = vmatpush1.bf16.msra.mxu0 0
        %5374 = vmatprep.subr.bf16.mxu0 0
        %5375 = vmatpush1.bf16.msra.mxu0 0
        %5376 = vmatprep.subr.bf16.mxu0 0
        %5377 = vmatpush1.bf16.msra.mxu0 0
        %5378 = vmatprep.subr.bf16.mxu0 0
        %5379 = vmatpush1.bf16.msra.mxu0 0
        %5380 = vmatprep.subr.bf16.mxu0 0
        %5381 = vmatpush1.bf16.msra.mxu0 0
        %5382 = vmatprep.subr.bf16.mxu0 0
        %5383 = vmatpush1.bf16.msra.mxu0 0
        %5384 = vmatprep.mubr.bf16.mxu0 0
        %5385 = vmatmul.mubr.bf16.gmra.mrb[0].mxu0 %v5350
        %v5386 = vpop.f32.mrb[0].mxu0
        %v5387 = vadd.f32 0.0, %v5386
        %v5388 = vpop.f32.mrb[0].mxu0
        %v5389 = vadd.f32 0.0, %v5388
        %v5390 = vpop.f32.mrb[0].mxu0
        %v5391 = vpop.f32.mrb[0].mxu0
        %5392 = vdwg.mxu0
        %5393 = vmatprep.subr.bf16.mxu0 0
        %5394 = vmatpush1.bf16.msra.mxu0 %v4565
        %5395 = vmatprep.subr.bf16.mxu0 0
        %5396 = vmatpush1.bf16.msra.mxu0 0
        %5397 = vmatprep.subr.bf16.mxu0 0
        %5398 = vmatpush1.bf16.msra.mxu0 0
        %5399 = vmatprep.subr.bf16.mxu0 0
        %5400 = vmatpush1.bf16.msra.mxu0 0
        %5401 = vmatprep.subr.bf16.mxu0 0
        %5402 = vmatpush1.bf16.msra.mxu0 0
        %5403 = vmatprep.subr.bf16.mxu0 0
        %5404 = vmatpush1.bf16.msra.mxu0 0
        %5405 = vmatprep.subr.bf16.mxu0 0
        %5406 = vmatpush1.bf16.msra.mxu0 0
        %5407 = vmatprep.subr.bf16.mxu0 0
        %5408 = vmatpush1.bf16.msra.mxu0 0
        %5409 = vmatprep.subr.bf16.mxu0 0
        %5410 = vmatpush1.bf16.msra.mxu0 0
        %5411 = vmatprep.subr.bf16.mxu0 0
        %5412 = vmatpush1.bf16.msra.mxu0 0
        %5413 = vmatprep.subr.bf16.mxu0 0
        %5414 = vmatpush1.bf16.msra.mxu0 0
        %5415 = vmatprep.subr.bf16.mxu0 0
        %5416 = vmatpush1.bf16.msra.mxu0 0
        %5417 = vmatprep.subr.bf16.mxu0 0
        %5418 = vmatpush1.bf16.msra.mxu0 0
        %5419 = vmatprep.subr.bf16.mxu0 0
        %5420 = vmatpush1.bf16.msra.mxu0 0
        %5421 = vmatprep.subr.bf16.mxu0 0
        %5422 = vmatpush1.bf16.msra.mxu0 0
        %5423 = vmatprep.subr.bf16.mxu0 0
        %5424 = vmatpush1.bf16.msra.mxu0 0
        %5425 = vmatprep.mubr.bf16.mxu0 0
        %5426 = vmatmul.mubr.bf16.gmra.mrb[0].mxu0 %v5350
        %v5427 = vpop.f32.mrb[0].mxu0
        %v5428 = vadd.f32 0.0, %v5427
        %v5429 = vpop.f32.mrb[0].mxu0
        %v5430 = vpop.f32.mrb[0].mxu0
        %v5431 = vpop.f32.mrb[0].mxu0
        %5432 = vdwg.mxu0
        %v5433 = vadd.f32 %v5345, %v5387
        %v5434 = vadd.f32 %v5346, %v5389
        %v5435 = vadd.f32 %v5347, %v5428
        %v5436 = vld [vmem:[%s4545] sm:$0xf]
        %5437 = vrot.lane.b32.xlu0 %v1565, 108
        %v5438 = vpop.permute.xlu0 %5437
        %5439 = vrot.lane.b32.xlu0 %v1561, 108
        %v5440 = vpop.permute.xlu0 %5439
        %5441 = vrot.lane.b32.xlu0 %v1568, 108
        %v5442 = vpop.permute.xlu0 %5441
        %v5443 = vsel %vm2007, %v5438, %v5440
        %v5444 = vsel %vm2007, %v5440, %v5442
        %v5446 = vsel %vm577, %v5436, 0
        %v5449 = vsel %vm581, %v5443, 0
        %v5452 = vsel %vm581, %v5444, 0
        %v5455 = vsel %vm581, %v5442, 0
        %5457 = vmatprep.subr.bf16.mxu0 %v5452
        %5458 = vmatpush1.bf16.msra.mxu0 %v5449
        %5459 = vmatprep.subr.bf16.mxu0 0
        %5460 = vmatpush1.bf16.msra.mxu0 0
        %5461 = vmatprep.subr.bf16.mxu0 0
        %5462 = vmatpush1.bf16.msra.mxu0 0
        %5463 = vmatprep.subr.bf16.mxu0 0
        %5464 = vmatpush1.bf16.msra.mxu0 0
        %5465 = vmatprep.subr.bf16.mxu0 0
        %5466 = vmatpush1.bf16.msra.mxu0 0
        %5467 = vmatprep.subr.bf16.mxu0 0
        %5468 = vmatpush1.bf16.msra.mxu0 0
        %5469 = vmatprep.subr.bf16.mxu0 0
        %5470 = vmatpush1.bf16.msra.mxu0 0
        %5471 = vmatprep.subr.bf16.mxu0 0
        %5472 = vmatpush1.bf16.msra.mxu0 0
        %5473 = vmatprep.subr.bf16.mxu0 0
        %5474 = vmatpush1.bf16.msra.mxu0 0
        %5475 = vmatprep.subr.bf16.mxu0 0
        %5476 = vmatpush1.bf16.msra.mxu0 0
        %5477 = vmatprep.subr.bf16.mxu0 0
        %5478 = vmatpush1.bf16.msra.mxu0 0
        %5479 = vmatprep.subr.bf16.mxu0 0
        %5480 = vmatpush1.bf16.msra.mxu0 0
        %5481 = vmatprep.subr.bf16.mxu0 0
        %5482 = vmatpush1.bf16.msra.mxu0 0
        %5483 = vmatprep.subr.bf16.mxu0 0
        %5484 = vmatpush1.bf16.msra.mxu0 0
        %5485 = vmatprep.subr.bf16.mxu0 0
        %5486 = vmatpush1.bf16.msra.mxu0 0
        %5487 = vmatprep.subr.bf16.mxu0 0
        %5488 = vmatpush1.bf16.msra.mxu0 0
        %5489 = vmatprep.mubr.bf16.mxu0 0
        %5490 = vmatmul.mubr.bf16.gmra.mrb[0].mxu0 %v5446
        %v5491 = vpop.f32.mrb[0].mxu0
        %v5492 = vadd.f32 0.0, %v5491
        %v5493 = vpop.f32.mrb[0].mxu0
        %v5494 = vadd.f32 0.0, %v5493
        %v5495 = vpop.f32.mrb[0].mxu0
        %v5496 = vpop.f32.mrb[0].mxu0
        %5497 = vdwg.mxu0
        %5498 = vmatprep.subr.bf16.mxu0 0
        %5499 = vmatpush1.bf16.msra.mxu0 %v5455
        %5500 = vmatprep.subr.bf16.mxu0 0
        %5501 = vmatpush1.bf16.msra.mxu0 0
        %5502 = vmatprep.subr.bf16.mxu0 0
        %5503 = vmatpush1.bf16.msra.mxu0 0
        %5504 = vmatprep.subr.bf16.mxu0 0
        %5505 = vmatpush1.bf16.msra.mxu0 0
        %5506 = vmatprep.subr.bf16.mxu0 0
        %5507 = vmatpush1.bf16.msra.mxu0 0
        %5508 = vmatprep.subr.bf16.mxu0 0
        %5509 = vmatpush1.bf16.msra.mxu0 0
        %5510 = vmatprep.subr.bf16.mxu0 0
        %5511 = vmatpush1.bf16.msra.mxu0 0
        %5512 = vmatprep.subr.bf16.mxu0 0
        %5513 = vmatpush1.bf16.msra.mxu0 0
        %5514 = vmatprep.subr.bf16.mxu0 0
        %5515 = vmatpush1.bf16.msra.mxu0 0
        %5516 = vmatprep.subr.bf16.mxu0 0
        %5517 = vmatpush1.bf16.msra.mxu0 0
        %5518 = vmatprep.subr.bf16.mxu0 0
        %5519 = vmatpush1.bf16.msra.mxu0 0
        %5520 = vmatprep.subr.bf16.mxu0 0
        %5521 = vmatpush1.bf16.msra.mxu0 0
        %5522 = vmatprep.subr.bf16.mxu0 0
        %5523 = vmatpush1.bf16.msra.mxu0 0
        %5524 = vmatprep.subr.bf16.mxu0 0
        %5525 = vmatpush1.bf16.msra.mxu0 0
        %5526 = vmatprep.subr.bf16.mxu0 0
        %5527 = vmatpush1.bf16.msra.mxu0 0
        %5528 = vmatprep.subr.bf16.mxu0 0
        %5529 = vmatpush1.bf16.msra.mxu0 0
        %5530 = vmatprep.mubr.bf16.mxu0 0
        %5531 = vmatmul.mubr.bf16.gmra.mrb[0].mxu0 %v5446
        %v5532 = vpop.f32.mrb[0].mxu0
        %v5533 = vadd.f32 0.0, %v5532
        %v5534 = vpop.f32.mrb[0].mxu0
        %v5535 = vpop.f32.mrb[0].mxu0
        %v5536 = vpop.f32.mrb[0].mxu0
        %5537 = vdwg.mxu0
        %v5538 = vadd.f32 %v5433, %v5492
        %v5539 = vadd.f32 %v5434, %v5494
        %v5540 = vadd.f32 %v5435, %v5533
        %v5541 = vld [vmem:[%s4651] sm:$0xf]
        %v5543 = vsel %vm577, %v5541, 0
        %5545 = vmatprep.subr.bf16.mxu0 %v4774
        %5546 = vmatpush1.bf16.msra.mxu0 %v4771
        %5547 = vmatprep.subr.bf16.mxu0 0
        %5548 = vmatpush1.bf16.msra.mxu0 0
        %5549 = vmatprep.subr.bf16.mxu0 0
        %5550 = vmatpush1.bf16.msra.mxu0 0
        %5551 = vmatprep.subr.bf16.mxu0 0
        %5552 = vmatpush1.bf16.msra.mxu0 0
        %5553 = vmatprep.subr.bf16.mxu0 0
        %5554 = vmatpush1.bf16.msra.mxu0 0
        %5555 = vmatprep.subr.bf16.mxu0 0
        %5556 = vmatpush1.bf16.msra.mxu0 0
        %5557 = vmatprep.subr.bf16.mxu0 0
        %5558 = vmatpush1.bf16.msra.mxu0 0
        %5559 = vmatprep.subr.bf16.mxu0 0
        %5560 = vmatpush1.bf16.msra.mxu0 0
        %5561 = vmatprep.subr.bf16.mxu0 0
        %5562 = vmatpush1.bf16.msra.mxu0 0
        %5563 = vmatprep.subr.bf16.mxu0 0
        %5564 = vmatpush1.bf16.msra.mxu0 0
        %5565 = vmatprep.subr.bf16.mxu0 0
        %5566 = vmatpush1.bf16.msra.mxu0 0
        %5567 = vmatprep.subr.bf16.mxu0 0
        %5568 = vmatpush1.bf16.msra.mxu0 0
        %5569 = vmatprep.subr.bf16.mxu0 0
        %5570 = vmatpush1.bf16.msra.mxu0 0
        %5571 = vmatprep.subr.bf16.mxu0 0
        %5572 = vmatpush1.bf16.msra.mxu0 0
        %5573 = vmatprep.subr.bf16.mxu0 0
        %5574 = vmatpush1.bf16.msra.mxu0 0
        %5575 = vmatprep.subr.bf16.mxu0 0
        %5576 = vmatpush1.bf16.msra.mxu0 0
        %5577 = vmatprep.mubr.bf16.mxu0 0
        %5578 = vmatmul.mubr.bf16.gmra.mrb[0].mxu0 %v5543
        %v5579 = vpop.f32.mrb[0].mxu0
        %v5580 = vadd.f32 0.0, %v5579
        %v5581 = vpop.f32.mrb[0].mxu0
        %v5582 = vadd.f32 0.0, %v5581
        %v5583 = vpop.f32.mrb[0].mxu0
        %v5584 = vpop.f32.mrb[0].mxu0
        %5585 = vdwg.mxu0
        %5586 = vmatprep.subr.bf16.mxu0 0
        %5587 = vmatpush1.bf16.msra.mxu0 %v4777
        %5588 = vmatprep.subr.bf16.mxu0 0
        %5589 = vmatpush1.bf16.msra.mxu0 0
        %5590 = vmatprep.subr.bf16.mxu0 0
        %5591 = vmatpush1.bf16.msra.mxu0 0
        %5592 = vmatprep.subr.bf16.mxu0 0
        %5593 = vmatpush1.bf16.msra.mxu0 0
        %5594 = vmatprep.subr.bf16.mxu0 0
        %5595 = vmatpush1.bf16.msra.mxu0 0
        %5596 = vmatprep.subr.bf16.mxu0 0
        %5597 = vmatpush1.bf16.msra.mxu0 0
        %5598 = vmatprep.subr.bf16.mxu0 0
        %5599 = vmatpush1.bf16.msra.mxu0 0
        %5600 = vmatprep.subr.bf16.mxu0 0
        %5601 = vmatpush1.bf16.msra.mxu0 0
        %5602 = vmatprep.subr.bf16.mxu0 0
        %5603 = vmatpush1.bf16.msra.mxu0 0
        %5604 = vmatprep.subr.bf16.mxu0 0
        %5605 = vmatpush1.bf16.msra.mxu0 0
        %5606 = vmatprep.subr.bf16.mxu0 0
        %5607 = vmatpush1.bf16.msra.mxu0 0
        %5608 = vmatprep.subr.bf16.mxu0 0
        %5609 = vmatpush1.bf16.msra.mxu0 0
        %5610 = vmatprep.subr.bf16.mxu0 0
        %5611 = vmatpush1.bf16.msra.mxu0 0
        %5612 = vmatprep.subr.bf16.mxu0 0
        %5613 = vmatpush1.bf16.msra.mxu0 0
        %5614 = vmatprep.subr.bf16.mxu0 0
        %5615 = vmatpush1.bf16.msra.mxu0 0
        %5616 = vmatprep.subr.bf16.mxu0 0
        %5617 = vmatpush1.bf16.msra.mxu0 0
        %5618 = vmatprep.mubr.bf16.mxu0 0
        %5619 = vmatmul.mubr.bf16.gmra.mrb[0].mxu0 %v5543
        %v5620 = vpop.f32.mrb[0].mxu0
        %v5621 = vadd.f32 0.0, %v5620
        %v5622 = vpop.f32.mrb[0].mxu0
        %v5623 = vpop.f32.mrb[0].mxu0
        %v5624 = vpop.f32.mrb[0].mxu0
        %5625 = vdwg.mxu0
        %v5626 = vadd.f32 %v5538, %v5580
        %v5627 = vadd.f32 %v5539, %v5582
        %v5628 = vadd.f32 %v5540, %v5621
        %v5629 = vld [vmem:[%s4757] sm:$0xf]
        %v5631 = vsel %vm577, %v5629, 0
        %5633 = vmatprep.subr.bf16.mxu0 %v4880
        %5634 = vmatpush1.bf16.msra.mxu0 %v4877
        %5635 = vmatprep.subr.bf16.mxu0 0
        %5636 = vmatpush1.bf16.msra.mxu0 0
        %5637 = vmatprep.subr.bf16.mxu0 0
        %5638 = vmatpush1.bf16.msra.mxu0 0
        %5639 = vmatprep.subr.bf16.mxu0 0
        %5640 = vmatpush1.bf16.msra.mxu0 0
        %5641 = vmatprep.subr.bf16.mxu0 0
        %5642 = vmatpush1.bf16.msra.mxu0 0
        %5643 = vmatprep.subr.bf16.mxu0 0
        %5644 = vmatpush1.bf16.msra.mxu0 0
        %5645 = vmatprep.subr.bf16.mxu0 0
        %5646 = vmatpush1.bf16.msra.mxu0 0
        %5647 = vmatprep.subr.bf16.mxu0 0
        %5648 = vmatpush1.bf16.msra.mxu0 0
        %5649 = vmatprep.subr.bf16.mxu0 0
        %5650 = vmatpush1.bf16.msra.mxu0 0
        %5651 = vmatprep.subr.bf16.mxu0 0
        %5652 = vmatpush1.bf16.msra.mxu0 0
        %5653 = vmatprep.subr.bf16.mxu0 0
        %5654 = vmatpush1.bf16.msra.mxu0 0
        %5655 = vmatprep.subr.bf16.mxu0 0
        %5656 = vmatpush1.bf16.msra.mxu0 0
        %5657 = vmatprep.subr.bf16.mxu0 0
        %5658 = vmatpush1.bf16.msra.mxu0 0
        %5659 = vmatprep.subr.bf16.mxu0 0
        %5660 = vmatpush1.bf16.msra.mxu0 0
        %5661 = vmatprep.subr.bf16.mxu0 0
        %5662 = vmatpush1.bf16.msra.mxu0 0
        %5663 = vmatprep.subr.bf16.mxu0 0
        %5664 = vmatpush1.bf16.msra.mxu0 0
        %5665 = vmatprep.mubr.bf16.mxu0 0
        %5666 = vmatmul.mubr.bf16.gmra.mrb[0].mxu0 %v5631
        %v5667 = vpop.f32.mrb[0].mxu0
        %v5668 = vadd.f32 0.0, %v5667
        %v5669 = vpop.f32.mrb[0].mxu0
        %v5670 = vadd.f32 0.0, %v5669
        %v5671 = vpop.f32.mrb[0].mxu0
        %v5672 = vpop.f32.mrb[0].mxu0
        %5673 = vdwg.mxu0
        %5674 = vmatprep.subr.bf16.mxu0 0
        %5675 = vmatpush1.bf16.msra.mxu0 %v4883
        %5676 = vmatprep.subr.bf16.mxu0 0
        %5677 = vmatpush1.bf16.msra.mxu0 0
        %5678 = vmatprep.subr.bf16.mxu0 0
        %5679 = vmatpush1.bf16.msra.mxu0 0
        %5680 = vmatprep.subr.bf16.mxu0 0
        %5681 = vmatpush1.bf16.msra.mxu0 0
        %5682 = vmatprep.subr.bf16.mxu0 0
        %5683 = vmatpush1.bf16.msra.mxu0 0
        %5684 = vmatprep.subr.bf16.mxu0 0
        %5685 = vmatpush1.bf16.msra.mxu0 0
        %5686 = vmatprep.subr.bf16.mxu0 0
        %5687 = vmatpush1.bf16.msra.mxu0 0
        %5688 = vmatprep.subr.bf16.mxu0 0
        %5689 = vmatpush1.bf16.msra.mxu0 0
        %5690 = vmatprep.subr.bf16.mxu0 0
        %5691 = vmatpush1.bf16.msra.mxu0 0
        %5692 = vmatprep.subr.bf16.mxu0 0
        %5693 = vmatpush1.bf16.msra.mxu0 0
        %5694 = vmatprep.subr.bf16.mxu0 0
        %5695 = vmatpush1.bf16.msra.mxu0 0
        %5696 = vmatprep.subr.bf16.mxu0 0
        %5697 = vmatpush1.bf16.msra.mxu0 0
        %5698 = vmatprep.subr.bf16.mxu0 0
        %5699 = vmatpush1.bf16.msra.mxu0 0
        %5700 = vmatprep.subr.bf16.mxu0 0
        %5701 = vmatpush1.bf16.msra.mxu0 0
        %5702 = vmatprep.subr.bf16.mxu0 0
        %5703 = vmatpush1.bf16.msra.mxu0 0
        %5704 = vmatprep.subr.bf16.mxu0 0
        %5705 = vmatpush1.bf16.msra.mxu0 0
        %5706 = vmatprep.mubr.bf16.mxu0 0
        %5707 = vmatmul.mubr.bf16.gmra.mrb[0].mxu0 %v5631
        %v5708 = vpop.f32.mrb[0].mxu0
        %v5709 = vadd.f32 0.0, %v5708
        %v5710 = vpop.f32.mrb[0].mxu0
        %v5711 = vpop.f32.mrb[0].mxu0
        %v5712 = vpop.f32.mrb[0].mxu0
        %5713 = vdwg.mxu0
        %v5714 = vadd.f32 %v5626, %v5668
        %v5715 = vadd.f32 %v5627, %v5670
        %v5716 = vadd.f32 %v5628, %v5709
        %v5717 = vld [vmem:[%s4863] sm:$0xf]
        %5718 = vrot.lane.b32.xlu0 %v3226, 108
        %v5719 = vpop.permute.xlu0 %5718
        %5720 = vrot.lane.b32.xlu0 %v3223, 108
        %v5721 = vpop.permute.xlu0 %5720
        %5722 = vrot.lane.b32.xlu0 %v3228, 108
        %v5723 = vpop.permute.xlu0 %5722
        %v5724 = vsel %vm2007, %v5719, %v5721
        %v5725 = vsel %vm2007, %v5721, %v5723
        %v5727 = vsel %vm577, %v5717, 0
        %v5730 = vsel %vm581, %v5724, 0
        %v5733 = vsel %vm581, %v5725, 0
        %v5736 = vsel %vm581, %v5723, 0
        %5738 = vmatprep.subr.bf16.mxu0 %v5733
        %5739 = vmatpush1.bf16.msra.mxu0 %v5730
        %5740 = vmatprep.subr.bf16.mxu0 0
        %5741 = vmatpush1.bf16.msra.mxu0 0
        %5742 = vmatprep.subr.bf16.mxu0 0
        %5743 = vmatpush1.bf16.msra.mxu0 0
        %5744 = vmatprep.subr.bf16.mxu0 0
        %5745 = vmatpush1.bf16.msra.mxu0 0
        %5746 = vmatprep.subr.bf16.mxu0 0
        %5747 = vmatpush1.bf16.msra.mxu0 0
        %5748 = vmatprep.subr.bf16.mxu0 0
        %5749 = vmatpush1.bf16.msra.mxu0 0
        %5750 = vmatprep.subr.bf16.mxu0 0
        %5751 = vmatpush1.bf16.msra.mxu0 0
        %5752 = vmatprep.subr.bf16.mxu0 0
        %5753 = vmatpush1.bf16.msra.mxu0 0
        %5754 = vmatprep.subr.bf16.mxu0 0
        %5755 = vmatpush1.bf16.msra.mxu0 0
        %5756 = vmatprep.subr.bf16.mxu0 0
        %5757 = vmatpush1.bf16.msra.mxu0 0
        %5758 = vmatprep.subr.bf16.mxu0 0
        %5759 = vmatpush1.bf16.msra.mxu0 0
        %5760 = vmatprep.subr.bf16.mxu0 0
        %5761 = vmatpush1.bf16.msra.mxu0 0
        %5762 = vmatprep.subr.bf16.mxu0 0
        %5763 = vmatpush1.bf16.msra.mxu0 0
        %5764 = vmatprep.subr.bf16.mxu0 0
        %5765 = vmatpush1.bf16.msra.mxu0 0
        %5766 = vmatprep.subr.bf16.mxu0 0
        %5767 = vmatpush1.bf16.msra.mxu0 0
        %5768 = vmatprep.subr.bf16.mxu0 0
        %5769 = vmatpush1.bf16.msra.mxu0 0
        %5770 = vmatprep.mubr.bf16.mxu0 0
        %5771 = vmatmul.mubr.bf16.gmra.mrb[0].mxu0 %v5727
        %v5772 = vpop.f32.mrb[0].mxu0
        %v5773 = vadd.f32 0.0, %v5772
        %v5774 = vpop.f32.mrb[0].mxu0
        %v5775 = vadd.f32 0.0, %v5774
        %v5776 = vpop.f32.mrb[0].mxu0
        %v5777 = vpop.f32.mrb[0].mxu0
        %5778 = vdwg.mxu0
        %5779 = vmatprep.subr.bf16.mxu0 0
        %5780 = vmatpush1.bf16.msra.mxu0 %v5736
        %5781 = vmatprep.subr.bf16.mxu0 0
        %5782 = vmatpush1.bf16.msra.mxu0 0
        %5783 = vmatprep.subr.bf16.mxu0 0
        %5784 = vmatpush1.bf16.msra.mxu0 0
        %5785 = vmatprep.subr.bf16.mxu0 0
        %5786 = vmatpush1.bf16.msra.mxu0 0
        %5787 = vmatprep.subr.bf16.mxu0 0
        %5788 = vmatpush1.bf16.msra.mxu0 0
        %5789 = vmatprep.subr.bf16.mxu0 0
        %5790 = vmatpush1.bf16.msra.mxu0 0
        %5791 = vmatprep.subr.bf16.mxu0 0
        %5792 = vmatpush1.bf16.msra.mxu0 0
        %5793 = vmatprep.subr.bf16.mxu0 0
        %5794 = vmatpush1.bf16.msra.mxu0 0
        %5795 = vmatprep.subr.bf16.mxu0 0
        %5796 = vmatpush1.bf16.msra.mxu0 0
        %5797 = vmatprep.subr.bf16.mxu0 0
        %5798 = vmatpush1.bf16.msra.mxu0 0
        %5799 = vmatprep.subr.bf16.mxu0 0
        %5800 = vmatpush1.bf16.msra.mxu0 0
        %5801 = vmatprep.subr.bf16.mxu0 0
        %5802 = vmatpush1.bf16.msra.mxu0 0
        %5803 = vmatprep.subr.bf16.mxu0 0
        %5804 = vmatpush1.bf16.msra.mxu0 0
        %5805 = vmatprep.subr.bf16.mxu0 0
        %5806 = vmatpush1.bf16.msra.mxu0 0
        %5807 = vmatprep.subr.bf16.mxu0 0
        %5808 = vmatpush1.bf16.msra.mxu0 0
        %5809 = vmatprep.subr.bf16.mxu0 0
        %5810 = vmatpush1.bf16.msra.mxu0 0
        %5811 = vmatprep.mubr.bf16.mxu0 0
        %5812 = vmatmul.mubr.bf16.gmra.mrb[0].mxu0 %v5727
        %v5813 = vpop.f32.mrb[0].mxu0
        %v5814 = vadd.f32 0.0, %v5813
        %v5815 = vpop.f32.mrb[0].mxu0
        %v5816 = vpop.f32.mrb[0].mxu0
        %v5817 = vpop.f32.mrb[0].mxu0
        %5818 = vdwg.mxu0
        %v5819 = vadd.f32 %v5714, %v5773
        %v5820 = vadd.f32 %v5715, %v5775
        %v5821 = vadd.f32 %v5716, %v5814
        %v5822 = vld [vmem:[#allocation10] sm:$0xff]
        %5824 = vset.pattern.permute.xlu0 0
        %5825 = vperm.xlu0 %5824, %v5822
        %v5826 = vpop.permute.xlu0 %5825
        %v5828 = vadd.f32 %v5819, %v5826
        %v5829 = vadd.f32 %v5820, %v5826
        %v5830 = vadd.f32 %v5821, %v5826
        %v5831 = vmax.f32 %v5828, 0.0
        %v5832 = vmax.f32 %v5829, 0.0
        %v5833 = vmax.f32 %v5830, 0.0
        %s5834 = scalar_lea.vmem %s373, 24 [#allocation14]
        %5835 = vst [vmem:[%s5834] sm:$0xff] %v5831
        %5836 = vst [vmem:[%s5834 + $0x8] sm:$0xff] %v5832
        %5837 = vst.msk [vmem:[%s5834 + $0x10] sm:$0xff] %vm4983, %v5833
        %v5838 = vld [vmem:[#allocation8] sm:$0xf]
        %v5839 = vld [vmem:[%s4025] sm:$0xf]
        %v5841 = vsel %vm577, %v5839, 0
        %5843 = vmatprep.subr.bf16.mxu0 %v4456
        %5844 = vmatpush1.bf16.msra.mxu0 %v4453
        %5845 = vmatprep.subr.bf16.mxu0 0
        %5846 = vmatpush1.bf16.msra.mxu0 0
        %5847 = vmatprep.subr.bf16.mxu0 0
        %5848 = vmatpush1.bf16.msra.mxu0 0
        %5849 = vmatprep.subr.bf16.mxu0 0
        %5850 = vmatpush1.bf16.msra.mxu0 0
        %5851 = vmatprep.subr.bf16.mxu0 0
        %5852 = vmatpush1.bf16.msra.mxu0 0
        %5853 = vmatprep.subr.bf16.mxu0 0
        %5854 = vmatpush1.bf16.msra.mxu0 0
        %5855 = vmatprep.subr.bf16.mxu0 0
        %5856 = vmatpush1.bf16.msra.mxu0 0
        %5857 = vmatprep.subr.bf16.mxu0 0
        %5858 = vmatpush1.bf16.msra.mxu0 0
        %5859 = vmatprep.subr.bf16.mxu0 0
        %5860 = vmatpush1.bf16.msra.mxu0 0
        %5861 = vmatprep.subr.bf16.mxu0 0
        %5862 = vmatpush1.bf16.msra.mxu0 0
        %5863 = vmatprep.subr.bf16.mxu0 0
        %5864 = vmatpush1.bf16.msra.mxu0 0
        %5865 = vmatprep.subr.bf16.mxu0 0
        %5866 = vmatpush1.bf16.msra.mxu0 0
        %5867 = vmatprep.subr.bf16.mxu0 0
        %5868 = vmatpush1.bf16.msra.mxu0 0
        %5869 = vmatprep.subr.bf16.mxu0 0
        %5870 = vmatpush1.bf16.msra.mxu0 0
        %5871 = vmatprep.subr.bf16.mxu0 0
        %5872 = vmatpush1.bf16.msra.mxu0 0
        %5873 = vmatprep.subr.bf16.mxu0 0
        %5874 = vmatpush1.bf16.msra.mxu0 0
        %5875 = vmatprep.mubr.bf16.mxu0 0
        %5876 = vmatmul.mubr.bf16.gmra.mrb[0].mxu0 %v5841
        %v5877 = vpop.f32.mrb[0].mxu0
        %v5878 = vadd.f32 0.0, %v5877
        %v5879 = vpop.f32.mrb[0].mxu0
        %v5880 = vadd.f32 0.0, %v5879
        %v5881 = vpop.f32.mrb[0].mxu0
        %v5882 = vpop.f32.mrb[0].mxu0
        %5883 = vdwg.mxu0
        %5884 = vmatprep.subr.bf16.mxu0 0
        %5885 = vmatpush1.bf16.msra.mxu0 %v4459
        %5886 = vmatprep.subr.bf16.mxu0 0
        %5887 = vmatpush1.bf16.msra.mxu0 0
        %5888 = vmatprep.subr.bf16.mxu0 0
        %5889 = vmatpush1.bf16.msra.mxu0 0
        %5890 = vmatprep.subr.bf16.mxu0 0
        %5891 = vmatpush1.bf16.msra.mxu0 0
        %5892 = vmatprep.subr.bf16.mxu0 0
        %5893 = vmatpush1.bf16.msra.mxu0 0
        %5894 = vmatprep.subr.bf16.mxu0 0
        %5895 = vmatpush1.bf16.msra.mxu0 0
        %5896 = vmatprep.subr.bf16.mxu0 0
        %5897 = vmatpush1.bf16.msra.mxu0 0
        %5898 = vmatprep.subr.bf16.mxu0 0
        %5899 = vmatpush1.bf16.msra.mxu0 0
        %5900 = vmatprep.subr.bf16.mxu0 0
        %5901 = vmatpush1.bf16.msra.mxu0 0
        %5902 = vmatprep.subr.bf16.mxu0 0
        %5903 = vmatpush1.bf16.msra.mxu0 0
        %5904 = vmatprep.subr.bf16.mxu0 0
        %5905 = vmatpush1.bf16.msra.mxu0 0
        %5906 = vmatprep.subr.bf16.mxu0 0
        %5907 = vmatpush1.bf16.msra.mxu0 0
        %5908 = vmatprep.subr.bf16.mxu0 0
        %5909 = vmatpush1.bf16.msra.mxu0 0
        %5910 = vmatprep.subr.bf16.mxu0 0
        %5911 = vmatpush1.bf16.msra.mxu0 0
        %5912 = vmatprep.subr.bf16.mxu0 0
        %5913 = vmatpush1.bf16.msra.mxu0 0
        %5914 = vmatprep.subr.bf16.mxu0 0
        %5915 = vmatpush1.bf16.msra.mxu0 0
        %5916 = vmatprep.mubr.bf16.mxu0 0
        %5917 = vmatmul.mubr.bf16.gmra.mrb[0].mxu0 %v5841
        %v5918 = vpop.f32.mrb[0].mxu0
        %v5919 = vadd.f32 0.0, %v5918
        %v5920 = vpop.f32.mrb[0].mxu0
        %v5921 = vpop.f32.mrb[0].mxu0
        %v5922 = vpop.f32.mrb[0].mxu0
        %5923 = vdwg.mxu0
        %v5925 = vsel %vm577, %v5838, 0
        %5927 = vmatprep.subr.bf16.mxu0 %v4348
        %5928 = vmatpush1.bf16.msra.mxu0 %v4345
        %5929 = vmatprep.subr.bf16.mxu0 0
        %5930 = vmatpush1.bf16.msra.mxu0 0
        %5931 = vmatprep.subr.bf16.mxu0 0
        %5932 = vmatpush1.bf16.msra.mxu0 0
        %5933 = vmatprep.subr.bf16.mxu0 0
        %5934 = vmatpush1.bf16.msra.mxu0 0
        %5935 = vmatprep.subr.bf16.mxu0 0
        %5936 = vmatpush1.bf16.msra.mxu0 0
        %5937 = vmatprep.subr.bf16.mxu0 0
        %5938 = vmatpush1.bf16.msra.mxu0 0
        %5939 = vmatprep.subr.bf16.mxu0 0
        %5940 = vmatpush1.bf16.msra.mxu0 0
        %5941 = vmatprep.subr.bf16.mxu0 0
        %5942 = vmatpush1.bf16.msra.mxu0 0
        %5943 = vmatprep.subr.bf16.mxu0 0
        %5944 = vmatpush1.bf16.msra.mxu0 0
        %5945 = vmatprep.subr.bf16.mxu0 0
        %5946 = vmatpush1.bf16.msra.mxu0 0
        %5947 = vmatprep.subr.bf16.mxu0 0
        %5948 = vmatpush1.bf16.msra.mxu0 0
        %5949 = vmatprep.subr.bf16.mxu0 0
        %5950 = vmatpush1.bf16.msra.mxu0 0
        %5951 = vmatprep.subr.bf16.mxu0 0
        %5952 = vmatpush1.bf16.msra.mxu0 0
        %5953 = vmatprep.subr.bf16.mxu0 0
        %5954 = vmatpush1.bf16.msra.mxu0 0
        %5955 = vmatprep.subr.bf16.mxu0 0
        %5956 = vmatpush1.bf16.msra.mxu0 0
        %5957 = vmatprep.subr.bf16.mxu0 0
        %5958 = vmatpush1.bf16.msra.mxu0 0
        %5959 = vmatprep.mubr.bf16.mxu0 0
        %5960 = vmatmul.mubr.bf16.gmra.mrb[0].mxu0 %v5925
        %v5961 = vpop.f32.mrb[0].mxu0
        %v5962 = vadd.f32 %v5878, %v5961
        %v5963 = vpop.f32.mrb[0].mxu0
        %v5964 = vadd.f32 %v5880, %v5963
        %v5965 = vpop.f32.mrb[0].mxu0
        %v5966 = vpop.f32.mrb[0].mxu0
        %5967 = vdwg.mxu0
        %5968 = vmatprep.subr.bf16.mxu0 0
        %5969 = vmatpush1.bf16.msra.mxu0 %v4351
        %5970 = vmatprep.subr.bf16.mxu0 0
        %5971 = vmatpush1.bf16.msra.mxu0 0
        %5972 = vmatprep.subr.bf16.mxu0 0
        %5973 = vmatpush1.bf16.msra.mxu0 0
        %5974 = vmatprep.subr.bf16.mxu0 0
        %5975 = vmatpush1.bf16.msra.mxu0 0
        %5976 = vmatprep.subr.bf16.mxu0 0
        %5977 = vmatpush1.bf16.msra.mxu0 0
        %5978 = vmatprep.subr.bf16.mxu0 0
        %5979 = vmatpush1.bf16.msra.mxu0 0
        %5980 = vmatprep.subr.bf16.mxu0 0
        %5981 = vmatpush1.bf16.msra.mxu0 0
        %5982 = vmatprep.subr.bf16.mxu0 0
        %5983 = vmatpush1.bf16.msra.mxu0 0
        %5984 = vmatprep.subr.bf16.mxu0 0
        %5985 = vmatpush1.bf16.msra.mxu0 0
        %5986 = vmatprep.subr.bf16.mxu0 0
        %5987 = vmatpush1.bf16.msra.mxu0 0
        %5988 = vmatprep.subr.bf16.mxu0 0
        %5989 = vmatpush1.bf16.msra.mxu0 0
        %5990 = vmatprep.subr.bf16.mxu0 0
        %5991 = vmatpush1.bf16.msra.mxu0 0
        %5992 = vmatprep.subr.bf16.mxu0 0
        %5993 = vmatpush1.bf16.msra.mxu0 0
        %5994 = vmatprep.subr.bf16.mxu0 0
        %5995 = vmatpush1.bf16.msra.mxu0 0
        %5996 = vmatprep.subr.bf16.mxu0 0
        %5997 = vmatpush1.bf16.msra.mxu0 0
        %5998 = vmatprep.subr.bf16.mxu0 0
        %5999 = vmatpush1.bf16.msra.mxu0 0
        %6000 = vmatprep.mubr.bf16.mxu0 0
        %6001 = vmatmul.mubr.bf16.gmra.mrb[0].mxu0 %v5925
        %v6002 = vpop.f32.mrb[0].mxu0
        %v6003 = vadd.f32 %v5919, %v6002
        %v6004 = vpop.f32.mrb[0].mxu0
        %v6005 = vpop.f32.mrb[0].mxu0
        %v6006 = vpop.f32.mrb[0].mxu0
        %6007 = vdwg.mxu0
        %v6008 = vld [vmem:[%s4221] sm:$0xf]
        %v6010 = vsel %vm577, %v6008, 0
        %6012 = vmatprep.subr.bf16.mxu0 %v4562
        %6013 = vmatpush1.bf16.msra.mxu0 %v4559
        %6014 = vmatprep.subr.bf16.mxu0 0
        %6015 = vmatpush1.bf16.msra.mxu0 0
        %6016 = vmatprep.subr.bf16.mxu0 0
        %6017 = vmatpush1.bf16.msra.mxu0 0
        %6018 = vmatprep.subr.bf16.mxu0 0
        %6019 = vmatpush1.bf16.msra.mxu0 0
        %6020 = vmatprep.subr.bf16.mxu0 0
        %6021 = vmatpush1.bf16.msra.mxu0 0
        %6022 = vmatprep.subr.bf16.mxu0 0
        %6023 = vmatpush1.bf16.msra.mxu0 0
        %6024 = vmatprep.subr.bf16.mxu0 0
        %6025 = vmatpush1.bf16.msra.mxu0 0
        %6026 = vmatprep.subr.bf16.mxu0 0
        %6027 = vmatpush1.bf16.msra.mxu0 0
        %6028 = vmatprep.subr.bf16.mxu0 0
        %6029 = vmatpush1.bf16.msra.mxu0 0
        %6030 = vmatprep.subr.bf16.mxu0 0
        %6031 = vmatpush1.bf16.msra.mxu0 0
        %6032 = vmatprep.subr.bf16.mxu0 0
        %6033 = vmatpush1.bf16.msra.mxu0 0
        %6034 = vmatprep.subr.bf16.mxu0 0
        %6035 = vmatpush1.bf16.msra.mxu0 0
        %6036 = vmatprep.subr.bf16.mxu0 0
        %6037 = vmatpush1.bf16.msra.mxu0 0
        %6038 = vmatprep.subr.bf16.mxu0 0
        %6039 = vmatpush1.bf16.msra.mxu0 0
        %6040 = vmatprep.subr.bf16.mxu0 0
        %6041 = vmatpush1.bf16.msra.mxu0 0
        %6042 = vmatprep.subr.bf16.mxu0 0
        %6043 = vmatpush1.bf16.msra.mxu0 0
        %6044 = vmatprep.mubr.bf16.mxu0 0
        %6045 = vmatmul.mubr.bf16.gmra.mrb[0].mxu0 %v6010
        %v6046 = vpop.f32.mrb[0].mxu0
        %v6047 = vadd.f32 0.0, %v6046
        %v6048 = vpop.f32.mrb[0].mxu0
        %v6049 = vadd.f32 0.0, %v6048
        %v6050 = vpop.f32.mrb[0].mxu0
        %v6051 = vpop.f32.mrb[0].mxu0
        %6052 = vdwg.mxu0
        %6053 = vmatprep.subr.bf16.mxu0 0
        %6054 = vmatpush1.bf16.msra.mxu0 %v4565
        %6055 = vmatprep.subr.bf16.mxu0 0
        %6056 = vmatpush1.bf16.msra.mxu0 0
        %6057 = vmatprep.subr.bf16.mxu0 0
        %6058 = vmatpush1.bf16.msra.mxu0 0
        %6059 = vmatprep.subr.bf16.mxu0 0
        %6060 = vmatpush1.bf16.msra.mxu0 0
        %6061 = vmatprep.subr.bf16.mxu0 0
        %6062 = vmatpush1.bf16.msra.mxu0 0
        %6063 = vmatprep.subr.bf16.mxu0 0
        %6064 = vmatpush1.bf16.msra.mxu0 0
        %6065 = vmatprep.subr.bf16.mxu0 0
        %6066 = vmatpush1.bf16.msra.mxu0 0
        %6067 = vmatprep.subr.bf16.mxu0 0
        %6068 = vmatpush1.bf16.msra.mxu0 0
        %6069 = vmatprep.subr.bf16.mxu0 0
        %6070 = vmatpush1.bf16.msra.mxu0 0
        %6071 = vmatprep.subr.bf16.mxu0 0
        %6072 = vmatpush1.bf16.msra.mxu0 0
        %6073 = vmatprep.subr.bf16.mxu0 0
        %6074 = vmatpush1.bf16.msra.mxu0 0
        %6075 = vmatprep.subr.bf16.mxu0 0
        %6076 = vmatpush1.bf16.msra.mxu0 0
        %6077 = vmatprep.subr.bf16.mxu0 0
        %6078 = vmatpush1.bf16.msra.mxu0 0
        %6079 = vmatprep.subr.bf16.mxu0 0
        %6080 = vmatpush1.bf16.msra.mxu0 0
        %6081 = vmatprep.subr.bf16.mxu0 0
        %6082 = vmatpush1.bf16.msra.mxu0 0
        %6083 = vmatprep.subr.bf16.mxu0 0
        %6084 = vmatpush1.bf16.msra.mxu0 0
        %6085 = vmatprep.mubr.bf16.mxu0 0
        %6086 = vmatmul.mubr.bf16.gmra.mrb[0].mxu0 %v6010
        %v6087 = vpop.f32.mrb[0].mxu0
        %v6088 = vadd.f32 0.0, %v6087
        %v6089 = vpop.f32.mrb[0].mxu0
        %v6090 = vpop.f32.mrb[0].mxu0
        %v6091 = vpop.f32.mrb[0].mxu0
        %6092 = vdwg.mxu0
        %v6093 = vadd.f32 %v5962, %v6047
        %v6094 = vadd.f32 %v5964, %v6049
        %v6095 = vadd.f32 %v6003, %v6088
        %v6096 = vld [vmem:[%s4329] sm:$0xf]
        %v6098 = vsel %vm577, %v6096, 0
        %6100 = vmatprep.subr.bf16.mxu0 %v4668
        %6101 = vmatpush1.bf16.msra.mxu0 %v4665
        %6102 = vmatprep.subr.bf16.mxu0 0
        %6103 = vmatpush1.bf16.msra.mxu0 0
        %6104 = vmatprep.subr.bf16.mxu0 0
        %6105 = vmatpush1.bf16.msra.mxu0 0
        %6106 = vmatprep.subr.bf16.mxu0 0
        %6107 = vmatpush1.bf16.msra.mxu0 0
        %6108 = vmatprep.subr.bf16.mxu0 0
        %6109 = vmatpush1.bf16.msra.mxu0 0
        %6110 = vmatprep.subr.bf16.mxu0 0
        %6111 = vmatpush1.bf16.msra.mxu0 0
        %6112 = vmatprep.subr.bf16.mxu0 0
        %6113 = vmatpush1.bf16.msra.mxu0 0
        %6114 = vmatprep.subr.bf16.mxu0 0
        %6115 = vmatpush1.bf16.msra.mxu0 0
        %6116 = vmatprep.subr.bf16.mxu0 0
        %6117 = vmatpush1.bf16.msra.mxu0 0
        %6118 = vmatprep.subr.bf16.mxu0 0
        %6119 = vmatpush1.bf16.msra.mxu0 0
        %6120 = vmatprep.subr.bf16.mxu0 0
        %6121 = vmatpush1.bf16.msra.mxu0 0
        %6122 = vmatprep.subr.bf16.mxu0 0
        %6123 = vmatpush1.bf16.msra.mxu0 0
        %6124 = vmatprep.subr.bf16.mxu0 0
        %6125 = vmatpush1.bf16.msra.mxu0 0
        %6126 = vmatprep.subr.bf16.mxu0 0
        %6127 = vmatpush1.bf16.msra.mxu0 0
        %6128 = vmatprep.subr.bf16.mxu0 0
        %6129 = vmatpush1.bf16.msra.mxu0 0
        %6130 = vmatprep.subr.bf16.mxu0 0
        %6131 = vmatpush1.bf16.msra.mxu0 0
        %6132 = vmatprep.mubr.bf16.mxu0 0
        %6133 = vmatmul.mubr.bf16.gmra.mrb[0].mxu0 %v6098
        %v6134 = vpop.f32.mrb[0].mxu0
        %v6135 = vadd.f32 0.0, %v6134
        %v6136 = vpop.f32.mrb[0].mxu0
        %v6137 = vadd.f32 0.0, %v6136
        %v6138 = vpop.f32.mrb[0].mxu0
        %v6139 = vpop.f32.mrb[0].mxu0
        %6140 = vdwg.mxu0
        %6141 = vmatprep.subr.bf16.mxu0 0
        %6142 = vmatpush1.bf16.msra.mxu0 %v4671
        %6143 = vmatprep.subr.bf16.mxu0 0
        %6144 = vmatpush1.bf16.msra.mxu0 0
        %6145 = vmatprep.subr.bf16.mxu0 0
        %6146 = vmatpush1.bf16.msra.mxu0 0
        %6147 = vmatprep.subr.bf16.mxu0 0
        %6148 = vmatpush1.bf16.msra.mxu0 0
        %6149 = vmatprep.subr.bf16.mxu0 0
        %6150 = vmatpush1.bf16.msra.mxu0 0
        %6151 = vmatprep.subr.bf16.mxu0 0
        %6152 = vmatpush1.bf16.msra.mxu0 0
        %6153 = vmatprep.subr.bf16.mxu0 0
        %6154 = vmatpush1.bf16.msra.mxu0 0
        %6155 = vmatprep.subr.bf16.mxu0 0
        %6156 = vmatpush1.bf16.msra.mxu0 0
        %6157 = vmatprep.subr.bf16.mxu0 0
        %6158 = vmatpush1.bf16.msra.mxu0 0
        %6159 = vmatprep.subr.bf16.mxu0 0
        %6160 = vmatpush1.bf16.msra.mxu0 0
        %6161 = vmatprep.subr.bf16.mxu0 0
        %6162 = vmatpush1.bf16.msra.mxu0 0
        %6163 = vmatprep.subr.bf16.mxu0 0
        %6164 = vmatpush1.bf16.msra.mxu0 0
        %6165 = vmatprep.subr.bf16.mxu0 0
        %6166 = vmatpush1.bf16.msra.mxu0 0
        %6167 = vmatprep.subr.bf16.mxu0 0
        %6168 = vmatpush1.bf16.msra.mxu0 0
        %6169 = vmatprep.subr.bf16.mxu0 0
        %6170 = vmatpush1.bf16.msra.mxu0 0
        %6171 = vmatprep.subr.bf16.mxu0 0
        %6172 = vmatpush1.bf16.msra.mxu0 0
        %6173 = vmatprep.mubr.bf16.mxu0 0
        %6174 = vmatmul.mubr.bf16.gmra.mrb[0].mxu0 %v6098
        %v6175 = vpop.f32.mrb[0].mxu0
        %v6176 = vadd.f32 0.0, %v6175
        %v6177 = vpop.f32.mrb[0].mxu0
        %v6178 = vpop.f32.mrb[0].mxu0
        %v6179 = vpop.f32.mrb[0].mxu0
        %6180 = vdwg.mxu0
        %v6181 = vadd.f32 %v6093, %v6135
        %v6182 = vadd.f32 %v6094, %v6137
        %v6183 = vadd.f32 %v6095, %v6176
        %v6184 = vld [vmem:[%s4437] sm:$0xf]
        %v6186 = vsel %vm577, %v6184, 0
        %6188 = vmatprep.subr.bf16.mxu0 %v4774
        %6189 = vmatpush1.bf16.msra.mxu0 %v4771
        %6190 = vmatprep.subr.bf16.mxu0 0
        %6191 = vmatpush1.bf16.msra.mxu0 0
        %6192 = vmatprep.subr.bf16.mxu0 0
        %6193 = vmatpush1.bf16.msra.mxu0 0
        %6194 = vmatprep.subr.bf16.mxu0 0
        %6195 = vmatpush1.bf16.msra.mxu0 0
        %6196 = vmatprep.subr.bf16.mxu0 0
        %6197 = vmatpush1.bf16.msra.mxu0 0
        %6198 = vmatprep.subr.bf16.mxu0 0
        %6199 = vmatpush1.bf16.msra.mxu0 0
        %6200 = vmatprep.subr.bf16.mxu0 0
        %6201 = vmatpush1.bf16.msra.mxu0 0
        %6202 = vmatprep.subr.bf16.mxu0 0
        %6203 = vmatpush1.bf16.msra.mxu0 0
        %6204 = vmatprep.subr.bf16.mxu0 0
        %6205 = vmatpush1.bf16.msra.mxu0 0
        %6206 = vmatprep.subr.bf16.mxu0 0
        %6207 = vmatpush1.bf16.msra.mxu0 0
        %6208 = vmatprep.subr.bf16.mxu0 0
        %6209 = vmatpush1.bf16.msra.mxu0 0
        %6210 = vmatprep.subr.bf16.mxu0 0
        %6211 = vmatpush1.bf16.msra.mxu0 0
        %6212 = vmatprep.subr.bf16.mxu0 0
        %6213 = vmatpush1.bf16.msra.mxu0 0
        %6214 = vmatprep.subr.bf16.mxu0 0
        %6215 = vmatpush1.bf16.msra.mxu0 0
        %6216 = vmatprep.subr.bf16.mxu0 0
        %6217 = vmatpush1.bf16.msra.mxu0 0
        %6218 = vmatprep.subr.bf16.mxu0 0
        %6219 = vmatpush1.bf16.msra.mxu0 0
        %6220 = vmatprep.mubr.bf16.mxu0 0
        %6221 = vmatmul.mubr.bf16.gmra.mrb[0].mxu0 %v6186
        %v6222 = vpop.f32.mrb[0].mxu0
        %v6223 = vadd.f32 0.0, %v6222
        %v6224 = vpop.f32.mrb[0].mxu0
        %v6225 = vadd.f32 0.0, %v6224
        %v6226 = vpop.f32.mrb[0].mxu0
        %v6227 = vpop.f32.mrb[0].mxu0
        %6228 = vdwg.mxu0
        %6229 = vmatprep.subr.bf16.mxu0 0
        %6230 = vmatpush1.bf16.msra.mxu0 %v4777
        %6231 = vmatprep.subr.bf16.mxu0 0
        %6232 = vmatpush1.bf16.msra.mxu0 0
        %6233 = vmatprep.subr.bf16.mxu0 0
        %6234 = vmatpush1.bf16.msra.mxu0 0
        %6235 = vmatprep.subr.bf16.mxu0 0
        %6236 = vmatpush1.bf16.msra.mxu0 0
        %6237 = vmatprep.subr.bf16.mxu0 0
        %6238 = vmatpush1.bf16.msra.mxu0 0
        %6239 = vmatprep.subr.bf16.mxu0 0
        %6240 = vmatpush1.bf16.msra.mxu0 0
        %6241 = vmatprep.subr.bf16.mxu0 0
        %6242 = vmatpush1.bf16.msra.mxu0 0
        %6243 = vmatprep.subr.bf16.mxu0 0
        %6244 = vmatpush1.bf16.msra.mxu0 0
        %6245 = vmatprep.subr.bf16.mxu0 0
        %6246 = vmatpush1.bf16.msra.mxu0 0
        %6247 = vmatprep.subr.bf16.mxu0 0
        %6248 = vmatpush1.bf16.msra.mxu0 0
        %6249 = vmatprep.subr.bf16.mxu0 0
        %6250 = vmatpush1.bf16.msra.mxu0 0
        %6251 = vmatprep.subr.bf16.mxu0 0
        %6252 = vmatpush1.bf16.msra.mxu0 0
        %6253 = vmatprep.subr.bf16.mxu0 0
        %6254 = vmatpush1.bf16.msra.mxu0 0
        %6255 = vmatprep.subr.bf16.mxu0 0
        %6256 = vmatpush1.bf16.msra.mxu0 0
        %6257 = vmatprep.subr.bf16.mxu0 0
        %6258 = vmatpush1.bf16.msra.mxu0 0
        %6259 = vmatprep.subr.bf16.mxu0 0
        %6260 = vmatpush1.bf16.msra.mxu0 0
        %6261 = vmatprep.mubr.bf16.mxu0 0
        %6262 = vmatmul.mubr.bf16.gmra.mrb[0].mxu0 %v6186
        %v6263 = vpop.f32.mrb[0].mxu0
        %v6264 = vadd.f32 0.0, %v6263
        %v6265 = vpop.f32.mrb[0].mxu0
        %v6266 = vpop.f32.mrb[0].mxu0
        %v6267 = vpop.f32.mrb[0].mxu0
        %6268 = vdwg.mxu0
        %v6269 = vadd.f32 %v6181, %v6223
        %v6270 = vadd.f32 %v6182, %v6225
        %v6271 = vadd.f32 %v6183, %v6264
        %v6272 = vld [vmem:[%s4545] sm:$0xf]
        %v6274 = vsel %vm577, %v6272, 0
        %6276 = vmatprep.subr.bf16.mxu0 %v4880
        %6277 = vmatpush1.bf16.msra.mxu0 %v4877
        %6278 = vmatprep.subr.bf16.mxu0 0
        %6279 = vmatpush1.bf16.msra.mxu0 0
        %6280 = vmatprep.subr.bf16.mxu0 0
        %6281 = vmatpush1.bf16.msra.mxu0 0
        %6282 = vmatprep.subr.bf16.mxu0 0
        %6283 = vmatpush1.bf16.msra.mxu0 0
        %6284 = vmatprep.subr.bf16.mxu0 0
        %6285 = vmatpush1.bf16.msra.mxu0 0
        %6286 = vmatprep.subr.bf16.mxu0 0
        %6287 = vmatpush1.bf16.msra.mxu0 0
        %6288 = vmatprep.subr.bf16.mxu0 0
        %6289 = vmatpush1.bf16.msra.mxu0 0
        %6290 = vmatprep.subr.bf16.mxu0 0
        %6291 = vmatpush1.bf16.msra.mxu0 0
        %6292 = vmatprep.subr.bf16.mxu0 0
        %6293 = vmatpush1.bf16.msra.mxu0 0
        %6294 = vmatprep.subr.bf16.mxu0 0
        %6295 = vmatpush1.bf16.msra.mxu0 0
        %6296 = vmatprep.subr.bf16.mxu0 0
        %6297 = vmatpush1.bf16.msra.mxu0 0
        %6298 = vmatprep.subr.bf16.mxu0 0
        %6299 = vmatpush1.bf16.msra.mxu0 0
        %6300 = vmatprep.subr.bf16.mxu0 0
        %6301 = vmatpush1.bf16.msra.mxu0 0
        %6302 = vmatprep.subr.bf16.mxu0 0
        %6303 = vmatpush1.bf16.msra.mxu0 0
        %6304 = vmatprep.subr.bf16.mxu0 0
        %6305 = vmatpush1.bf16.msra.mxu0 0
        %6306 = vmatprep.subr.bf16.mxu0 0
        %6307 = vmatpush1.bf16.msra.mxu0 0
        %6308 = vmatprep.mubr.bf16.mxu0 0
        %6309 = vmatmul.mubr.bf16.gmra.mrb[0].mxu0 %v6274
        %v6310 = vpop.f32.mrb[0].mxu0
        %v6311 = vadd.f32 0.0, %v6310
        %v6312 = vpop.f32.mrb[0].mxu0
        %v6313 = vadd.f32 0.0, %v6312
        %v6314 = vpop.f32.mrb[0].mxu0
        %v6315 = vpop.f32.mrb[0].mxu0
        %6316 = vdwg.mxu0
        %6317 = vmatprep.subr.bf16.mxu0 0
        %6318 = vmatpush1.bf16.msra.mxu0 %v4883
        %6319 = vmatprep.subr.bf16.mxu0 0
        %6320 = vmatpush1.bf16.msra.mxu0 0
        %6321 = vmatprep.subr.bf16.mxu0 0
        %6322 = vmatpush1.bf16.msra.mxu0 0
        %6323 = vmatprep.subr.bf16.mxu0 0
        %6324 = vmatpush1.bf16.msra.mxu0 0
        %6325 = vmatprep.subr.bf16.mxu0 0
        %6326 = vmatpush1.bf16.msra.mxu0 0
        %6327 = vmatprep.subr.bf16.mxu0 0
        %6328 = vmatpush1.bf16.msra.mxu0 0
        %6329 = vmatprep.subr.bf16.mxu0 0
        %6330 = vmatpush1.bf16.msra.mxu0 0
        %6331 = vmatprep.subr.bf16.mxu0 0
        %6332 = vmatpush1.bf16.msra.mxu0 0
        %6333 = vmatprep.subr.bf16.mxu0 0
        %6334 = vmatpush1.bf16.msra.mxu0 0
        %6335 = vmatprep.subr.bf16.mxu0 0
        %6336 = vmatpush1.bf16.msra.mxu0 0
        %6337 = vmatprep.subr.bf16.mxu0 0
        %6338 = vmatpush1.bf16.msra.mxu0 0
        %6339 = vmatprep.subr.bf16.mxu0 0
        %6340 = vmatpush1.bf16.msra.mxu0 0
        %6341 = vmatprep.subr.bf16.mxu0 0
        %6342 = vmatpush1.bf16.msra.mxu0 0
        %6343 = vmatprep.subr.bf16.mxu0 0
        %6344 = vmatpush1.bf16.msra.mxu0 0
        %6345 = vmatprep.subr.bf16.mxu0 0
        %6346 = vmatpush1.bf16.msra.mxu0 0
        %6347 = vmatprep.subr.bf16.mxu0 0
        %6348 = vmatpush1.bf16.msra.mxu0 0
        %6349 = vmatprep.mubr.bf16.mxu0 0
        %6350 = vmatmul.mubr.bf16.gmra.mrb[0].mxu0 %v6274
        %v6351 = vpop.f32.mrb[0].mxu0
        %v6352 = vadd.f32 0.0, %v6351
        %v6353 = vpop.f32.mrb[0].mxu0
        %v6354 = vpop.f32.mrb[0].mxu0
        %v6355 = vpop.f32.mrb[0].mxu0
        %6356 = vdwg.mxu0
        %v6357 = vadd.f32 %v6269, %v6311
        %v6358 = vadd.f32 %v6270, %v6313
        %v6359 = vadd.f32 %v6271, %v6352
        %v6360 = vld [vmem:[%s4651] sm:$0xf]
        %6361 = vrot.lane.b32.xlu0 %v2396, 92
        %v6362 = vpop.permute.xlu0 %6361
        %6363 = vrot.lane.b32.xlu0 %v2393, 92
        %v6364 = vpop.permute.xlu0 %6363
        %6365 = vrot.lane.b32.xlu0 %v2398, 92
        %v6366 = vpop.permute.xlu0 %6365
        %v6367 = vsel %vm2903, %v6362, %v6364
        %v6368 = vsel %vm2903, %v6364, %v6366
        %v6370 = vsel %vm577, %v6360, 0
        %v6373 = vsel %vm581, %v6367, 0
        %v6376 = vsel %vm581, %v6368, 0
        %v6379 = vsel %vm581, %v6366, 0
        %6381 = vmatprep.subr.bf16.mxu0 %v6376
        %6382 = vmatpush1.bf16.msra.mxu0 %v6373
        %6383 = vmatprep.subr.bf16.mxu0 0
        %6384 = vmatpush1.bf16.msra.mxu0 0
        %6385 = vmatprep.subr.bf16.mxu0 0
        %6386 = vmatpush1.bf16.msra.mxu0 0
        %6387 = vmatprep.subr.bf16.mxu0 0
        %6388 = vmatpush1.bf16.msra.mxu0 0
        %6389 = vmatprep.subr.bf16.mxu0 0
        %6390 = vmatpush1.bf16.msra.mxu0 0
        %6391 = vmatprep.subr.bf16.mxu0 0
        %6392 = vmatpush1.bf16.msra.mxu0 0
        %6393 = vmatprep.subr.bf16.mxu0 0
        %6394 = vmatpush1.bf16.msra.mxu0 0
        %6395 = vmatprep.subr.bf16.mxu0 0
        %6396 = vmatpush1.bf16.msra.mxu0 0
        %6397 = vmatprep.subr.bf16.mxu0 0
        %6398 = vmatpush1.bf16.msra.mxu0 0
        %6399 = vmatprep.subr.bf16.mxu0 0
        %6400 = vmatpush1.bf16.msra.mxu0 0
        %6401 = vmatprep.subr.bf16.mxu0 0
        %6402 = vmatpush1.bf16.msra.mxu0 0
        %6403 = vmatprep.subr.bf16.mxu0 0
        %6404 = vmatpush1.bf16.msra.mxu0 0
        %6405 = vmatprep.subr.bf16.mxu0 0
        %6406 = vmatpush1.bf16.msra.mxu0 0
        %6407 = vmatprep.subr.bf16.mxu0 0
        %6408 = vmatpush1.bf16.msra.mxu0 0
        %6409 = vmatprep.subr.bf16.mxu0 0
        %6410 = vmatpush1.bf16.msra.mxu0 0
        %6411 = vmatprep.subr.bf16.mxu0 0
        %6412 = vmatpush1.bf16.msra.mxu0 0
        %6413 = vmatprep.mubr.bf16.mxu0 0
        %6414 = vmatmul.mubr.bf16.gmra.mrb[0].mxu0 %v6370
        %v6415 = vpop.f32.mrb[0].mxu0
        %v6416 = vadd.f32 0.0, %v6415
        %v6417 = vpop.f32.mrb[0].mxu0
        %v6418 = vadd.f32 0.0, %v6417
        %v6419 = vpop.f32.mrb[0].mxu0
        %v6420 = vpop.f32.mrb[0].mxu0
        %6421 = vdwg.mxu0
        %6422 = vmatprep.subr.bf16.mxu0 0
        %6423 = vmatpush1.bf16.msra.mxu0 %v6379
        %6424 = vmatprep.subr.bf16.mxu0 0
        %6425 = vmatpush1.bf16.msra.mxu0 0
        %6426 = vmatprep.subr.bf16.mxu0 0
        %6427 = vmatpush1.bf16.msra.mxu0 0
        %6428 = vmatprep.subr.bf16.mxu0 0
        %6429 = vmatpush1.bf16.msra.mxu0 0
        %6430 = vmatprep.subr.bf16.mxu0 0
        %6431 = vmatpush1.bf16.msra.mxu0 0
        %6432 = vmatprep.subr.bf16.mxu0 0
        %6433 = vmatpush1.bf16.msra.mxu0 0
        %6434 = vmatprep.subr.bf16.mxu0 0
        %6435 = vmatpush1.bf16.msra.mxu0 0
        %6436 = vmatprep.subr.bf16.mxu0 0
        %6437 = vmatpush1.bf16.msra.mxu0 0
        %6438 = vmatprep.subr.bf16.mxu0 0
        %6439 = vmatpush1.bf16.msra.mxu0 0
        %6440 = vmatprep.subr.bf16.mxu0 0
        %6441 = vmatpush1.bf16.msra.mxu0 0
        %6442 = vmatprep.subr.bf16.mxu0 0
        %6443 = vmatpush1.bf16.msra.mxu0 0
        %6444 = vmatprep.subr.bf16.mxu0 0
        %6445 = vmatpush1.bf16.msra.mxu0 0
        %6446 = vmatprep.subr.bf16.mxu0 0
        %6447 = vmatpush1.bf16.msra.mxu0 0
        %6448 = vmatprep.subr.bf16.mxu0 0
        %6449 = vmatpush1.bf16.msra.mxu0 0
        %6450 = vmatprep.subr.bf16.mxu0 0
        %6451 = vmatpush1.bf16.msra.mxu0 0
        %6452 = vmatprep.subr.bf16.mxu0 0
        %6453 = vmatpush1.bf16.msra.mxu0 0
        %6454 = vmatprep.mubr.bf16.mxu0 0
        %6455 = vmatmul.mubr.bf16.gmra.mrb[0].mxu0 %v6370
        %v6456 = vpop.f32.mrb[0].mxu0
        %v6457 = vadd.f32 0.0, %v6456
        %v6458 = vpop.f32.mrb[0].mxu0
        %v6459 = vpop.f32.mrb[0].mxu0
        %v6460 = vpop.f32.mrb[0].mxu0
        %6461 = vdwg.mxu0
        %v6462 = vadd.f32 %v6357, %v6416
        %v6463 = vadd.f32 %v6358, %v6418
        %v6464 = vadd.f32 %v6359, %v6457
        %v6465 = vld [vmem:[%s4757] sm:$0xf]
        %6466 = vrot.lane.b32.xlu0 %v1565, 91
        %v6467 = vpop.permute.xlu0 %6466
        %6468 = vrot.lane.b32.xlu0 %v1561, 91
        %v6469 = vpop.permute.xlu0 %6468
        %6470 = vrot.lane.b32.xlu0 %v1568, 91
        %v6471 = vpop.permute.xlu0 %6470
        %v6472 = vsel %vm3005, %v6467, %v6469
        %v6473 = vsel %vm3005, %v6469, %v6471
        %v6475 = vsel %vm577, %v6465, 0
        %v6478 = vsel %vm581, %v6472, 0
        %v6481 = vsel %vm581, %v6473, 0
        %v6484 = vsel %vm581, %v6471, 0
        %6486 = vmatprep.subr.bf16.mxu0 %v6481
        %6487 = vmatpush1.bf16.msra.mxu0 %v6478
        %6488 = vmatprep.subr.bf16.mxu0 0
        %6489 = vmatpush1.bf16.msra.mxu0 0
        %6490 = vmatprep.subr.bf16.mxu0 0
        %6491 = vmatpush1.bf16.msra.mxu0 0
        %6492 = vmatprep.subr.bf16.mxu0 0
        %6493 = vmatpush1.bf16.msra.mxu0 0
        %6494 = vmatprep.subr.bf16.mxu0 0
        %6495 = vmatpush1.bf16.msra.mxu0 0
        %6496 = vmatprep.subr.bf16.mxu0 0
        %6497 = vmatpush1.bf16.msra.mxu0 0
        %6498 = vmatprep.subr.bf16.mxu0 0
        %6499 = vmatpush1.bf16.msra.mxu0 0
        %6500 = vmatprep.subr.bf16.mxu0 0
        %6501 = vmatpush1.bf16.msra.mxu0 0
        %6502 = vmatprep.subr.bf16.mxu0 0
        %6503 = vmatpush1.bf16.msra.mxu0 0
        %6504 = vmatprep.subr.bf16.mxu0 0
        %6505 = vmatpush1.bf16.msra.mxu0 0
        %6506 = vmatprep.subr.bf16.mxu0 0
        %6507 = vmatpush1.bf16.msra.mxu0 0
        %6508 = vmatprep.subr.bf16.mxu0 0
        %6509 = vmatpush1.bf16.msra.mxu0 0
        %6510 = vmatprep.subr.bf16.mxu0 0
        %6511 = vmatpush1.bf16.msra.mxu0 0
        %6512 = vmatprep.subr.bf16.mxu0 0
        %6513 = vmatpush1.bf16.msra.mxu0 0
        %6514 = vmatprep.subr.bf16.mxu0 0
        %6515 = vmatpush1.bf16.msra.mxu0 0
        %6516 = vmatprep.subr.bf16.mxu0 0
        %6517 = vmatpush1.bf16.msra.mxu0 0
        %6518 = vmatprep.mubr.bf16.mxu0 0
        %6519 = vmatmul.mubr.bf16.gmra.mrb[0].mxu0 %v6475
        %v6520 = vpop.f32.mrb[0].mxu0
        %v6521 = vadd.f32 0.0, %v6520
        %v6522 = vpop.f32.mrb[0].mxu0
        %v6523 = vadd.f32 0.0, %v6522
        %v6524 = vpop.f32.mrb[0].mxu0
        %v6525 = vpop.f32.mrb[0].mxu0
        %6526 = vdwg.mxu0
        %6527 = vmatprep.subr.bf16.mxu0 0
        %6528 = vmatpush1.bf16.msra.mxu0 %v6484
        %6529 = vmatprep.subr.bf16.mxu0 0
        %6530 = vmatpush1.bf16.msra.mxu0 0
        %6531 = vmatprep.subr.bf16.mxu0 0
        %6532 = vmatpush1.bf16.msra.mxu0 0
        %6533 = vmatprep.subr.bf16.mxu0 0
        %6534 = vmatpush1.bf16.msra.mxu0 0
        %6535 = vmatprep.subr.bf16.mxu0 0
        %6536 = vmatpush1.bf16.msra.mxu0 0
        %6537 = vmatprep.subr.bf16.mxu0 0
        %6538 = vmatpush1.bf16.msra.mxu0 0
        %6539 = vmatprep.subr.bf16.mxu0 0
        %6540 = vmatpush1.bf16.msra.mxu0 0
        %6541 = vmatprep.subr.bf16.mxu0 0
        %6542 = vmatpush1.bf16.msra.mxu0 0
        %6543 = vmatprep.subr.bf16.mxu0 0
        %6544 = vmatpush1.bf16.msra.mxu0 0
        %6545 = vmatprep.subr.bf16.mxu0 0
        %6546 = vmatpush1.bf16.msra.mxu0 0
        %6547 = vmatprep.subr.bf16.mxu0 0
        %6548 = vmatpush1.bf16.msra.mxu0 0
        %6549 = vmatprep.subr.bf16.mxu0 0
        %6550 = vmatpush1.bf16.msra.mxu0 0
        %6551 = vmatprep.subr.bf16.mxu0 0
        %6552 = vmatpush1.bf16.msra.mxu0 0
        %6553 = vmatprep.subr.bf16.mxu0 0
        %6554 = vmatpush1.bf16.msra.mxu0 0
        %6555 = vmatprep.subr.bf16.mxu0 0
        %6556 = vmatpush1.bf16.msra.mxu0 0
        %6557 = vmatprep.subr.bf16.mxu0 0
        %6558 = vmatpush1.bf16.msra.mxu0 0
        %6559 = vmatprep.mubr.bf16.mxu0 0
        %6560 = vmatmul.mubr.bf16.gmra.mrb[0].mxu0 %v6475
        %v6561 = vpop.f32.mrb[0].mxu0
        %v6562 = vadd.f32 0.0, %v6561
        %v6563 = vpop.f32.mrb[0].mxu0
        %v6564 = vpop.f32.mrb[0].mxu0
        %v6565 = vpop.f32.mrb[0].mxu0
        %6566 = vdwg.mxu0
        %v6567 = vadd.f32 %v6462, %v6521
        %v6568 = vadd.f32 %v6463, %v6523
        %v6569 = vadd.f32 %v6464, %v6562
        %v6570 = vld [vmem:[%s4863] sm:$0xf]
        %6571 = vrot.lane.b32.xlu0 %v2396, 91
        %v6572 = vpop.permute.xlu0 %6571
        %6573 = vrot.lane.b32.xlu0 %v2393, 91
        %v6574 = vpop.permute.xlu0 %6573
        %6575 = vrot.lane.b32.xlu0 %v2398, 91
        %v6576 = vpop.permute.xlu0 %6575
        %v6577 = vsel %vm3005, %v6572, %v6574
        %v6578 = vsel %vm3005, %v6574, %v6576
        %v6580 = vsel %vm577, %v6570, 0
        %v6583 = vsel %vm581, %v6577, 0
        %v6586 = vsel %vm581, %v6578, 0
        %v6589 = vsel %vm581, %v6576, 0
        %6591 = vmatprep.subr.bf16.mxu0 %v6586
        %6592 = vmatpush1.bf16.msra.mxu0 %v6583
        %6593 = vmatprep.subr.bf16.mxu0 0
        %6594 = vmatpush1.bf16.msra.mxu0 0
        %6595 = vmatprep.subr.bf16.mxu0 0
        %6596 = vmatpush1.bf16.msra.mxu0 0
        %6597 = vmatprep.subr.bf16.mxu0 0
        %6598 = vmatpush1.bf16.msra.mxu0 0
        %6599 = vmatprep.subr.bf16.mxu0 0
        %6600 = vmatpush1.bf16.msra.mxu0 0
        %6601 = vmatprep.subr.bf16.mxu0 0
        %6602 = vmatpush1.bf16.msra.mxu0 0
        %6603 = vmatprep.subr.bf16.mxu0 0
        %6604 = vmatpush1.bf16.msra.mxu0 0
        %6605 = vmatprep.subr.bf16.mxu0 0
        %6606 = vmatpush1.bf16.msra.mxu0 0
        %6607 = vmatprep.subr.bf16.mxu0 0
        %6608 = vmatpush1.bf16.msra.mxu0 0
        %6609 = vmatprep.subr.bf16.mxu0 0
        %6610 = vmatpush1.bf16.msra.mxu0 0
        %6611 = vmatprep.subr.bf16.mxu0 0
        %6612 = vmatpush1.bf16.msra.mxu0 0
        %6613 = vmatprep.subr.bf16.mxu0 0
        %6614 = vmatpush1.bf16.msra.mxu0 0
        %6615 = vmatprep.subr.bf16.mxu0 0
        %6616 = vmatpush1.bf16.msra.mxu0 0
        %6617 = vmatprep.subr.bf16.mxu0 0
        %6618 = vmatpush1.bf16.msra.mxu0 0
        %6619 = vmatprep.subr.bf16.mxu0 0
        %6620 = vmatpush1.bf16.msra.mxu0 0
        %6621 = vmatprep.subr.bf16.mxu0 0
        %6622 = vmatpush1.bf16.msra.mxu0 0
        %6623 = vmatprep.mubr.bf16.mxu0 0
        %6624 = vmatmul.mubr.bf16.gmra.mrb[0].mxu0 %v6580
        %v6625 = vpop.f32.mrb[0].mxu0
        %v6626 = vadd.f32 0.0, %v6625
        %v6627 = vpop.f32.mrb[0].mxu0
        %v6628 = vadd.f32 0.0, %v6627
        %v6629 = vpop.f32.mrb[0].mxu0
        %v6630 = vpop.f32.mrb[0].mxu0
        %6631 = vdwg.mxu0
        %6632 = vmatprep.subr.bf16.mxu0 0
        %6633 = vmatpush1.bf16.msra.mxu0 %v6589
        %6634 = vmatprep.subr.bf16.mxu0 0
        %6635 = vmatpush1.bf16.msra.mxu0 0
        %6636 = vmatprep.subr.bf16.mxu0 0
        %6637 = vmatpush1.bf16.msra.mxu0 0
        %6638 = vmatprep.subr.bf16.mxu0 0
        %6639 = vmatpush1.bf16.msra.mxu0 0
        %6640 = vmatprep.subr.bf16.mxu0 0
        %6641 = vmatpush1.bf16.msra.mxu0 0
        %6642 = vmatprep.subr.bf16.mxu0 0
        %6643 = vmatpush1.bf16.msra.mxu0 0
        %6644 = vmatprep.subr.bf16.mxu0 0
        %6645 = vmatpush1.bf16.msra.mxu0 0
        %6646 = vmatprep.subr.bf16.mxu0 0
        %6647 = vmatpush1.bf16.msra.mxu0 0
        %6648 = vmatprep.subr.bf16.mxu0 0
        %6649 = vmatpush1.bf16.msra.mxu0 0
        %6650 = vmatprep.subr.bf16.mxu0 0
        %6651 = vmatpush1.bf16.msra.mxu0 0
        %6652 = vmatprep.subr.bf16.mxu0 0
        %6653 = vmatpush1.bf16.msra.mxu0 0
        %6654 = vmatprep.subr.bf16.mxu0 0
        %6655 = vmatpush1.bf16.msra.mxu0 0
        %6656 = vmatprep.subr.bf16.mxu0 0
        %6657 = vmatpush1.bf16.msra.mxu0 0
        %6658 = vmatprep.subr.bf16.mxu0 0
        %6659 = vmatpush1.bf16.msra.mxu0 0
        %6660 = vmatprep.subr.bf16.mxu0 0
        %6661 = vmatpush1.bf16.msra.mxu0 0
        %6662 = vmatprep.subr.bf16.mxu0 0
        %6663 = vmatpush1.bf16.msra.mxu0 0
        %6664 = vmatprep.mubr.bf16.mxu0 0
        %6665 = vmatmul.mubr.bf16.gmra.mrb[0].mxu0 %v6580
        %v6666 = vpop.f32.mrb[0].mxu0
        %v6667 = vadd.f32 0.0, %v6666
        %v6668 = vpop.f32.mrb[0].mxu0
        %v6669 = vpop.f32.mrb[0].mxu0
        %v6670 = vpop.f32.mrb[0].mxu0
        %6671 = vdwg.mxu0
        %v6672 = vadd.f32 %v6567, %v6626
        %v6673 = vadd.f32 %v6568, %v6628
        %v6674 = vadd.f32 %v6569, %v6667
        %v6675 = vld [vmem:[#allocation10] sm:$0xff]
        %6677 = vset.pattern.permute.xlu0 0
        %6678 = vperm.xlu0 %6677, %v6675
        %v6679 = vpop.permute.xlu0 %6678
        %v6681 = vadd.f32 %v6672, %v6679
        %v6682 = vadd.f32 %v6673, %v6679
        %v6683 = vadd.f32 %v6674, %v6679
        %v6684 = vmax.f32 %v6681, 0.0
        %v6685 = vmax.f32 %v6682, 0.0
        %v6686 = vmax.f32 %v6683, 0.0
        %s6687 = scalar_lea.vmem %s373, 48 [#allocation14]
        %6688 = vst [vmem:[%s6687] sm:$0xff] %v6684
        %6689 = vst [vmem:[%s6687 + $0x8] sm:$0xff] %v6685
        %6690 = vst.msk [vmem:[%s6687 + $0x10] sm:$0xff] %vm4983, %v6686
        %v6691 = vld [vmem:[#allocation8] sm:$0xf]
        %v6692 = vld [vmem:[%s4025] sm:$0xf]
        %v6694 = vsel %vm577, %v6692, 0
        %6696 = vmatprep.subr.bf16.mxu0 %v4562
        %6697 = vmatpush1.bf16.msra.mxu0 %v4559
        %6698 = vmatprep.subr.bf16.mxu0 0
        %6699 = vmatpush1.bf16.msra.mxu0 0
        %6700 = vmatprep.subr.bf16.mxu0 0
        %6701 = vmatpush1.bf16.msra.mxu0 0
        %6702 = vmatprep.subr.bf16.mxu0 0
        %6703 = vmatpush1.bf16.msra.mxu0 0
        %6704 = vmatprep.subr.bf16.mxu0 0
        %6705 = vmatpush1.bf16.msra.mxu0 0
        %6706 = vmatprep.subr.bf16.mxu0 0
        %6707 = vmatpush1.bf16.msra.mxu0 0
        %6708 = vmatprep.subr.bf16.mxu0 0
        %6709 = vmatpush1.bf16.msra.mxu0 0
        %6710 = vmatprep.subr.bf16.mxu0 0
        %6711 = vmatpush1.bf16.msra.mxu0 0
        %6712 = vmatprep.subr.bf16.mxu0 0
        %6713 = vmatpush1.bf16.msra.mxu0 0
        %6714 = vmatprep.subr.bf16.mxu0 0
        %6715 = vmatpush1.bf16.msra.mxu0 0
        %6716 = vmatprep.subr.bf16.mxu0 0
        %6717 = vmatpush1.bf16.msra.mxu0 0
        %6718 = vmatprep.subr.bf16.mxu0 0
        %6719 = vmatpush1.bf16.msra.mxu0 0
        %6720 = vmatprep.subr.bf16.mxu0 0
        %6721 = vmatpush1.bf16.msra.mxu0 0
        %6722 = vmatprep.subr.bf16.mxu0 0
        %6723 = vmatpush1.bf16.msra.mxu0 0
        %6724 = vmatprep.subr.bf16.mxu0 0
        %6725 = vmatpush1.bf16.msra.mxu0 0
        %6726 = vmatprep.subr.bf16.mxu0 0
        %6727 = vmatpush1.bf16.msra.mxu0 0
        %6728 = vmatprep.mubr.bf16.mxu0 0
        %6729 = vmatmul.mubr.bf16.gmra.mrb[0].mxu0 %v6694
        %v6730 = vpop.f32.mrb[0].mxu0
        %v6731 = vadd.f32 0.0, %v6730
        %v6732 = vpop.f32.mrb[0].mxu0
        %v6733 = vadd.f32 0.0, %v6732
        %v6734 = vpop.f32.mrb[0].mxu0
        %v6735 = vpop.f32.mrb[0].mxu0
        %6736 = vdwg.mxu0
        %6737 = vmatprep.subr.bf16.mxu0 0
        %6738 = vmatpush1.bf16.msra.mxu0 %v4565
        %6739 = vmatprep.subr.bf16.mxu0 0
        %6740 = vmatpush1.bf16.msra.mxu0 0
        %6741 = vmatprep.subr.bf16.mxu0 0
        %6742 = vmatpush1.bf16.msra.mxu0 0
        %6743 = vmatprep.subr.bf16.mxu0 0
        %6744 = vmatpush1.bf16.msra.mxu0 0
        %6745 = vmatprep.subr.bf16.mxu0 0
        %6746 = vmatpush1.bf16.msra.mxu0 0
        %6747 = vmatprep.subr.bf16.mxu0 0
        %6748 = vmatpush1.bf16.msra.mxu0 0
        %6749 = vmatprep.subr.bf16.mxu0 0
        %6750 = vmatpush1.bf16.msra.mxu0 0
        %6751 = vmatprep.subr.bf16.mxu0 0
        %6752 = vmatpush1.bf16.msra.mxu0 0
        %6753 = vmatprep.subr.bf16.mxu0 0
        %6754 = vmatpush1.bf16.msra.mxu0 0
        %6755 = vmatprep.subr.bf16.mxu0 0
        %6756 = vmatpush1.bf16.msra.mxu0 0
        %6757 = vmatprep.subr.bf16.mxu0 0
        %6758 = vmatpush1.bf16.msra.mxu0 0
        %6759 = vmatprep.subr.bf16.mxu0 0
        %6760 = vmatpush1.bf16.msra.mxu0 0
        %6761 = vmatprep.subr.bf16.mxu0 0
        %6762 = vmatpush1.bf16.msra.mxu0 0
        %6763 = vmatprep.subr.bf16.mxu0 0
        %6764 = vmatpush1.bf16.msra.mxu0 0
        %6765 = vmatprep.subr.bf16.mxu0 0
        %6766 = vmatpush1.bf16.msra.mxu0 0
        %6767 = vmatprep.subr.bf16.mxu0 0
        %6768 = vmatpush1.bf16.msra.mxu0 0
        %6769 = vmatprep.mubr.bf16.mxu0 0
        %6770 = vmatmul.mubr.bf16.gmra.mrb[0].mxu0 %v6694
        %v6771 = vpop.f32.mrb[0].mxu0
        %v6772 = vadd.f32 0.0, %v6771
        %v6773 = vpop.f32.mrb[0].mxu0
        %v6774 = vpop.f32.mrb[0].mxu0
        %v6775 = vpop.f32.mrb[0].mxu0
        %6776 = vdwg.mxu0
        %v6778 = vsel %vm577, %v6691, 0
        %6780 = vmatprep.subr.bf16.mxu0 %v4456
        %6781 = vmatpush1.bf16.msra.mxu0 %v4453
        %6782 = vmatprep.subr.bf16.mxu0 0
        %6783 = vmatpush1.bf16.msra.mxu0 0
        %6784 = vmatprep.subr.bf16.mxu0 0
        %6785 = vmatpush1.bf16.msra.mxu0 0
        %6786 = vmatprep.subr.bf16.mxu0 0
        %6787 = vmatpush1.bf16.msra.mxu0 0
        %6788 = vmatprep.subr.bf16.mxu0 0
        %6789 = vmatpush1.bf16.msra.mxu0 0
        %6790 = vmatprep.subr.bf16.mxu0 0
        %6791 = vmatpush1.bf16.msra.mxu0 0
        %6792 = vmatprep.subr.bf16.mxu0 0
        %6793 = vmatpush1.bf16.msra.mxu0 0
        %6794 = vmatprep.subr.bf16.mxu0 0
        %6795 = vmatpush1.bf16.msra.mxu0 0
        %6796 = vmatprep.subr.bf16.mxu0 0
        %6797 = vmatpush1.bf16.msra.mxu0 0
        %6798 = vmatprep.subr.bf16.mxu0 0
        %6799 = vmatpush1.bf16.msra.mxu0 0
        %6800 = vmatprep.subr.bf16.mxu0 0
        %6801 = vmatpush1.bf16.msra.mxu0 0
        %6802 = vmatprep.subr.bf16.mxu0 0
        %6803 = vmatpush1.bf16.msra.mxu0 0
        %6804 = vmatprep.subr.bf16.mxu0 0
        %6805 = vmatpush1.bf16.msra.mxu0 0
        %6806 = vmatprep.subr.bf16.mxu0 0
        %6807 = vmatpush1.bf16.msra.mxu0 0
        %6808 = vmatprep.subr.bf16.mxu0 0
        %6809 = vmatpush1.bf16.msra.mxu0 0
        %6810 = vmatprep.subr.bf16.mxu0 0
        %6811 = vmatpush1.bf16.msra.mxu0 0
        %6812 = vmatprep.mubr.bf16.mxu0 0
        %6813 = vmatmul.mubr.bf16.gmra.mrb[0].mxu0 %v6778
        %v6814 = vpop.f32.mrb[0].mxu0
        %v6815 = vadd.f32 %v6731, %v6814
        %v6816 = vpop.f32.mrb[0].mxu0
        %v6817 = vadd.f32 %v6733, %v6816
        %v6818 = vpop.f32.mrb[0].mxu0
        %v6819 = vpop.f32.mrb[0].mxu0
        %6820 = vdwg.mxu0
        %6821 = vmatprep.subr.bf16.mxu0 0
        %6822 = vmatpush1.bf16.msra.mxu0 %v4459
        %6823 = vmatprep.subr.bf16.mxu0 0
        %6824 = vmatpush1.bf16.msra.mxu0 0
        %6825 = vmatprep.subr.bf16.mxu0 0
        %6826 = vmatpush1.bf16.msra.mxu0 0
        %6827 = vmatprep.subr.bf16.mxu0 0
        %6828 = vmatpush1.bf16.msra.mxu0 0
        %6829 = vmatprep.subr.bf16.mxu0 0
        %6830 = vmatpush1.bf16.msra.mxu0 0
        %6831 = vmatprep.subr.bf16.mxu0 0
        %6832 = vmatpush1.bf16.msra.mxu0 0
        %6833 = vmatprep.subr.bf16.mxu0 0
        %6834 = vmatpush1.bf16.msra.mxu0 0
        %6835 = vmatprep.subr.bf16.mxu0 0
        %6836 = vmatpush1.bf16.msra.mxu0 0
        %6837 = vmatprep.subr.bf16.mxu0 0
        %6838 = vmatpush1.bf16.msra.mxu0 0
        %6839 = vmatprep.subr.bf16.mxu0 0
        %6840 = vmatpush1.bf16.msra.mxu0 0
        %6841 = vmatprep.subr.bf16.mxu0 0
        %6842 = vmatpush1.bf16.msra.mxu0 0
        %6843 = vmatprep.subr.bf16.mxu0 0
        %6844 = vmatpush1.bf16.msra.mxu0 0
        %6845 = vmatprep.subr.bf16.mxu0 0
        %6846 = vmatpush1.bf16.msra.mxu0 0
        %6847 = vmatprep.subr.bf16.mxu0 0
        %6848 = vmatpush1.bf16.msra.mxu0 0
        %6849 = vmatprep.subr.bf16.mxu0 0
        %6850 = vmatpush1.bf16.msra.mxu0 0
        %6851 = vmatprep.subr.bf16.mxu0 0
        %6852 = vmatpush1.bf16.msra.mxu0 0
        %6853 = vmatprep.mubr.bf16.mxu0 0
        %6854 = vmatmul.mubr.bf16.gmra.mrb[0].mxu0 %v6778
        %v6855 = vpop.f32.mrb[0].mxu0
        %v6856 = vadd.f32 %v6772, %v6855
        %v6857 = vpop.f32.mrb[0].mxu0
        %v6858 = vpop.f32.mrb[0].mxu0
        %v6859 = vpop.f32.mrb[0].mxu0
        %6860 = vdwg.mxu0
        %v6861 = vld [vmem:[%s4221] sm:$0xf]
        %v6863 = vsel %vm577, %v6861, 0
        %6865 = vmatprep.subr.bf16.mxu0 %v5452
        %6866 = vmatpush1.bf16.msra.mxu0 %v5449
        %6867 = vmatprep.subr.bf16.mxu0 0
        %6868 = vmatpush1.bf16.msra.mxu0 0
        %6869 = vmatprep.subr.bf16.mxu0 0
        %6870 = vmatpush1.bf16.msra.mxu0 0
        %6871 = vmatprep.subr.bf16.mxu0 0
        %6872 = vmatpush1.bf16.msra.mxu0 0
        %6873 = vmatprep.subr.bf16.mxu0 0
        %6874 = vmatpush1.bf16.msra.mxu0 0
        %6875 = vmatprep.subr.bf16.mxu0 0
        %6876 = vmatpush1.bf16.msra.mxu0 0
        %6877 = vmatprep.subr.bf16.mxu0 0
        %6878 = vmatpush1.bf16.msra.mxu0 0
        %6879 = vmatprep.subr.bf16.mxu0 0
        %6880 = vmatpush1.bf16.msra.mxu0 0
        %6881 = vmatprep.subr.bf16.mxu0 0
        %6882 = vmatpush1.bf16.msra.mxu0 0
        %6883 = vmatprep.subr.bf16.mxu0 0
        %6884 = vmatpush1.bf16.msra.mxu0 0
        %6885 = vmatprep.subr.bf16.mxu0 0
        %6886 = vmatpush1.bf16.msra.mxu0 0
        %6887 = vmatprep.subr.bf16.mxu0 0
        %6888 = vmatpush1.bf16.msra.mxu0 0
        %6889 = vmatprep.subr.bf16.mxu0 0
        %6890 = vmatpush1.bf16.msra.mxu0 0
        %6891 = vmatprep.subr.bf16.mxu0 0
        %6892 = vmatpush1.bf16.msra.mxu0 0
        %6893 = vmatprep.subr.bf16.mxu0 0
        %6894 = vmatpush1.bf16.msra.mxu0 0
        %6895 = vmatprep.subr.bf16.mxu0 0
        %6896 = vmatpush1.bf16.msra.mxu0 0
        %6897 = vmatprep.mubr.bf16.mxu0 0
        %6898 = vmatmul.mubr.bf16.gmra.mrb[0].mxu0 %v6863
        %v6899 = vpop.f32.mrb[0].mxu0
        %v6900 = vadd.f32 0.0, %v6899
        %v6901 = vpop.f32.mrb[0].mxu0
        %v6902 = vadd.f32 0.0, %v6901
        %v6903 = vpop.f32.mrb[0].mxu0
        %v6904 = vpop.f32.mrb[0].mxu0
        %6905 = vdwg.mxu0
        %6906 = vmatprep.subr.bf16.mxu0 0
        %6907 = vmatpush1.bf16.msra.mxu0 %v5455
        %6908 = vmatprep.subr.bf16.mxu0 0
        %6909 = vmatpush1.bf16.msra.mxu0 0
        %6910 = vmatprep.subr.bf16.mxu0 0
        %6911 = vmatpush1.bf16.msra.mxu0 0
        %6912 = vmatprep.subr.bf16.mxu0 0
        %6913 = vmatpush1.bf16.msra.mxu0 0
        %6914 = vmatprep.subr.bf16.mxu0 0
        %6915 = vmatpush1.bf16.msra.mxu0 0
        %6916 = vmatprep.subr.bf16.mxu0 0
        %6917 = vmatpush1.bf16.msra.mxu0 0
        %6918 = vmatprep.subr.bf16.mxu0 0
        %6919 = vmatpush1.bf16.msra.mxu0 0
        %6920 = vmatprep.subr.bf16.mxu0 0
        %6921 = vmatpush1.bf16.msra.mxu0 0
        %6922 = vmatprep.subr.bf16.mxu0 0
        %6923 = vmatpush1.bf16.msra.mxu0 0
        %6924 = vmatprep.subr.bf16.mxu0 0
        %6925 = vmatpush1.bf16.msra.mxu0 0
        %6926 = vmatprep.subr.bf16.mxu0 0
        %6927 = vmatpush1.bf16.msra.mxu0 0
        %6928 = vmatprep.subr.bf16.mxu0 0
        %6929 = vmatpush1.bf16.msra.mxu0 0
        %6930 = vmatprep.subr.bf16.mxu0 0
        %6931 = vmatpush1.bf16.msra.mxu0 0
        %6932 = vmatprep.subr.bf16.mxu0 0
        %6933 = vmatpush1.bf16.msra.mxu0 0
        %6934 = vmatprep.subr.bf16.mxu0 0
        %6935 = vmatpush1.bf16.msra.mxu0 0
        %6936 = vmatprep.subr.bf16.mxu0 0
        %6937 = vmatpush1.bf16.msra.mxu0 0
        %6938 = vmatprep.mubr.bf16.mxu0 0
        %6939 = vmatmul.mubr.bf16.gmra.mrb[0].mxu0 %v6863
        %v6940 = vpop.f32.mrb[0].mxu0
        %v6941 = vadd.f32 0.0, %v6940
        %v6942 = vpop.f32.mrb[0].mxu0
        %v6943 = vpop.f32.mrb[0].mxu0
        %v6944 = vpop.f32.mrb[0].mxu0
        %6945 = vdwg.mxu0
        %v6946 = vadd.f32 %v6815, %v6900
        %v6947 = vadd.f32 %v6817, %v6902
        %v6948 = vadd.f32 %v6856, %v6941
        %v6949 = vld [vmem:[%s4329] sm:$0xf]
        %v6951 = vsel %vm577, %v6949, 0
        %6953 = vmatprep.subr.bf16.mxu0 %v4774
        %6954 = vmatpush1.bf16.msra.mxu0 %v4771
        %6955 = vmatprep.subr.bf16.mxu0 0
        %6956 = vmatpush1.bf16.msra.mxu0 0
        %6957 = vmatprep.subr.bf16.mxu0 0
        %6958 = vmatpush1.bf16.msra.mxu0 0
        %6959 = vmatprep.subr.bf16.mxu0 0
        %6960 = vmatpush1.bf16.msra.mxu0 0
        %6961 = vmatprep.subr.bf16.mxu0 0
        %6962 = vmatpush1.bf16.msra.mxu0 0
        %6963 = vmatprep.subr.bf16.mxu0 0
        %6964 = vmatpush1.bf16.msra.mxu0 0
        %6965 = vmatprep.subr.bf16.mxu0 0
        %6966 = vmatpush1.bf16.msra.mxu0 0
        %6967 = vmatprep.subr.bf16.mxu0 0
        %6968 = vmatpush1.bf16.msra.mxu0 0
        %6969 = vmatprep.subr.bf16.mxu0 0
        %6970 = vmatpush1.bf16.msra.mxu0 0
        %6971 = vmatprep.subr.bf16.mxu0 0
        %6972 = vmatpush1.bf16.msra.mxu0 0
        %6973 = vmatprep.subr.bf16.mxu0 0
        %6974 = vmatpush1.bf16.msra.mxu0 0
        %6975 = vmatprep.subr.bf16.mxu0 0
        %6976 = vmatpush1.bf16.msra.mxu0 0
        %6977 = vmatprep.subr.bf16.mxu0 0
        %6978 = vmatpush1.bf16.msra.mxu0 0
        %6979 = vmatprep.subr.bf16.mxu0 0
        %6980 = vmatpush1.bf16.msra.mxu0 0
        %6981 = vmatprep.subr.bf16.mxu0 0
        %6982 = vmatpush1.bf16.msra.mxu0 0
        %6983 = vmatprep.subr.bf16.mxu0 0
        %6984 = vmatpush1.bf16.msra.mxu0 0
        %6985 = vmatprep.mubr.bf16.mxu0 0
        %6986 = vmatmul.mubr.bf16.gmra.mrb[0].mxu0 %v6951
        %v6987 = vpop.f32.mrb[0].mxu0
        %v6988 = vadd.f32 0.0, %v6987
        %v6989 = vpop.f32.mrb[0].mxu0
        %v6990 = vadd.f32 0.0, %v6989
        %v6991 = vpop.f32.mrb[0].mxu0
        %v6992 = vpop.f32.mrb[0].mxu0
        %6993 = vdwg.mxu0
        %6994 = vmatprep.subr.bf16.mxu0 0
        %6995 = vmatpush1.bf16.msra.mxu0 %v4777
        %6996 = vmatprep.subr.bf16.mxu0 0
        %6997 = vmatpush1.bf16.msra.mxu0 0
        %6998 = vmatprep.subr.bf16.mxu0 0
        %6999 = vmatpush1.bf16.msra.mxu0 0
        %7000 = vmatprep.subr.bf16.mxu0 0
        %7001 = vmatpush1.bf16.msra.mxu0 0
        %7002 = vmatprep.subr.bf16.mxu0 0
        %7003 = vmatpush1.bf16.msra.mxu0 0
        %7004 = vmatprep.subr.bf16.mxu0 0
        %7005 = vmatpush1.bf16.msra.mxu0 0
        %7006 = vmatprep.subr.bf16.mxu0 0
        %7007 = vmatpush1.bf16.msra.mxu0 0
        %7008 = vmatprep.subr.bf16.mxu0 0
        %7009 = vmatpush1.bf16.msra.mxu0 0
        %7010 = vmatprep.subr.bf16.mxu0 0
        %7011 = vmatpush1.bf16.msra.mxu0 0
        %7012 = vmatprep.subr.bf16.mxu0 0
        %7013 = vmatpush1.bf16.msra.mxu0 0
        %7014 = vmatprep.subr.bf16.mxu0 0
        %7015 = vmatpush1.bf16.msra.mxu0 0
        %7016 = vmatprep.subr.bf16.mxu0 0
        %7017 = vmatpush1.bf16.msra.mxu0 0
        %7018 = vmatprep.subr.bf16.mxu0 0
        %7019 = vmatpush1.bf16.msra.mxu0 0
        %7020 = vmatprep.subr.bf16.mxu0 0
        %7021 = vmatpush1.bf16.msra.mxu0 0
        %7022 = vmatprep.subr.bf16.mxu0 0
        %7023 = vmatpush1.bf16.msra.mxu0 0
        %7024 = vmatprep.subr.bf16.mxu0 0
        %7025 = vmatpush1.bf16.msra.mxu0 0
        %7026 = vmatprep.mubr.bf16.mxu0 0
        %7027 = vmatmul.mubr.bf16.gmra.mrb[0].mxu0 %v6951
        %v7028 = vpop.f32.mrb[0].mxu0
        %v7029 = vadd.f32 0.0, %v7028
        %v7030 = vpop.f32.mrb[0].mxu0
        %v7031 = vpop.f32.mrb[0].mxu0
        %v7032 = vpop.f32.mrb[0].mxu0
        %7033 = vdwg.mxu0
        %v7034 = vadd.f32 %v6946, %v6988
        %v7035 = vadd.f32 %v6947, %v6990
        %v7036 = vadd.f32 %v6948, %v7029
        %v7037 = vld [vmem:[%s4437] sm:$0xf]
        %v7039 = vsel %vm577, %v7037, 0
        %7041 = vmatprep.subr.bf16.mxu0 %v4880
        %7042 = vmatpush1.bf16.msra.mxu0 %v4877
        %7043 = vmatprep.subr.bf16.mxu0 0
        %7044 = vmatpush1.bf16.msra.mxu0 0
        %7045 = vmatprep.subr.bf16.mxu0 0
        %7046 = vmatpush1.bf16.msra.mxu0 0
        %7047 = vmatprep.subr.bf16.mxu0 0
        %7048 = vmatpush1.bf16.msra.mxu0 0
        %7049 = vmatprep.subr.bf16.mxu0 0
        %7050 = vmatpush1.bf16.msra.mxu0 0
        %7051 = vmatprep.subr.bf16.mxu0 0
        %7052 = vmatpush1.bf16.msra.mxu0 0
        %7053 = vmatprep.subr.bf16.mxu0 0
        %7054 = vmatpush1.bf16.msra.mxu0 0
        %7055 = vmatprep.subr.bf16.mxu0 0
        %7056 = vmatpush1.bf16.msra.mxu0 0
        %7057 = vmatprep.subr.bf16.mxu0 0
        %7058 = vmatpush1.bf16.msra.mxu0 0
        %7059 = vmatprep.subr.bf16.mxu0 0
        %7060 = vmatpush1.bf16.msra.mxu0 0
        %7061 = vmatprep.subr.bf16.mxu0 0
        %7062 = vmatpush1.bf16.msra.mxu0 0
        %7063 = vmatprep.subr.bf16.mxu0 0
        %7064 = vmatpush1.bf16.msra.mxu0 0
        %7065 = vmatprep.subr.bf16.mxu0 0
        %7066 = vmatpush1.bf16.msra.mxu0 0
        %7067 = vmatprep.subr.bf16.mxu0 0
        %7068 = vmatpush1.bf16.msra.mxu0 0
        %7069 = vmatprep.subr.bf16.mxu0 0
        %7070 = vmatpush1.bf16.msra.mxu0 0
        %7071 = vmatprep.subr.bf16.mxu0 0
        %7072 = vmatpush1.bf16.msra.mxu0 0
        %7073 = vmatprep.mubr.bf16.mxu0 0
        %7074 = vmatmul.mubr.bf16.gmra.mrb[0].mxu0 %v7039
        %v7075 = vpop.f32.mrb[0].mxu0
        %v7076 = vadd.f32 0.0, %v7075
        %v7077 = vpop.f32.mrb[0].mxu0
        %v7078 = vadd.f32 0.0, %v7077
        %v7079 = vpop.f32.mrb[0].mxu0
        %v7080 = vpop.f32.mrb[0].mxu0
        %7081 = vdwg.mxu0
        %7082 = vmatprep.subr.bf16.mxu0 0
        %7083 = vmatpush1.bf16.msra.mxu0 %v4883
        %7084 = vmatprep.subr.bf16.mxu0 0
        %7085 = vmatpush1.bf16.msra.mxu0 0
        %7086 = vmatprep.subr.bf16.mxu0 0
        %7087 = vmatpush1.bf16.msra.mxu0 0
        %7088 = vmatprep.subr.bf16.mxu0 0
        %7089 = vmatpush1.bf16.msra.mxu0 0
        %7090 = vmatprep.subr.bf16.mxu0 0
        %7091 = vmatpush1.bf16.msra.mxu0 0
        %7092 = vmatprep.subr.bf16.mxu0 0
        %7093 = vmatpush1.bf16.msra.mxu0 0
        %7094 = vmatprep.subr.bf16.mxu0 0
        %7095 = vmatpush1.bf16.msra.mxu0 0
        %7096 = vmatprep.subr.bf16.mxu0 0
        %7097 = vmatpush1.bf16.msra.mxu0 0
        %7098 = vmatprep.subr.bf16.mxu0 0
        %7099 = vmatpush1.bf16.msra.mxu0 0
        %7100 = vmatprep.subr.bf16.mxu0 0
        %7101 = vmatpush1.bf16.msra.mxu0 0
        %7102 = vmatprep.subr.bf16.mxu0 0
        %7103 = vmatpush1.bf16.msra.mxu0 0
        %7104 = vmatprep.subr.bf16.mxu0 0
        %7105 = vmatpush1.bf16.msra.mxu0 0
        %7106 = vmatprep.subr.bf16.mxu0 0
        %7107 = vmatpush1.bf16.msra.mxu0 0
        %7108 = vmatprep.subr.bf16.mxu0 0
        %7109 = vmatpush1.bf16.msra.mxu0 0
        %7110 = vmatprep.subr.bf16.mxu0 0
        %7111 = vmatpush1.bf16.msra.mxu0 0
        %7112 = vmatprep.subr.bf16.mxu0 0
        %7113 = vmatpush1.bf16.msra.mxu0 0
        %7114 = vmatprep.mubr.bf16.mxu0 0
        %7115 = vmatmul.mubr.bf16.gmra.mrb[0].mxu0 %v7039
        %v7116 = vpop.f32.mrb[0].mxu0
        %v7117 = vadd.f32 0.0, %v7116
        %v7118 = vpop.f32.mrb[0].mxu0
        %v7119 = vpop.f32.mrb[0].mxu0
        %v7120 = vpop.f32.mrb[0].mxu0
        %7121 = vdwg.mxu0
        %v7122 = vadd.f32 %v7034, %v7076
        %v7123 = vadd.f32 %v7035, %v7078
        %v7124 = vadd.f32 %v7036, %v7117
        %v7125 = vld [vmem:[%s4545] sm:$0xf]
        %v7127 = vsel %vm577, %v7125, 0
        %7129 = vmatprep.subr.bf16.mxu0 %v5733
        %7130 = vmatpush1.bf16.msra.mxu0 %v5730
        %7131 = vmatprep.subr.bf16.mxu0 0
        %7132 = vmatpush1.bf16.msra.mxu0 0
        %7133 = vmatprep.subr.bf16.mxu0 0
        %7134 = vmatpush1.bf16.msra.mxu0 0
        %7135 = vmatprep.subr.bf16.mxu0 0
        %7136 = vmatpush1.bf16.msra.mxu0 0
        %7137 = vmatprep.subr.bf16.mxu0 0
        %7138 = vmatpush1.bf16.msra.mxu0 0
        %7139 = vmatprep.subr.bf16.mxu0 0
        %7140 = vmatpush1.bf16.msra.mxu0 0
        %7141 = vmatprep.subr.bf16.mxu0 0
        %7142 = vmatpush1.bf16.msra.mxu0 0
        %7143 = vmatprep.subr.bf16.mxu0 0
        %7144 = vmatpush1.bf16.msra.mxu0 0
        %7145 = vmatprep.subr.bf16.mxu0 0
        %7146 = vmatpush1.bf16.msra.mxu0 0
        %7147 = vmatprep.subr.bf16.mxu0 0
        %7148 = vmatpush1.bf16.msra.mxu0 0
        %7149 = vmatprep.subr.bf16.mxu0 0
        %7150 = vmatpush1.bf16.msra.mxu0 0
        %7151 = vmatprep.subr.bf16.mxu0 0
        %7152 = vmatpush1.bf16.msra.mxu0 0
        %7153 = vmatprep.subr.bf16.mxu0 0
        %7154 = vmatpush1.bf16.msra.mxu0 0
        %7155 = vmatprep.subr.bf16.mxu0 0
        %7156 = vmatpush1.bf16.msra.mxu0 0
        %7157 = vmatprep.subr.bf16.mxu0 0
        %7158 = vmatpush1.bf16.msra.mxu0 0
        %7159 = vmatprep.subr.bf16.mxu0 0
        %7160 = vmatpush1.bf16.msra.mxu0 0
        %7161 = vmatprep.mubr.bf16.mxu0 0
        %7162 = vmatmul.mubr.bf16.gmra.mrb[0].mxu0 %v7127
        %v7163 = vpop.f32.mrb[0].mxu0
        %v7164 = vadd.f32 0.0, %v7163
        %v7165 = vpop.f32.mrb[0].mxu0
        %v7166 = vadd.f32 0.0, %v7165
        %v7167 = vpop.f32.mrb[0].mxu0
        %v7168 = vpop.f32.mrb[0].mxu0
        %7169 = vdwg.mxu0
        %7170 = vmatprep.subr.bf16.mxu0 0
        %7171 = vmatpush1.bf16.msra.mxu0 %v5736
        %7172 = vmatprep.subr.bf16.mxu0 0
        %7173 = vmatpush1.bf16.msra.mxu0 0
        %7174 = vmatprep.subr.bf16.mxu0 0
        %7175 = vmatpush1.bf16.msra.mxu0 0
        %7176 = vmatprep.subr.bf16.mxu0 0
        %7177 = vmatpush1.bf16.msra.mxu0 0
        %7178 = vmatprep.subr.bf16.mxu0 0
        %7179 = vmatpush1.bf16.msra.mxu0 0
        %7180 = vmatprep.subr.bf16.mxu0 0
        %7181 = vmatpush1.bf16.msra.mxu0 0
        %7182 = vmatprep.subr.bf16.mxu0 0
        %7183 = vmatpush1.bf16.msra.mxu0 0
        %7184 = vmatprep.subr.bf16.mxu0 0
        %7185 = vmatpush1.bf16.msra.mxu0 0
        %7186 = vmatprep.subr.bf16.mxu0 0
        %7187 = vmatpush1.bf16.msra.mxu0 0
        %7188 = vmatprep.subr.bf16.mxu0 0
        %7189 = vmatpush1.bf16.msra.mxu0 0
        %7190 = vmatprep.subr.bf16.mxu0 0
        %7191 = vmatpush1.bf16.msra.mxu0 0
        %7192 = vmatprep.subr.bf16.mxu0 0
        %7193 = vmatpush1.bf16.msra.mxu0 0
        %7194 = vmatprep.subr.bf16.mxu0 0
        %7195 = vmatpush1.bf16.msra.mxu0 0
        %7196 = vmatprep.subr.bf16.mxu0 0
        %7197 = vmatpush1.bf16.msra.mxu0 0
        %7198 = vmatprep.subr.bf16.mxu0 0
        %7199 = vmatpush1.bf16.msra.mxu0 0
        %7200 = vmatprep.subr.bf16.mxu0 0
        %7201 = vmatpush1.bf16.msra.mxu0 0
        %7202 = vmatprep.mubr.bf16.mxu0 0
        %7203 = vmatmul.mubr.bf16.gmra.mrb[0].mxu0 %v7127
        %v7204 = vpop.f32.mrb[0].mxu0
        %v7205 = vadd.f32 0.0, %v7204
        %v7206 = vpop.f32.mrb[0].mxu0
        %v7207 = vpop.f32.mrb[0].mxu0
        %v7208 = vpop.f32.mrb[0].mxu0
        %7209 = vdwg.mxu0
        %v7210 = vadd.f32 %v7122, %v7164
        %v7211 = vadd.f32 %v7123, %v7166
        %v7212 = vadd.f32 %v7124, %v7205
        %v7213 = vld [vmem:[%s4651] sm:$0xf]
        %v7215 = vsel %vm577, %v7213, 0
        %7217 = vmatprep.subr.bf16.mxu0 %v6481
        %7218 = vmatpush1.bf16.msra.mxu0 %v6478
        %7219 = vmatprep.subr.bf16.mxu0 0
        %7220 = vmatpush1.bf16.msra.mxu0 0
        %7221 = vmatprep.subr.bf16.mxu0 0
        %7222 = vmatpush1.bf16.msra.mxu0 0
        %7223 = vmatprep.subr.bf16.mxu0 0
        %7224 = vmatpush1.bf16.msra.mxu0 0
        %7225 = vmatprep.subr.bf16.mxu0 0
        %7226 = vmatpush1.bf16.msra.mxu0 0
        %7227 = vmatprep.subr.bf16.mxu0 0
        %7228 = vmatpush1.bf16.msra.mxu0 0
        %7229 = vmatprep.subr.bf16.mxu0 0
        %7230 = vmatpush1.bf16.msra.mxu0 0
        %7231 = vmatprep.subr.bf16.mxu0 0
        %7232 = vmatpush1.bf16.msra.mxu0 0
        %7233 = vmatprep.subr.bf16.mxu0 0
        %7234 = vmatpush1.bf16.msra.mxu0 0
        %7235 = vmatprep.subr.bf16.mxu0 0
        %7236 = vmatpush1.bf16.msra.mxu0 0
        %7237 = vmatprep.subr.bf16.mxu0 0
        %7238 = vmatpush1.bf16.msra.mxu0 0
        %7239 = vmatprep.subr.bf16.mxu0 0
        %7240 = vmatpush1.bf16.msra.mxu0 0
        %7241 = vmatprep.subr.bf16.mxu0 0
        %7242 = vmatpush1.bf16.msra.mxu0 0
        %7243 = vmatprep.subr.bf16.mxu0 0
        %7244 = vmatpush1.bf16.msra.mxu0 0
        %7245 = vmatprep.subr.bf16.mxu0 0
        %7246 = vmatpush1.bf16.msra.mxu0 0
        %7247 = vmatprep.subr.bf16.mxu0 0
        %7248 = vmatpush1.bf16.msra.mxu0 0
        %7249 = vmatprep.mubr.bf16.mxu0 0
        %7250 = vmatmul.mubr.bf16.gmra.mrb[0].mxu0 %v7215
        %v7251 = vpop.f32.mrb[0].mxu0
        %v7252 = vadd.f32 0.0, %v7251
        %v7253 = vpop.f32.mrb[0].mxu0
        %v7254 = vadd.f32 0.0, %v7253
        %v7255 = vpop.f32.mrb[0].mxu0
        %v7256 = vpop.f32.mrb[0].mxu0
        %7257 = vdwg.mxu0
        %7258 = vmatprep.subr.bf16.mxu0 0
        %7259 = vmatpush1.bf16.msra.mxu0 %v6484
        %7260 = vmatprep.subr.bf16.mxu0 0
        %7261 = vmatpush1.bf16.msra.mxu0 0
        %7262 = vmatprep.subr.bf16.mxu0 0
        %7263 = vmatpush1.bf16.msra.mxu0 0
        %7264 = vmatprep.subr.bf16.mxu0 0
        %7265 = vmatpush1.bf16.msra.mxu0 0
        %7266 = vmatprep.subr.bf16.mxu0 0
        %7267 = vmatpush1.bf16.msra.mxu0 0
        %7268 = vmatprep.subr.bf16.mxu0 0
        %7269 = vmatpush1.bf16.msra.mxu0 0
        %7270 = vmatprep.subr.bf16.mxu0 0
        %7271 = vmatpush1.bf16.msra.mxu0 0
        %7272 = vmatprep.subr.bf16.mxu0 0
        %7273 = vmatpush1.bf16.msra.mxu0 0
        %7274 = vmatprep.subr.bf16.mxu0 0
        %7275 = vmatpush1.bf16.msra.mxu0 0
        %7276 = vmatprep.subr.bf16.mxu0 0
        %7277 = vmatpush1.bf16.msra.mxu0 0
        %7278 = vmatprep.subr.bf16.mxu0 0
        %7279 = vmatpush1.bf16.msra.mxu0 0
        %7280 = vmatprep.subr.bf16.mxu0 0
        %7281 = vmatpush1.bf16.msra.mxu0 0
        %7282 = vmatprep.subr.bf16.mxu0 0
        %7283 = vmatpush1.bf16.msra.mxu0 0
        %7284 = vmatprep.subr.bf16.mxu0 0
        %7285 = vmatpush1.bf16.msra.mxu0 0
        %7286 = vmatprep.subr.bf16.mxu0 0
        %7287 = vmatpush1.bf16.msra.mxu0 0
        %7288 = vmatprep.subr.bf16.mxu0 0
        %7289 = vmatpush1.bf16.msra.mxu0 0
        %7290 = vmatprep.mubr.bf16.mxu0 0
        %7291 = vmatmul.mubr.bf16.gmra.mrb[0].mxu0 %v7215
        %v7292 = vpop.f32.mrb[0].mxu0
        %v7293 = vadd.f32 0.0, %v7292
        %v7294 = vpop.f32.mrb[0].mxu0
        %v7295 = vpop.f32.mrb[0].mxu0
        %v7296 = vpop.f32.mrb[0].mxu0
        %7297 = vdwg.mxu0
        %v7298 = vadd.f32 %v7210, %v7252
        %v7299 = vadd.f32 %v7211, %v7254
        %v7300 = vadd.f32 %v7212, %v7293
        %v7301 = vld [vmem:[%s4757] sm:$0xf]
        %v7303 = vsel %vm577, %v7301, 0
        %7305 = vmatprep.subr.bf16.mxu0 %v6586
        %7306 = vmatpush1.bf16.msra.mxu0 %v6583
        %7307 = vmatprep.subr.bf16.mxu0 0
        %7308 = vmatpush1.bf16.msra.mxu0 0
        %7309 = vmatprep.subr.bf16.mxu0 0
        %7310 = vmatpush1.bf16.msra.mxu0 0
        %7311 = vmatprep.subr.bf16.mxu0 0
        %7312 = vmatpush1.bf16.msra.mxu0 0
        %7313 = vmatprep.subr.bf16.mxu0 0
        %7314 = vmatpush1.bf16.msra.mxu0 0
        %7315 = vmatprep.subr.bf16.mxu0 0
        %7316 = vmatpush1.bf16.msra.mxu0 0
        %7317 = vmatprep.subr.bf16.mxu0 0
        %7318 = vmatpush1.bf16.msra.mxu0 0
        %7319 = vmatprep.subr.bf16.mxu0 0
        %7320 = vmatpush1.bf16.msra.mxu0 0
        %7321 = vmatprep.subr.bf16.mxu0 0
        %7322 = vmatpush1.bf16.msra.mxu0 0
        %7323 = vmatprep.subr.bf16.mxu0 0
        %7324 = vmatpush1.bf16.msra.mxu0 0
        %7325 = vmatprep.subr.bf16.mxu0 0
        %7326 = vmatpush1.bf16.msra.mxu0 0
        %7327 = vmatprep.subr.bf16.mxu0 0
        %7328 = vmatpush1.bf16.msra.mxu0 0
        %7329 = vmatprep.subr.bf16.mxu0 0
        %7330 = vmatpush1.bf16.msra.mxu0 0
        %7331 = vmatprep.subr.bf16.mxu0 0
        %7332 = vmatpush1.bf16.msra.mxu0 0
        %7333 = vmatprep.subr.bf16.mxu0 0
        %7334 = vmatpush1.bf16.msra.mxu0 0
        %7335 = vmatprep.subr.bf16.mxu0 0
        %7336 = vmatpush1.bf16.msra.mxu0 0
        %7337 = vmatprep.mubr.bf16.mxu0 0
        %7338 = vmatmul.mubr.bf16.gmra.mrb[0].mxu0 %v7303
        %v7339 = vpop.f32.mrb[0].mxu0
        %v7340 = vadd.f32 0.0, %v7339
        %v7341 = vpop.f32.mrb[0].mxu0
        %v7342 = vadd.f32 0.0, %v7341
        %v7343 = vpop.f32.mrb[0].mxu0
        %v7344 = vpop.f32.mrb[0].mxu0
        %7345 = vdwg.mxu0
        %7346 = vmatprep.subr.bf16.mxu0 0
        %7347 = vmatpush1.bf16.msra.mxu0 %v6589
        %7348 = vmatprep.subr.bf16.mxu0 0
        %7349 = vmatpush1.bf16.msra.mxu0 0
        %7350 = vmatprep.subr.bf16.mxu0 0
        %7351 = vmatpush1.bf16.msra.mxu0 0
        %7352 = vmatprep.subr.bf16.mxu0 0
        %7353 = vmatpush1.bf16.msra.mxu0 0
        %7354 = vmatprep.subr.bf16.mxu0 0
        %7355 = vmatpush1.bf16.msra.mxu0 0
        %7356 = vmatprep.subr.bf16.mxu0 0
        %7357 = vmatpush1.bf16.msra.mxu0 0
        %7358 = vmatprep.subr.bf16.mxu0 0
        %7359 = vmatpush1.bf16.msra.mxu0 0
        %7360 = vmatprep.subr.bf16.mxu0 0
        %7361 = vmatpush1.bf16.msra.mxu0 0
        %7362 = vmatprep.subr.bf16.mxu0 0
        %7363 = vmatpush1.bf16.msra.mxu0 0
        %7364 = vmatprep.subr.bf16.mxu0 0
        %7365 = vmatpush1.bf16.msra.mxu0 0
        %7366 = vmatprep.subr.bf16.mxu0 0
        %7367 = vmatpush1.bf16.msra.mxu0 0
        %7368 = vmatprep.subr.bf16.mxu0 0
        %7369 = vmatpush1.bf16.msra.mxu0 0
        %7370 = vmatprep.subr.bf16.mxu0 0
        %7371 = vmatpush1.bf16.msra.mxu0 0
        %7372 = vmatprep.subr.bf16.mxu0 0
        %7373 = vmatpush1.bf16.msra.mxu0 0
        %7374 = vmatprep.subr.bf16.mxu0 0
        %7375 = vmatpush1.bf16.msra.mxu0 0
        %7376 = vmatprep.subr.bf16.mxu0 0
        %7377 = vmatpush1.bf16.msra.mxu0 0
        %7378 = vmatprep.mubr.bf16.mxu0 0
        %7379 = vmatmul.mubr.bf16.gmra.mrb[0].mxu0 %v7303
        %v7380 = vpop.f32.mrb[0].mxu0
        %v7381 = vadd.f32 0.0, %v7380
        %v7382 = vpop.f32.mrb[0].mxu0
        %v7383 = vpop.f32.mrb[0].mxu0
        %v7384 = vpop.f32.mrb[0].mxu0
        %7385 = vdwg.mxu0
        %v7386 = vadd.f32 %v7298, %v7340
        %v7387 = vadd.f32 %v7299, %v7342
        %v7388 = vadd.f32 %v7300, %v7381
        %v7389 = vld [vmem:[%s4863] sm:$0xf]
        %7390 = vrot.lane.b32.xlu0 %v1565, 90
        %v7391 = vpop.permute.xlu0 %7390
        %7392 = vrot.lane.b32.xlu0 %v1561, 90
        %v7393 = vpop.permute.xlu0 %7392
        %7394 = vrot.lane.b32.xlu0 %v1568, 90
        %v7395 = vpop.permute.xlu0 %7394
        %v7396 = vsel %vm3901, %v7391, %v7393
        %v7397 = vsel %vm3901, %v7393, %v7395
        %v7399 = vsel %vm577, %v7389, 0
        %v7402 = vsel %vm581, %v7396, 0
        %v7405 = vsel %vm581, %v7397, 0
        %v7408 = vsel %vm581, %v7395, 0
        %7410 = vmatprep.subr.bf16.mxu0 %v7405
        %7411 = vmatpush1.bf16.msra.mxu0 %v7402
        %7412 = vmatprep.subr.bf16.mxu0 0
        %7413 = vmatpush1.bf16.msra.mxu0 0
        %7414 = vmatprep.subr.bf16.mxu0 0
        %7415 = vmatpush1.bf16.msra.mxu0 0
        %7416 = vmatprep.subr.bf16.mxu0 0
        %7417 = vmatpush1.bf16.msra.mxu0 0
        %7418 = vmatprep.subr.bf16.mxu0 0
        %7419 = vmatpush1.bf16.msra.mxu0 0
        %7420 = vmatprep.subr.bf16.mxu0 0
        %7421 = vmatpush1.bf16.msra.mxu0 0
        %7422 = vmatprep.subr.bf16.mxu0 0
        %7423 = vmatpush1.bf16.msra.mxu0 0
        %7424 = vmatprep.subr.bf16.mxu0 0
        %7425 = vmatpush1.bf16.msra.mxu0 0
        %7426 = vmatprep.subr.bf16.mxu0 0
        %7427 = vmatpush1.bf16.msra.mxu0 0
        %7428 = vmatprep.subr.bf16.mxu0 0
        %7429 = vmatpush1.bf16.msra.mxu0 0
        %7430 = vmatprep.subr.bf16.mxu0 0
        %7431 = vmatpush1.bf16.msra.mxu0 0
        %7432 = vmatprep.subr.bf16.mxu0 0
        %7433 = vmatpush1.bf16.msra.mxu0 0
        %7434 = vmatprep.subr.bf16.mxu0 0
        %7435 = vmatpush1.bf16.msra.mxu0 0
        %7436 = vmatprep.subr.bf16.mxu0 0
        %7437 = vmatpush1.bf16.msra.mxu0 0
        %7438 = vmatprep.subr.bf16.mxu0 0
        %7439 = vmatpush1.bf16.msra.mxu0 0
        %7440 = vmatprep.subr.bf16.mxu0 0
        %7441 = vmatpush1.bf16.msra.mxu0 0
        %7442 = vmatprep.mubr.bf16.mxu0 0
        %7443 = vmatmul.mubr.bf16.gmra.mrb[0].mxu0 %v7399
        %v7444 = vpop.f32.mrb[0].mxu0
        %v7445 = vadd.f32 0.0, %v7444
        %v7446 = vpop.f32.mrb[0].mxu0
        %v7447 = vadd.f32 0.0, %v7446
        %v7448 = vpop.f32.mrb[0].mxu0
        %v7449 = vpop.f32.mrb[0].mxu0
        %7450 = vdwg.mxu0
        %7451 = vmatprep.subr.bf16.mxu0 0
        %7452 = vmatpush1.bf16.msra.mxu0 %v7408
        %7453 = vmatprep.subr.bf16.mxu0 0
        %7454 = vmatpush1.bf16.msra.mxu0 0
        %7455 = vmatprep.subr.bf16.mxu0 0
        %7456 = vmatpush1.bf16.msra.mxu0 0
        %7457 = vmatprep.subr.bf16.mxu0 0
        %7458 = vmatpush1.bf16.msra.mxu0 0
        %7459 = vmatprep.subr.bf16.mxu0 0
        %7460 = vmatpush1.bf16.msra.mxu0 0
        %7461 = vmatprep.subr.bf16.mxu0 0
        %7462 = vmatpush1.bf16.msra.mxu0 0
        %7463 = vmatprep.subr.bf16.mxu0 0
        %7464 = vmatpush1.bf16.msra.mxu0 0
        %7465 = vmatprep.subr.bf16.mxu0 0
        %7466 = vmatpush1.bf16.msra.mxu0 0
        %7467 = vmatprep.subr.bf16.mxu0 0
        %7468 = vmatpush1.bf16.msra.mxu0 0
        %7469 = vmatprep.subr.bf16.mxu0 0
        %7470 = vmatpush1.bf16.msra.mxu0 0
        %7471 = vmatprep.subr.bf16.mxu0 0
        %7472 = vmatpush1.bf16.msra.mxu0 0
        %7473 = vmatprep.subr.bf16.mxu0 0
        %7474 = vmatpush1.bf16.msra.mxu0 0
        %7475 = vmatprep.subr.bf16.mxu0 0
        %7476 = vmatpush1.bf16.msra.mxu0 0
        %7477 = vmatprep.subr.bf16.mxu0 0
        %7478 = vmatpush1.bf16.msra.mxu0 0
        %7479 = vmatprep.subr.bf16.mxu0 0
        %7480 = vmatpush1.bf16.msra.mxu0 0
        %7481 = vmatprep.subr.bf16.mxu0 0
        %7482 = vmatpush1.bf16.msra.mxu0 0
        %7483 = vmatprep.mubr.bf16.mxu0 0
        %7484 = vmatmul.mubr.bf16.gmra.mrb[0].mxu0 %v7399
        %v7485 = vpop.f32.mrb[0].mxu0
        %v7486 = vadd.f32 0.0, %v7485
        %v7487 = vpop.f32.mrb[0].mxu0
        %v7488 = vpop.f32.mrb[0].mxu0
        %v7489 = vpop.f32.mrb[0].mxu0
        %7490 = vdwg.mxu0
        %v7491 = vadd.f32 %v7386, %v7445
        %v7492 = vadd.f32 %v7387, %v7447
        %v7493 = vadd.f32 %v7388, %v7486
        %v7494 = vld [vmem:[#allocation10] sm:$0xff]
        %7496 = vset.pattern.permute.xlu0 0
        %7497 = vperm.xlu0 %7496, %v7494
        %v7498 = vpop.permute.xlu0 %7497
        %v7500 = vadd.f32 %v7491, %v7498
        %v7501 = vadd.f32 %v7492, %v7498
        %v7502 = vadd.f32 %v7493, %v7498
        %v7503 = vmax.f32 %v7500, 0.0
        %v7504 = vmax.f32 %v7501, 0.0
        %v7505 = vmax.f32 %v7502, 0.0
        %s7506 = scalar_lea.vmem %s373, 72 [#allocation14]
        %7507 = vst [vmem:[%s7506] sm:$0xff] %v7503
        %7508 = vst [vmem:[%s7506 + $0x8] sm:$0xff] %v7504
        %7509 = vst.msk [vmem:[%s7506 + $0x10] sm:$0xff] %vm4983, %v7505
        %s7510 = sand.u32 %s187, 1
        %s7511 = scalar_lea.sflag [#allocation4], %s7510
        %s7512 = sand.u32 %s187, 1
        %s7513 = smul.addr %s7512, 96
        %s7514 = scalar_lea.vmem [#allocation14], %s7513
        // Predicated region
        $region77: #{decoder_module_forward.1} parent=47 // pred_check
          %p7515 = pneg %p197
        $region78: #{decoder_module_forward.1} parent=47 // pred_check_branch
          %7517 = sbr.rel (%p7515) target = $region80
        $region79: #{decoder_module_forward.1} parent=47 // pred_region
          %s7519 = ssub.s32 1536, 1536
          %7520 = vsyncadd %s7511, %s7519
          %s7521 = smul.addr %s27, 12
          %s7522 = smul.addr %s7521, 128
          %s7523 = scalar_lea.hbm %s7, %s7522
          %s7524 = sshll.u32 %s7514, 4
          %s7525 = int_to_ptr.vmem [resolvable:$true] %s7524
          %7530 = dma.vmem_to_hbm [thread:$0]  %s7525, 1536, %s7523, %s7511, 384, 384, 24
        $region80: #{decoder_module_forward.1} parent=47 // pred_fallthru
          _
      $region48: #{decoder_module_forward.1} parent=5 // pred_fallthru
        _
      %p7531 = scmp.le.s32.totalorder 2, %s22
      // Predicated region
      $region81: #{decoder_module_forward.1} parent=5 // pred_check
        %p7532 = pneg %p7531
      $region82: #{decoder_module_forward.1} parent=5 // pred_check_branch
        %7534 = sbr.rel (%p7532) target = $region84
      $region83: #{decoder_module_forward.1} parent=5 // pred_region
        %s7535 = ssub.s32 %s22, 2
        // Predicated region
        $region85: #{decoder_module_forward.1} parent=83 // pred_check
          %p7536 = pneg %p203
        $region86: #{decoder_module_forward.1} parent=83 // pred_check_branch
          %7538 = sbr.rel (%p7536) target = $region88
        $region87: #{decoder_module_forward.1} parent=83 // pred_region
          %s7539 = sand.u32 %s188, 1
          %s7540 = scalar_lea.sflag [#allocation4], %s7539
          %s7541 = sand.u32 %s188, 1
          %s7542 = smul.addr %s7541, 96
          %s7543 = scalar_lea.vmem [#allocation14], %s7542
          %7544 = dma.done %s7540, 1536
        $region88: #{decoder_module_forward.1} parent=83 // pred_fallthru
          _
      $region84: #{decoder_module_forward.1} parent=5 // pred_fallthru
        _
    $region6: #{decoder_module_forward.1} parent=1 // loop_footer
      %s26 = sadd.s32 1, %s22
    $region7: #{decoder_module_forward.1} parent=1 // loop_footer_branch
      %21 = sbr.rel target = $region3
    $region8: #{decoder_module_forward.1} parent=1 // loop_exit
      _
    %7545 = vsyncpa [#allocation3], 1
    %s7546 = scalar_lea.sflag [#allocation3], 1
    %7547 = vsyncpa %s7546, 1
    %7548 = vsyncpa [#allocation6], 1
    %7549 = vsyncpa [#allocation9], 1
    %7550 = vsyncpa [#allocation12], 1
    %7551 = vsyncpa [#allocation4], 1
    %s7552 = scalar_lea.sflag [#allocation4], 1
    %7553 = vsyncpa %s7552, 1

</llo_original>
